<compile_context>
chip_gen: v7x
topology: tpu7x:2x2x1
jax: 0.10.0
libtpu: 0.0.40
codegen_flags: <defaults>
</compile_context>

<pallas_src>
import functools

import jax
import jax.numpy as jnp
from jax.experimental import pallas as pl
from jax.experimental.pallas import tpu as pltpu


# ---------------------------------------------------------------------------
# Kernel 1: fused  bf16 matmul (MXU, f32 accumulate)  ->  f32 scale/shift
#           ->  optional ReLU.
# Used for: 3x3 conv (im2col, 9 taps folded into K = 9*Cin), 2x2 stride-2
# conv-transpose (K = Cin, 4*Cout packed outputs), 1x1 output conv.
# ---------------------------------------------------------------------------
def _mm_scale_act_kernel(lhs_ref, rhs_ref, scale_ref, shift_ref, o_ref, *, relu):
    acc = jnp.dot(lhs_ref[0], rhs_ref[...], preferred_element_type=jnp.float32)
    y = acc * scale_ref[...] + shift_ref[...]
    if relu:
        y = jnp.maximum(y, 0.0)
    o_ref[0] = y.astype(o_ref.dtype)


def _pick_row_tile(m, cap=512):
    """Largest row tile <= cap that divides m (multiple of 8 when tiling)."""
    if m <= cap:
        return m
    t = cap - (cap % 8)
    while t >= 8:
        if m % t == 0:
            return t
        t -= 8
    return m


def mm_scale_act(lhs, rhs, scale, shift, *, relu):
    """lhs: (N, M, K) bf16; rhs: (K, Cout) bf16; scale/shift: (1, Cout) f32.

    Returns f32 (N, M, Cout) = act(lhs @ rhs * scale + shift).
    """
    N, M, K = lhs.shape
    Cout = rhs.shape[1]
    TM = _pick_row_tile(M)
    kernel = functools.partial(_mm_scale_act_kernel, relu=relu)
    return pl.pallas_call(
        kernel,
        out_shape=jax.ShapeDtypeStruct((N, M, Cout), jnp.float32),
        grid=(N, M // TM),
        in_specs=[
            pl.BlockSpec((1, TM, K), lambda n, m: (n, m, 0)),
            pl.BlockSpec((K, Cout), lambda n, m: (0, 0)),
            pl.BlockSpec((1, Cout), lambda n, m: (0, 0)),
            pl.BlockSpec((1, Cout), lambda n, m: (0, 0)),
        ],
        out_specs=pl.BlockSpec((1, TM, Cout), lambda n, m: (n, m, 0)),
        compiler_params=pltpu.CompilerParams(
            dimension_semantics=("parallel", "parallel"),
            vmem_limit_bytes=32 * 1024 * 1024,
        ),
    )(lhs, rhs, scale, shift)


# ---------------------------------------------------------------------------
# Kernel 2: single-pass 2x2 max pooling (stride 2).
# The wrapper reshape (N,H,W,C) -> (N,Hp,2,Wp,2*C) is a free row-major
# reshape; the four-way max runs in the kernel (one input DMA per image).
# ---------------------------------------------------------------------------
def _maxpool_kernel(x_ref, o_ref):
    x = x_ref[0]                         # (Hp, 2, Wp, 2*C)
    v = jnp.maximum(x[:, 0], x[:, 1])    # vertical 2-max -> (Hp, Wp, 2*C)
    C = o_ref.shape[-1]
    o_ref[0] = jnp.maximum(v[..., :C], v[..., C:])   # horizontal 2-max


def maxpool2x2(x_nhwc):
    N, H, W, C = x_nhwc.shape
    Hp, Wp = H // 2, W // 2
    xr = x_nhwc.reshape(N, Hp, 2, Wp, 2 * C)     # free reshape, no HBM copy
    return pl.pallas_call(
        _maxpool_kernel,
        out_shape=jax.ShapeDtypeStruct((N, Hp, Wp, C), x_nhwc.dtype),
        grid=(N,),
        in_specs=[pl.BlockSpec((1, Hp, 2, Wp, 2 * C),
                               lambda n: (n, 0, 0, 0, 0))],
        out_specs=pl.BlockSpec((1, Hp, Wp, C), lambda n: (n, 0, 0, 0)),
        compiler_params=pltpu.CompilerParams(dimension_semantics=("parallel",)),
    )(xr)


# ---------------------------------------------------------------------------
# Layer wrappers (layout glue outside the kernels).
# ---------------------------------------------------------------------------
def conv3x3_bn_relu(x_nhwc, params, eps=1e-5):
    w, b, gamma, beta, mean, var = params          # w: (3, 3, Cin, Cout)
    N, H, W, Cin = x_nhwc.shape
    Cout = w.shape[-1]
    xp = jnp.pad(x_nhwc, ((0, 0), (1, 1), (1, 1), (0, 0)))
    # im2col: fold the 9 taps into K = 9*Cin (single MXU contraction).
    lhs = jnp.concatenate(
        [xp[:, dy:dy + H, dx:dx + W, :] for dy in range(3) for dx in range(3)],
        axis=-1,
    ).reshape(N, H * W, 9 * Cin).astype(jnp.bfloat16)
    rhs = w.reshape(9 * Cin, Cout).astype(jnp.bfloat16)
    # Fold conv bias + eval-mode BatchNorm into a single scale/shift.
    scale = (gamma / jnp.sqrt(var + eps)).astype(jnp.float32)
    shift = ((b - mean) * scale + beta).astype(jnp.float32)
    out = mm_scale_act(lhs, rhs, scale.reshape(1, Cout), shift.reshape(1, Cout),
                       relu=True)
    return out.reshape(N, H, W, Cout)


def double_conv(x, params):
    # Note: chaining both convs inside one pallas_call (VMEM-resident
    # intermediate) is a further optimization left out to keep VMEM bounded.
    x = conv3x3_bn_relu(x, params["conv1"])
    x = conv3x3_bn_relu(x, params["conv2"])
    return x


def conv_transpose2x2(x_nhwc, w, b):
    """ConvTranspose2d(Cin, Cout, 2, stride=2); w: (Cin, Cout, 2, 2)."""
    N, H, W, Cin = x_nhwc.shape
    Cout = w.shape[1]
    lhs = x_nhwc.reshape(N, H * W, Cin).astype(jnp.bfloat16)
    rhs = jnp.transpose(w, (0, 2, 3, 1)).reshape(Cin, 4 * Cout).astype(jnp.bfloat16)
    scale = jnp.ones((1, 4 * Cout), jnp.float32)
    shift = jnp.tile(b, 4).reshape(1, 4 * Cout).astype(jnp.float32)
    y = mm_scale_act(lhs, rhs, scale, shift, relu=False)        # (N, HW, 4*Cout)
    y = y.reshape(N, H, W, 2, 2, Cout).transpose(0, 1, 3, 2, 4, 5)
    return y.reshape(N, 2 * H, 2 * W, Cout)


def outconv1x1(x_nhwc, w, b):
    """Conv2d(Cin, Cout, 1); w: (Cin, Cout)."""
    N, H, W, Cin = x_nhwc.shape
    Cout = w.shape[1]
    lhs = x_nhwc.reshape(N, H * W, Cin).astype(jnp.bfloat16)
    y = mm_scale_act(lhs, w.astype(jnp.bfloat16),
                     jnp.ones((1, Cout), jnp.float32),
                     b.reshape(1, Cout).astype(jnp.float32), relu=False)
    return y.reshape(N, H, W, Cout)


def down_block(x, params):
    return double_conv(maxpool2x2(x), params)


def up_block(x1, x2, params):
    x1 = conv_transpose2x2(x1, params["up_w"], params["up_b"])
    dh = x2.shape[1] - x1.shape[1]
    dw = x2.shape[2] - x1.shape[2]
    if dh or dw:                                   # parity with torch F.pad
        x1 = jnp.pad(x1, ((0, 0), (dh // 2, dh - dh // 2),
                          (dw // 2, dw - dw // 2), (0, 0)))
    x = jnp.concatenate([x2, x1], axis=-1)         # torch.cat([x2, x1], dim=1)
    return double_conv(x, params["conv"])


def unet_stream(x_nchw, p):
    x = jnp.transpose(x_nchw, (0, 2, 3, 1)).astype(jnp.float32)   # NCHW -> NHWC
    x = double_conv(x, p["inc"])                                  # InConv
    feats = [x]
    for dp in p["downs"]:                                         # Encoder
        feats.append(down_block(feats[-1], dp))
    feats = feats[::-1]
    x1 = feats[0]
    for i, up in enumerate(p["ups"]):                             # Decoder
        x1 = up_block(x1, feats[i + 1], up)
    out = outconv1x1(x1, p["outc_w"], p["outc_b"])                # OutConv
    return jnp.transpose(out, (0, 3, 1, 2))                       # NHWC -> NCHW


@jax.jit
def dual_stream_unet(x_sar, x_optical, params):
    out_sar = unet_stream(x_sar, params["sar"])
    out_opt = unet_stream(x_optical, params["optical"])
    return out_sar, out_opt


# ---------------------------------------------------------------------------
# Deterministic synthetic parameter init (mirrors the torch module topology).
# ---------------------------------------------------------------------------
def _conv_bn_params(key, cin, cout):
    k = jax.random.split(key, 6)
    w = jax.random.normal(k[0], (3, 3, cin, cout), jnp.float32) / jnp.sqrt(9 * cin)
    b = 0.1 * jax.random.normal(k[1], (cout,), jnp.float32)
    gamma = jax.random.uniform(k[2], (cout,), jnp.float32, 0.5, 1.5)
    beta = 0.1 * jax.random.normal(k[3], (cout,), jnp.float32)
    mean = 0.1 * jax.random.normal(k[4], (cout,), jnp.float32)
    var = jax.random.uniform(k[5], (cout,), jnp.float32, 0.5, 1.5)
    return (w, b, gamma, beta, mean, var)


def _double_conv_params(key, cin, cout):
    k1, k2 = jax.random.split(key)
    return {"conv1": _conv_bn_params(k1, cin, cout),
            "conv2": _conv_bn_params(k2, cout, cout)}


def _up_params(key, ch_up, cin_conv, cout_conv):
    k1, k2, k3 = jax.random.split(key, 3)
    up_w = jax.random.normal(k1, (ch_up, ch_up, 2, 2), jnp.float32) / jnp.sqrt(4 * ch_up)
    up_b = 0.1 * jax.random.normal(k2, (ch_up,), jnp.float32)
    return {"up_w": up_w, "up_b": up_b,
            "conv": _double_conv_params(k3, cin_conv, cout_conv)}


def _stream_params(key, in_bands, topology, out_ch):
    n = len(topology)
    up_topo = [topology[0]] + [topology[i + 1] if i != n - 1 else topology[i]
                               for i in range(n)]
    keys = jax.random.split(key, 2 * n + 2)
    p = {"inc": _double_conv_params(keys[0], in_bands, topology[0])}
    downs = []
    for i in range(n):
        cin = topology[i]
        cout = topology[i + 1] if i != n - 1 else topology[i]
        downs.append(_double_conv_params(keys[1 + i], cin, cout))
    p["downs"] = downs
    ups = []
    for j, idx in enumerate(reversed(range(n))):
        ch_up = up_topo[idx]
        x2_idx = idx - 1 if idx != 0 else idx
        ups.append(_up_params(keys[1 + n + j], ch_up, 2 * up_topo[idx],
                              up_topo[x2_idx]))
    p["ups"] = ups
    ko = jax.random.split(keys[-1], 2)
    p["outc_w"] = (jax.random.normal(ko[0], (topology[0], out_ch), jnp.float32)
                   / jnp.sqrt(topology[0]))
    p["outc_b"] = 0.1 * jax.random.normal(ko[1], (out_ch,), jnp.float32)
    return p


# ---------------------------------------------------------------------------
# Pure-JAX reference (same bf16-matmul / f32-epilogue precision).
# ---------------------------------------------------------------------------
def _ref_conv_bn_relu(x, params, eps=1e-5):
    w, b, gamma, beta, mean, var = params
    y = jax.lax.conv_general_dilated(
        x.astype(jnp.bfloat16), w.astype(jnp.bfloat16), (1, 1), "SAME",
        dimension_numbers=("NHWC", "HWIO", "NHWC"),
        preferred_element_type=jnp.float32)
    scale = gamma / jnp.sqrt(var + eps)
    return jnp.maximum((y + b) * scale + (beta - mean * scale), 0.0)


def _ref_double_conv(x, p):
    return _ref_conv_bn_relu(_ref_conv_bn_relu(x, p["conv1"]), p["conv2"])


def _ref_maxpool(x):
    N, H, W, C = x.shape
    return x.reshape(N, H // 2, 2, W // 2, 2, C).max(axis=(2, 4))


def _ref_conv_transpose(x, w, b):
    N, H, W, Cin = x.shape
    Cout = w.shape[1]
    xb = x.astype(jnp.bfloat16).reshape(N * H * W, Cin)
    y = jnp.stack(
        [jnp.dot(xb, w[:, :, dy, dx].astype(jnp.bfloat16),
                 preferred_element_type=jnp.float32)
         for dy in range(2) for dx in range(2)], axis=1)        # (NHW, 4, Cout)
    y = y.reshape(N, H, W, 2, 2, Cout) + b
    return y.transpose(0, 1, 3, 2, 4, 5).reshape(N, 2 * H, 2 * W, Cout)


def _ref_outconv(x, w, b):
    return jnp.dot(x.astype(jnp.bfloat16), w.astype(jnp.bfloat16),
                   preferred_element_type=jnp.float32) + b


def ref_stream(x_nchw, p):
    x = jnp.transpose(x_nchw, (0, 2, 3, 1)).astype(jnp.float32)
    x = _ref_double_conv(x, p["inc"])
    feats = [x]
    for dp in p["downs"]:
        feats.append(_ref_double_conv(_ref_maxpool(feats[-1]), dp))
    feats = feats[::-1]
    x1 = feats[0]
    for i, up in enumerate(p["ups"]):
        x1u = _ref_conv_transpose(x1, up["up_w"], up["up_b"])
        x1 = _ref_double_conv(jnp.concatenate([feats[i + 1], x1u], axis=-1),
                              up["conv"])
    out = _ref_outconv(x1, p["outc_w"], p["outc_b"])
    return jnp.transpose(out, (0, 3, 1, 2))


def ref_dual_stream(x_sar, x_optical, params):
    return ref_stream(x_sar, params["sar"]), ref_stream(x_optical, params["optical"])


if __name__ == "__main__":
    key = jax.random.PRNGKey(0)
    k_sar, k_opt, k_par = jax.random.split(key, 3)

    # Small config: TOPOLOGY=[8,16], 2 SAR bands, 4 optical bands, 1 out channel.
    topology = [8, 16]
    n_sar_bands, n_opt_bands, out_ch = 2, 4, 1
    N, H, W = 2, 16, 16

    x_sar = jax.random.normal(k_sar, (N, n_sar_bands, H, W), jnp.float32)
    x_opt = jax.random.normal(k_opt, (N, n_opt_bands, H, W), jnp.float32)

    kp1, kp2 = jax.random.split(k_par)
    params = {"sar": _stream_params(kp1, n_sar_bands, topology, out_ch),
              "optical": _stream_params(kp2, n_opt_bands, topology, out_ch)}

    out_sar, out_opt = dual_stream_unet(x_sar, x_opt, params)
    out_sar, out_opt = jax.block_until_ready((out_sar, out_opt))

    assert out_sar.shape == (N, out_ch, H, W), out_sar.shape
    assert out_opt.shape == (N, out_ch, H, W), out_opt.shape

    ref_sar, ref_opt = ref_dual_stream(x_sar, x_opt, params)
    err = max(float(jnp.max(jnp.abs(out_sar - ref_sar))),
              float(jnp.max(jnp.abs(out_opt - ref_opt))))
    assert err < 5e-2, f"max abs error too large: {err}"

    print("KERNEL_OK")
</pallas_src>

<mosaic_0001>
module attributes {stable_mosaic.version = 11 : i64} {
  func.func @_mm_scale_act_kernel(%arg0: i32, %arg1: i32, %arg2: memref<1x256x36xbf16, #tpu.memory_space<vmem>>, %arg3: memref<36x8xbf16, #tpu.memory_space<vmem>>, %arg4: memref<1x8xf32, #tpu.memory_space<vmem>>, %arg5: memref<1x8xf32, #tpu.memory_space<vmem>>, %arg6: memref<1x256x8xf32, #tpu.memory_space<vmem>>) attributes {dimension_semantics = [#tpu.dimension_semantics<parallel>, #tpu.dimension_semantics<parallel>], iteration_bounds = array<i64: 2, 1>, scalar_prefetch = 0 : i64, scratch_operands = 0 : i64, tpu.core_type = #tpu.core_type<tc>, window_params = [{transform_indices = @transform_0, window_bounds = array<i64: 1, 256, 36>}, {pipeline_mode = #tpu.pipeline_mode<synchronous>, transform_indices = @transform_1, window_bounds = array<i64: 36, 8>}, {pipeline_mode = #tpu.pipeline_mode<synchronous>, transform_indices = @transform_2, window_bounds = array<i64: 1, 8>}, {pipeline_mode = #tpu.pipeline_mode<synchronous>, transform_indices = @transform_3, window_bounds = array<i64: 1, 8>}, {transform_indices = @transform_4, window_bounds = array<i64: 1, 256, 8>}]} {
    %c0 = arith.constant 0 : index
    %c0_0 = arith.constant 0 : index
    %c0_1 = arith.constant 0 : index
    %0 = vector.load %arg2[%c0, %c0_0, %c0_1] : memref<1x256x36xbf16, #tpu.memory_space<vmem>>, vector<1x256x36xbf16>
    %1 = vector.shape_cast %0 : vector<1x256x36xbf16> to vector<256x36xbf16>
    %c0_2 = arith.constant 0 : index
    %c0_3 = arith.constant 0 : index
    %2 = vector.load %arg3[%c0_2, %c0_3] : memref<36x8xbf16, #tpu.memory_space<vmem>>, vector<36x8xbf16>
    %cst = arith.constant dense<0.000000e+00> : vector<256x8xf32>
    %3 = tpu.matmul %1, %2, %cst {dimension_numbers = #tpu.dot_dimension_numbers<[1], [0], [0], [1], [0, 0, 1, 1], [], []>} : vector<256x36xbf16>, vector<36x8xbf16>, vector<256x8xf32> -> vector<256x8xf32>
    %c0_4 = arith.constant 0 : index
    %c0_5 = arith.constant 0 : index
    %4 = vector.load %arg4[%c0_4, %c0_5] : memref<1x8xf32, #tpu.memory_space<vmem>>, vector<1x8xf32>
    %5 = vector.broadcast %4 : vector<1x8xf32> to vector<256x8xf32>
    %6 = arith.mulf %3, %5 : vector<256x8xf32>
    %c0_6 = arith.constant 0 : index
    %c0_7 = arith.constant 0 : index
    %7 = vector.load %arg5[%c0_6, %c0_7] : memref<1x8xf32, #tpu.memory_space<vmem>>, vector<1x8xf32>
    %8 = vector.broadcast %7 : vector<1x8xf32> to vector<256x8xf32>
    %9 = arith.addf %6, %8 : vector<256x8xf32>
    %cst_8 = arith.constant 0.000000e+00 : f32
    %10 = vector.broadcast %cst_8 : f32 to vector<256x8xf32>
    %11 = arith.maximumf %9, %10 : vector<256x8xf32>
    %c0_9 = arith.constant 0 : index
    %c0_10 = arith.constant 0 : index
    %c0_11 = arith.constant 0 : index
    %12 = vector.load %arg6[%c0_9, %c0_10, %c0_11] : memref<1x256x8xf32, #tpu.memory_space<vmem>>, vector<1x256x8xf32>
    %13 = vector.shape_cast %12 : vector<1x256x8xf32> to vector<256x8xf32>
    %14 = vector.shape_cast %11 : vector<256x8xf32> to vector<1x256x8xf32>
    tpu.vector_store %arg6[%c0_9, %c0_10, %c0_11], %14 {strides = array<i32>} : memref<1x256x8xf32, #tpu.memory_space<vmem>>, vector<1x256x8xf32>,
    return
  }
  func.func @transform_0(%arg0: i32, %arg1: i32) -> (i32, i32, i32) {
    %c0_i32 = arith.constant 0 : i32
    %c0_i32_0 = arith.constant 0 : i32
    return %arg0, %arg1, %c0_i32 : i32, i32, i32
  }
  func.func @transform_1(%arg0: i32, %arg1: i32) -> (i32, i32) {
    %c0_i32 = arith.constant 0 : i32
    %c0_i32_0 = arith.constant 0 : i32
    %c0_i32_1 = arith.constant 0 : i32
    return %c0_i32, %c0_i32_0 : i32, i32
  }
  func.func @transform_2(%arg0: i32, %arg1: i32) -> (i32, i32) {
    %c0_i32 = arith.constant 0 : i32
    %c0_i32_0 = arith.constant 0 : i32
    %c0_i32_1 = arith.constant 0 : i32
    return %c0_i32, %c0_i32_0 : i32, i32
  }
  func.func @transform_3(%arg0: i32, %arg1: i32) -> (i32, i32) {
    %c0_i32 = arith.constant 0 : i32
    %c0_i32_0 = arith.constant 0 : i32
    %c0_i32_1 = arith.constant 0 : i32
    return %c0_i32, %c0_i32_0 : i32, i32
  }
  func.func @transform_4(%arg0: i32, %arg1: i32) -> (i32, i32, i32) {
    %c0_i32 = arith.constant 0 : i32
    %c0_i32_0 = arith.constant 0 : i32
    return %arg0, %arg1, %c0_i32 : i32, i32, i32
  }
}

module attributes {stable_mosaic.version = 11 : i64} {
  func.func @_mm_scale_act_kernel(%arg0: i32, %arg1: i32, %arg2: memref<1x256x72xbf16, #tpu.memory_space<vmem>>, %arg3: memref<72x8xbf16, #tpu.memory_space<vmem>>, %arg4: memref<1x8xf32, #tpu.memory_space<vmem>>, %arg5: memref<1x8xf32, #tpu.memory_space<vmem>>, %arg6: memref<1x256x8xf32, #tpu.memory_space<vmem>>) attributes {dimension_semantics = [#tpu.dimension_semantics<parallel>, #tpu.dimension_semantics<parallel>], iteration_bounds = array<i64: 2, 1>, scalar_prefetch = 0 : i64, scratch_operands = 0 : i64, tpu.core_type = #tpu.core_type<tc>, window_params = [{transform_indices = @transform_0, window_bounds = array<i64: 1, 256, 72>}, {pipeline_mode = #tpu.pipeline_mode<synchronous>, transform_indices = @transform_1, window_bounds = array<i64: 72, 8>}, {pipeline_mode = #tpu.pipeline_mode<synchronous>, transform_indices = @transform_2, window_bounds = array<i64: 1, 8>}, {pipeline_mode = #tpu.pipeline_mode<synchronous>, transform_indices = @transform_3, window_bounds = array<i64: 1, 8>}, {transform_indices = @transform_4, window_bounds = array<i64: 1, 256, 8>}]} {
    %c0 = arith.constant 0 : index
    %c0_0 = arith.constant 0 : index
    %c0_1 = arith.constant 0 : index
    %0 = vector.load %arg2[%c0, %c0_0, %c0_1] : memref<1x256x72xbf16, #tpu.memory_space<vmem>>, vector<1x256x72xbf16>
    %1 = vector.shape_cast %0 : vector<1x256x72xbf16> to vector<256x72xbf16>
    %c0_2 = arith.constant 0 : index
    %c0_3 = arith.constant 0 : index
    %2 = vector.load %arg3[%c0_2, %c0_3] : memref<72x8xbf16, #tpu.memory_space<vmem>>, vector<72x8xbf16>
    %cst = arith.constant dense<0.000000e+00> : vector<256x8xf32>
    %3 = tpu.matmul %1, %2, %cst {dimension_numbers = #tpu.dot_dimension_numbers<[1], [0], [0], [1], [0, 0, 1, 1], [], []>} : vector<256x72xbf16>, vector<72x8xbf16>, vector<256x8xf32> -> vector<256x8xf32>
    %c0_4 = arith.constant 0 : index
    %c0_5 = arith.constant 0 : index
    %4 = vector.load %arg4[%c0_4, %c0_5] : memref<1x8xf32, #tpu.memory_space<vmem>>, vector<1x8xf32>
    %5 = vector.broadcast %4 : vector<1x8xf32> to vector<256x8xf32>
    %6 = arith.mulf %3, %5 : vector<256x8xf32>
    %c0_6 = arith.constant 0 : index
    %c0_7 = arith.constant 0 : index
    %7 = vector.load %arg5[%c0_6, %c0_7] : memref<1x8xf32, #tpu.memory_space<vmem>>, vector<1x8xf32>
    %8 = vector.broadcast %7 : vector<1x8xf32> to vector<256x8xf32>
    %9 = arith.addf %6, %8 : vector<256x8xf32>
    %cst_8 = arith.constant 0.000000e+00 : f32
    %10 = vector.broadcast %cst_8 : f32 to vector<256x8xf32>
    %11 = arith.maximumf %9, %10 : vector<256x8xf32>
    %c0_9 = arith.constant 0 : index
    %c0_10 = arith.constant 0 : index
    %c0_11 = arith.constant 0 : index
    %12 = vector.load %arg6[%c0_9, %c0_10, %c0_11] : memref<1x256x8xf32, #tpu.memory_space<vmem>>, vector<1x256x8xf32>
    %13 = vector.shape_cast %12 : vector<1x256x8xf32> to vector<256x8xf32>
    %14 = vector.shape_cast %11 : vector<256x8xf32> to vector<1x256x8xf32>
    tpu.vector_store %arg6[%c0_9, %c0_10, %c0_11], %14 {strides = array<i32>} : memref<1x256x8xf32, #tpu.memory_space<vmem>>, vector<1x256x8xf32>,
    return
  }
  func.func @transform_0(%arg0: i32, %arg1: i32) -> (i32, i32, i32) {
    %c0_i32 = arith.constant 0 : i32
    %c0_i32_0 = arith.constant 0 : i32
    return %arg0, %arg1, %c0_i32 : i32, i32, i32
  }
  func.func @transform_1(%arg0: i32, %arg1: i32) -> (i32, i32) {
    %c0_i32 = arith.constant 0 : i32
    %c0_i32_0 = arith.constant 0 : i32
    %c0_i32_1 = arith.constant 0 : i32
    return %c0_i32, %c0_i32_0 : i32, i32
  }
  func.func @transform_2(%arg0: i32, %arg1: i32) -> (i32, i32) {
    %c0_i32 = arith.constant 0 : i32
    %c0_i32_0 = arith.constant 0 : i32
    %c0_i32_1 = arith.constant 0 : i32
    return %c0_i32, %c0_i32_0 : i32, i32
  }
  func.func @transform_3(%arg0: i32, %arg1: i32) -> (i32, i32) {
    %c0_i32 = arith.constant 0 : i32
    %c0_i32_0 = arith.constant 0 : i32
    %c0_i32_1 = arith.constant 0 : i32
    return %c0_i32, %c0_i32_0 : i32, i32
  }
  func.func @transform_4(%arg0: i32, %arg1: i32) -> (i32, i32, i32) {
    %c0_i32 = arith.constant 0 : i32
    %c0_i32_0 = arith.constant 0 : i32
    return %arg0, %arg1, %c0_i32 : i32, i32, i32
  }
}

module attributes {stable_mosaic.version = 11 : i64} {
  func.func @_maxpool_kernel(%arg0: i32, %arg1: memref<1x8x2x8x16xf32, #tpu.memory_space<vmem>>, %arg2: memref<1x8x8x8xf32, #tpu.memory_space<vmem>>) attributes {dimension_semantics = [#tpu.dimension_semantics<parallel>], iteration_bounds = array<i64: 2>, scalar_prefetch = 0 : i64, scratch_operands = 0 : i64, tpu.core_type = #tpu.core_type<tc>, window_params = [{transform_indices = @transform_0, window_bounds = array<i64: 1, 8, 2, 8, 16>}, {transform_indices = @transform_1, window_bounds = array<i64: 1, 8, 8, 8>}]} {
    %c0 = arith.constant 0 : index
    %c0_0 = arith.constant 0 : index
    %c0_1 = arith.constant 0 : index
    %c0_2 = arith.constant 0 : index
    %c0_3 = arith.constant 0 : index
    %0 = vector.load %arg1[%c0, %c0_0, %c0_1, %c0_2, %c0_3] : memref<1x8x2x8x16xf32, #tpu.memory_space<vmem>>, vector<1x8x2x8x16xf32>
    %1 = vector.shape_cast %0 : vector<1x8x2x8x16xf32> to vector<8x2x8x16xf32>
    %2 = vector.extract_strided_slice %1 {offsets = [0, 0, 0, 0], sizes = [8, 1, 8, 16], strides = [1, 1, 1, 1]} : vector<8x2x8x16xf32> to vector<8x1x8x16xf32>
    %3 = vector.shape_cast %2 : vector<8x1x8x16xf32> to vector<8x8x16xf32>
    %4 = vector.extract_strided_slice %1 {offsets = [0, 1, 0, 0], sizes = [8, 1, 8, 16], strides = [1, 1, 1, 1]} : vector<8x2x8x16xf32> to vector<8x1x8x16xf32>
    %5 = vector.shape_cast %4 : vector<8x1x8x16xf32> to vector<8x8x16xf32>
    %6 = arith.maximumf %3, %5 : vector<8x8x16xf32>
    %7 = vector.extract_strided_slice %6 {offsets = [0, 0, 0], sizes = [8, 8, 8], strides = [1, 1, 1]} : vector<8x8x16xf32> to vector<8x8x8xf32>
    %8 = vector.extract_strided_slice %6 {offsets = [0, 0, 8], sizes = [8, 8, 8], strides = [1, 1, 1]} : vector<8x8x16xf32> to vector<8x8x8xf32>
    %9 = arith.maximumf %7, %8 : vector<8x8x8xf32>
    %c0_4 = arith.constant 0 : index
    %c0_5 = arith.constant 0 : index
    %c0_6 = arith.constant 0 : index
    %c0_7 = arith.constant 0 : index
    %10 = vector.load %arg2[%c0_4, %c0_5, %c0_6, %c0_7] : memref<1x8x8x8xf32, #tpu.memory_space<vmem>>, vector<1x8x8x8xf32>
    %11 = vector.shape_cast %10 : vector<1x8x8x8xf32> to vector<8x8x8xf32>
    %12 = vector.shape_cast %9 : vector<8x8x8xf32> to vector<1x8x8x8xf32>
    tpu.vector_store %arg2[%c0_4, %c0_5, %c0_6, %c0_7], %12 {strides = array<i32>} : memref<1x8x8x8xf32, #tpu.memory_space<vmem>>, vector<1x8x8x8xf32>,
    return
  }
  func.func @transform_0(%arg0: i32) -> (i32, i32, i32, i32, i32) {
    %c0_i32 = arith.constant 0 : i32
    %c0_i32_0 = arith.constant 0 : i32
    %c0_i32_1 = arith.constant 0 : i32
    %c0_i32_2 = arith.constant 0 : i32
    %c0_i32_3 = arith.constant 0 : i32
    return %arg0, %c0_i32, %c0_i32_0, %c0_i32_1, %c0_i32_2 : i32, i32, i32, i32, i32
  }
  func.func @transform_1(%arg0: i32) -> (i32, i32, i32, i32) {
    %c0_i32 = arith.constant 0 : i32
    %c0_i32_0 = arith.constant 0 : i32
    %c0_i32_1 = arith.constant 0 : i32
    %c0_i32_2 = arith.constant 0 : i32
    return %arg0, %c0_i32, %c0_i32_0, %c0_i32_1 : i32, i32, i32, i32
  }
}

module attributes {stable_mosaic.version = 11 : i64} {
  func.func @_mm_scale_act_kernel(%arg0: i32, %arg1: i32, %arg2: memref<1x64x72xbf16, #tpu.memory_space<vmem>>, %arg3: memref<72x16xbf16, #tpu.memory_space<vmem>>, %arg4: memref<1x16xf32, #tpu.memory_space<vmem>>, %arg5: memref<1x16xf32, #tpu.memory_space<vmem>>, %arg6: memref<1x64x16xf32, #tpu.memory_space<vmem>>) attributes {dimension_semantics = [#tpu.dimension_semantics<parallel>, #tpu.dimension_semantics<parallel>], iteration_bounds = array<i64: 2, 1>, scalar_prefetch = 0 : i64, scratch_operands = 0 : i64, tpu.core_type = #tpu.core_type<tc>, window_params = [{transform_indices = @transform_0, window_bounds = array<i64: 1, 64, 72>}, {pipeline_mode = #tpu.pipeline_mode<synchronous>, transform_indices = @transform_1, window_bounds = array<i64: 72, 16>}, {pipeline_mode = #tpu.pipeline_mode<synchronous>, transform_indices = @transform_2, window_bounds = array<i64: 1, 16>}, {pipeline_mode = #tpu.pipeline_mode<synchronous>, transform_indices = @transform_3, window_bounds = array<i64: 1, 16>}, {transform_indices = @transform_4, window_bounds = array<i64: 1, 64, 16>}]} {
    %c0 = arith.constant 0 : index
    %c0_0 = arith.constant 0 : index
    %c0_1 = arith.constant 0 : index
    %0 = vector.load %arg2[%c0, %c0_0, %c0_1] : memref<1x64x72xbf16, #tpu.memory_space<vmem>>, vector<1x64x72xbf16>
    %1 = vector.shape_cast %0 : vector<1x64x72xbf16> to vector<64x72xbf16>
    %c0_2 = arith.constant 0 : index
    %c0_3 = arith.constant 0 : index
    %2 = vector.load %arg3[%c0_2, %c0_3] : memref<72x16xbf16, #tpu.memory_space<vmem>>, vector<72x16xbf16>
    %cst = arith.constant dense<0.000000e+00> : vector<64x16xf32>
    %3 = tpu.matmul %1, %2, %cst {dimension_numbers = #tpu.dot_dimension_numbers<[1], [0], [0], [1], [0, 0, 1, 1], [], []>} : vector<64x72xbf16>, vector<72x16xbf16>, vector<64x16xf32> -> vector<64x16xf32>
    %c0_4 = arith.constant 0 : index
    %c0_5 = arith.constant 0 : index
    %4 = vector.load %arg4[%c0_4, %c0_5] : memref<1x16xf32, #tpu.memory_space<vmem>>, vector<1x16xf32>
    %5 = vector.broadcast %4 : vector<1x16xf32> to vector<64x16xf32>
    %6 = arith.mulf %3, %5 : vector<64x16xf32>
    %c0_6 = arith.constant 0 : index
    %c0_7 = arith.constant 0 : index
    %7 = vector.load %arg5[%c0_6, %c0_7] : memref<1x16xf32, #tpu.memory_space<vmem>>, vector<1x16xf32>
    %8 = vector.broadcast %7 : vector<1x16xf32> to vector<64x16xf32>
    %9 = arith.addf %6, %8 : vector<64x16xf32>
    %cst_8 = arith.constant 0.000000e+00 : f32
    %10 = vector.broadcast %cst_8 : f32 to vector<64x16xf32>
    %11 = arith.maximumf %9, %10 : vector<64x16xf32>
    %c0_9 = arith.constant 0 : index
    %c0_10 = arith.constant 0 : index
    %c0_11 = arith.constant 0 : index
    %12 = vector.load %arg6[%c0_9, %c0_10, %c0_11] : memref<1x64x16xf32, #tpu.memory_space<vmem>>, vector<1x64x16xf32>
    %13 = vector.shape_cast %12 : vector<1x64x16xf32> to vector<64x16xf32>
    %14 = vector.shape_cast %11 : vector<64x16xf32> to vector<1x64x16xf32>
    tpu.vector_store %arg6[%c0_9, %c0_10, %c0_11], %14 {strides = array<i32>} : memref<1x64x16xf32, #tpu.memory_space<vmem>>, vector<1x64x16xf32>,
    return
  }
  func.func @transform_0(%arg0: i32, %arg1: i32) -> (i32, i32, i32) {
    %c0_i32 = arith.constant 0 : i32
    %c0_i32_0 = arith.constant 0 : i32
    return %arg0, %arg1, %c0_i32 : i32, i32, i32
  }
  func.func @transform_1(%arg0: i32, %arg1: i32) -> (i32, i32) {
    %c0_i32 = arith.constant 0 : i32
    %c0_i32_0 = arith.constant 0 : i32
    %c0_i32_1 = arith.constant 0 : i32
    return %c0_i32, %c0_i32_0 : i32, i32
  }
  func.func @transform_2(%arg0: i32, %arg1: i32) -> (i32, i32) {
    %c0_i32 = arith.constant 0 : i32
    %c0_i32_0 = arith.constant 0 : i32
    %c0_i32_1 = arith.constant 0 : i32
    return %c0_i32, %c0_i32_0 : i32, i32
  }
  func.func @transform_3(%arg0: i32, %arg1: i32) -> (i32, i32) {
    %c0_i32 = arith.constant 0 : i32
    %c0_i32_0 = arith.constant 0 : i32
    %c0_i32_1 = arith.constant 0 : i32
    return %c0_i32, %c0_i32_0 : i32, i32
  }
  func.func @transform_4(%arg0: i32, %arg1: i32) -> (i32, i32, i32) {
    %c0_i32 = arith.constant 0 : i32
    %c0_i32_0 = arith.constant 0 : i32
    return %arg0, %arg1, %c0_i32 : i32, i32, i32
  }
}

module attributes {stable_mosaic.version = 11 : i64} {
  func.func @_mm_scale_act_kernel(%arg0: i32, %arg1: i32, %arg2: memref<1x64x144xbf16, #tpu.memory_space<vmem>>, %arg3: memref<144x16xbf16, #tpu.memory_space<vmem>>, %arg4: memref<1x16xf32, #tpu.memory_space<vmem>>, %arg5: memref<1x16xf32, #tpu.memory_space<vmem>>, %arg6: memref<1x64x16xf32, #tpu.memory_space<vmem>>) attributes {dimension_semantics = [#tpu.dimension_semantics<parallel>, #tpu.dimension_semantics<parallel>], iteration_bounds = array<i64: 2, 1>, scalar_prefetch = 0 : i64, scratch_operands = 0 : i64, tpu.core_type = #tpu.core_type<tc>, window_params = [{transform_indices = @transform_0, window_bounds = array<i64: 1, 64, 144>}, {pipeline_mode = #tpu.pipeline_mode<synchronous>, transform_indices = @transform_1, window_bounds = array<i64: 144, 16>}, {pipeline_mode = #tpu.pipeline_mode<synchronous>, transform_indices = @transform_2, window_bounds = array<i64: 1, 16>}, {pipeline_mode = #tpu.pipeline_mode<synchronous>, transform_indices = @transform_3, window_bounds = array<i64: 1, 16>}, {transform_indices = @transform_4, window_bounds = array<i64: 1, 64, 16>}]} {
    %c0 = arith.constant 0 : index
    %c0_0 = arith.constant 0 : index
    %c0_1 = arith.constant 0 : index
    %0 = vector.load %arg2[%c0, %c0_0, %c0_1] : memref<1x64x144xbf16, #tpu.memory_space<vmem>>, vector<1x64x144xbf16>
    %1 = vector.shape_cast %0 : vector<1x64x144xbf16> to vector<64x144xbf16>
    %c0_2 = arith.constant 0 : index
    %c0_3 = arith.constant 0 : index
    %2 = vector.load %arg3[%c0_2, %c0_3] : memref<144x16xbf16, #tpu.memory_space<vmem>>, vector<144x16xbf16>
    %cst = arith.constant dense<0.000000e+00> : vector<64x16xf32>
    %3 = tpu.matmul %1, %2, %cst {dimension_numbers = #tpu.dot_dimension_numbers<[1], [0], [0], [1], [0, 0, 1, 1], [], []>} : vector<64x144xbf16>, vector<144x16xbf16>, vector<64x16xf32> -> vector<64x16xf32>
    %c0_4 = arith.constant 0 : index
    %c0_5 = arith.constant 0 : index
    %4 = vector.load %arg4[%c0_4, %c0_5] : memref<1x16xf32, #tpu.memory_space<vmem>>, vector<1x16xf32>
    %5 = vector.broadcast %4 : vector<1x16xf32> to vector<64x16xf32>
    %6 = arith.mulf %3, %5 : vector<64x16xf32>
    %c0_6 = arith.constant 0 : index
    %c0_7 = arith.constant 0 : index
    %7 = vector.load %arg5[%c0_6, %c0_7] : memref<1x16xf32, #tpu.memory_space<vmem>>, vector<1x16xf32>
    %8 = vector.broadcast %7 : vector<1x16xf32> to vector<64x16xf32>
    %9 = arith.addf %6, %8 : vector<64x16xf32>
    %cst_8 = arith.constant 0.000000e+00 : f32
    %10 = vector.broadcast %cst_8 : f32 to vector<64x16xf32>
    %11 = arith.maximumf %9, %10 : vector<64x16xf32>
    %c0_9 = arith.constant 0 : index
    %c0_10 = arith.constant 0 : index
    %c0_11 = arith.constant 0 : index
    %12 = vector.load %arg6[%c0_9, %c0_10, %c0_11] : memref<1x64x16xf32, #tpu.memory_space<vmem>>, vector<1x64x16xf32>
    %13 = vector.shape_cast %12 : vector<1x64x16xf32> to vector<64x16xf32>
    %14 = vector.shape_cast %11 : vector<64x16xf32> to vector<1x64x16xf32>
    tpu.vector_store %arg6[%c0_9, %c0_10, %c0_11], %14 {strides = array<i32>} : memref<1x64x16xf32, #tpu.memory_space<vmem>>, vector<1x64x16xf32>,
    return
  }
  func.func @transform_0(%arg0: i32, %arg1: i32) -> (i32, i32, i32) {
    %c0_i32 = arith.constant 0 : i32
    %c0_i32_0 = arith.constant 0 : i32
    return %arg0, %arg1, %c0_i32 : i32, i32, i32
  }
  func.func @transform_1(%arg0: i32, %arg1: i32) -> (i32, i32) {
    %c0_i32 = arith.constant 0 : i32
    %c0_i32_0 = arith.constant 0 : i32
    %c0_i32_1 = arith.constant 0 : i32
    return %c0_i32, %c0_i32_0 : i32, i32
  }
  func.func @transform_2(%arg0: i32, %arg1: i32) -> (i32, i32) {
    %c0_i32 = arith.constant 0 : i32
    %c0_i32_0 = arith.constant 0 : i32
    %c0_i32_1 = arith.constant 0 : i32
    return %c0_i32, %c0_i32_0 : i32, i32
  }
  func.func @transform_3(%arg0: i32, %arg1: i32) -> (i32, i32) {
    %c0_i32 = arith.constant 0 : i32
    %c0_i32_0 = arith.constant 0 : i32
    %c0_i32_1 = arith.constant 0 : i32
    return %c0_i32, %c0_i32_0 : i32, i32
  }
  func.func @transform_4(%arg0: i32, %arg1: i32) -> (i32, i32, i32) {
    %c0_i32 = arith.constant 0 : i32
    %c0_i32_0 = arith.constant 0 : i32
    return %arg0, %arg1, %c0_i32 : i32, i32, i32
  }
}

module attributes {stable_mosaic.version = 11 : i64} {
  func.func @_maxpool_kernel(%arg0: i32, %arg1: memref<1x4x2x4x32xf32, #tpu.memory_space<vmem>>, %arg2: memref<1x4x4x16xf32, #tpu.memory_space<vmem>>) attributes {dimension_semantics = [#tpu.dimension_semantics<parallel>], iteration_bounds = array<i64: 2>, scalar_prefetch = 0 : i64, scratch_operands = 0 : i64, tpu.core_type = #tpu.core_type<tc>, window_params = [{transform_indices = @transform_0, window_bounds = array<i64: 1, 4, 2, 4, 32>}, {transform_indices = @transform_1, window_bounds = array<i64: 1, 4, 4, 16>}]} {
    %c0 = arith.constant 0 : index
    %c0_0 = arith.constant 0 : index
    %c0_1 = arith.constant 0 : index
    %c0_2 = arith.constant 0 : index
    %c0_3 = arith.constant 0 : index
    %0 = vector.load %arg1[%c0, %c0_0, %c0_1, %c0_2, %c0_3] : memref<1x4x2x4x32xf32, #tpu.memory_space<vmem>>, vector<1x4x2x4x32xf32>
    %1 = vector.shape_cast %0 : vector<1x4x2x4x32xf32> to vector<4x2x4x32xf32>
    %2 = vector.extract_strided_slice %1 {offsets = [0, 0, 0, 0], sizes = [4, 1, 4, 32], strides = [1, 1, 1, 1]} : vector<4x2x4x32xf32> to vector<4x1x4x32xf32>
    %3 = vector.shape_cast %2 : vector<4x1x4x32xf32> to vector<4x4x32xf32>
    %4 = vector.extract_strided_slice %1 {offsets = [0, 1, 0, 0], sizes = [4, 1, 4, 32], strides = [1, 1, 1, 1]} : vector<4x2x4x32xf32> to vector<4x1x4x32xf32>
    %5 = vector.shape_cast %4 : vector<4x1x4x32xf32> to vector<4x4x32xf32>
    %6 = arith.maximumf %3, %5 : vector<4x4x32xf32>
    %7 = vector.extract_strided_slice %6 {offsets = [0, 0, 0], sizes = [4, 4, 16], strides = [1, 1, 1]} : vector<4x4x32xf32> to vector<4x4x16xf32>
    %8 = vector.extract_strided_slice %6 {offsets = [0, 0, 16], sizes = [4, 4, 16], strides = [1, 1, 1]} : vector<4x4x32xf32> to vector<4x4x16xf32>
    %9 = arith.maximumf %7, %8 : vector<4x4x16xf32>
    %c0_4 = arith.constant 0 : index
    %c0_5 = arith.constant 0 : index
    %c0_6 = arith.constant 0 : index
    %c0_7 = arith.constant 0 : index
    %10 = vector.load %arg2[%c0_4, %c0_5, %c0_6, %c0_7] : memref<1x4x4x16xf32, #tpu.memory_space<vmem>>, vector<1x4x4x16xf32>
    %11 = vector.shape_cast %10 : vector<1x4x4x16xf32> to vector<4x4x16xf32>
    %12 = vector.shape_cast %9 : vector<4x4x16xf32> to vector<1x4x4x16xf32>
    tpu.vector_store %arg2[%c0_4, %c0_5, %c0_6, %c0_7], %12 {strides = array<i32>} : memref<1x4x4x16xf32, #tpu.memory_space<vmem>>, vector<1x4x4x16xf32>,
    return
  }
  func.func @transform_0(%arg0: i32) -> (i32, i32, i32, i32, i32) {
    %c0_i32 = arith.constant 0 : i32
    %c0_i32_0 = arith.constant 0 : i32
    %c0_i32_1 = arith.constant 0 : i32
    %c0_i32_2 = arith.constant 0 : i32
    %c0_i32_3 = arith.constant 0 : i32
    return %arg0, %c0_i32, %c0_i32_0, %c0_i32_1, %c0_i32_2 : i32, i32, i32, i32, i32
  }
  func.func @transform_1(%arg0: i32) -> (i32, i32, i32, i32) {
    %c0_i32 = arith.constant 0 : i32
    %c0_i32_0 = arith.constant 0 : i32
    %c0_i32_1 = arith.constant 0 : i32
    %c0_i32_2 = arith.constant 0 : i32
    return %arg0, %c0_i32, %c0_i32_0, %c0_i32_1 : i32, i32, i32, i32
  }
}

module attributes {stable_mosaic.version = 11 : i64} {
  func.func @_mm_scale_act_kernel(%arg0: i32, %arg1: i32, %arg2: memref<1x16x144xbf16, #tpu.memory_space<vmem>>, %arg3: memref<144x16xbf16, #tpu.memory_space<vmem>>, %arg4: memref<1x16xf32, #tpu.memory_space<vmem>>, %arg5: memref<1x16xf32, #tpu.memory_space<vmem>>, %arg6: memref<1x16x16xf32, #tpu.memory_space<vmem>>) attributes {dimension_semantics = [#tpu.dimension_semantics<parallel>, #tpu.dimension_semantics<parallel>], iteration_bounds = array<i64: 2, 1>, scalar_prefetch = 0 : i64, scratch_operands = 0 : i64, tpu.core_type = #tpu.core_type<tc>, window_params = [{transform_indices = @transform_0, window_bounds = array<i64: 1, 16, 144>}, {pipeline_mode = #tpu.pipeline_mode<synchronous>, transform_indices = @transform_1, window_bounds = array<i64: 144, 16>}, {pipeline_mode = #tpu.pipeline_mode<synchronous>, transform_indices = @transform_2, window_bounds = array<i64: 1, 16>}, {pipeline_mode = #tpu.pipeline_mode<synchronous>, transform_indices = @transform_3, window_bounds = array<i64: 1, 16>}, {transform_indices = @transform_4, window_bounds = array<i64: 1, 16, 16>}]} {
    %c0 = arith.constant 0 : index
    %c0_0 = arith.constant 0 : index
    %c0_1 = arith.constant 0 : index
    %0 = vector.load %arg2[%c0, %c0_0, %c0_1] : memref<1x16x144xbf16, #tpu.memory_space<vmem>>, vector<1x16x144xbf16>
    %1 = vector.shape_cast %0 : vector<1x16x144xbf16> to vector<16x144xbf16>
    %c0_2 = arith.constant 0 : index
    %c0_3 = arith.constant 0 : index
    %2 = vector.load %arg3[%c0_2, %c0_3] : memref<144x16xbf16, #tpu.memory_space<vmem>>, vector<144x16xbf16>
    %cst = arith.constant dense<0.000000e+00> : vector<16x16xf32>
    %3 = tpu.matmul %1, %2, %cst {dimension_numbers = #tpu.dot_dimension_numbers<[1], [0], [0], [1], [0, 0, 1, 1], [], []>} : vector<16x144xbf16>, vector<144x16xbf16>, vector<16x16xf32> -> vector<16x16xf32>
    %c0_4 = arith.constant 0 : index
    %c0_5 = arith.constant 0 : index
    %4 = vector.load %arg4[%c0_4, %c0_5] : memref<1x16xf32, #tpu.memory_space<vmem>>, vector<1x16xf32>
    %5 = vector.broadcast %4 : vector<1x16xf32> to vector<16x16xf32>
    %6 = arith.mulf %3, %5 : vector<16x16xf32>
    %c0_6 = arith.constant 0 : index
    %c0_7 = arith.constant 0 : index
    %7 = vector.load %arg5[%c0_6, %c0_7] : memref<1x16xf32, #tpu.memory_space<vmem>>, vector<1x16xf32>
    %8 = vector.broadcast %7 : vector<1x16xf32> to vector<16x16xf32>
    %9 = arith.addf %6, %8 : vector<16x16xf32>
    %cst_8 = arith.constant 0.000000e+00 : f32
    %10 = vector.broadcast %cst_8 : f32 to vector<16x16xf32>
    %11 = arith.maximumf %9, %10 : vector<16x16xf32>
    %c0_9 = arith.constant 0 : index
    %c0_10 = arith.constant 0 : index
    %c0_11 = arith.constant 0 : index
    %12 = vector.load %arg6[%c0_9, %c0_10, %c0_11] : memref<1x16x16xf32, #tpu.memory_space<vmem>>, vector<1x16x16xf32>
    %13 = vector.shape_cast %12 : vector<1x16x16xf32> to vector<16x16xf32>
    %14 = vector.shape_cast %11 : vector<16x16xf32> to vector<1x16x16xf32>
    tpu.vector_store %arg6[%c0_9, %c0_10, %c0_11], %14 {strides = array<i32>} : memref<1x16x16xf32, #tpu.memory_space<vmem>>, vector<1x16x16xf32>,
    return
  }
  func.func @transform_0(%arg0: i32, %arg1: i32) -> (i32, i32, i32) {
    %c0_i32 = arith.constant 0 : i32
    %c0_i32_0 = arith.constant 0 : i32
    return %arg0, %arg1, %c0_i32 : i32, i32, i32
  }
  func.func @transform_1(%arg0: i32, %arg1: i32) -> (i32, i32) {
    %c0_i32 = arith.constant 0 : i32
    %c0_i32_0 = arith.constant 0 : i32
    %c0_i32_1 = arith.constant 0 : i32
    return %c0_i32, %c0_i32_0 : i32, i32
  }
  func.func @transform_2(%arg0: i32, %arg1: i32) -> (i32, i32) {
    %c0_i32 = arith.constant 0 : i32
    %c0_i32_0 = arith.constant 0 : i32
    %c0_i32_1 = arith.constant 0 : i32
    return %c0_i32, %c0_i32_0 : i32, i32
  }
  func.func @transform_3(%arg0: i32, %arg1: i32) -> (i32, i32) {
    %c0_i32 = arith.constant 0 : i32
    %c0_i32_0 = arith.constant 0 : i32
    %c0_i32_1 = arith.constant 0 : i32
    return %c0_i32, %c0_i32_0 : i32, i32
  }
  func.func @transform_4(%arg0: i32, %arg1: i32) -> (i32, i32, i32) {
    %c0_i32 = arith.constant 0 : i32
    %c0_i32_0 = arith.constant 0 : i32
    return %arg0, %arg1, %c0_i32 : i32, i32, i32
  }
}

module attributes {stable_mosaic.version = 11 : i64} {
  func.func @_mm_scale_act_kernel(%arg0: i32, %arg1: i32, %arg2: memref<1x16x16xbf16, #tpu.memory_space<vmem>>, %arg3: memref<16x64xbf16, #tpu.memory_space<vmem>>, %arg4: memref<1x64xf32, #tpu.memory_space<vmem>>, %arg5: memref<1x64xf32, #tpu.memory_space<vmem>>, %arg6: memref<1x16x64xf32, #tpu.memory_space<vmem>>) attributes {dimension_semantics = [#tpu.dimension_semantics<parallel>, #tpu.dimension_semantics<parallel>], iteration_bounds = array<i64: 2, 1>, scalar_prefetch = 0 : i64, scratch_operands = 0 : i64, tpu.core_type = #tpu.core_type<tc>, window_params = [{transform_indices = @transform_0, window_bounds = array<i64: 1, 16, 16>}, {pipeline_mode = #tpu.pipeline_mode<synchronous>, transform_indices = @transform_1, window_bounds = array<i64: 16, 64>}, {pipeline_mode = #tpu.pipeline_mode<synchronous>, transform_indices = @transform_2, window_bounds = array<i64: 1, 64>}, {pipeline_mode = #tpu.pipeline_mode<synchronous>, transform_indices = @transform_3, window_bounds = array<i64: 1, 64>}, {transform_indices = @transform_4, window_bounds = array<i64: 1, 16, 64>}]} {
    %c0 = arith.constant 0 : index
    %c0_0 = arith.constant 0 : index
    %c0_1 = arith.constant 0 : index
    %0 = vector.load %arg2[%c0, %c0_0, %c0_1] : memref<1x16x16xbf16, #tpu.memory_space<vmem>>, vector<1x16x16xbf16>
    %1 = vector.shape_cast %0 : vector<1x16x16xbf16> to vector<16x16xbf16>
    %c0_2 = arith.constant 0 : index
    %c0_3 = arith.constant 0 : index
    %2 = vector.load %arg3[%c0_2, %c0_3] : memref<16x64xbf16, #tpu.memory_space<vmem>>, vector<16x64xbf16>
    %cst = arith.constant dense<0.000000e+00> : vector<16x64xf32>
    %3 = tpu.matmul %1, %2, %cst {dimension_numbers = #tpu.dot_dimension_numbers<[1], [0], [0], [1], [0, 0, 1, 1], [], []>} : vector<16x16xbf16>, vector<16x64xbf16>, vector<16x64xf32> -> vector<16x64xf32>
    %c0_4 = arith.constant 0 : index
    %c0_5 = arith.constant 0 : index
    %4 = vector.load %arg4[%c0_4, %c0_5] : memref<1x64xf32, #tpu.memory_space<vmem>>, vector<1x64xf32>
    %5 = vector.broadcast %4 : vector<1x64xf32> to vector<16x64xf32>
    %6 = arith.mulf %3, %5 : vector<16x64xf32>
    %c0_6 = arith.constant 0 : index
    %c0_7 = arith.constant 0 : index
    %7 = vector.load %arg5[%c0_6, %c0_7] : memref<1x64xf32, #tpu.memory_space<vmem>>, vector<1x64xf32>
    %8 = vector.broadcast %7 : vector<1x64xf32> to vector<16x64xf32>
    %9 = arith.addf %6, %8 : vector<16x64xf32>
    %c0_8 = arith.constant 0 : index
    %c0_9 = arith.constant 0 : index
    %c0_10 = arith.constant 0 : index
    %10 = vector.load %arg6[%c0_8, %c0_9, %c0_10] : memref<1x16x64xf32, #tpu.memory_space<vmem>>, vector<1x16x64xf32>
    %11 = vector.shape_cast %10 : vector<1x16x64xf32> to vector<16x64xf32>
    %12 = vector.shape_cast %9 : vector<16x64xf32> to vector<1x16x64xf32>
    tpu.vector_store %arg6[%c0_8, %c0_9, %c0_10], %12 {strides = array<i32>} : memref<1x16x64xf32, #tpu.memory_space<vmem>>, vector<1x16x64xf32>,
    return
  }
  func.func @transform_0(%arg0: i32, %arg1: i32) -> (i32, i32, i32) {
    %c0_i32 = arith.constant 0 : i32
    %c0_i32_0 = arith.constant 0 : i32
    return %arg0, %arg1, %c0_i32 : i32, i32, i32
  }
  func.func @transform_1(%arg0: i32, %arg1: i32) -> (i32, i32) {
    %c0_i32 = arith.constant 0 : i32
    %c0_i32_0 = arith.constant 0 : i32
    %c0_i32_1 = arith.constant 0 : i32
    return %c0_i32, %c0_i32_0 : i32, i32
  }
  func.func @transform_2(%arg0: i32, %arg1: i32) -> (i32, i32) {
    %c0_i32 = arith.constant 0 : i32
    %c0_i32_0 = arith.constant 0 : i32
    %c0_i32_1 = arith.constant 0 : i32
    return %c0_i32, %c0_i32_0 : i32, i32
  }
  func.func @transform_3(%arg0: i32, %arg1: i32) -> (i32, i32) {
    %c0_i32 = arith.constant 0 : i32
    %c0_i32_0 = arith.constant 0 : i32
    %c0_i32_1 = arith.constant 0 : i32
    return %c0_i32, %c0_i32_0 : i32, i32
  }
  func.func @transform_4(%arg0: i32, %arg1: i32) -> (i32, i32, i32) {
    %c0_i32 = arith.constant 0 : i32
    %c0_i32_0 = arith.constant 0 : i32
    return %arg0, %arg1, %c0_i32 : i32, i32, i32
  }
}

module attributes {stable_mosaic.version = 11 : i64} {
  func.func @_mm_scale_act_kernel(%arg0: i32, %arg1: i32, %arg2: memref<1x64x288xbf16, #tpu.memory_space<vmem>>, %arg3: memref<288x8xbf16, #tpu.memory_space<vmem>>, %arg4: memref<1x8xf32, #tpu.memory_space<vmem>>, %arg5: memref<1x8xf32, #tpu.memory_space<vmem>>, %arg6: memref<1x64x8xf32, #tpu.memory_space<vmem>>) attributes {dimension_semantics = [#tpu.dimension_semantics<parallel>, #tpu.dimension_semantics<parallel>], iteration_bounds = array<i64: 2, 1>, scalar_prefetch = 0 : i64, scratch_operands = 0 : i64, tpu.core_type = #tpu.core_type<tc>, window_params = [{transform_indices = @transform_0, window_bounds = array<i64: 1, 64, 288>}, {pipeline_mode = #tpu.pipeline_mode<synchronous>, transform_indices = @transform_1, window_bounds = array<i64: 288, 8>}, {pipeline_mode = #tpu.pipeline_mode<synchronous>, transform_indices = @transform_2, window_bounds = array<i64: 1, 8>}, {pipeline_mode = #tpu.pipeline_mode<synchronous>, transform_indices = @transform_3, window_bounds = array<i64: 1, 8>}, {transform_indices = @transform_4, window_bounds = array<i64: 1, 64, 8>}]} {
    %c0 = arith.constant 0 : index
    %c0_0 = arith.constant 0 : index
    %c0_1 = arith.constant 0 : index
    %0 = vector.load %arg2[%c0, %c0_0, %c0_1] : memref<1x64x288xbf16, #tpu.memory_space<vmem>>, vector<1x64x288xbf16>
    %1 = vector.shape_cast %0 : vector<1x64x288xbf16> to vector<64x288xbf16>
    %c0_2 = arith.constant 0 : index
    %c0_3 = arith.constant 0 : index
    %2 = vector.load %arg3[%c0_2, %c0_3] : memref<288x8xbf16, #tpu.memory_space<vmem>>, vector<288x8xbf16>
    %cst = arith.constant dense<0.000000e+00> : vector<64x8xf32>
    %3 = tpu.matmul %1, %2, %cst {dimension_numbers = #tpu.dot_dimension_numbers<[1], [0], [0], [1], [0, 0, 1, 1], [], []>} : vector<64x288xbf16>, vector<288x8xbf16>, vector<64x8xf32> -> vector<64x8xf32>
    %c0_4 = arith.constant 0 : index
    %c0_5 = arith.constant 0 : index
    %4 = vector.load %arg4[%c0_4, %c0_5] : memref<1x8xf32, #tpu.memory_space<vmem>>, vector<1x8xf32>
    %5 = vector.broadcast %4 : vector<1x8xf32> to vector<64x8xf32>
    %6 = arith.mulf %3, %5 : vector<64x8xf32>
    %c0_6 = arith.constant 0 : index
    %c0_7 = arith.constant 0 : index
    %7 = vector.load %arg5[%c0_6, %c0_7] : memref<1x8xf32, #tpu.memory_space<vmem>>, vector<1x8xf32>
    %8 = vector.broadcast %7 : vector<1x8xf32> to vector<64x8xf32>
    %9 = arith.addf %6, %8 : vector<64x8xf32>
    %cst_8 = arith.constant 0.000000e+00 : f32
    %10 = vector.broadcast %cst_8 : f32 to vector<64x8xf32>
    %11 = arith.maximumf %9, %10 : vector<64x8xf32>
    %c0_9 = arith.constant 0 : index
    %c0_10 = arith.constant 0 : index
    %c0_11 = arith.constant 0 : index
    %12 = vector.load %arg6[%c0_9, %c0_10, %c0_11] : memref<1x64x8xf32, #tpu.memory_space<vmem>>, vector<1x64x8xf32>
    %13 = vector.shape_cast %12 : vector<1x64x8xf32> to vector<64x8xf32>
    %14 = vector.shape_cast %11 : vector<64x8xf32> to vector<1x64x8xf32>
    tpu.vector_store %arg6[%c0_9, %c0_10, %c0_11], %14 {strides = array<i32>} : memref<1x64x8xf32, #tpu.memory_space<vmem>>, vector<1x64x8xf32>,
    return
  }
  func.func @transform_0(%arg0: i32, %arg1: i32) -> (i32, i32, i32) {
    %c0_i32 = arith.constant 0 : i32
    %c0_i32_0 = arith.constant 0 : i32
    return %arg0, %arg1, %c0_i32 : i32, i32, i32
  }
  func.func @transform_1(%arg0: i32, %arg1: i32) -> (i32, i32) {
    %c0_i32 = arith.constant 0 : i32
    %c0_i32_0 = arith.constant 0 : i32
    %c0_i32_1 = arith.constant 0 : i32
    return %c0_i32, %c0_i32_0 : i32, i32
  }
  func.func @transform_2(%arg0: i32, %arg1: i32) -> (i32, i32) {
    %c0_i32 = arith.constant 0 : i32
    %c0_i32_0 = arith.constant 0 : i32
    %c0_i32_1 = arith.constant 0 : i32
    return %c0_i32, %c0_i32_0 : i32, i32
  }
  func.func @transform_3(%arg0: i32, %arg1: i32) -> (i32, i32) {
    %c0_i32 = arith.constant 0 : i32
    %c0_i32_0 = arith.constant 0 : i32
    %c0_i32_1 = arith.constant 0 : i32
    return %c0_i32, %c0_i32_0 : i32, i32
  }
  func.func @transform_4(%arg0: i32, %arg1: i32) -> (i32, i32, i32) {
    %c0_i32 = arith.constant 0 : i32
    %c0_i32_0 = arith.constant 0 : i32
    return %arg0, %arg1, %c0_i32 : i32, i32, i32
  }
}

module attributes {stable_mosaic.version = 11 : i64} {
  func.func @_mm_scale_act_kernel(%arg0: i32, %arg1: i32, %arg2: memref<1x64x72xbf16, #tpu.memory_space<vmem>>, %arg3: memref<72x8xbf16, #tpu.memory_space<vmem>>, %arg4: memref<1x8xf32, #tpu.memory_space<vmem>>, %arg5: memref<1x8xf32, #tpu.memory_space<vmem>>, %arg6: memref<1x64x8xf32, #tpu.memory_space<vmem>>) attributes {dimension_semantics = [#tpu.dimension_semantics<parallel>, #tpu.dimension_semantics<parallel>], iteration_bounds = array<i64: 2, 1>, scalar_prefetch = 0 : i64, scratch_operands = 0 : i64, tpu.core_type = #tpu.core_type<tc>, window_params = [{transform_indices = @transform_0, window_bounds = array<i64: 1, 64, 72>}, {pipeline_mode = #tpu.pipeline_mode<synchronous>, transform_indices = @transform_1, window_bounds = array<i64: 72, 8>}, {pipeline_mode = #tpu.pipeline_mode<synchronous>, transform_indices = @transform_2, window_bounds = array<i64: 1, 8>}, {pipeline_mode = #tpu.pipeline_mode<synchronous>, transform_indices = @transform_3, window_bounds = array<i64: 1, 8>}, {transform_indices = @transform_4, window_bounds = array<i64: 1, 64, 8>}]} {
    %c0 = arith.constant 0 : index
    %c0_0 = arith.constant 0 : index
    %c0_1 = arith.constant 0 : index
    %0 = vector.load %arg2[%c0, %c0_0, %c0_1] : memref<1x64x72xbf16, #tpu.memory_space<vmem>>, vector<1x64x72xbf16>
    %1 = vector.shape_cast %0 : vector<1x64x72xbf16> to vector<64x72xbf16>
    %c0_2 = arith.constant 0 : index
    %c0_3 = arith.constant 0 : index
    %2 = vector.load %arg3[%c0_2, %c0_3] : memref<72x8xbf16, #tpu.memory_space<vmem>>, vector<72x8xbf16>
    %cst = arith.constant dense<0.000000e+00> : vector<64x8xf32>
    %3 = tpu.matmul %1, %2, %cst {dimension_numbers = #tpu.dot_dimension_numbers<[1], [0], [0], [1], [0, 0, 1, 1], [], []>} : vector<64x72xbf16>, vector<72x8xbf16>, vector<64x8xf32> -> vector<64x8xf32>
    %c0_4 = arith.constant 0 : index
    %c0_5 = arith.constant 0 : index
    %4 = vector.load %arg4[%c0_4, %c0_5] : memref<1x8xf32, #tpu.memory_space<vmem>>, vector<1x8xf32>
    %5 = vector.broadcast %4 : vector<1x8xf32> to vector<64x8xf32>
    %6 = arith.mulf %3, %5 : vector<64x8xf32>
    %c0_6 = arith.constant 0 : index
    %c0_7 = arith.constant 0 : index
    %7 = vector.load %arg5[%c0_6, %c0_7] : memref<1x8xf32, #tpu.memory_space<vmem>>, vector<1x8xf32>
    %8 = vector.broadcast %7 : vector<1x8xf32> to vector<64x8xf32>
    %9 = arith.addf %6, %8 : vector<64x8xf32>
    %cst_8 = arith.constant 0.000000e+00 : f32
    %10 = vector.broadcast %cst_8 : f32 to vector<64x8xf32>
    %11 = arith.maximumf %9, %10 : vector<64x8xf32>
    %c0_9 = arith.constant 0 : index
    %c0_10 = arith.constant 0 : index
    %c0_11 = arith.constant 0 : index
    %12 = vector.load %arg6[%c0_9, %c0_10, %c0_11] : memref<1x64x8xf32, #tpu.memory_space<vmem>>, vector<1x64x8xf32>
    %13 = vector.shape_cast %12 : vector<1x64x8xf32> to vector<64x8xf32>
    %14 = vector.shape_cast %11 : vector<64x8xf32> to vector<1x64x8xf32>
    tpu.vector_store %arg6[%c0_9, %c0_10, %c0_11], %14 {strides = array<i32>} : memref<1x64x8xf32, #tpu.memory_space<vmem>>, vector<1x64x8xf32>,
    return
  }
  func.func @transform_0(%arg0: i32, %arg1: i32) -> (i32, i32, i32) {
    %c0_i32 = arith.constant 0 : i32
    %c0_i32_0 = arith.constant 0 : i32
    return %arg0, %arg1, %c0_i32 : i32, i32, i32
  }
  func.func @transform_1(%arg0: i32, %arg1: i32) -> (i32, i32) {
    %c0_i32 = arith.constant 0 : i32
    %c0_i32_0 = arith.constant 0 : i32
    %c0_i32_1 = arith.constant 0 : i32
    return %c0_i32, %c0_i32_0 : i32, i32
  }
  func.func @transform_2(%arg0: i32, %arg1: i32) -> (i32, i32) {
    %c0_i32 = arith.constant 0 : i32
    %c0_i32_0 = arith.constant 0 : i32
    %c0_i32_1 = arith.constant 0 : i32
    return %c0_i32, %c0_i32_0 : i32, i32
  }
  func.func @transform_3(%arg0: i32, %arg1: i32) -> (i32, i32) {
    %c0_i32 = arith.constant 0 : i32
    %c0_i32_0 = arith.constant 0 : i32
    %c0_i32_1 = arith.constant 0 : i32
    return %c0_i32, %c0_i32_0 : i32, i32
  }
  func.func @transform_4(%arg0: i32, %arg1: i32) -> (i32, i32, i32) {
    %c0_i32 = arith.constant 0 : i32
    %c0_i32_0 = arith.constant 0 : i32
    return %arg0, %arg1, %c0_i32 : i32, i32, i32
  }
}

module attributes {stable_mosaic.version = 11 : i64} {
  func.func @_mm_scale_act_kernel(%arg0: i32, %arg1: i32, %arg2: memref<1x64x8xbf16, #tpu.memory_space<vmem>>, %arg3: memref<8x32xbf16, #tpu.memory_space<vmem>>, %arg4: memref<1x32xf32, #tpu.memory_space<vmem>>, %arg5: memref<1x32xf32, #tpu.memory_space<vmem>>, %arg6: memref<1x64x32xf32, #tpu.memory_space<vmem>>) attributes {dimension_semantics = [#tpu.dimension_semantics<parallel>, #tpu.dimension_semantics<parallel>], iteration_bounds = array<i64: 2, 1>, scalar_prefetch = 0 : i64, scratch_operands = 0 : i64, tpu.core_type = #tpu.core_type<tc>, window_params = [{transform_indices = @transform_0, window_bounds = array<i64: 1, 64, 8>}, {pipeline_mode = #tpu.pipeline_mode<synchronous>, transform_indices = @transform_1, window_bounds = array<i64: 8, 32>}, {pipeline_mode = #tpu.pipeline_mode<synchronous>, transform_indices = @transform_2, window_bounds = array<i64: 1, 32>}, {pipeline_mode = #tpu.pipeline_mode<synchronous>, transform_indices = @transform_3, window_bounds = array<i64: 1, 32>}, {transform_indices = @transform_4, window_bounds = array<i64: 1, 64, 32>}]} {
    %c0 = arith.constant 0 : index
    %c0_0 = arith.constant 0 : index
    %c0_1 = arith.constant 0 : index
    %0 = vector.load %arg2[%c0, %c0_0, %c0_1] : memref<1x64x8xbf16, #tpu.memory_space<vmem>>, vector<1x64x8xbf16>
    %1 = vector.shape_cast %0 : vector<1x64x8xbf16> to vector<64x8xbf16>
    %c0_2 = arith.constant 0 : index
    %c0_3 = arith.constant 0 : index
    %2 = vector.load %arg3[%c0_2, %c0_3] : memref<8x32xbf16, #tpu.memory_space<vmem>>, vector<8x32xbf16>
    %cst = arith.constant dense<0.000000e+00> : vector<64x32xf32>
    %3 = tpu.matmul %1, %2, %cst {dimension_numbers = #tpu.dot_dimension_numbers<[1], [0], [0], [1], [0, 0, 1, 1], [], []>} : vector<64x8xbf16>, vector<8x32xbf16>, vector<64x32xf32> -> vector<64x32xf32>
    %c0_4 = arith.constant 0 : index
    %c0_5 = arith.constant 0 : index
    %4 = vector.load %arg4[%c0_4, %c0_5] : memref<1x32xf32, #tpu.memory_space<vmem>>, vector<1x32xf32>
    %5 = vector.broadcast %4 : vector<1x32xf32> to vector<64x32xf32>
    %6 = arith.mulf %3, %5 : vector<64x32xf32>
    %c0_6 = arith.constant 0 : index
    %c0_7 = arith.constant 0 : index
    %7 = vector.load %arg5[%c0_6, %c0_7] : memref<1x32xf32, #tpu.memory_space<vmem>>, vector<1x32xf32>
    %8 = vector.broadcast %7 : vector<1x32xf32> to vector<64x32xf32>
    %9 = arith.addf %6, %8 : vector<64x32xf32>
    %c0_8 = arith.constant 0 : index
    %c0_9 = arith.constant 0 : index
    %c0_10 = arith.constant 0 : index
    %10 = vector.load %arg6[%c0_8, %c0_9, %c0_10] : memref<1x64x32xf32, #tpu.memory_space<vmem>>, vector<1x64x32xf32>
    %11 = vector.shape_cast %10 : vector<1x64x32xf32> to vector<64x32xf32>
    %12 = vector.shape_cast %9 : vector<64x32xf32> to vector<1x64x32xf32>
    tpu.vector_store %arg6[%c0_8, %c0_9, %c0_10], %12 {strides = array<i32>} : memref<1x64x32xf32, #tpu.memory_space<vmem>>, vector<1x64x32xf32>,
    return
  }
  func.func @transform_0(%arg0: i32, %arg1: i32) -> (i32, i32, i32) {
    %c0_i32 = arith.constant 0 : i32
    %c0_i32_0 = arith.constant 0 : i32
    return %arg0, %arg1, %c0_i32 : i32, i32, i32
  }
  func.func @transform_1(%arg0: i32, %arg1: i32) -> (i32, i32) {
    %c0_i32 = arith.constant 0 : i32
    %c0_i32_0 = arith.constant 0 : i32
    %c0_i32_1 = arith.constant 0 : i32
    return %c0_i32, %c0_i32_0 : i32, i32
  }
  func.func @transform_2(%arg0: i32, %arg1: i32) -> (i32, i32) {
    %c0_i32 = arith.constant 0 : i32
    %c0_i32_0 = arith.constant 0 : i32
    %c0_i32_1 = arith.constant 0 : i32
    return %c0_i32, %c0_i32_0 : i32, i32
  }
  func.func @transform_3(%arg0: i32, %arg1: i32) -> (i32, i32) {
    %c0_i32 = arith.constant 0 : i32
    %c0_i32_0 = arith.constant 0 : i32
    %c0_i32_1 = arith.constant 0 : i32
    return %c0_i32, %c0_i32_0 : i32, i32
  }
  func.func @transform_4(%arg0: i32, %arg1: i32) -> (i32, i32, i32) {
    %c0_i32 = arith.constant 0 : i32
    %c0_i32_0 = arith.constant 0 : i32
    return %arg0, %arg1, %c0_i32 : i32, i32, i32
  }
}

module attributes {stable_mosaic.version = 11 : i64} {
  func.func @_mm_scale_act_kernel(%arg0: i32, %arg1: i32, %arg2: memref<1x256x144xbf16, #tpu.memory_space<vmem>>, %arg3: memref<144x8xbf16, #tpu.memory_space<vmem>>, %arg4: memref<1x8xf32, #tpu.memory_space<vmem>>, %arg5: memref<1x8xf32, #tpu.memory_space<vmem>>, %arg6: memref<1x256x8xf32, #tpu.memory_space<vmem>>) attributes {dimension_semantics = [#tpu.dimension_semantics<parallel>, #tpu.dimension_semantics<parallel>], iteration_bounds = array<i64: 2, 1>, scalar_prefetch = 0 : i64, scratch_operands = 0 : i64, tpu.core_type = #tpu.core_type<tc>, window_params = [{transform_indices = @transform_0, window_bounds = array<i64: 1, 256, 144>}, {pipeline_mode = #tpu.pipeline_mode<synchronous>, transform_indices = @transform_1, window_bounds = array<i64: 144, 8>}, {pipeline_mode = #tpu.pipeline_mode<synchronous>, transform_indices = @transform_2, window_bounds = array<i64: 1, 8>}, {pipeline_mode = #tpu.pipeline_mode<synchronous>, transform_indices = @transform_3, window_bounds = array<i64: 1, 8>}, {transform_indices = @transform_4, window_bounds = array<i64: 1, 256, 8>}]} {
    %c0 = arith.constant 0 : index
    %c0_0 = arith.constant 0 : index
    %c0_1 = arith.constant 0 : index
    %0 = vector.load %arg2[%c0, %c0_0, %c0_1] : memref<1x256x144xbf16, #tpu.memory_space<vmem>>, vector<1x256x144xbf16>
    %1 = vector.shape_cast %0 : vector<1x256x144xbf16> to vector<256x144xbf16>
    %c0_2 = arith.constant 0 : index
    %c0_3 = arith.constant 0 : index
    %2 = vector.load %arg3[%c0_2, %c0_3] : memref<144x8xbf16, #tpu.memory_space<vmem>>, vector<144x8xbf16>
    %cst = arith.constant dense<0.000000e+00> : vector<256x8xf32>
    %3 = tpu.matmul %1, %2, %cst {dimension_numbers = #tpu.dot_dimension_numbers<[1], [0], [0], [1], [0, 0, 1, 1], [], []>} : vector<256x144xbf16>, vector<144x8xbf16>, vector<256x8xf32> -> vector<256x8xf32>
    %c0_4 = arith.constant 0 : index
    %c0_5 = arith.constant 0 : index
    %4 = vector.load %arg4[%c0_4, %c0_5] : memref<1x8xf32, #tpu.memory_space<vmem>>, vector<1x8xf32>
    %5 = vector.broadcast %4 : vector<1x8xf32> to vector<256x8xf32>
    %6 = arith.mulf %3, %5 : vector<256x8xf32>
    %c0_6 = arith.constant 0 : index
    %c0_7 = arith.constant 0 : index
    %7 = vector.load %arg5[%c0_6, %c0_7] : memref<1x8xf32, #tpu.memory_space<vmem>>, vector<1x8xf32>
    %8 = vector.broadcast %7 : vector<1x8xf32> to vector<256x8xf32>
    %9 = arith.addf %6, %8 : vector<256x8xf32>
    %cst_8 = arith.constant 0.000000e+00 : f32
    %10 = vector.broadcast %cst_8 : f32 to vector<256x8xf32>
    %11 = arith.maximumf %9, %10 : vector<256x8xf32>
    %c0_9 = arith.constant 0 : index
    %c0_10 = arith.constant 0 : index
    %c0_11 = arith.constant 0 : index
    %12 = vector.load %arg6[%c0_9, %c0_10, %c0_11] : memref<1x256x8xf32, #tpu.memory_space<vmem>>, vector<1x256x8xf32>
    %13 = vector.shape_cast %12 : vector<1x256x8xf32> to vector<256x8xf32>
    %14 = vector.shape_cast %11 : vector<256x8xf32> to vector<1x256x8xf32>
    tpu.vector_store %arg6[%c0_9, %c0_10, %c0_11], %14 {strides = array<i32>} : memref<1x256x8xf32, #tpu.memory_space<vmem>>, vector<1x256x8xf32>,
    return
  }
  func.func @transform_0(%arg0: i32, %arg1: i32) -> (i32, i32, i32) {
    %c0_i32 = arith.constant 0 : i32
    %c0_i32_0 = arith.constant 0 : i32
    return %arg0, %arg1, %c0_i32 : i32, i32, i32
  }
  func.func @transform_1(%arg0: i32, %arg1: i32) -> (i32, i32) {
    %c0_i32 = arith.constant 0 : i32
    %c0_i32_0 = arith.constant 0 : i32
    %c0_i32_1 = arith.constant 0 : i32
    return %c0_i32, %c0_i32_0 : i32, i32
  }
  func.func @transform_2(%arg0: i32, %arg1: i32) -> (i32, i32) {
    %c0_i32 = arith.constant 0 : i32
    %c0_i32_0 = arith.constant 0 : i32
    %c0_i32_1 = arith.constant 0 : i32
    return %c0_i32, %c0_i32_0 : i32, i32
  }
  func.func @transform_3(%arg0: i32, %arg1: i32) -> (i32, i32) {
    %c0_i32 = arith.constant 0 : i32
    %c0_i32_0 = arith.constant 0 : i32
    %c0_i32_1 = arith.constant 0 : i32
    return %c0_i32, %c0_i32_0 : i32, i32
  }
  func.func @transform_4(%arg0: i32, %arg1: i32) -> (i32, i32, i32) {
    %c0_i32 = arith.constant 0 : i32
    %c0_i32_0 = arith.constant 0 : i32
    return %arg0, %arg1, %c0_i32 : i32, i32, i32
  }
}

module attributes {stable_mosaic.version = 11 : i64} {
  func.func @_mm_scale_act_kernel(%arg0: i32, %arg1: i32, %arg2: memref<1x256x8xbf16, #tpu.memory_space<vmem>>, %arg3: memref<8x1xbf16, #tpu.memory_space<vmem>>, %arg4: memref<1x1xf32, #tpu.memory_space<vmem>>, %arg5: memref<1x1xf32, #tpu.memory_space<vmem>>, %arg6: memref<1x256x1xf32, #tpu.memory_space<vmem>>) attributes {dimension_semantics = [#tpu.dimension_semantics<parallel>, #tpu.dimension_semantics<parallel>], iteration_bounds = array<i64: 2, 1>, scalar_prefetch = 0 : i64, scratch_operands = 0 : i64, tpu.core_type = #tpu.core_type<tc>, window_params = [{transform_indices = @transform_0, window_bounds = array<i64: 1, 256, 8>}, {pipeline_mode = #tpu.pipeline_mode<synchronous>, transform_indices = @transform_1, window_bounds = array<i64: 8, 1>}, {pipeline_mode = #tpu.pipeline_mode<synchronous>, transform_indices = @transform_2, window_bounds = array<i64: 1, 1>}, {pipeline_mode = #tpu.pipeline_mode<synchronous>, transform_indices = @transform_3, window_bounds = array<i64: 1, 1>}, {transform_indices = @transform_4, window_bounds = array<i64: 1, 256, 1>}]} {
    %c0 = arith.constant 0 : index
    %c0_0 = arith.constant 0 : index
    %c0_1 = arith.constant 0 : index
    %0 = vector.load %arg2[%c0, %c0_0, %c0_1] : memref<1x256x8xbf16, #tpu.memory_space<vmem>>, vector<1x256x8xbf16>
    %1 = vector.shape_cast %0 : vector<1x256x8xbf16> to vector<256x8xbf16>
    %c0_2 = arith.constant 0 : index
    %c0_3 = arith.constant 0 : index
    %2 = vector.load %arg3[%c0_2, %c0_3] : memref<8x1xbf16, #tpu.memory_space<vmem>>, vector<8x1xbf16>
    %cst = arith.constant dense<0.000000e+00> : vector<256x1xf32>
    %3 = tpu.matmul %1, %2, %cst {dimension_numbers = #tpu.dot_dimension_numbers<[1], [0], [0], [1], [0, 0, 1, 1], [], []>} : vector<256x8xbf16>, vector<8x1xbf16>, vector<256x1xf32> -> vector<256x1xf32>
    %c0_4 = arith.constant 0 : index
    %c0_5 = arith.constant 0 : index
    %4 = vector.load %arg4[%c0_4, %c0_5] : memref<1x1xf32, #tpu.memory_space<vmem>>, vector<1x1xf32>
    %5 = vector.broadcast %4 : vector<1x1xf32> to vector<256x1xf32>
    %6 = arith.mulf %3, %5 : vector<256x1xf32>
    %c0_6 = arith.constant 0 : index
    %c0_7 = arith.constant 0 : index
    %7 = vector.load %arg5[%c0_6, %c0_7] : memref<1x1xf32, #tpu.memory_space<vmem>>, vector<1x1xf32>
    %8 = vector.broadcast %7 : vector<1x1xf32> to vector<256x1xf32>
    %9 = arith.addf %6, %8 : vector<256x1xf32>
    %c0_8 = arith.constant 0 : index
    %c0_9 = arith.constant 0 : index
    %c0_10 = arith.constant 0 : index
    %10 = vector.load %arg6[%c0_8, %c0_9, %c0_10] : memref<1x256x1xf32, #tpu.memory_space<vmem>>, vector<1x256x1xf32>
    %11 = vector.shape_cast %10 : vector<1x256x1xf32> to vector<256x1xf32>
    %12 = vector.shape_cast %9 : vector<256x1xf32> to vector<1x256x1xf32>
    tpu.vector_store %arg6[%c0_8, %c0_9, %c0_10], %12 {strides = array<i32>} : memref<1x256x1xf32, #tpu.memory_space<vmem>>, vector<1x256x1xf32>,
    return
  }
  func.func @transform_0(%arg0: i32, %arg1: i32) -> (i32, i32, i32) {
    %c0_i32 = arith.constant 0 : i32
    %c0_i32_0 = arith.constant 0 : i32
    return %arg0, %arg1, %c0_i32 : i32, i32, i32
  }
  func.func @transform_1(%arg0: i32, %arg1: i32) -> (i32, i32) {
    %c0_i32 = arith.constant 0 : i32
    %c0_i32_0 = arith.constant 0 : i32
    %c0_i32_1 = arith.constant 0 : i32
    return %c0_i32, %c0_i32_0 : i32, i32
  }
  func.func @transform_2(%arg0: i32, %arg1: i32) -> (i32, i32) {
    %c0_i32 = arith.constant 0 : i32
    %c0_i32_0 = arith.constant 0 : i32
    %c0_i32_1 = arith.constant 0 : i32
    return %c0_i32, %c0_i32_0 : i32, i32
  }
  func.func @transform_3(%arg0: i32, %arg1: i32) -> (i32, i32) {
    %c0_i32 = arith.constant 0 : i32
    %c0_i32_0 = arith.constant 0 : i32
    %c0_i32_1 = arith.constant 0 : i32
    return %c0_i32, %c0_i32_0 : i32, i32
  }
  func.func @transform_4(%arg0: i32, %arg1: i32) -> (i32, i32, i32) {
    %c0_i32 = arith.constant 0 : i32
    %c0_i32_0 = arith.constant 0 : i32
    return %arg0, %arg1, %c0_i32 : i32, i32, i32
  }
}

module attributes {stable_mosaic.version = 11 : i64} {
  func.func @_mm_scale_act_kernel(%arg0: i32, %arg1: i32, %arg2: memref<1x256x18xbf16, #tpu.memory_space<vmem>>, %arg3: memref<18x8xbf16, #tpu.memory_space<vmem>>, %arg4: memref<1x8xf32, #tpu.memory_space<vmem>>, %arg5: memref<1x8xf32, #tpu.memory_space<vmem>>, %arg6: memref<1x256x8xf32, #tpu.memory_space<vmem>>) attributes {dimension_semantics = [#tpu.dimension_semantics<parallel>, #tpu.dimension_semantics<parallel>], iteration_bounds = array<i64: 2, 1>, scalar_prefetch = 0 : i64, scratch_operands = 0 : i64, tpu.core_type = #tpu.core_type<tc>, window_params = [{transform_indices = @transform_0, window_bounds = array<i64: 1, 256, 18>}, {pipeline_mode = #tpu.pipeline_mode<synchronous>, transform_indices = @transform_1, window_bounds = array<i64: 18, 8>}, {pipeline_mode = #tpu.pipeline_mode<synchronous>, transform_indices = @transform_2, window_bounds = array<i64: 1, 8>}, {pipeline_mode = #tpu.pipeline_mode<synchronous>, transform_indices = @transform_3, window_bounds = array<i64: 1, 8>}, {transform_indices = @transform_4, window_bounds = array<i64: 1, 256, 8>}]} {
    %c0 = arith.constant 0 : index
    %c0_0 = arith.constant 0 : index
    %c0_1 = arith.constant 0 : index
    %0 = vector.load %arg2[%c0, %c0_0, %c0_1] : memref<1x256x18xbf16, #tpu.memory_space<vmem>>, vector<1x256x18xbf16>
    %1 = vector.shape_cast %0 : vector<1x256x18xbf16> to vector<256x18xbf16>
    %c0_2 = arith.constant 0 : index
    %c0_3 = arith.constant 0 : index
    %2 = vector.load %arg3[%c0_2, %c0_3] : memref<18x8xbf16, #tpu.memory_space<vmem>>, vector<18x8xbf16>
    %cst = arith.constant dense<0.000000e+00> : vector<256x8xf32>
    %3 = tpu.matmul %1, %2, %cst {dimension_numbers = #tpu.dot_dimension_numbers<[1], [0], [0], [1], [0, 0, 1, 1], [], []>} : vector<256x18xbf16>, vector<18x8xbf16>, vector<256x8xf32> -> vector<256x8xf32>
    %c0_4 = arith.constant 0 : index
    %c0_5 = arith.constant 0 : index
    %4 = vector.load %arg4[%c0_4, %c0_5] : memref<1x8xf32, #tpu.memory_space<vmem>>, vector<1x8xf32>
    %5 = vector.broadcast %4 : vector<1x8xf32> to vector<256x8xf32>
    %6 = arith.mulf %3, %5 : vector<256x8xf32>
    %c0_6 = arith.constant 0 : index
    %c0_7 = arith.constant 0 : index
    %7 = vector.load %arg5[%c0_6, %c0_7] : memref<1x8xf32, #tpu.memory_space<vmem>>, vector<1x8xf32>
    %8 = vector.broadcast %7 : vector<1x8xf32> to vector<256x8xf32>
    %9 = arith.addf %6, %8 : vector<256x8xf32>
    %cst_8 = arith.constant 0.000000e+00 : f32
    %10 = vector.broadcast %cst_8 : f32 to vector<256x8xf32>
    %11 = arith.maximumf %9, %10 : vector<256x8xf32>
    %c0_9 = arith.constant 0 : index
    %c0_10 = arith.constant 0 : index
    %c0_11 = arith.constant 0 : index
    %12 = vector.load %arg6[%c0_9, %c0_10, %c0_11] : memref<1x256x8xf32, #tpu.memory_space<vmem>>, vector<1x256x8xf32>
    %13 = vector.shape_cast %12 : vector<1x256x8xf32> to vector<256x8xf32>
    %14 = vector.shape_cast %11 : vector<256x8xf32> to vector<1x256x8xf32>
    tpu.vector_store %arg6[%c0_9, %c0_10, %c0_11], %14 {strides = array<i32>} : memref<1x256x8xf32, #tpu.memory_space<vmem>>, vector<1x256x8xf32>,
    return
  }
  func.func @transform_0(%arg0: i32, %arg1: i32) -> (i32, i32, i32) {
    %c0_i32 = arith.constant 0 : i32
    %c0_i32_0 = arith.constant 0 : i32
    return %arg0, %arg1, %c0_i32 : i32, i32, i32
  }
  func.func @transform_1(%arg0: i32, %arg1: i32) -> (i32, i32) {
    %c0_i32 = arith.constant 0 : i32
    %c0_i32_0 = arith.constant 0 : i32
    %c0_i32_1 = arith.constant 0 : i32
    return %c0_i32, %c0_i32_0 : i32, i32
  }
  func.func @transform_2(%arg0: i32, %arg1: i32) -> (i32, i32) {
    %c0_i32 = arith.constant 0 : i32
    %c0_i32_0 = arith.constant 0 : i32
    %c0_i32_1 = arith.constant 0 : i32
    return %c0_i32, %c0_i32_0 : i32, i32
  }
  func.func @transform_3(%arg0: i32, %arg1: i32) -> (i32, i32) {
    %c0_i32 = arith.constant 0 : i32
    %c0_i32_0 = arith.constant 0 : i32
    %c0_i32_1 = arith.constant 0 : i32
    return %c0_i32, %c0_i32_0 : i32, i32
  }
  func.func @transform_4(%arg0: i32, %arg1: i32) -> (i32, i32, i32) {
    %c0_i32 = arith.constant 0 : i32
    %c0_i32_0 = arith.constant 0 : i32
    return %arg0, %arg1, %c0_i32 : i32, i32, i32
  }
}

</mosaic_0001>

<llo_original>
// kernel: dual_stream_unet.46
$region0: #{dual_stream_unet.46}
  #allocation0 [shape = 'u32[]', space=smem, size = 0x4, offset = 0x4, fixed_abs, tag = 'smem constant byte address 0x4 - core index']
  #allocation1 [shape = 'u32[144,128]{1,0:T(1,128)}', space=vmem, size = 0x12000, scoped, tag = 'internal scratch']
  %s0 = inlined_call_operand.vmem [shape: bf16[2,256,72], index: 0, kind: input, shape index: {}]
  %s1 = inlined_call_operand.vmem [shape: bf16[72,8], index: 1, kind: input, shape index: {}]
  %s2 = inlined_call_operand.vmem [shape: f32[1,8], index: 2, kind: input, shape index: {}]
  %s3 = inlined_call_operand.vmem [shape: f32[1,8], index: 3, kind: input, shape index: {}]
  %s4 = inlined_call_operand.vmem [shape: f32[2,256,8], index: 4, kind: output, shape index: {}]
  %s5 = sld [smem:[#allocation0]]
  $region49: #{dual_stream_unet.46} parent=0
    _
  %s7 = ssub.s32 1, %s5
  %s8 = scalar_select 0, %s7, %s5
  loop: start=0, step=1, limit=4
  $region2: #{dual_stream_unet.46} parent=0 // loop_pre_header
    _
  $region3: #{dual_stream_unet.46} parent=0 // loop_header
    %s10 = sphi 0, %s14
    %p11 = scmp.ge.s32.totalorder %s10, 4
    %s17 = sphi 0, %s29
    %s18 = sphi 0, %s25
    %s19 = sphi 0, %s17
    %s20 = sphi 0, %s18
    %s21 = sphi 0, %s19
    %s22 = sphi 0, %s20
    %s34 = sphi 0, %s36
    %s37 = sphi 0, %s34
    %s38 = sphi 0, %s37
    %s54 = sphi 0, %s38
    %s58 = sphi 0, %s58
    %s60 = sphi 0, %s58
    %s61 = sphi 0, %s60
    %s75 = sphi 0, %s61
    %s79 = sphi 0, %s79
    %s81 = sphi 0, %s79
    %s82 = sphi 0, %s81
    %s96 = sphi 0, %s82
    %s100 = sphi 0, %s100
    %s102 = sphi 0, %s100
    %s103 = sphi 0, %s102
    %s117 = sphi 0, %s103
    %s125 = sphi 0, %s127
    %s128 = sphi 0, %s125
    %s129 = sphi 0, %s128
    %s145 = sphi 0, %s129
  $region4: #{dual_stream_unet.46} parent=0 // loop_header_branch
    %13 = sbr.rel (%p11) target = $region8
  $region5: #{dual_stream_unet.46} parent=0 // loop_body
    %s15 = ssub.s32 %s10, 1
    %s16 = ssub.s32 %s10, 2
    %s23 = sadd.s32 1, %s18
    %p24 = scmp.ge.s32.totalorder %s23, 1
    %s25 = scalar_select %p24, 0, %s23
    %s26 = sadd.s32 1, %s17
    %s27 = scalar_select %p24, %s26, %s17
    %p28 = scmp.ge.s32.totalorder %s27, 2
    %s29 = scalar_select %p28, 0, %s27
    %s30 = ssub.s32 %s17, %s29
    %s31 = ssub.s32 %s18, %s25
    %s32 = sor.u32 %s30, %s31
    %p33 = scmp.eq.s32.totalorder %s32, 0
    %s35 = sadd.s32 %s34, 1
    %s36 = scalar_select %p33, %s34, %s35
    %p39 = pneg %p33
    %p40 = scmp.eq.s32.totalorder %s10, 1
    %p41 = por %p39, %p40
    %p42 = scmp.ne.s32.totalorder %s34, %s37
    %p43 = scmp.eq.s32.totalorder %s10, 0
    %p44 = por %p42, %p43
    %p45 = scmp.ne.s32.totalorder %s34, %s37
    %p46 = scmp.eq.s32.totalorder %s15, 1
    %p47 = por %p45, %p46
    %p48 = scmp.ne.s32.totalorder %s37, %s38
    %p49 = scmp.eq.s32.totalorder %s15, 0
    %p50 = por %p48, %p49
    %p51 = scmp.ne.s32.totalorder %s37, %s38
    %p52 = scmp.eq.s32.totalorder %s16, 1
    %p53 = por %p51, %p52
    %p55 = scmp.ne.s32.totalorder %s38, %s54
    %p56 = scmp.eq.s32.totalorder %s16, 0
    %p57 = por %p55, %p56
    %s59 = sadd.s32 %s58, 1
    %p62 = scmp.eq.s32.totalorder %s10, 1
    %p63 = scmp.ne.s32.totalorder %s58, %s60
    %p64 = scmp.eq.s32.totalorder %s10, 0
    %p65 = por %p63, %p64
    %p66 = scmp.ne.s32.totalorder %s58, %s60
    %p67 = scmp.eq.s32.totalorder %s15, 1
    %p68 = por %p66, %p67
    %p69 = scmp.ne.s32.totalorder %s60, %s61
    %p70 = scmp.eq.s32.totalorder %s15, 0
    %p71 = por %p69, %p70
    %p72 = scmp.ne.s32.totalorder %s60, %s61
    %p73 = scmp.eq.s32.totalorder %s16, 1
    %p74 = por %p72, %p73
    %p76 = scmp.ne.s32.totalorder %s61, %s75
    %p77 = scmp.eq.s32.totalorder %s16, 0
    %p78 = por %p76, %p77
    %s80 = sadd.s32 %s79, 1
    %p83 = scmp.eq.s32.totalorder %s10, 1
    %p84 = scmp.ne.s32.totalorder %s79, %s81
    %p85 = scmp.eq.s32.totalorder %s10, 0
    %p86 = por %p84, %p85
    %p87 = scmp.ne.s32.totalorder %s79, %s81
    %p88 = scmp.eq.s32.totalorder %s15, 1
    %p89 = por %p87, %p88
    %p90 = scmp.ne.s32.totalorder %s81, %s82
    %p91 = scmp.eq.s32.totalorder %s15, 0
    %p92 = por %p90, %p91
    %p93 = scmp.ne.s32.totalorder %s81, %s82
    %p94 = scmp.eq.s32.totalorder %s16, 1
    %p95 = por %p93, %p94
    %p97 = scmp.ne.s32.totalorder %s82, %s96
    %p98 = scmp.eq.s32.totalorder %s16, 0
    %p99 = por %p97, %p98
    %s101 = sadd.s32 %s100, 1
    %p104 = scmp.eq.s32.totalorder %s10, 1
    %p105 = scmp.ne.s32.totalorder %s100, %s102
    %p106 = scmp.eq.s32.totalorder %s10, 0
    %p107 = por %p105, %p106
    %p108 = scmp.ne.s32.totalorder %s100, %s102
    %p109 = scmp.eq.s32.totalorder %s15, 1
    %p110 = por %p108, %p109
    %p111 = scmp.ne.s32.totalorder %s102, %s103
    %p112 = scmp.eq.s32.totalorder %s15, 0
    %p113 = por %p111, %p112
    %p114 = scmp.ne.s32.totalorder %s102, %s103
    %p115 = scmp.eq.s32.totalorder %s16, 1
    %p116 = por %p114, %p115
    %p118 = scmp.ne.s32.totalorder %s103, %s117
    %p119 = scmp.eq.s32.totalorder %s16, 0
    %p120 = por %p118, %p119
    %s121 = ssub.s32 %s17, %s29
    %s122 = ssub.s32 %s18, %s25
    %s123 = sor.u32 %s121, %s122
    %p124 = scmp.eq.s32.totalorder %s123, 0
    %s126 = sadd.s32 %s125, 1
    %s127 = scalar_select %p124, %s125, %s126
    %p130 = pneg %p124
    %p131 = scmp.eq.s32.totalorder %s10, 1
    %p132 = por %p130, %p131
    %p133 = scmp.ne.s32.totalorder %s125, %s128
    %p134 = scmp.eq.s32.totalorder %s10, 0
    %p135 = por %p133, %p134
    %p136 = scmp.ne.s32.totalorder %s125, %s128
    %p137 = scmp.eq.s32.totalorder %s15, 1
    %p138 = por %p136, %p137
    %p139 = scmp.ne.s32.totalorder %s128, %s129
    %p140 = scmp.eq.s32.totalorder %s15, 0
    %p141 = por %p139, %p140
    %p142 = scmp.ne.s32.totalorder %s128, %s129
    %p143 = scmp.eq.s32.totalorder %s16, 1
    %p144 = por %p142, %p143
    %p146 = scmp.ne.s32.totalorder %s129, %s145
    %p147 = scmp.eq.s32.totalorder %s16, 0
    %p148 = por %p146, %p147
    %p149 = scmp.le.s32.totalorder 1, %s10
    %p150 = scmp.lt.s32.totalorder %s10, 3
    %p151 = pnand %p149, %p150
    %p152 = pneg %p151
    // Predicated region
    $region9: #{dual_stream_unet.46} parent=5 // pred_check
      _
    $region10: #{dual_stream_unet.46} parent=5 // pred_check_branch
      %154 = sbr.rel (%p151) target = $region12
    $region11: #{dual_stream_unet.46} parent=5 // pred_region
      %s155 = ssub.s32 %s10, 1
      // Predicated region
      $region13: #{dual_stream_unet.46} parent=11 // pred_check
        %p156 = pneg %p71
      $region14: #{dual_stream_unet.46} parent=11 // pred_check_branch
        %158 = sbr.rel (%p156) target = $region16
      $region15: #{dual_stream_unet.46} parent=11 // pred_region
        _
      $region16: #{dual_stream_unet.46} parent=11 // pred_fallthru
        _
      // Predicated region
      $region17: #{dual_stream_unet.46} parent=11 // pred_check
        %p159 = pneg %p92
      $region18: #{dual_stream_unet.46} parent=11 // pred_check_branch
        %161 = sbr.rel (%p159) target = $region20
      $region19: #{dual_stream_unet.46} parent=11 // pred_region
        _
      $region20: #{dual_stream_unet.46} parent=11 // pred_fallthru
        _
      // Predicated region
      $region21: #{dual_stream_unet.46} parent=11 // pred_check
        %p162 = pneg %p113
      $region22: #{dual_stream_unet.46} parent=11 // pred_check_branch
        %164 = sbr.rel (%p162) target = $region24
      $region23: #{dual_stream_unet.46} parent=11 // pred_region
        _
      $region24: #{dual_stream_unet.46} parent=11 // pred_fallthru
        _
    $region12: #{dual_stream_unet.46} parent=5 // pred_fallthru
      _
    %p165 = scmp.lt.s32.totalorder %s10, 2
    // Predicated region
    $region25: #{dual_stream_unet.46} parent=5 // pred_check
      %p166 = pneg %p165
    $region26: #{dual_stream_unet.46} parent=5 // pred_check_branch
      %168 = sbr.rel (%p166) target = $region28
    $region27: #{dual_stream_unet.46} parent=5 // pred_region
      // Predicated region
      $region29: #{dual_stream_unet.46} parent=27 // pred_check
        %p169 = pneg %p44
      $region30: #{dual_stream_unet.46} parent=27 // pred_check_branch
        %171 = sbr.rel (%p169) target = $region32
      $region31: #{dual_stream_unet.46} parent=27 // pred_region
        %s172 = smul.u32 32, %s18
        %p173 = scmp.lt.s32.totalorder %s17, 1
        %s174 = scalar_select %p173, %s17, 1
        %p175 = scmp.lt.s32.totalorder %s172, 31
        %s176 = scalar_select %p175, %s172, 31
        %s177 = smul.addr %s174, 32
        %s178 = sadd.s32 %s176, %s177
        %s179 = smul.addr %s178, 4
        %s180 = scalar_lea.vmem %s0, %s179
        %s181 = smul.u32 32, %s18
      $region32: #{dual_stream_unet.46} parent=27 // pred_fallthru
        _
    $region28: #{dual_stream_unet.46} parent=5 // pred_fallthru
      _
    %p182 = scmp.le.s32.totalorder 1, %s10
    %p183 = scmp.lt.s32.totalorder %s10, 3
    %p184 = pnand %p182, %p183
    %p185 = pneg %p184
    // Predicated region
    $region33: #{dual_stream_unet.46} parent=5 // pred_check
      _
    $region34: #{dual_stream_unet.46} parent=5 // pred_check_branch
      %187 = sbr.rel (%p184) target = $region36
    $region35: #{dual_stream_unet.46} parent=5 // pred_region
      %s188 = ssub.s32 %s10, 1
      %s189 = smul.u32 32, %s20
      %p190 = scmp.lt.s32.totalorder %s19, 1
      %s191 = scalar_select %p190, %s19, 1
      %p192 = scmp.lt.s32.totalorder %s189, 31
      %s193 = scalar_select %p192, %s189, 31
      %s194 = smul.addr %s191, 32
      %s195 = sadd.s32 %s193, %s194
      %s196 = smul.addr %s195, 4
      %s197 = scalar_lea.vmem %s0, %s196
      %p198 = pneg %p50
      %p199 = pneg %p47
      %p200 = pneg %p71
      %p201 = pneg %p68
      %p202 = pneg %p92
      %p203 = pneg %p89
      %p204 = pneg %p113
      %p205 = pneg %p110
      %p206 = pneg %p141
      %p207 = pneg %p138
      %s208 = smul.u32 32, %s20
      %p209 = scmp.lt.s32.totalorder %s19, 1
      %s210 = scalar_select %p209, %s19, 1
      %p211 = scmp.lt.s32.totalorder %s208, 31
      %s212 = scalar_select %p211, %s208, 31
      %s213 = smul.addr %s210, 32
      %s214 = sadd.s32 %s212, %s213
      %s215 = smul.addr %s214, 8
      %s216 = scalar_lea.vmem %s4, %s215
      %s217 = smul.u32 32, %s20
      %p218 = scmp.lt.s32.totalorder %s19, 1
      %s219 = scalar_select %p218, %s19, 1
      %p220 = scmp.lt.s32.totalorder %s217, 31
      %s221 = scalar_select %p220, %s217, 31
      %s222 = smul.addr %s219, 32
      %s223 = sadd.s32 %s221, %s222
      %s224 = smul.addr %s223, 4
      %s225 = scalar_lea.vmem %s0, %s224
      %s226 = smul.u32 32, %s20
      %s227 = smul.u32 32, %s20
      %p228 = scmp.lt.s32.totalorder %s19, 1
      %s229 = scalar_select %p228, %s19, 1
      %p230 = scmp.lt.s32.totalorder %s227, 31
      %s231 = scalar_select %p230, %s227, 31
      %s232 = smul.addr %s229, 32
      %s233 = sadd.s32 %s231, %s232
      %s234 = smul.addr %s233, 8
      %s235 = scalar_lea.vmem %s4, %s234
      %s236 = smul.u32 32, %s20
      %v238 = vld [vmem:[%s225] sm:$0xf]
      %v239 = vld [vmem:[%s225 + $0x4] sm:$0xf]
      %v240 = vld [vmem:[%s225 + $0x8] sm:$0xf]
      %v241 = vld [vmem:[%s225 + $0xc] sm:$0xf]
      %v242 = vld [vmem:[%s225 + $0x10] sm:$0xf]
      %v243 = vld [vmem:[%s225 + $0x14] sm:$0xf]
      %v244 = vld [vmem:[%s225 + $0x18] sm:$0xf]
      %v245 = vld [vmem:[%s225 + $0x1c] sm:$0xf]
      %v246 = vld [vmem:[%s225 + $0x20] sm:$0xf]
      %v247 = vld [vmem:[%s225 + $0x24] sm:$0xf]
      %v248 = vld [vmem:[%s225 + $0x28] sm:$0xf]
      %v249 = vld [vmem:[%s225 + $0x2c] sm:$0xf]
      %v250 = vld [vmem:[%s225 + $0x30] sm:$0xf]
      %v251 = vld [vmem:[%s225 + $0x34] sm:$0xf]
      %v252 = vld [vmem:[%s225 + $0x38] sm:$0xf]
      %v253 = vld [vmem:[%s225 + $0x3c] sm:$0xf]
      %v254 = vld [vmem:[%s225 + $0x40] sm:$0xf]
      %v255 = vld [vmem:[%s225 + $0x44] sm:$0xf]
      %v256 = vld [vmem:[%s225 + $0x48] sm:$0xf]
      %v257 = vld [vmem:[%s225 + $0x4c] sm:$0xf]
      %v258 = vld [vmem:[%s225 + $0x50] sm:$0xf]
      %v259 = vld [vmem:[%s225 + $0x54] sm:$0xf]
      %v260 = vld [vmem:[%s225 + $0x58] sm:$0xf]
      %v261 = vld [vmem:[%s225 + $0x5c] sm:$0xf]
      %v262 = vld [vmem:[%s225 + $0x60] sm:$0xf]
      %v263 = vld [vmem:[%s225 + $0x64] sm:$0xf]
      %v264 = vld [vmem:[%s225 + $0x68] sm:$0xf]
      %v265 = vld [vmem:[%s225 + $0x6c] sm:$0xf]
      %v266 = vld [vmem:[%s225 + $0x70] sm:$0xf]
      %v267 = vld [vmem:[%s225 + $0x74] sm:$0xf]
      %v268 = vld [vmem:[%s225 + $0x78] sm:$0xf]
      %v269 = vld [vmem:[%s225 + $0x7c] sm:$0xf]
      %v270 = vld [vmem:[%s1] sm:$0xf]
      %v271 = vld [vmem:[%s1 + $0x4] sm:$0xf]
      %v272 = vld [vmem:[%s1 + $0x8] sm:$0xf]
      %v273 = vld [vmem:[%s1 + $0xc] sm:$0xf]
      %v274 = vld [vmem:[%s1 + $0x10] sm:$0xf]
      %v275 = vld [vmem:[%s1 + $0x14] sm:$0xf]
      %v276 = vld [vmem:[%s1 + $0x18] sm:$0xf]
      %v277 = vld [vmem:[%s1 + $0x1c] sm:$0xf]
      %v278 = vld [vmem:[%s1 + $0x20] sm:$0xf]
      %v311 = vunpack.c.l.b16 %v238
      %v312 = vunpack.c.l.b16 %v239
      %v313 = vunpack.c.l.b16 %v240
      %v314 = vunpack.c.l.b16 %v241
      %v315 = vunpack.c.l.b16 %v242
      %v316 = vunpack.c.l.b16 %v243
      %v317 = vunpack.c.l.b16 %v244
      %v318 = vunpack.c.l.b16 %v245
      %v319 = vunpack.c.l.b16 %v246
      %v320 = vunpack.c.l.b16 %v247
      %v321 = vunpack.c.l.b16 %v248
      %v322 = vunpack.c.l.b16 %v249
      %v323 = vunpack.c.l.b16 %v250
      %v324 = vunpack.c.l.b16 %v251
      %v325 = vunpack.c.l.b16 %v252
      %v326 = vunpack.c.l.b16 %v253
      %v327 = vunpack.c.l.b16 %v254
      %v328 = vunpack.c.l.b16 %v255
      %v329 = vunpack.c.l.b16 %v256
      %v330 = vunpack.c.l.b16 %v257
      %v331 = vunpack.c.l.b16 %v258
      %v332 = vunpack.c.l.b16 %v259
      %v333 = vunpack.c.l.b16 %v260
      %v334 = vunpack.c.l.b16 %v261
      %v335 = vunpack.c.l.b16 %v262
      %v336 = vunpack.c.l.b16 %v263
      %v337 = vunpack.c.l.b16 %v264
      %v338 = vunpack.c.l.b16 %v265
      %v339 = vunpack.c.l.b16 %v266
      %v340 = vunpack.c.l.b16 %v267
      %v341 = vunpack.c.l.b16 %v268
      %v342 = vunpack.c.l.b16 %v269
      %v343 = vpack.c.b16 %v312, %v311
      %v344 = vpack.c.b16 %v314, %v313
      %v345 = vpack.c.b16 %v316, %v315
      %v346 = vpack.c.b16 %v318, %v317
      %v347 = vpack.c.b16 %v320, %v319
      %v348 = vpack.c.b16 %v322, %v321
      %v349 = vpack.c.b16 %v324, %v323
      %v350 = vpack.c.b16 %v326, %v325
      %v351 = vpack.c.b16 %v328, %v327
      %v352 = vpack.c.b16 %v330, %v329
      %v353 = vpack.c.b16 %v332, %v331
      %v354 = vpack.c.b16 %v334, %v333
      %v355 = vpack.c.b16 %v336, %v335
      %v356 = vpack.c.b16 %v338, %v337
      %v357 = vpack.c.b16 %v340, %v339
      %v358 = vpack.c.b16 %v342, %v341
      %v368 = vunpack.c.l.b16 %v270
      %v369 = vunpack.c.l.b16 %v271
      %v370 = vunpack.c.l.b16 %v272
      %v371 = vunpack.c.l.b16 %v273
      %v372 = vunpack.c.l.b16 %v274
      %v373 = vunpack.c.l.b16 %v275
      %v374 = vunpack.c.l.b16 %v276
      %v375 = vunpack.c.l.b16 %v277
      %v376 = vunpack.c.l.b16 %v278
      %v377 = vpack.c.b16 %v369, %v368
      %v378 = vpack.c.b16 %v371, %v370
      %v379 = vpack.c.b16 %v373, %v372
      %v380 = vpack.c.b16 %v375, %v374
      %v381 = vpack.c.b16 %v376, %v376
      %vm386 = vcmask 588800
      %v388 = vsel %vm386, %v343, 0
      %v391 = vsel %vm386, %v344, 0
      %v394 = vsel %vm386, %v345, 0
      %v397 = vsel %vm386, %v346, 0
      %v400 = vsel %vm386, %v347, 0
      %v403 = vsel %vm386, %v348, 0
      %v406 = vsel %vm386, %v349, 0
      %v409 = vsel %vm386, %v350, 0
      %v412 = vsel %vm386, %v351, 0
      %v415 = vsel %vm386, %v352, 0
      %v418 = vsel %vm386, %v353, 0
      %v421 = vsel %vm386, %v354, 0
      %v424 = vsel %vm386, %v355, 0
      %v427 = vsel %vm386, %v356, 0
      %v430 = vsel %vm386, %v357, 0
      %v433 = vsel %vm386, %v358, 0
      %vm435 = vcmask 1043456
      %v437 = vsel %vm435, %v381, 0
      %439 = vmatprep.subr.bf16.mxu0 0
      %440 = vmatpush1.bf16.msra.mxu0 %v377
      %441 = vmatprep.subr.bf16.mxu0 0
      %442 = vmatpush1.bf16.msra.mxu0 %v378
      %443 = vmatprep.subr.bf16.mxu0 0
      %444 = vmatpush1.bf16.msra.mxu0 %v379
      %445 = vmatprep.subr.bf16.mxu0 0
      %446 = vmatpush1.bf16.msra.mxu0 %v380
      %447 = vmatprep.subr.bf16.mxu0 0
      %448 = vmatpush1.bf16.msra.mxu0 %v437
      %449 = vmatprep.subr.bf16.mxu0 0
      %450 = vmatpush1.bf16.msra.mxu0 0
      %451 = vmatprep.subr.bf16.mxu0 0
      %452 = vmatpush1.bf16.msra.mxu0 0
      %453 = vmatprep.subr.bf16.mxu0 0
      %454 = vmatpush1.bf16.msra.mxu0 0
      %455 = vmatprep.subr.bf16.mxu0 0
      %456 = vmatpush1.bf16.msra.mxu0 0
      %457 = vmatprep.subr.bf16.mxu0 0
      %458 = vmatpush1.bf16.msra.mxu0 0
      %459 = vmatprep.subr.bf16.mxu0 0
      %460 = vmatpush1.bf16.msra.mxu0 0
      %461 = vmatprep.subr.bf16.mxu0 0
      %462 = vmatpush1.bf16.msra.mxu0 0
      %463 = vmatprep.subr.bf16.mxu0 0
      %464 = vmatpush1.bf16.msra.mxu0 0
      %465 = vmatprep.subr.bf16.mxu0 0
      %466 = vmatpush1.bf16.msra.mxu0 0
      %467 = vmatprep.subr.bf16.mxu0 0
      %468 = vmatpush1.bf16.msra.mxu0 0
      %469 = vmatprep.subr.bf16.mxu0 0
      %470 = vmatpush1.bf16.msra.mxu0 0
      %471 = vmatprep.mubr.bf16.mxu0 0
      %472 = vmatmul.mubr.bf16.gmra.mrb[0].mxu0 %v388
      %v473 = vpop.f32.mrb[0].mxu0
      %v474 = vadd.f32 0.0, %v473
      %v475 = vpop.f32.mrb[0].mxu0
      %v476 = vpop.f32.mrb[0].mxu0
      %v477 = vadd.f32 0.0, %v476
      %v478 = vpop.f32.mrb[0].mxu0
      %479 = vmatprep.mubr.bf16.mxu0 0
      %480 = vmatmul.mubr.bf16.gmra.mrb[0].mxu0 %v391
      %v481 = vpop.f32.mrb[0].mxu0
      %v482 = vadd.f32 0.0, %v481
      %v483 = vpop.f32.mrb[0].mxu0
      %v484 = vpop.f32.mrb[0].mxu0
      %v485 = vadd.f32 0.0, %v484
      %v486 = vpop.f32.mrb[0].mxu0
      %487 = vmatprep.mubr.bf16.mxu0 0
      %488 = vmatmul.mubr.bf16.gmra.mrb[0].mxu0 %v394
      %v489 = vpop.f32.mrb[0].mxu0
      %v490 = vadd.f32 0.0, %v489
      %v491 = vpop.f32.mrb[0].mxu0
      %v492 = vpop.f32.mrb[0].mxu0
      %v493 = vadd.f32 0.0, %v492
      %v494 = vpop.f32.mrb[0].mxu0
      %495 = vmatprep.mubr.bf16.mxu0 0
      %496 = vmatmul.mubr.bf16.gmra.mrb[0].mxu0 %v397
      %v497 = vpop.f32.mrb[0].mxu0
      %v498 = vadd.f32 0.0, %v497
      %v499 = vpop.f32.mrb[0].mxu0
      %v500 = vpop.f32.mrb[0].mxu0
      %v501 = vadd.f32 0.0, %v500
      %v502 = vpop.f32.mrb[0].mxu0
      %503 = vmatprep.mubr.bf16.mxu0 0
      %504 = vmatmul.mubr.bf16.gmra.mrb[0].mxu0 %v400
      %v505 = vpop.f32.mrb[0].mxu0
      %v506 = vadd.f32 0.0, %v505
      %v507 = vpop.f32.mrb[0].mxu0
      %v508 = vpop.f32.mrb[0].mxu0
      %v509 = vadd.f32 0.0, %v508
      %v510 = vpop.f32.mrb[0].mxu0
      %511 = vmatprep.mubr.bf16.mxu0 0
      %512 = vmatmul.mubr.bf16.gmra.mrb[0].mxu0 %v403
      %v513 = vpop.f32.mrb[0].mxu0
      %v514 = vadd.f32 0.0, %v513
      %v515 = vpop.f32.mrb[0].mxu0
      %v516 = vpop.f32.mrb[0].mxu0
      %v517 = vadd.f32 0.0, %v516
      %v518 = vpop.f32.mrb[0].mxu0
      %519 = vmatprep.mubr.bf16.mxu0 0
      %520 = vmatmul.mubr.bf16.gmra.mrb[0].mxu0 %v406
      %v521 = vpop.f32.mrb[0].mxu0
      %v522 = vadd.f32 0.0, %v521
      %v523 = vpop.f32.mrb[0].mxu0
      %v524 = vpop.f32.mrb[0].mxu0
      %v525 = vadd.f32 0.0, %v524
      %v526 = vpop.f32.mrb[0].mxu0
      %527 = vmatprep.mubr.bf16.mxu0 0
      %528 = vmatmul.mubr.bf16.gmra.mrb[0].mxu0 %v409
      %v529 = vpop.f32.mrb[0].mxu0
      %v530 = vadd.f32 0.0, %v529
      %v531 = vpop.f32.mrb[0].mxu0
      %v532 = vpop.f32.mrb[0].mxu0
      %v533 = vadd.f32 0.0, %v532
      %v534 = vpop.f32.mrb[0].mxu0
      %535 = vmatprep.mubr.bf16.mxu0 0
      %536 = vmatmul.mubr.bf16.gmra.mrb[0].mxu0 %v412
      %v537 = vpop.f32.mrb[0].mxu0
      %v538 = vadd.f32 0.0, %v537
      %v539 = vpop.f32.mrb[0].mxu0
      %v540 = vpop.f32.mrb[0].mxu0
      %v541 = vadd.f32 0.0, %v540
      %v542 = vpop.f32.mrb[0].mxu0
      %543 = vmatprep.mubr.bf16.mxu0 0
      %544 = vmatmul.mubr.bf16.gmra.mrb[0].mxu0 %v415
      %v545 = vpop.f32.mrb[0].mxu0
      %v546 = vadd.f32 0.0, %v545
      %v547 = vpop.f32.mrb[0].mxu0
      %v548 = vpop.f32.mrb[0].mxu0
      %v549 = vadd.f32 0.0, %v548
      %v550 = vpop.f32.mrb[0].mxu0
      %551 = vmatprep.mubr.bf16.mxu0 0
      %552 = vmatmul.mubr.bf16.gmra.mrb[0].mxu0 %v418
      %v553 = vpop.f32.mrb[0].mxu0
      %v554 = vadd.f32 0.0, %v553
      %v555 = vpop.f32.mrb[0].mxu0
      %v556 = vpop.f32.mrb[0].mxu0
      %v557 = vadd.f32 0.0, %v556
      %v558 = vpop.f32.mrb[0].mxu0
      %559 = vmatprep.mubr.bf16.mxu0 0
      %560 = vmatmul.mubr.bf16.gmra.mrb[0].mxu0 %v421
      %v561 = vpop.f32.mrb[0].mxu0
      %v562 = vadd.f32 0.0, %v561
      %v563 = vpop.f32.mrb[0].mxu0
      %v564 = vpop.f32.mrb[0].mxu0
      %v565 = vadd.f32 0.0, %v564
      %v566 = vpop.f32.mrb[0].mxu0
      %567 = vmatprep.mubr.bf16.mxu0 0
      %568 = vmatmul.mubr.bf16.gmra.mrb[0].mxu0 %v424
      %v569 = vpop.f32.mrb[0].mxu0
      %v570 = vadd.f32 0.0, %v569
      %v571 = vpop.f32.mrb[0].mxu0
      %v572 = vpop.f32.mrb[0].mxu0
      %v573 = vadd.f32 0.0, %v572
      %v574 = vpop.f32.mrb[0].mxu0
      %575 = vmatprep.mubr.bf16.mxu0 0
      %576 = vmatmul.mubr.bf16.gmra.mrb[0].mxu0 %v427
      %v577 = vpop.f32.mrb[0].mxu0
      %v578 = vadd.f32 0.0, %v577
      %v579 = vpop.f32.mrb[0].mxu0
      %v580 = vpop.f32.mrb[0].mxu0
      %v581 = vadd.f32 0.0, %v580
      %v582 = vpop.f32.mrb[0].mxu0
      %583 = vmatprep.mubr.bf16.mxu0 0
      %584 = vmatmul.mubr.bf16.gmra.mrb[0].mxu0 %v430
      %v585 = vpop.f32.mrb[0].mxu0
      %v586 = vadd.f32 0.0, %v585
      %v587 = vpop.f32.mrb[0].mxu0
      %v588 = vpop.f32.mrb[0].mxu0
      %v589 = vadd.f32 0.0, %v588
      %v590 = vpop.f32.mrb[0].mxu0
      %591 = vmatprep.mubr.bf16.mxu0 0
      %592 = vmatmul.mubr.bf16.gmra.mrb[0].mxu0 %v433
      %v593 = vpop.f32.mrb[0].mxu0
      %v594 = vadd.f32 0.0, %v593
      %v595 = vpop.f32.mrb[0].mxu0
      %v596 = vpop.f32.mrb[0].mxu0
      %v597 = vadd.f32 0.0, %v596
      %v598 = vpop.f32.mrb[0].mxu0
      %599 = vdwg.mxu0
      %v600 = vld [vmem:[%s2] sm:$0x1]
      %v602 = vlaneseq
      %v603 = vshrl.u32 %v602, 7
      %v604 = vsub.s32 0, %v603
      %v605 = vrot.slane %v600, %v604
      %v607 = vmul.f32 %v474, %v605
      %v608 = vmul.f32 %v477, %v605
      %v609 = vmul.f32 %v482, %v605
      %v610 = vmul.f32 %v485, %v605
      %v611 = vmul.f32 %v490, %v605
      %v612 = vmul.f32 %v493, %v605
      %v613 = vmul.f32 %v498, %v605
      %v614 = vmul.f32 %v501, %v605
      %v615 = vmul.f32 %v506, %v605
      %v616 = vmul.f32 %v509, %v605
      %v617 = vmul.f32 %v514, %v605
      %v618 = vmul.f32 %v517, %v605
      %v619 = vmul.f32 %v522, %v605
      %v620 = vmul.f32 %v525, %v605
      %v621 = vmul.f32 %v530, %v605
      %v622 = vmul.f32 %v533, %v605
      %v623 = vmul.f32 %v538, %v605
      %v624 = vmul.f32 %v541, %v605
      %v625 = vmul.f32 %v546, %v605
      %v626 = vmul.f32 %v549, %v605
      %v627 = vmul.f32 %v554, %v605
      %v628 = vmul.f32 %v557, %v605
      %v629 = vmul.f32 %v562, %v605
      %v630 = vmul.f32 %v565, %v605
      %v631 = vmul.f32 %v570, %v605
      %v632 = vmul.f32 %v573, %v605
      %v633 = vmul.f32 %v578, %v605
      %v634 = vmul.f32 %v581, %v605
      %v635 = vmul.f32 %v586, %v605
      %v636 = vmul.f32 %v589, %v605
      %v637 = vmul.f32 %v594, %v605
      %v638 = vmul.f32 %v597, %v605
      %v639 = vld [vmem:[%s3] sm:$0x1]
      %v641 = vlaneseq
      %v642 = vshrl.u32 %v641, 7
      %v643 = vsub.s32 0, %v642
      %v644 = vrot.slane %v639, %v643
      %v646 = vadd.f32 %v607, %v644
      %v647 = vadd.f32 %v608, %v644
      %v648 = vadd.f32 %v609, %v644
      %v649 = vadd.f32 %v610, %v644
      %v650 = vadd.f32 %v611, %v644
      %v651 = vadd.f32 %v612, %v644
      %v652 = vadd.f32 %v613, %v644
      %v653 = vadd.f32 %v614, %v644
      %v654 = vadd.f32 %v615, %v644
      %v655 = vadd.f32 %v616, %v644
      %v656 = vadd.f32 %v617, %v644
      %v657 = vadd.f32 %v618, %v644
      %v658 = vadd.f32 %v619, %v644
      %v659 = vadd.f32 %v620, %v644
      %v660 = vadd.f32 %v621, %v644
      %v661 = vadd.f32 %v622, %v644
      %v662 = vadd.f32 %v623, %v644
      %v663 = vadd.f32 %v624, %v644
      %v664 = vadd.f32 %v625, %v644
      %v665 = vadd.f32 %v626, %v644
      %v666 = vadd.f32 %v627, %v644
      %v667 = vadd.f32 %v628, %v644
      %v668 = vadd.f32 %v629, %v644
      %v669 = vadd.f32 %v630, %v644
      %v670 = vadd.f32 %v631, %v644
      %v671 = vadd.f32 %v632, %v644
      %v672 = vadd.f32 %v633, %v644
      %v673 = vadd.f32 %v634, %v644
      %v674 = vadd.f32 %v635, %v644
      %v675 = vadd.f32 %v636, %v644
      %v676 = vadd.f32 %v637, %v644
      %v677 = vadd.f32 %v638, %v644
      %v678 = vmax.f32 %v646, 0.0
      %v679 = vmax.f32 %v647, 0.0
      %v680 = vmax.f32 %v648, 0.0
      %v681 = vmax.f32 %v649, 0.0
      %v682 = vmax.f32 %v650, 0.0
      %v683 = vmax.f32 %v651, 0.0
      %v684 = vmax.f32 %v652, 0.0
      %v685 = vmax.f32 %v653, 0.0
      %v686 = vmax.f32 %v654, 0.0
      %v687 = vmax.f32 %v655, 0.0
      %v688 = vmax.f32 %v656, 0.0
      %v689 = vmax.f32 %v657, 0.0
      %v690 = vmax.f32 %v658, 0.0
      %v691 = vmax.f32 %v659, 0.0
      %v692 = vmax.f32 %v660, 0.0
      %v693 = vmax.f32 %v661, 0.0
      %v694 = vmax.f32 %v662, 0.0
      %v695 = vmax.f32 %v663, 0.0
      %v696 = vmax.f32 %v664, 0.0
      %v697 = vmax.f32 %v665, 0.0
      %v698 = vmax.f32 %v666, 0.0
      %v699 = vmax.f32 %v667, 0.0
      %v700 = vmax.f32 %v668, 0.0
      %v701 = vmax.f32 %v669, 0.0
      %v702 = vmax.f32 %v670, 0.0
      %v703 = vmax.f32 %v671, 0.0
      %v704 = vmax.f32 %v672, 0.0
      %v705 = vmax.f32 %v673, 0.0
      %v706 = vmax.f32 %v674, 0.0
      %v707 = vmax.f32 %v675, 0.0
      %v708 = vmax.f32 %v676, 0.0
      %v709 = vmax.f32 %v677, 0.0
      %vm710 = vcmask 64512
      %711 = vst.msk [vmem:[%s235] sm:$0xff] %vm710, %v678
      %712 = vst.msk [vmem:[%s235 + $0x8] sm:$0xff] %vm710, %v679
      %713 = vst.msk [vmem:[%s235 + $0x10] sm:$0xff] %vm710, %v680
      %714 = vst.msk [vmem:[%s235 + $0x18] sm:$0xff] %vm710, %v681
      %715 = vst.msk [vmem:[%s235 + $0x20] sm:$0xff] %vm710, %v682
      %716 = vst.msk [vmem:[%s235 + $0x28] sm:$0xff] %vm710, %v683
      %717 = vst.msk [vmem:[%s235 + $0x30] sm:$0xff] %vm710, %v684
      %718 = vst.msk [vmem:[%s235 + $0x38] sm:$0xff] %vm710, %v685
      %719 = vst.msk [vmem:[%s235 + $0x40] sm:$0xff] %vm710, %v686
      %720 = vst.msk [vmem:[%s235 + $0x48] sm:$0xff] %vm710, %v687
      %721 = vst.msk [vmem:[%s235 + $0x50] sm:$0xff] %vm710, %v688
      %722 = vst.msk [vmem:[%s235 + $0x58] sm:$0xff] %vm710, %v689
      %723 = vst.msk [vmem:[%s235 + $0x60] sm:$0xff] %vm710, %v690
      %724 = vst.msk [vmem:[%s235 + $0x68] sm:$0xff] %vm710, %v691
      %725 = vst.msk [vmem:[%s235 + $0x70] sm:$0xff] %vm710, %v692
      %726 = vst.msk [vmem:[%s235 + $0x78] sm:$0xff] %vm710, %v693
      %727 = vst.msk [vmem:[%s235 + $0x80] sm:$0xff] %vm710, %v694
      %728 = vst.msk [vmem:[%s235 + $0x88] sm:$0xff] %vm710, %v695
      %729 = vst.msk [vmem:[%s235 + $0x90] sm:$0xff] %vm710, %v696
      %730 = vst.msk [vmem:[%s235 + $0x98] sm:$0xff] %vm710, %v697
      %731 = vst.msk [vmem:[%s235 + $0xa0] sm:$0xff] %vm710, %v698
      %732 = vst.msk [vmem:[%s235 + $0xa8] sm:$0xff] %vm710, %v699
      %733 = vst.msk [vmem:[%s235 + $0xb0] sm:$0xff] %vm710, %v700
      %734 = vst.msk [vmem:[%s235 + $0xb8] sm:$0xff] %vm710, %v701
      %735 = vst.msk [vmem:[%s235 + $0xc0] sm:$0xff] %vm710, %v702
      %736 = vst.msk [vmem:[%s235 + $0xc8] sm:$0xff] %vm710, %v703
      %737 = vst.msk [vmem:[%s235 + $0xd0] sm:$0xff] %vm710, %v704
      %738 = vst.msk [vmem:[%s235 + $0xd8] sm:$0xff] %vm710, %v705
      %739 = vst.msk [vmem:[%s235 + $0xe0] sm:$0xff] %vm710, %v706
      %740 = vst.msk [vmem:[%s235 + $0xe8] sm:$0xff] %vm710, %v707
      %741 = vst.msk [vmem:[%s235 + $0xf0] sm:$0xff] %vm710, %v708
      %742 = vst.msk [vmem:[%s235 + $0xf8] sm:$0xff] %vm710, %v709
      %s743 = smul.u32 32, %s20
      %p744 = scmp.lt.s32.totalorder %s19, 1
      %s745 = scalar_select %p744, %s19, 1
      %p746 = scmp.lt.s32.totalorder %s743, 31
      %s747 = scalar_select %p746, %s743, 31
      %s748 = smul.addr %s745, 32
      %s749 = sadd.s32 %s747, %s748
      %s750 = smul.addr %s749, 8
      %s751 = scalar_lea.vmem %s4, %s750
      // Predicated region
      $region37: #{dual_stream_unet.46} parent=35 // pred_check
        %p752 = pneg %p138
      $region38: #{dual_stream_unet.46} parent=35 // pred_check_branch
        %754 = sbr.rel (%p752) target = $region40
      $region39: #{dual_stream_unet.46} parent=35 // pred_region
        %s755 = smul.u32 32, %s20
      $region40: #{dual_stream_unet.46} parent=35 // pred_fallthru
        _
    $region36: #{dual_stream_unet.46} parent=5 // pred_fallthru
      _
    %p756 = scmp.le.s32.totalorder 2, %s10
    // Predicated region
    $region41: #{dual_stream_unet.46} parent=5 // pred_check
      %p757 = pneg %p756
    $region42: #{dual_stream_unet.46} parent=5 // pred_check_branch
      %759 = sbr.rel (%p757) target = $region44
    $region43: #{dual_stream_unet.46} parent=5 // pred_region
      %s760 = ssub.s32 %s10, 2
      // Predicated region
      $region45: #{dual_stream_unet.46} parent=43 // pred_check
        %p761 = pneg %p144
      $region46: #{dual_stream_unet.46} parent=43 // pred_check_branch
        %763 = sbr.rel (%p761) target = $region48
      $region47: #{dual_stream_unet.46} parent=43 // pred_region
        %s764 = smul.u32 32, %s22
        %p765 = scmp.lt.s32.totalorder %s21, 1
        %s766 = scalar_select %p765, %s21, 1
        %p767 = scmp.lt.s32.totalorder %s764, 31
        %s768 = scalar_select %p767, %s764, 31
        %s769 = smul.addr %s766, 32
        %s770 = sadd.s32 %s768, %s769
        %s771 = smul.addr %s770, 8
        %s772 = scalar_lea.vmem %s4, %s771
      $region48: #{dual_stream_unet.46} parent=43 // pred_fallthru
        _
    $region44: #{dual_stream_unet.46} parent=5 // pred_fallthru
      _
  $region6: #{dual_stream_unet.46} parent=0 // loop_footer
    %s14 = sadd.s32 1, %s10
  $region7: #{dual_stream_unet.46} parent=0 // loop_footer_branch
    %9 = sbr.rel target = $region3
  $region8: #{dual_stream_unet.46} parent=0 // loop_exit
    _

// kernel: dual_stream_unet.45
$region0: #{dual_stream_unet.45}
  #allocation0 [shape = 'u32[]', space=smem, size = 0x4, offset = 0x4, fixed_abs, tag = 'smem constant byte address 0x4 - core index']
  #allocation1 [shape = 'u32[144,128]{1,0:T(1,128)}', space=vmem, size = 0x12000, scoped, tag = 'internal scratch']
  %s0 = inlined_call_operand.vmem [shape: bf16[2,256,36], index: 0, kind: input, shape index: {}]
  %s1 = inlined_call_operand.vmem [shape: bf16[36,8], index: 1, kind: input, shape index: {}]
  %s2 = inlined_call_operand.vmem [shape: f32[1,8], index: 2, kind: input, shape index: {}]
  %s3 = inlined_call_operand.vmem [shape: f32[1,8], index: 3, kind: input, shape index: {}]
  %s4 = inlined_call_operand.vmem [shape: f32[2,256,8], index: 4, kind: output, shape index: {}]
  %s5 = sld [smem:[#allocation0]]
  $region49: #{dual_stream_unet.45} parent=0
    _
  %s7 = ssub.s32 1, %s5
  %s8 = scalar_select 0, %s7, %s5
  loop: start=0, step=1, limit=4
  $region2: #{dual_stream_unet.45} parent=0 // loop_pre_header
    _
  $region3: #{dual_stream_unet.45} parent=0 // loop_header
    %s10 = sphi 0, %s14
    %p11 = scmp.ge.s32.totalorder %s10, 4
    %s17 = sphi 0, %s29
    %s18 = sphi 0, %s25
    %s19 = sphi 0, %s17
    %s20 = sphi 0, %s18
    %s21 = sphi 0, %s19
    %s22 = sphi 0, %s20
    %s34 = sphi 0, %s36
    %s37 = sphi 0, %s34
    %s38 = sphi 0, %s37
    %s54 = sphi 0, %s38
    %s58 = sphi 0, %s58
    %s60 = sphi 0, %s58
    %s61 = sphi 0, %s60
    %s75 = sphi 0, %s61
    %s79 = sphi 0, %s79
    %s81 = sphi 0, %s79
    %s82 = sphi 0, %s81
    %s96 = sphi 0, %s82
    %s100 = sphi 0, %s100
    %s102 = sphi 0, %s100
    %s103 = sphi 0, %s102
    %s117 = sphi 0, %s103
    %s125 = sphi 0, %s127
    %s128 = sphi 0, %s125
    %s129 = sphi 0, %s128
    %s145 = sphi 0, %s129
  $region4: #{dual_stream_unet.45} parent=0 // loop_header_branch
    %13 = sbr.rel (%p11) target = $region8
  $region5: #{dual_stream_unet.45} parent=0 // loop_body
    %s15 = ssub.s32 %s10, 1
    %s16 = ssub.s32 %s10, 2
    %s23 = sadd.s32 1, %s18
    %p24 = scmp.ge.s32.totalorder %s23, 1
    %s25 = scalar_select %p24, 0, %s23
    %s26 = sadd.s32 1, %s17
    %s27 = scalar_select %p24, %s26, %s17
    %p28 = scmp.ge.s32.totalorder %s27, 2
    %s29 = scalar_select %p28, 0, %s27
    %s30 = ssub.s32 %s17, %s29
    %s31 = ssub.s32 %s18, %s25
    %s32 = sor.u32 %s30, %s31
    %p33 = scmp.eq.s32.totalorder %s32, 0
    %s35 = sadd.s32 %s34, 1
    %s36 = scalar_select %p33, %s34, %s35
    %p39 = pneg %p33
    %p40 = scmp.eq.s32.totalorder %s10, 1
    %p41 = por %p39, %p40
    %p42 = scmp.ne.s32.totalorder %s34, %s37
    %p43 = scmp.eq.s32.totalorder %s10, 0
    %p44 = por %p42, %p43
    %p45 = scmp.ne.s32.totalorder %s34, %s37
    %p46 = scmp.eq.s32.totalorder %s15, 1
    %p47 = por %p45, %p46
    %p48 = scmp.ne.s32.totalorder %s37, %s38
    %p49 = scmp.eq.s32.totalorder %s15, 0
    %p50 = por %p48, %p49
    %p51 = scmp.ne.s32.totalorder %s37, %s38
    %p52 = scmp.eq.s32.totalorder %s16, 1
    %p53 = por %p51, %p52
    %p55 = scmp.ne.s32.totalorder %s38, %s54
    %p56 = scmp.eq.s32.totalorder %s16, 0
    %p57 = por %p55, %p56
    %s59 = sadd.s32 %s58, 1
    %p62 = scmp.eq.s32.totalorder %s10, 1
    %p63 = scmp.ne.s32.totalorder %s58, %s60
    %p64 = scmp.eq.s32.totalorder %s10, 0
    %p65 = por %p63, %p64
    %p66 = scmp.ne.s32.totalorder %s58, %s60
    %p67 = scmp.eq.s32.totalorder %s15, 1
    %p68 = por %p66, %p67
    %p69 = scmp.ne.s32.totalorder %s60, %s61
    %p70 = scmp.eq.s32.totalorder %s15, 0
    %p71 = por %p69, %p70
    %p72 = scmp.ne.s32.totalorder %s60, %s61
    %p73 = scmp.eq.s32.totalorder %s16, 1
    %p74 = por %p72, %p73
    %p76 = scmp.ne.s32.totalorder %s61, %s75
    %p77 = scmp.eq.s32.totalorder %s16, 0
    %p78 = por %p76, %p77
    %s80 = sadd.s32 %s79, 1
    %p83 = scmp.eq.s32.totalorder %s10, 1
    %p84 = scmp.ne.s32.totalorder %s79, %s81
    %p85 = scmp.eq.s32.totalorder %s10, 0
    %p86 = por %p84, %p85
    %p87 = scmp.ne.s32.totalorder %s79, %s81
    %p88 = scmp.eq.s32.totalorder %s15, 1
    %p89 = por %p87, %p88
    %p90 = scmp.ne.s32.totalorder %s81, %s82
    %p91 = scmp.eq.s32.totalorder %s15, 0
    %p92 = por %p90, %p91
    %p93 = scmp.ne.s32.totalorder %s81, %s82
    %p94 = scmp.eq.s32.totalorder %s16, 1
    %p95 = por %p93, %p94
    %p97 = scmp.ne.s32.totalorder %s82, %s96
    %p98 = scmp.eq.s32.totalorder %s16, 0
    %p99 = por %p97, %p98
    %s101 = sadd.s32 %s100, 1
    %p104 = scmp.eq.s32.totalorder %s10, 1
    %p105 = scmp.ne.s32.totalorder %s100, %s102
    %p106 = scmp.eq.s32.totalorder %s10, 0
    %p107 = por %p105, %p106
    %p108 = scmp.ne.s32.totalorder %s100, %s102
    %p109 = scmp.eq.s32.totalorder %s15, 1
    %p110 = por %p108, %p109
    %p111 = scmp.ne.s32.totalorder %s102, %s103
    %p112 = scmp.eq.s32.totalorder %s15, 0
    %p113 = por %p111, %p112
    %p114 = scmp.ne.s32.totalorder %s102, %s103
    %p115 = scmp.eq.s32.totalorder %s16, 1
    %p116 = por %p114, %p115
    %p118 = scmp.ne.s32.totalorder %s103, %s117
    %p119 = scmp.eq.s32.totalorder %s16, 0
    %p120 = por %p118, %p119
    %s121 = ssub.s32 %s17, %s29
    %s122 = ssub.s32 %s18, %s25
    %s123 = sor.u32 %s121, %s122
    %p124 = scmp.eq.s32.totalorder %s123, 0
    %s126 = sadd.s32 %s125, 1
    %s127 = scalar_select %p124, %s125, %s126
    %p130 = pneg %p124
    %p131 = scmp.eq.s32.totalorder %s10, 1
    %p132 = por %p130, %p131
    %p133 = scmp.ne.s32.totalorder %s125, %s128
    %p134 = scmp.eq.s32.totalorder %s10, 0
    %p135 = por %p133, %p134
    %p136 = scmp.ne.s32.totalorder %s125, %s128
    %p137 = scmp.eq.s32.totalorder %s15, 1
    %p138 = por %p136, %p137
    %p139 = scmp.ne.s32.totalorder %s128, %s129
    %p140 = scmp.eq.s32.totalorder %s15, 0
    %p141 = por %p139, %p140
    %p142 = scmp.ne.s32.totalorder %s128, %s129
    %p143 = scmp.eq.s32.totalorder %s16, 1
    %p144 = por %p142, %p143
    %p146 = scmp.ne.s32.totalorder %s129, %s145
    %p147 = scmp.eq.s32.totalorder %s16, 0
    %p148 = por %p146, %p147
    %p149 = scmp.le.s32.totalorder 1, %s10
    %p150 = scmp.lt.s32.totalorder %s10, 3
    %p151 = pnand %p149, %p150
    %p152 = pneg %p151
    // Predicated region
    $region9: #{dual_stream_unet.45} parent=5 // pred_check
      _
    $region10: #{dual_stream_unet.45} parent=5 // pred_check_branch
      %154 = sbr.rel (%p151) target = $region12
    $region11: #{dual_stream_unet.45} parent=5 // pred_region
      %s155 = ssub.s32 %s10, 1
      // Predicated region
      $region13: #{dual_stream_unet.45} parent=11 // pred_check
        %p156 = pneg %p71
      $region14: #{dual_stream_unet.45} parent=11 // pred_check_branch
        %158 = sbr.rel (%p156) target = $region16
      $region15: #{dual_stream_unet.45} parent=11 // pred_region
        _
      $region16: #{dual_stream_unet.45} parent=11 // pred_fallthru
        _
      // Predicated region
      $region17: #{dual_stream_unet.45} parent=11 // pred_check
        %p159 = pneg %p92
      $region18: #{dual_stream_unet.45} parent=11 // pred_check_branch
        %161 = sbr.rel (%p159) target = $region20
      $region19: #{dual_stream_unet.45} parent=11 // pred_region
        _
      $region20: #{dual_stream_unet.45} parent=11 // pred_fallthru
        _
      // Predicated region
      $region21: #{dual_stream_unet.45} parent=11 // pred_check
        %p162 = pneg %p113
      $region22: #{dual_stream_unet.45} parent=11 // pred_check_branch
        %164 = sbr.rel (%p162) target = $region24
      $region23: #{dual_stream_unet.45} parent=11 // pred_region
        _
      $region24: #{dual_stream_unet.45} parent=11 // pred_fallthru
        _
    $region12: #{dual_stream_unet.45} parent=5 // pred_fallthru
      _
    %p165 = scmp.lt.s32.totalorder %s10, 2
    // Predicated region
    $region25: #{dual_stream_unet.45} parent=5 // pred_check
      %p166 = pneg %p165
    $region26: #{dual_stream_unet.45} parent=5 // pred_check_branch
      %168 = sbr.rel (%p166) target = $region28
    $region27: #{dual_stream_unet.45} parent=5 // pred_region
      // Predicated region
      $region29: #{dual_stream_unet.45} parent=27 // pred_check
        %p169 = pneg %p44
      $region30: #{dual_stream_unet.45} parent=27 // pred_check_branch
        %171 = sbr.rel (%p169) target = $region32
      $region31: #{dual_stream_unet.45} parent=27 // pred_region
        %s172 = smul.u32 32, %s18
        %p173 = scmp.lt.s32.totalorder %s17, 1
        %s174 = scalar_select %p173, %s17, 1
        %p175 = scmp.lt.s32.totalorder %s172, 31
        %s176 = scalar_select %p175, %s172, 31
        %s177 = smul.addr %s174, 32
        %s178 = sadd.s32 %s176, %s177
        %s179 = smul.addr %s178, 4
        %s180 = scalar_lea.vmem %s0, %s179
        %s181 = smul.u32 32, %s18
      $region32: #{dual_stream_unet.45} parent=27 // pred_fallthru
        _
    $region28: #{dual_stream_unet.45} parent=5 // pred_fallthru
      _
    %p182 = scmp.le.s32.totalorder 1, %s10
    %p183 = scmp.lt.s32.totalorder %s10, 3
    %p184 = pnand %p182, %p183
    %p185 = pneg %p184
    // Predicated region
    $region33: #{dual_stream_unet.45} parent=5 // pred_check
      _
    $region34: #{dual_stream_unet.45} parent=5 // pred_check_branch
      %187 = sbr.rel (%p184) target = $region36
    $region35: #{dual_stream_unet.45} parent=5 // pred_region
      %s188 = ssub.s32 %s10, 1
      %s189 = smul.u32 32, %s20
      %p190 = scmp.lt.s32.totalorder %s19, 1
      %s191 = scalar_select %p190, %s19, 1
      %p192 = scmp.lt.s32.totalorder %s189, 31
      %s193 = scalar_select %p192, %s189, 31
      %s194 = smul.addr %s191, 32
      %s195 = sadd.s32 %s193, %s194
      %s196 = smul.addr %s195, 4
      %s197 = scalar_lea.vmem %s0, %s196
      %p198 = pneg %p50
      %p199 = pneg %p47
      %p200 = pneg %p71
      %p201 = pneg %p68
      %p202 = pneg %p92
      %p203 = pneg %p89
      %p204 = pneg %p113
      %p205 = pneg %p110
      %p206 = pneg %p141
      %p207 = pneg %p138
      %s208 = smul.u32 32, %s20
      %p209 = scmp.lt.s32.totalorder %s19, 1
      %s210 = scalar_select %p209, %s19, 1
      %p211 = scmp.lt.s32.totalorder %s208, 31
      %s212 = scalar_select %p211, %s208, 31
      %s213 = smul.addr %s210, 32
      %s214 = sadd.s32 %s212, %s213
      %s215 = smul.addr %s214, 8
      %s216 = scalar_lea.vmem %s4, %s215
      %s217 = smul.u32 32, %s20
      %p218 = scmp.lt.s32.totalorder %s19, 1
      %s219 = scalar_select %p218, %s19, 1
      %p220 = scmp.lt.s32.totalorder %s217, 31
      %s221 = scalar_select %p220, %s217, 31
      %s222 = smul.addr %s219, 32
      %s223 = sadd.s32 %s221, %s222
      %s224 = smul.addr %s223, 4
      %s225 = scalar_lea.vmem %s0, %s224
      %s226 = smul.u32 32, %s20
      %s227 = smul.u32 32, %s20
      %p228 = scmp.lt.s32.totalorder %s19, 1
      %s229 = scalar_select %p228, %s19, 1
      %p230 = scmp.lt.s32.totalorder %s227, 31
      %s231 = scalar_select %p230, %s227, 31
      %s232 = smul.addr %s229, 32
      %s233 = sadd.s32 %s231, %s232
      %s234 = smul.addr %s233, 8
      %s235 = scalar_lea.vmem %s4, %s234
      %s236 = smul.u32 32, %s20
      %v238 = vld [vmem:[%s225] sm:$0xf]
      %v239 = vld [vmem:[%s225 + $0x4] sm:$0xf]
      %v240 = vld [vmem:[%s225 + $0x8] sm:$0xf]
      %v241 = vld [vmem:[%s225 + $0xc] sm:$0xf]
      %v242 = vld [vmem:[%s225 + $0x10] sm:$0xf]
      %v243 = vld [vmem:[%s225 + $0x14] sm:$0xf]
      %v244 = vld [vmem:[%s225 + $0x18] sm:$0xf]
      %v245 = vld [vmem:[%s225 + $0x1c] sm:$0xf]
      %v246 = vld [vmem:[%s225 + $0x20] sm:$0xf]
      %v247 = vld [vmem:[%s225 + $0x24] sm:$0xf]
      %v248 = vld [vmem:[%s225 + $0x28] sm:$0xf]
      %v249 = vld [vmem:[%s225 + $0x2c] sm:$0xf]
      %v250 = vld [vmem:[%s225 + $0x30] sm:$0xf]
      %v251 = vld [vmem:[%s225 + $0x34] sm:$0xf]
      %v252 = vld [vmem:[%s225 + $0x38] sm:$0xf]
      %v253 = vld [vmem:[%s225 + $0x3c] sm:$0xf]
      %v254 = vld [vmem:[%s225 + $0x40] sm:$0xf]
      %v255 = vld [vmem:[%s225 + $0x44] sm:$0xf]
      %v256 = vld [vmem:[%s225 + $0x48] sm:$0xf]
      %v257 = vld [vmem:[%s225 + $0x4c] sm:$0xf]
      %v258 = vld [vmem:[%s225 + $0x50] sm:$0xf]
      %v259 = vld [vmem:[%s225 + $0x54] sm:$0xf]
      %v260 = vld [vmem:[%s225 + $0x58] sm:$0xf]
      %v261 = vld [vmem:[%s225 + $0x5c] sm:$0xf]
      %v262 = vld [vmem:[%s225 + $0x60] sm:$0xf]
      %v263 = vld [vmem:[%s225 + $0x64] sm:$0xf]
      %v264 = vld [vmem:[%s225 + $0x68] sm:$0xf]
      %v265 = vld [vmem:[%s225 + $0x6c] sm:$0xf]
      %v266 = vld [vmem:[%s225 + $0x70] sm:$0xf]
      %v267 = vld [vmem:[%s225 + $0x74] sm:$0xf]
      %v268 = vld [vmem:[%s225 + $0x78] sm:$0xf]
      %v269 = vld [vmem:[%s225 + $0x7c] sm:$0xf]
      %v270 = vld [vmem:[%s1] sm:$0xf]
      %v271 = vld [vmem:[%s1 + $0x4] sm:$0xf]
      %v272 = vld [vmem:[%s1 + $0x8] sm:$0xf]
      %v273 = vld [vmem:[%s1 + $0xc] sm:$0xf]
      %v274 = vld [vmem:[%s1 + $0x10] sm:$0x3]
      %v307 = vunpack.c.l.b16 %v238
      %v308 = vunpack.c.l.b16 %v239
      %v309 = vunpack.c.l.b16 %v240
      %v310 = vunpack.c.l.b16 %v241
      %v311 = vunpack.c.l.b16 %v242
      %v312 = vunpack.c.l.b16 %v243
      %v313 = vunpack.c.l.b16 %v244
      %v314 = vunpack.c.l.b16 %v245
      %v315 = vunpack.c.l.b16 %v246
      %v316 = vunpack.c.l.b16 %v247
      %v317 = vunpack.c.l.b16 %v248
      %v318 = vunpack.c.l.b16 %v249
      %v319 = vunpack.c.l.b16 %v250
      %v320 = vunpack.c.l.b16 %v251
      %v321 = vunpack.c.l.b16 %v252
      %v322 = vunpack.c.l.b16 %v253
      %v323 = vunpack.c.l.b16 %v254
      %v324 = vunpack.c.l.b16 %v255
      %v325 = vunpack.c.l.b16 %v256
      %v326 = vunpack.c.l.b16 %v257
      %v327 = vunpack.c.l.b16 %v258
      %v328 = vunpack.c.l.b16 %v259
      %v329 = vunpack.c.l.b16 %v260
      %v330 = vunpack.c.l.b16 %v261
      %v331 = vunpack.c.l.b16 %v262
      %v332 = vunpack.c.l.b16 %v263
      %v333 = vunpack.c.l.b16 %v264
      %v334 = vunpack.c.l.b16 %v265
      %v335 = vunpack.c.l.b16 %v266
      %v336 = vunpack.c.l.b16 %v267
      %v337 = vunpack.c.l.b16 %v268
      %v338 = vunpack.c.l.b16 %v269
      %v339 = vpack.c.b16 %v308, %v307
      %v340 = vpack.c.b16 %v310, %v309
      %v341 = vpack.c.b16 %v312, %v311
      %v342 = vpack.c.b16 %v314, %v313
      %v343 = vpack.c.b16 %v316, %v315
      %v344 = vpack.c.b16 %v318, %v317
      %v345 = vpack.c.b16 %v320, %v319
      %v346 = vpack.c.b16 %v322, %v321
      %v347 = vpack.c.b16 %v324, %v323
      %v348 = vpack.c.b16 %v326, %v325
      %v349 = vpack.c.b16 %v328, %v327
      %v350 = vpack.c.b16 %v330, %v329
      %v351 = vpack.c.b16 %v332, %v331
      %v352 = vpack.c.b16 %v334, %v333
      %v353 = vpack.c.b16 %v336, %v335
      %v354 = vpack.c.b16 %v338, %v337
      %v360 = vunpack.c.l.b16 %v270
      %v361 = vunpack.c.l.b16 %v271
      %v362 = vunpack.c.l.b16 %v272
      %v363 = vunpack.c.l.b16 %v273
      %v364 = vunpack.c.l.b16 %v274
      %v365 = vpack.c.b16 %v361, %v360
      %v366 = vpack.c.b16 %v363, %v362
      %v367 = vpack.c.b16 %v364, %v364
      %vm370 = vcmask 293888
      %v372 = vsel %vm370, %v339, 0
      %v375 = vsel %vm370, %v340, 0
      %v378 = vsel %vm370, %v341, 0
      %v381 = vsel %vm370, %v342, 0
      %v384 = vsel %vm370, %v343, 0
      %v387 = vsel %vm370, %v344, 0
      %v390 = vsel %vm370, %v345, 0
      %v393 = vsel %vm370, %v346, 0
      %v396 = vsel %vm370, %v347, 0
      %v399 = vsel %vm370, %v348, 0
      %v402 = vsel %vm370, %v349, 0
      %v405 = vsel %vm370, %v350, 0
      %v408 = vsel %vm370, %v351, 0
      %v411 = vsel %vm370, %v352, 0
      %v414 = vsel %vm370, %v353, 0
      %v417 = vsel %vm370, %v354, 0
      %vm419 = vcmask 1041408
      %v421 = vsel %vm419, %v367, 0
      %423 = vmatprep.subr.bf16.mxu0 0
      %424 = vmatpush1.bf16.msra.mxu0 %v365
      %425 = vmatprep.subr.bf16.mxu0 0
      %426 = vmatpush1.bf16.msra.mxu0 %v366
      %427 = vmatprep.subr.bf16.mxu0 0
      %428 = vmatpush1.bf16.msra.mxu0 %v421
      %429 = vmatprep.subr.bf16.mxu0 0
      %430 = vmatpush1.bf16.msra.mxu0 0
      %431 = vmatprep.subr.bf16.mxu0 0
      %432 = vmatpush1.bf16.msra.mxu0 0
      %433 = vmatprep.subr.bf16.mxu0 0
      %434 = vmatpush1.bf16.msra.mxu0 0
      %435 = vmatprep.subr.bf16.mxu0 0
      %436 = vmatpush1.bf16.msra.mxu0 0
      %437 = vmatprep.subr.bf16.mxu0 0
      %438 = vmatpush1.bf16.msra.mxu0 0
      %439 = vmatprep.subr.bf16.mxu0 0
      %440 = vmatpush1.bf16.msra.mxu0 0
      %441 = vmatprep.subr.bf16.mxu0 0
      %442 = vmatpush1.bf16.msra.mxu0 0
      %443 = vmatprep.subr.bf16.mxu0 0
      %444 = vmatpush1.bf16.msra.mxu0 0
      %445 = vmatprep.subr.bf16.mxu0 0
      %446 = vmatpush1.bf16.msra.mxu0 0
      %447 = vmatprep.subr.bf16.mxu0 0
      %448 = vmatpush1.bf16.msra.mxu0 0
      %449 = vmatprep.subr.bf16.mxu0 0
      %450 = vmatpush1.bf16.msra.mxu0 0
      %451 = vmatprep.subr.bf16.mxu0 0
      %452 = vmatpush1.bf16.msra.mxu0 0
      %453 = vmatprep.subr.bf16.mxu0 0
      %454 = vmatpush1.bf16.msra.mxu0 0
      %455 = vmatprep.mubr.bf16.mxu0 0
      %456 = vmatmul.mubr.bf16.gmra.mrb[0].mxu0 %v372
      %v457 = vpop.f32.mrb[0].mxu0
      %v458 = vadd.f32 0.0, %v457
      %v459 = vpop.f32.mrb[0].mxu0
      %v460 = vpop.f32.mrb[0].mxu0
      %v461 = vadd.f32 0.0, %v460
      %v462 = vpop.f32.mrb[0].mxu0
      %463 = vmatprep.mubr.bf16.mxu0 0
      %464 = vmatmul.mubr.bf16.gmra.mrb[0].mxu0 %v375
      %v465 = vpop.f32.mrb[0].mxu0
      %v466 = vadd.f32 0.0, %v465
      %v467 = vpop.f32.mrb[0].mxu0
      %v468 = vpop.f32.mrb[0].mxu0
      %v469 = vadd.f32 0.0, %v468
      %v470 = vpop.f32.mrb[0].mxu0
      %471 = vmatprep.mubr.bf16.mxu0 0
      %472 = vmatmul.mubr.bf16.gmra.mrb[0].mxu0 %v378
      %v473 = vpop.f32.mrb[0].mxu0
      %v474 = vadd.f32 0.0, %v473
      %v475 = vpop.f32.mrb[0].mxu0
      %v476 = vpop.f32.mrb[0].mxu0
      %v477 = vadd.f32 0.0, %v476
      %v478 = vpop.f32.mrb[0].mxu0
      %479 = vmatprep.mubr.bf16.mxu0 0
      %480 = vmatmul.mubr.bf16.gmra.mrb[0].mxu0 %v381
      %v481 = vpop.f32.mrb[0].mxu0
      %v482 = vadd.f32 0.0, %v481
      %v483 = vpop.f32.mrb[0].mxu0
      %v484 = vpop.f32.mrb[0].mxu0
      %v485 = vadd.f32 0.0, %v484
      %v486 = vpop.f32.mrb[0].mxu0
      %487 = vmatprep.mubr.bf16.mxu0 0
      %488 = vmatmul.mubr.bf16.gmra.mrb[0].mxu0 %v384
      %v489 = vpop.f32.mrb[0].mxu0
      %v490 = vadd.f32 0.0, %v489
      %v491 = vpop.f32.mrb[0].mxu0
      %v492 = vpop.f32.mrb[0].mxu0
      %v493 = vadd.f32 0.0, %v492
      %v494 = vpop.f32.mrb[0].mxu0
      %495 = vmatprep.mubr.bf16.mxu0 0
      %496 = vmatmul.mubr.bf16.gmra.mrb[0].mxu0 %v387
      %v497 = vpop.f32.mrb[0].mxu0
      %v498 = vadd.f32 0.0, %v497
      %v499 = vpop.f32.mrb[0].mxu0
      %v500 = vpop.f32.mrb[0].mxu0
      %v501 = vadd.f32 0.0, %v500
      %v502 = vpop.f32.mrb[0].mxu0
      %503 = vmatprep.mubr.bf16.mxu0 0
      %504 = vmatmul.mubr.bf16.gmra.mrb[0].mxu0 %v390
      %v505 = vpop.f32.mrb[0].mxu0
      %v506 = vadd.f32 0.0, %v505
      %v507 = vpop.f32.mrb[0].mxu0
      %v508 = vpop.f32.mrb[0].mxu0
      %v509 = vadd.f32 0.0, %v508
      %v510 = vpop.f32.mrb[0].mxu0
      %511 = vmatprep.mubr.bf16.mxu0 0
      %512 = vmatmul.mubr.bf16.gmra.mrb[0].mxu0 %v393
      %v513 = vpop.f32.mrb[0].mxu0
      %v514 = vadd.f32 0.0, %v513
      %v515 = vpop.f32.mrb[0].mxu0
      %v516 = vpop.f32.mrb[0].mxu0
      %v517 = vadd.f32 0.0, %v516
      %v518 = vpop.f32.mrb[0].mxu0
      %519 = vmatprep.mubr.bf16.mxu0 0
      %520 = vmatmul.mubr.bf16.gmra.mrb[0].mxu0 %v396
      %v521 = vpop.f32.mrb[0].mxu0
      %v522 = vadd.f32 0.0, %v521
      %v523 = vpop.f32.mrb[0].mxu0
      %v524 = vpop.f32.mrb[0].mxu0
      %v525 = vadd.f32 0.0, %v524
      %v526 = vpop.f32.mrb[0].mxu0
      %527 = vmatprep.mubr.bf16.mxu0 0
      %528 = vmatmul.mubr.bf16.gmra.mrb[0].mxu0 %v399
      %v529 = vpop.f32.mrb[0].mxu0
      %v530 = vadd.f32 0.0, %v529
      %v531 = vpop.f32.mrb[0].mxu0
      %v532 = vpop.f32.mrb[0].mxu0
      %v533 = vadd.f32 0.0, %v532
      %v534 = vpop.f32.mrb[0].mxu0
      %535 = vmatprep.mubr.bf16.mxu0 0
      %536 = vmatmul.mubr.bf16.gmra.mrb[0].mxu0 %v402
      %v537 = vpop.f32.mrb[0].mxu0
      %v538 = vadd.f32 0.0, %v537
      %v539 = vpop.f32.mrb[0].mxu0
      %v540 = vpop.f32.mrb[0].mxu0
      %v541 = vadd.f32 0.0, %v540
      %v542 = vpop.f32.mrb[0].mxu0
      %543 = vmatprep.mubr.bf16.mxu0 0
      %544 = vmatmul.mubr.bf16.gmra.mrb[0].mxu0 %v405
      %v545 = vpop.f32.mrb[0].mxu0
      %v546 = vadd.f32 0.0, %v545
      %v547 = vpop.f32.mrb[0].mxu0
      %v548 = vpop.f32.mrb[0].mxu0
      %v549 = vadd.f32 0.0, %v548
      %v550 = vpop.f32.mrb[0].mxu0
      %551 = vmatprep.mubr.bf16.mxu0 0
      %552 = vmatmul.mubr.bf16.gmra.mrb[0].mxu0 %v408
      %v553 = vpop.f32.mrb[0].mxu0
      %v554 = vadd.f32 0.0, %v553
      %v555 = vpop.f32.mrb[0].mxu0
      %v556 = vpop.f32.mrb[0].mxu0
      %v557 = vadd.f32 0.0, %v556
      %v558 = vpop.f32.mrb[0].mxu0
      %559 = vmatprep.mubr.bf16.mxu0 0
      %560 = vmatmul.mubr.bf16.gmra.mrb[0].mxu0 %v411
      %v561 = vpop.f32.mrb[0].mxu0
      %v562 = vadd.f32 0.0, %v561
      %v563 = vpop.f32.mrb[0].mxu0
      %v564 = vpop.f32.mrb[0].mxu0
      %v565 = vadd.f32 0.0, %v564
      %v566 = vpop.f32.mrb[0].mxu0
      %567 = vmatprep.mubr.bf16.mxu0 0
      %568 = vmatmul.mubr.bf16.gmra.mrb[0].mxu0 %v414
      %v569 = vpop.f32.mrb[0].mxu0
      %v570 = vadd.f32 0.0, %v569
      %v571 = vpop.f32.mrb[0].mxu0
      %v572 = vpop.f32.mrb[0].mxu0
      %v573 = vadd.f32 0.0, %v572
      %v574 = vpop.f32.mrb[0].mxu0
      %575 = vmatprep.mubr.bf16.mxu0 0
      %576 = vmatmul.mubr.bf16.gmra.mrb[0].mxu0 %v417
      %v577 = vpop.f32.mrb[0].mxu0
      %v578 = vadd.f32 0.0, %v577
      %v579 = vpop.f32.mrb[0].mxu0
      %v580 = vpop.f32.mrb[0].mxu0
      %v581 = vadd.f32 0.0, %v580
      %v582 = vpop.f32.mrb[0].mxu0
      %583 = vdwg.mxu0
      %v584 = vld [vmem:[%s2] sm:$0x1]
      %v586 = vlaneseq
      %v587 = vshrl.u32 %v586, 7
      %v588 = vsub.s32 0, %v587
      %v589 = vrot.slane %v584, %v588
      %v591 = vmul.f32 %v458, %v589
      %v592 = vmul.f32 %v461, %v589
      %v593 = vmul.f32 %v466, %v589
      %v594 = vmul.f32 %v469, %v589
      %v595 = vmul.f32 %v474, %v589
      %v596 = vmul.f32 %v477, %v589
      %v597 = vmul.f32 %v482, %v589
      %v598 = vmul.f32 %v485, %v589
      %v599 = vmul.f32 %v490, %v589
      %v600 = vmul.f32 %v493, %v589
      %v601 = vmul.f32 %v498, %v589
      %v602 = vmul.f32 %v501, %v589
      %v603 = vmul.f32 %v506, %v589
      %v604 = vmul.f32 %v509, %v589
      %v605 = vmul.f32 %v514, %v589
      %v606 = vmul.f32 %v517, %v589
      %v607 = vmul.f32 %v522, %v589
      %v608 = vmul.f32 %v525, %v589
      %v609 = vmul.f32 %v530, %v589
      %v610 = vmul.f32 %v533, %v589
      %v611 = vmul.f32 %v538, %v589
      %v612 = vmul.f32 %v541, %v589
      %v613 = vmul.f32 %v546, %v589
      %v614 = vmul.f32 %v549, %v589
      %v615 = vmul.f32 %v554, %v589
      %v616 = vmul.f32 %v557, %v589
      %v617 = vmul.f32 %v562, %v589
      %v618 = vmul.f32 %v565, %v589
      %v619 = vmul.f32 %v570, %v589
      %v620 = vmul.f32 %v573, %v589
      %v621 = vmul.f32 %v578, %v589
      %v622 = vmul.f32 %v581, %v589
      %v623 = vld [vmem:[%s3] sm:$0x1]
      %v625 = vlaneseq
      %v626 = vshrl.u32 %v625, 7
      %v627 = vsub.s32 0, %v626
      %v628 = vrot.slane %v623, %v627
      %v630 = vadd.f32 %v591, %v628
      %v631 = vadd.f32 %v592, %v628
      %v632 = vadd.f32 %v593, %v628
      %v633 = vadd.f32 %v594, %v628
      %v634 = vadd.f32 %v595, %v628
      %v635 = vadd.f32 %v596, %v628
      %v636 = vadd.f32 %v597, %v628
      %v637 = vadd.f32 %v598, %v628
      %v638 = vadd.f32 %v599, %v628
      %v639 = vadd.f32 %v600, %v628
      %v640 = vadd.f32 %v601, %v628
      %v641 = vadd.f32 %v602, %v628
      %v642 = vadd.f32 %v603, %v628
      %v643 = vadd.f32 %v604, %v628
      %v644 = vadd.f32 %v605, %v628
      %v645 = vadd.f32 %v606, %v628
      %v646 = vadd.f32 %v607, %v628
      %v647 = vadd.f32 %v608, %v628
      %v648 = vadd.f32 %v609, %v628
      %v649 = vadd.f32 %v610, %v628
      %v650 = vadd.f32 %v611, %v628
      %v651 = vadd.f32 %v612, %v628
      %v652 = vadd.f32 %v613, %v628
      %v653 = vadd.f32 %v614, %v628
      %v654 = vadd.f32 %v615, %v628
      %v655 = vadd.f32 %v616, %v628
      %v656 = vadd.f32 %v617, %v628
      %v657 = vadd.f32 %v618, %v628
      %v658 = vadd.f32 %v619, %v628
      %v659 = vadd.f32 %v620, %v628
      %v660 = vadd.f32 %v621, %v628
      %v661 = vadd.f32 %v622, %v628
      %v662 = vmax.f32 %v630, 0.0
      %v663 = vmax.f32 %v631, 0.0
      %v664 = vmax.f32 %v632, 0.0
      %v665 = vmax.f32 %v633, 0.0
      %v666 = vmax.f32 %v634, 0.0
      %v667 = vmax.f32 %v635, 0.0
      %v668 = vmax.f32 %v636, 0.0
      %v669 = vmax.f32 %v637, 0.0
      %v670 = vmax.f32 %v638, 0.0
      %v671 = vmax.f32 %v639, 0.0
      %v672 = vmax.f32 %v640, 0.0
      %v673 = vmax.f32 %v641, 0.0
      %v674 = vmax.f32 %v642, 0.0
      %v675 = vmax.f32 %v643, 0.0
      %v676 = vmax.f32 %v644, 0.0
      %v677 = vmax.f32 %v645, 0.0
      %v678 = vmax.f32 %v646, 0.0
      %v679 = vmax.f32 %v647, 0.0
      %v680 = vmax.f32 %v648, 0.0
      %v681 = vmax.f32 %v649, 0.0
      %v682 = vmax.f32 %v650, 0.0
      %v683 = vmax.f32 %v651, 0.0
      %v684 = vmax.f32 %v652, 0.0
      %v685 = vmax.f32 %v653, 0.0
      %v686 = vmax.f32 %v654, 0.0
      %v687 = vmax.f32 %v655, 0.0
      %v688 = vmax.f32 %v656, 0.0
      %v689 = vmax.f32 %v657, 0.0
      %v690 = vmax.f32 %v658, 0.0
      %v691 = vmax.f32 %v659, 0.0
      %v692 = vmax.f32 %v660, 0.0
      %v693 = vmax.f32 %v661, 0.0
      %vm694 = vcmask 64512
      %695 = vst.msk [vmem:[%s235] sm:$0xff] %vm694, %v662
      %696 = vst.msk [vmem:[%s235 + $0x8] sm:$0xff] %vm694, %v663
      %697 = vst.msk [vmem:[%s235 + $0x10] sm:$0xff] %vm694, %v664
      %698 = vst.msk [vmem:[%s235 + $0x18] sm:$0xff] %vm694, %v665
      %699 = vst.msk [vmem:[%s235 + $0x20] sm:$0xff] %vm694, %v666
      %700 = vst.msk [vmem:[%s235 + $0x28] sm:$0xff] %vm694, %v667
      %701 = vst.msk [vmem:[%s235 + $0x30] sm:$0xff] %vm694, %v668
      %702 = vst.msk [vmem:[%s235 + $0x38] sm:$0xff] %vm694, %v669
      %703 = vst.msk [vmem:[%s235 + $0x40] sm:$0xff] %vm694, %v670
      %704 = vst.msk [vmem:[%s235 + $0x48] sm:$0xff] %vm694, %v671
      %705 = vst.msk [vmem:[%s235 + $0x50] sm:$0xff] %vm694, %v672
      %706 = vst.msk [vmem:[%s235 + $0x58] sm:$0xff] %vm694, %v673
      %707 = vst.msk [vmem:[%s235 + $0x60] sm:$0xff] %vm694, %v674
      %708 = vst.msk [vmem:[%s235 + $0x68] sm:$0xff] %vm694, %v675
      %709 = vst.msk [vmem:[%s235 + $0x70] sm:$0xff] %vm694, %v676
      %710 = vst.msk [vmem:[%s235 + $0x78] sm:$0xff] %vm694, %v677
      %711 = vst.msk [vmem:[%s235 + $0x80] sm:$0xff] %vm694, %v678
      %712 = vst.msk [vmem:[%s235 + $0x88] sm:$0xff] %vm694, %v679
      %713 = vst.msk [vmem:[%s235 + $0x90] sm:$0xff] %vm694, %v680
      %714 = vst.msk [vmem:[%s235 + $0x98] sm:$0xff] %vm694, %v681
      %715 = vst.msk [vmem:[%s235 + $0xa0] sm:$0xff] %vm694, %v682
      %716 = vst.msk [vmem:[%s235 + $0xa8] sm:$0xff] %vm694, %v683
      %717 = vst.msk [vmem:[%s235 + $0xb0] sm:$0xff] %vm694, %v684
      %718 = vst.msk [vmem:[%s235 + $0xb8] sm:$0xff] %vm694, %v685
      %719 = vst.msk [vmem:[%s235 + $0xc0] sm:$0xff] %vm694, %v686
      %720 = vst.msk [vmem:[%s235 + $0xc8] sm:$0xff] %vm694, %v687
      %721 = vst.msk [vmem:[%s235 + $0xd0] sm:$0xff] %vm694, %v688
      %722 = vst.msk [vmem:[%s235 + $0xd8] sm:$0xff] %vm694, %v689
      %723 = vst.msk [vmem:[%s235 + $0xe0] sm:$0xff] %vm694, %v690
      %724 = vst.msk [vmem:[%s235 + $0xe8] sm:$0xff] %vm694, %v691
      %725 = vst.msk [vmem:[%s235 + $0xf0] sm:$0xff] %vm694, %v692
      %726 = vst.msk [vmem:[%s235 + $0xf8] sm:$0xff] %vm694, %v693
      %s727 = smul.u32 32, %s20
      %p728 = scmp.lt.s32.totalorder %s19, 1
      %s729 = scalar_select %p728, %s19, 1
      %p730 = scmp.lt.s32.totalorder %s727, 31
      %s731 = scalar_select %p730, %s727, 31
      %s732 = smul.addr %s729, 32
      %s733 = sadd.s32 %s731, %s732
      %s734 = smul.addr %s733, 8
      %s735 = scalar_lea.vmem %s4, %s734
      // Predicated region
      $region37: #{dual_stream_unet.45} parent=35 // pred_check
        %p736 = pneg %p138
      $region38: #{dual_stream_unet.45} parent=35 // pred_check_branch
        %738 = sbr.rel (%p736) target = $region40
      $region39: #{dual_stream_unet.45} parent=35 // pred_region
        %s739 = smul.u32 32, %s20
      $region40: #{dual_stream_unet.45} parent=35 // pred_fallthru
        _
    $region36: #{dual_stream_unet.45} parent=5 // pred_fallthru
      _
    %p740 = scmp.le.s32.totalorder 2, %s10
    // Predicated region
    $region41: #{dual_stream_unet.45} parent=5 // pred_check
      %p741 = pneg %p740
    $region42: #{dual_stream_unet.45} parent=5 // pred_check_branch
      %743 = sbr.rel (%p741) target = $region44
    $region43: #{dual_stream_unet.45} parent=5 // pred_region
      %s744 = ssub.s32 %s10, 2
      // Predicated region
      $region45: #{dual_stream_unet.45} parent=43 // pred_check
        %p745 = pneg %p144
      $region46: #{dual_stream_unet.45} parent=43 // pred_check_branch
        %747 = sbr.rel (%p745) target = $region48
      $region47: #{dual_stream_unet.45} parent=43 // pred_region
        %s748 = smul.u32 32, %s22
        %p749 = scmp.lt.s32.totalorder %s21, 1
        %s750 = scalar_select %p749, %s21, 1
        %p751 = scmp.lt.s32.totalorder %s748, 31
        %s752 = scalar_select %p751, %s748, 31
        %s753 = smul.addr %s750, 32
        %s754 = sadd.s32 %s752, %s753
        %s755 = smul.addr %s754, 8
        %s756 = scalar_lea.vmem %s4, %s755
      $region48: #{dual_stream_unet.45} parent=43 // pred_fallthru
        _
    $region44: #{dual_stream_unet.45} parent=5 // pred_fallthru
      _
  $region6: #{dual_stream_unet.45} parent=0 // loop_footer
    %s14 = sadd.s32 1, %s10
  $region7: #{dual_stream_unet.45} parent=0 // loop_footer_branch
    %9 = sbr.rel target = $region3
  $region8: #{dual_stream_unet.45} parent=0 // loop_exit
    _

// kernel: dual_stream_unet.47
$region0: #{dual_stream_unet.47}
  #allocation0 [shape = 'u32[]', space=smem, size = 0x4, offset = 0x4, fixed_abs, tag = 'smem constant byte address 0x4 - core index']
  #allocation1 [shape = 'u32[144,128]{1,0:T(1,128)}', space=vmem, size = 0x12000, scoped, tag = 'internal scratch']
  %s0 = inlined_call_operand.vmem [shape: f32[2,8,2,8,16], index: 0, kind: input, shape index: {}]
  %s1 = inlined_call_operand.vmem [shape: f32[2,8,8,8], index: 1, kind: output, shape index: {}]
  %s2 = sld [smem:[#allocation0]]
  $region37: #{dual_stream_unet.47} parent=0
    _
  %s4 = ssub.s32 1, %s2
  %s5 = scalar_select 0, %s4, %s2
  loop: start=0, step=1, limit=4
  $region2: #{dual_stream_unet.47} parent=0 // loop_pre_header
    _
  $region3: #{dual_stream_unet.47} parent=0 // loop_header
    %s7 = sphi 0, %s11
    %p8 = scmp.ge.s32.totalorder %s7, 4
    %s17 = sphi 0, %s19
    %s20 = sphi 0, %s17
    %s21 = sphi 0, %s20
    %s37 = sphi 0, %s21
    %s43 = sphi 0, %s45
    %s46 = sphi 0, %s43
    %s47 = sphi 0, %s46
    %s63 = sphi 0, %s47
  $region4: #{dual_stream_unet.47} parent=0 // loop_header_branch
    %10 = sbr.rel (%p8) target = $region8
  $region5: #{dual_stream_unet.47} parent=0 // loop_body
    %s12 = ssub.s32 %s7, 1
    %s13 = ssub.s32 %s7, 2
    %s14 = sadd.s32 %s7, 1
    %s15 = ssub.s32 %s7, %s14
    %p16 = scmp.eq.s32.totalorder %s15, 0
    %s18 = sadd.s32 %s17, 1
    %s19 = scalar_select %p16, %s17, %s18
    %p22 = pneg %p16
    %p23 = scmp.eq.s32.totalorder %s7, 1
    %p24 = por %p22, %p23
    %p25 = scmp.ne.s32.totalorder %s17, %s20
    %p26 = scmp.eq.s32.totalorder %s7, 0
    %p27 = por %p25, %p26
    %p28 = scmp.ne.s32.totalorder %s17, %s20
    %p29 = scmp.eq.s32.totalorder %s12, 1
    %p30 = por %p28, %p29
    %p31 = scmp.ne.s32.totalorder %s20, %s21
    %p32 = scmp.eq.s32.totalorder %s12, 0
    %p33 = por %p31, %p32
    %p34 = scmp.ne.s32.totalorder %s20, %s21
    %p35 = scmp.eq.s32.totalorder %s13, 1
    %p36 = por %p34, %p35
    %p38 = scmp.ne.s32.totalorder %s21, %s37
    %p39 = scmp.eq.s32.totalorder %s13, 0
    %p40 = por %p38, %p39
    %s41 = ssub.s32 %s7, %s14
    %p42 = scmp.eq.s32.totalorder %s41, 0
    %s44 = sadd.s32 %s43, 1
    %s45 = scalar_select %p42, %s43, %s44
    %p48 = pneg %p42
    %p49 = scmp.eq.s32.totalorder %s7, 1
    %p50 = por %p48, %p49
    %p51 = scmp.ne.s32.totalorder %s43, %s46
    %p52 = scmp.eq.s32.totalorder %s7, 0
    %p53 = por %p51, %p52
    %p54 = scmp.ne.s32.totalorder %s43, %s46
    %p55 = scmp.eq.s32.totalorder %s12, 1
    %p56 = por %p54, %p55
    %p57 = scmp.ne.s32.totalorder %s46, %s47
    %p58 = scmp.eq.s32.totalorder %s12, 0
    %p59 = por %p57, %p58
    %p60 = scmp.ne.s32.totalorder %s46, %s47
    %p61 = scmp.eq.s32.totalorder %s13, 1
    %p62 = por %p60, %p61
    %p64 = scmp.ne.s32.totalorder %s47, %s63
    %p65 = scmp.eq.s32.totalorder %s13, 0
    %p66 = por %p64, %p65
    %p67 = scmp.le.s32.totalorder 1, %s7
    %p68 = scmp.lt.s32.totalorder %s7, 3
    %p69 = pnand %p67, %p68
    %p70 = pneg %p69
    // Predicated region
    $region9: #{dual_stream_unet.47} parent=5 // pred_check
      _
    $region10: #{dual_stream_unet.47} parent=5 // pred_check_branch
      %72 = sbr.rel (%p69) target = $region12
    $region11: #{dual_stream_unet.47} parent=5 // pred_region
      %s73 = ssub.s32 %s7, 1
    $region12: #{dual_stream_unet.47} parent=5 // pred_fallthru
      _
    %p74 = scmp.lt.s32.totalorder %s7, 2
    // Predicated region
    $region13: #{dual_stream_unet.47} parent=5 // pred_check
      %p75 = pneg %p74
    $region14: #{dual_stream_unet.47} parent=5 // pred_check_branch
      %77 = sbr.rel (%p75) target = $region16
    $region15: #{dual_stream_unet.47} parent=5 // pred_region
      // Predicated region
      $region17: #{dual_stream_unet.47} parent=15 // pred_check
        %p78 = pneg %p27
      $region18: #{dual_stream_unet.47} parent=15 // pred_check_branch
        %80 = sbr.rel (%p78) target = $region20
      $region19: #{dual_stream_unet.47} parent=15 // pred_region
        %p81 = scmp.lt.s32.totalorder %s7, 1
        %s82 = scalar_select %p81, %s7, 1
        %s83 = smul.addr %s82, 16
        %s84 = smul.addr %s83, 8
        %s85 = scalar_lea.vmem %s0, %s84
      $region20: #{dual_stream_unet.47} parent=15 // pred_fallthru
        _
    $region16: #{dual_stream_unet.47} parent=5 // pred_fallthru
      _
    %p86 = scmp.le.s32.totalorder 1, %s7
    %p87 = scmp.lt.s32.totalorder %s7, 3
    %p88 = pnand %p86, %p87
    %p89 = pneg %p88
    // Predicated region
    $region21: #{dual_stream_unet.47} parent=5 // pred_check
      _
    $region22: #{dual_stream_unet.47} parent=5 // pred_check_branch
      %91 = sbr.rel (%p88) target = $region24
    $region23: #{dual_stream_unet.47} parent=5 // pred_region
      %s92 = ssub.s32 %s7, 1
      %p93 = scmp.lt.s32.totalorder %s12, 1
      %s94 = scalar_select %p93, %s12, 1
      %s95 = smul.addr %s94, 16
      %s96 = smul.addr %s95, 8
      %s97 = scalar_lea.vmem %s0, %s96
      %p98 = pneg %p33
      %p99 = pneg %p30
      %p100 = pneg %p59
      %p101 = pneg %p56
      %p102 = scmp.lt.s32.totalorder %s12, 1
      %s103 = scalar_select %p102, %s12, 1
      %s104 = smul.addr %s103, 8
      %s105 = smul.addr %s104, 8
      %s106 = scalar_lea.vmem %s1, %s105
      %p107 = scmp.lt.s32.totalorder %s12, 1
      %s108 = scalar_select %p107, %s12, 1
      %s109 = smul.addr %s108, 16
      %s110 = smul.addr %s109, 8
      %s111 = scalar_lea.vmem %s0, %s110
      %p112 = scmp.lt.s32.totalorder %s12, 1
      %s113 = scalar_select %p112, %s12, 1
      %s114 = smul.addr %s113, 8
      %s115 = smul.addr %s114, 8
      %s116 = scalar_lea.vmem %s1, %s115
      %v117 = vld [vmem:[%s111] sm:$0xff]
      %v118 = vld [vmem:[%s111 + $0x8] sm:$0xff]
      %v119 = vld [vmem:[%s111 + $0x10] sm:$0xff]
      %v120 = vld [vmem:[%s111 + $0x18] sm:$0xff]
      %v121 = vld [vmem:[%s111 + $0x20] sm:$0xff]
      %v122 = vld [vmem:[%s111 + $0x28] sm:$0xff]
      %v123 = vld [vmem:[%s111 + $0x30] sm:$0xff]
      %v124 = vld [vmem:[%s111 + $0x38] sm:$0xff]
      %v125 = vld [vmem:[%s111 + $0x40] sm:$0xff]
      %v126 = vld [vmem:[%s111 + $0x48] sm:$0xff]
      %v127 = vld [vmem:[%s111 + $0x50] sm:$0xff]
      %v128 = vld [vmem:[%s111 + $0x58] sm:$0xff]
      %v129 = vld [vmem:[%s111 + $0x60] sm:$0xff]
      %v130 = vld [vmem:[%s111 + $0x68] sm:$0xff]
      %v131 = vld [vmem:[%s111 + $0x70] sm:$0xff]
      %v132 = vld [vmem:[%s111 + $0x78] sm:$0xff]
      %v133 = vmax.f32 %v117, %v118
      %v134 = vmax.f32 %v119, %v120
      %v135 = vmax.f32 %v121, %v122
      %v136 = vmax.f32 %v123, %v124
      %v137 = vmax.f32 %v125, %v126
      %v138 = vmax.f32 %v127, %v128
      %v139 = vmax.f32 %v129, %v130
      %v140 = vmax.f32 %v131, %v132
      %149 = vrot.lane.b32.xlu0 %v133, 120
      %v150 = vpop.permute.xlu0 %149
      %151 = vrot.lane.b32.xlu0 %v134, 120
      %v152 = vpop.permute.xlu0 %151
      %153 = vrot.lane.b32.xlu0 %v135, 120
      %v154 = vpop.permute.xlu0 %153
      %155 = vrot.lane.b32.xlu0 %v136, 120
      %v156 = vpop.permute.xlu0 %155
      %157 = vrot.lane.b32.xlu0 %v137, 120
      %v158 = vpop.permute.xlu0 %157
      %159 = vrot.lane.b32.xlu0 %v138, 120
      %v160 = vpop.permute.xlu0 %159
      %161 = vrot.lane.b32.xlu0 %v139, 120
      %v162 = vpop.permute.xlu0 %161
      %163 = vrot.lane.b32.xlu0 %v140, 120
      %v164 = vpop.permute.xlu0 %163
      %v173 = vmax.f32 %v133, %v150
      %v174 = vmax.f32 %v134, %v152
      %v175 = vmax.f32 %v135, %v154
      %v176 = vmax.f32 %v136, %v156
      %v177 = vmax.f32 %v137, %v158
      %v178 = vmax.f32 %v138, %v160
      %v179 = vmax.f32 %v139, %v162
      %v180 = vmax.f32 %v140, %v164
      %vm181 = vcmask 64512
      %182 = vst.msk [vmem:[%s116] sm:$0xff] %vm181, %v173
      %183 = vst.msk [vmem:[%s116 + $0x8] sm:$0xff] %vm181, %v174
      %184 = vst.msk [vmem:[%s116 + $0x10] sm:$0xff] %vm181, %v175
      %185 = vst.msk [vmem:[%s116 + $0x18] sm:$0xff] %vm181, %v176
      %186 = vst.msk [vmem:[%s116 + $0x20] sm:$0xff] %vm181, %v177
      %187 = vst.msk [vmem:[%s116 + $0x28] sm:$0xff] %vm181, %v178
      %188 = vst.msk [vmem:[%s116 + $0x30] sm:$0xff] %vm181, %v179
      %189 = vst.msk [vmem:[%s116 + $0x38] sm:$0xff] %vm181, %v180
      %p190 = scmp.lt.s32.totalorder %s12, 1
      %s191 = scalar_select %p190, %s12, 1
      %s192 = smul.addr %s191, 8
      %s193 = smul.addr %s192, 8
      %s194 = scalar_lea.vmem %s1, %s193
      // Predicated region
      $region25: #{dual_stream_unet.47} parent=23 // pred_check
        %p195 = pneg %p56
      $region26: #{dual_stream_unet.47} parent=23 // pred_check_branch
        %197 = sbr.rel (%p195) target = $region28
      $region27: #{dual_stream_unet.47} parent=23 // pred_region
        _
      $region28: #{dual_stream_unet.47} parent=23 // pred_fallthru
        _
    $region24: #{dual_stream_unet.47} parent=5 // pred_fallthru
      _
    %p198 = scmp.le.s32.totalorder 2, %s7
    // Predicated region
    $region29: #{dual_stream_unet.47} parent=5 // pred_check
      %p199 = pneg %p198
    $region30: #{dual_stream_unet.47} parent=5 // pred_check_branch
      %201 = sbr.rel (%p199) target = $region32
    $region31: #{dual_stream_unet.47} parent=5 // pred_region
      %s202 = ssub.s32 %s7, 2
      // Predicated region
      $region33: #{dual_stream_unet.47} parent=31 // pred_check
        %p203 = pneg %p62
      $region34: #{dual_stream_unet.47} parent=31 // pred_check_branch
        %205 = sbr.rel (%p203) target = $region36
      $region35: #{dual_stream_unet.47} parent=31 // pred_region
        %p206 = scmp.lt.s32.totalorder %s13, 1
        %s207 = scalar_select %p206, %s13, 1
        %s208 = smul.addr %s207, 8
        %s209 = smul.addr %s208, 8
        %s210 = scalar_lea.vmem %s1, %s209
      $region36: #{dual_stream_unet.47} parent=31 // pred_fallthru
        _
    $region32: #{dual_stream_unet.47} parent=5 // pred_fallthru
      _
  $region6: #{dual_stream_unet.47} parent=0 // loop_footer
    %s11 = sadd.s32 1, %s7
  $region7: #{dual_stream_unet.47} parent=0 // loop_footer_branch
    %6 = sbr.rel target = $region3
  $region8: #{dual_stream_unet.47} parent=0 // loop_exit
    _

// kernel: dual_stream_unet.48
$region0: #{dual_stream_unet.48}
  #allocation0 [shape = 'u32[]', space=smem, size = 0x4, offset = 0x4, fixed_abs, tag = 'smem constant byte address 0x4 - core index']
  #allocation1 [shape = 'u32[144,128]{1,0:T(1,128)}', space=vmem, size = 0x12000, scoped, tag = 'internal scratch']
  %s0 = inlined_call_operand.vmem [shape: bf16[2,64,72], index: 0, kind: input, shape index: {}]
  %s1 = inlined_call_operand.vmem [shape: bf16[72,16], index: 1, kind: input, shape index: {}]
  %s2 = inlined_call_operand.vmem [shape: f32[1,16], index: 2, kind: input, shape index: {}]
  %s3 = inlined_call_operand.vmem [shape: f32[1,16], index: 3, kind: input, shape index: {}]
  %s4 = inlined_call_operand.vmem [shape: f32[2,64,16], index: 4, kind: output, shape index: {}]
  %s5 = sld [smem:[#allocation0]]
  $region49: #{dual_stream_unet.48} parent=0
    _
  %s7 = ssub.s32 1, %s5
  %s8 = scalar_select 0, %s7, %s5
  loop: start=0, step=1, limit=4
  $region2: #{dual_stream_unet.48} parent=0 // loop_pre_header
    _
  $region3: #{dual_stream_unet.48} parent=0 // loop_header
    %s10 = sphi 0, %s14
    %p11 = scmp.ge.s32.totalorder %s10, 4
    %s17 = sphi 0, %s29
    %s18 = sphi 0, %s25
    %s19 = sphi 0, %s17
    %s20 = sphi 0, %s18
    %s21 = sphi 0, %s19
    %s22 = sphi 0, %s20
    %s34 = sphi 0, %s36
    %s37 = sphi 0, %s34
    %s38 = sphi 0, %s37
    %s54 = sphi 0, %s38
    %s58 = sphi 0, %s58
    %s60 = sphi 0, %s58
    %s61 = sphi 0, %s60
    %s75 = sphi 0, %s61
    %s79 = sphi 0, %s79
    %s81 = sphi 0, %s79
    %s82 = sphi 0, %s81
    %s96 = sphi 0, %s82
    %s100 = sphi 0, %s100
    %s102 = sphi 0, %s100
    %s103 = sphi 0, %s102
    %s117 = sphi 0, %s103
    %s125 = sphi 0, %s127
    %s128 = sphi 0, %s125
    %s129 = sphi 0, %s128
    %s145 = sphi 0, %s129
  $region4: #{dual_stream_unet.48} parent=0 // loop_header_branch
    %13 = sbr.rel (%p11) target = $region8
  $region5: #{dual_stream_unet.48} parent=0 // loop_body
    %s15 = ssub.s32 %s10, 1
    %s16 = ssub.s32 %s10, 2
    %s23 = sadd.s32 1, %s18
    %p24 = scmp.ge.s32.totalorder %s23, 1
    %s25 = scalar_select %p24, 0, %s23
    %s26 = sadd.s32 1, %s17
    %s27 = scalar_select %p24, %s26, %s17
    %p28 = scmp.ge.s32.totalorder %s27, 2
    %s29 = scalar_select %p28, 0, %s27
    %s30 = ssub.s32 %s17, %s29
    %s31 = ssub.s32 %s18, %s25
    %s32 = sor.u32 %s30, %s31
    %p33 = scmp.eq.s32.totalorder %s32, 0
    %s35 = sadd.s32 %s34, 1
    %s36 = scalar_select %p33, %s34, %s35
    %p39 = pneg %p33
    %p40 = scmp.eq.s32.totalorder %s10, 1
    %p41 = por %p39, %p40
    %p42 = scmp.ne.s32.totalorder %s34, %s37
    %p43 = scmp.eq.s32.totalorder %s10, 0
    %p44 = por %p42, %p43
    %p45 = scmp.ne.s32.totalorder %s34, %s37
    %p46 = scmp.eq.s32.totalorder %s15, 1
    %p47 = por %p45, %p46
    %p48 = scmp.ne.s32.totalorder %s37, %s38
    %p49 = scmp.eq.s32.totalorder %s15, 0
    %p50 = por %p48, %p49
    %p51 = scmp.ne.s32.totalorder %s37, %s38
    %p52 = scmp.eq.s32.totalorder %s16, 1
    %p53 = por %p51, %p52
    %p55 = scmp.ne.s32.totalorder %s38, %s54
    %p56 = scmp.eq.s32.totalorder %s16, 0
    %p57 = por %p55, %p56
    %s59 = sadd.s32 %s58, 1
    %p62 = scmp.eq.s32.totalorder %s10, 1
    %p63 = scmp.ne.s32.totalorder %s58, %s60
    %p64 = scmp.eq.s32.totalorder %s10, 0
    %p65 = por %p63, %p64
    %p66 = scmp.ne.s32.totalorder %s58, %s60
    %p67 = scmp.eq.s32.totalorder %s15, 1
    %p68 = por %p66, %p67
    %p69 = scmp.ne.s32.totalorder %s60, %s61
    %p70 = scmp.eq.s32.totalorder %s15, 0
    %p71 = por %p69, %p70
    %p72 = scmp.ne.s32.totalorder %s60, %s61
    %p73 = scmp.eq.s32.totalorder %s16, 1
    %p74 = por %p72, %p73
    %p76 = scmp.ne.s32.totalorder %s61, %s75
    %p77 = scmp.eq.s32.totalorder %s16, 0
    %p78 = por %p76, %p77
    %s80 = sadd.s32 %s79, 1
    %p83 = scmp.eq.s32.totalorder %s10, 1
    %p84 = scmp.ne.s32.totalorder %s79, %s81
    %p85 = scmp.eq.s32.totalorder %s10, 0
    %p86 = por %p84, %p85
    %p87 = scmp.ne.s32.totalorder %s79, %s81
    %p88 = scmp.eq.s32.totalorder %s15, 1
    %p89 = por %p87, %p88
    %p90 = scmp.ne.s32.totalorder %s81, %s82
    %p91 = scmp.eq.s32.totalorder %s15, 0
    %p92 = por %p90, %p91
    %p93 = scmp.ne.s32.totalorder %s81, %s82
    %p94 = scmp.eq.s32.totalorder %s16, 1
    %p95 = por %p93, %p94
    %p97 = scmp.ne.s32.totalorder %s82, %s96
    %p98 = scmp.eq.s32.totalorder %s16, 0
    %p99 = por %p97, %p98
    %s101 = sadd.s32 %s100, 1
    %p104 = scmp.eq.s32.totalorder %s10, 1
    %p105 = scmp.ne.s32.totalorder %s100, %s102
    %p106 = scmp.eq.s32.totalorder %s10, 0
    %p107 = por %p105, %p106
    %p108 = scmp.ne.s32.totalorder %s100, %s102
    %p109 = scmp.eq.s32.totalorder %s15, 1
    %p110 = por %p108, %p109
    %p111 = scmp.ne.s32.totalorder %s102, %s103
    %p112 = scmp.eq.s32.totalorder %s15, 0
    %p113 = por %p111, %p112
    %p114 = scmp.ne.s32.totalorder %s102, %s103
    %p115 = scmp.eq.s32.totalorder %s16, 1
    %p116 = por %p114, %p115
    %p118 = scmp.ne.s32.totalorder %s103, %s117
    %p119 = scmp.eq.s32.totalorder %s16, 0
    %p120 = por %p118, %p119
    %s121 = ssub.s32 %s17, %s29
    %s122 = ssub.s32 %s18, %s25
    %s123 = sor.u32 %s121, %s122
    %p124 = scmp.eq.s32.totalorder %s123, 0
    %s126 = sadd.s32 %s125, 1
    %s127 = scalar_select %p124, %s125, %s126
    %p130 = pneg %p124
    %p131 = scmp.eq.s32.totalorder %s10, 1
    %p132 = por %p130, %p131
    %p133 = scmp.ne.s32.totalorder %s125, %s128
    %p134 = scmp.eq.s32.totalorder %s10, 0
    %p135 = por %p133, %p134
    %p136 = scmp.ne.s32.totalorder %s125, %s128
    %p137 = scmp.eq.s32.totalorder %s15, 1
    %p138 = por %p136, %p137
    %p139 = scmp.ne.s32.totalorder %s128, %s129
    %p140 = scmp.eq.s32.totalorder %s15, 0
    %p141 = por %p139, %p140
    %p142 = scmp.ne.s32.totalorder %s128, %s129
    %p143 = scmp.eq.s32.totalorder %s16, 1
    %p144 = por %p142, %p143
    %p146 = scmp.ne.s32.totalorder %s129, %s145
    %p147 = scmp.eq.s32.totalorder %s16, 0
    %p148 = por %p146, %p147
    %p149 = scmp.le.s32.totalorder 1, %s10
    %p150 = scmp.lt.s32.totalorder %s10, 3
    %p151 = pnand %p149, %p150
    %p152 = pneg %p151
    // Predicated region
    $region9: #{dual_stream_unet.48} parent=5 // pred_check
      _
    $region10: #{dual_stream_unet.48} parent=5 // pred_check_branch
      %154 = sbr.rel (%p151) target = $region12
    $region11: #{dual_stream_unet.48} parent=5 // pred_region
      %s155 = ssub.s32 %s10, 1
      // Predicated region
      $region13: #{dual_stream_unet.48} parent=11 // pred_check
        %p156 = pneg %p71
      $region14: #{dual_stream_unet.48} parent=11 // pred_check_branch
        %158 = sbr.rel (%p156) target = $region16
      $region15: #{dual_stream_unet.48} parent=11 // pred_region
        _
      $region16: #{dual_stream_unet.48} parent=11 // pred_fallthru
        _
      // Predicated region
      $region17: #{dual_stream_unet.48} parent=11 // pred_check
        %p159 = pneg %p92
      $region18: #{dual_stream_unet.48} parent=11 // pred_check_branch
        %161 = sbr.rel (%p159) target = $region20
      $region19: #{dual_stream_unet.48} parent=11 // pred_region
        _
      $region20: #{dual_stream_unet.48} parent=11 // pred_fallthru
        _
      // Predicated region
      $region21: #{dual_stream_unet.48} parent=11 // pred_check
        %p162 = pneg %p113
      $region22: #{dual_stream_unet.48} parent=11 // pred_check_branch
        %164 = sbr.rel (%p162) target = $region24
      $region23: #{dual_stream_unet.48} parent=11 // pred_region
        _
      $region24: #{dual_stream_unet.48} parent=11 // pred_fallthru
        _
    $region12: #{dual_stream_unet.48} parent=5 // pred_fallthru
      _
    %p165 = scmp.lt.s32.totalorder %s10, 2
    // Predicated region
    $region25: #{dual_stream_unet.48} parent=5 // pred_check
      %p166 = pneg %p165
    $region26: #{dual_stream_unet.48} parent=5 // pred_check_branch
      %168 = sbr.rel (%p166) target = $region28
    $region27: #{dual_stream_unet.48} parent=5 // pred_region
      // Predicated region
      $region29: #{dual_stream_unet.48} parent=27 // pred_check
        %p169 = pneg %p44
      $region30: #{dual_stream_unet.48} parent=27 // pred_check_branch
        %171 = sbr.rel (%p169) target = $region32
      $region31: #{dual_stream_unet.48} parent=27 // pred_region
        %s172 = smul.u32 8, %s18
        %p173 = scmp.lt.s32.totalorder %s17, 1
        %s174 = scalar_select %p173, %s17, 1
        %p175 = scmp.lt.s32.totalorder %s172, 7
        %s176 = scalar_select %p175, %s172, 7
        %s177 = smul.addr %s174, 8
        %s178 = sadd.s32 %s176, %s177
        %s179 = smul.addr %s178, 4
        %s180 = scalar_lea.vmem %s0, %s179
        %s181 = smul.u32 8, %s18
      $region32: #{dual_stream_unet.48} parent=27 // pred_fallthru
        _
    $region28: #{dual_stream_unet.48} parent=5 // pred_fallthru
      _
    %p182 = scmp.le.s32.totalorder 1, %s10
    %p183 = scmp.lt.s32.totalorder %s10, 3
    %p184 = pnand %p182, %p183
    %p185 = pneg %p184
    // Predicated region
    $region33: #{dual_stream_unet.48} parent=5 // pred_check
      _
    $region34: #{dual_stream_unet.48} parent=5 // pred_check_branch
      %187 = sbr.rel (%p184) target = $region36
    $region35: #{dual_stream_unet.48} parent=5 // pred_region
      %s188 = ssub.s32 %s10, 1
      %s189 = smul.u32 8, %s20
      %p190 = scmp.lt.s32.totalorder %s19, 1
      %s191 = scalar_select %p190, %s19, 1
      %p192 = scmp.lt.s32.totalorder %s189, 7
      %s193 = scalar_select %p192, %s189, 7
      %s194 = smul.addr %s191, 8
      %s195 = sadd.s32 %s193, %s194
      %s196 = smul.addr %s195, 4
      %s197 = scalar_lea.vmem %s0, %s196
      %p198 = pneg %p50
      %p199 = pneg %p47
      %p200 = pneg %p71
      %p201 = pneg %p68
      %p202 = pneg %p92
      %p203 = pneg %p89
      %p204 = pneg %p113
      %p205 = pneg %p110
      %p206 = pneg %p141
      %p207 = pneg %p138
      %s208 = smul.u32 8, %s20
      %p209 = scmp.lt.s32.totalorder %s19, 1
      %s210 = scalar_select %p209, %s19, 1
      %p211 = scmp.lt.s32.totalorder %s208, 7
      %s212 = scalar_select %p211, %s208, 7
      %s213 = smul.addr %s210, 8
      %s214 = sadd.s32 %s212, %s213
      %s215 = smul.addr %s214, 8
      %s216 = scalar_lea.vmem %s4, %s215
      %s217 = smul.u32 8, %s20
      %p218 = scmp.lt.s32.totalorder %s19, 1
      %s219 = scalar_select %p218, %s19, 1
      %p220 = scmp.lt.s32.totalorder %s217, 7
      %s221 = scalar_select %p220, %s217, 7
      %s222 = smul.addr %s219, 8
      %s223 = sadd.s32 %s221, %s222
      %s224 = smul.addr %s223, 4
      %s225 = scalar_lea.vmem %s0, %s224
      %s226 = smul.u32 8, %s20
      %s227 = smul.u32 8, %s20
      %p228 = scmp.lt.s32.totalorder %s19, 1
      %s229 = scalar_select %p228, %s19, 1
      %p230 = scmp.lt.s32.totalorder %s227, 7
      %s231 = scalar_select %p230, %s227, 7
      %s232 = smul.addr %s229, 8
      %s233 = sadd.s32 %s231, %s232
      %s234 = smul.addr %s233, 8
      %s235 = scalar_lea.vmem %s4, %s234
      %s236 = smul.u32 8, %s20
      %v238 = vld [vmem:[%s225] sm:$0xf]
      %v239 = vld [vmem:[%s225 + $0x4] sm:$0xf]
      %v240 = vld [vmem:[%s225 + $0x8] sm:$0xf]
      %v241 = vld [vmem:[%s225 + $0xc] sm:$0xf]
      %v242 = vld [vmem:[%s225 + $0x10] sm:$0xf]
      %v243 = vld [vmem:[%s225 + $0x14] sm:$0xf]
      %v244 = vld [vmem:[%s225 + $0x18] sm:$0xf]
      %v245 = vld [vmem:[%s225 + $0x1c] sm:$0xf]
      %v246 = vld [vmem:[%s1] sm:$0xf]
      %v247 = vld [vmem:[%s1 + $0x4] sm:$0xf]
      %v248 = vld [vmem:[%s1 + $0x8] sm:$0xf]
      %v249 = vld [vmem:[%s1 + $0xc] sm:$0xf]
      %v250 = vld [vmem:[%s1 + $0x10] sm:$0xf]
      %v251 = vld [vmem:[%s1 + $0x14] sm:$0xf]
      %v252 = vld [vmem:[%s1 + $0x18] sm:$0xf]
      %v253 = vld [vmem:[%s1 + $0x1c] sm:$0xf]
      %v254 = vld [vmem:[%s1 + $0x20] sm:$0xf]
      %v263 = vunpack.c.l.b16 %v238
      %v264 = vunpack.c.l.b16 %v239
      %v265 = vunpack.c.l.b16 %v240
      %v266 = vunpack.c.l.b16 %v241
      %v267 = vunpack.c.l.b16 %v242
      %v268 = vunpack.c.l.b16 %v243
      %v269 = vunpack.c.l.b16 %v244
      %v270 = vunpack.c.l.b16 %v245
      %v271 = vpack.c.b16 %v264, %v263
      %v272 = vpack.c.b16 %v266, %v265
      %v273 = vpack.c.b16 %v268, %v267
      %v274 = vpack.c.b16 %v270, %v269
      %v284 = vunpack.c.l.b16 %v246
      %v285 = vunpack.c.l.b16 %v247
      %v286 = vunpack.c.l.b16 %v248
      %v287 = vunpack.c.l.b16 %v249
      %v288 = vunpack.c.l.b16 %v250
      %v289 = vunpack.c.l.b16 %v251
      %v290 = vunpack.c.l.b16 %v252
      %v291 = vunpack.c.l.b16 %v253
      %v292 = vunpack.c.l.b16 %v254
      %v293 = vpack.c.b16 %v285, %v284
      %v294 = vpack.c.b16 %v287, %v286
      %v295 = vpack.c.b16 %v289, %v288
      %v296 = vpack.c.b16 %v291, %v290
      %v297 = vpack.c.b16 %v292, %v292
      %vm302 = vcmask 588800
      %v304 = vsel %vm302, %v271, 0
      %v307 = vsel %vm302, %v272, 0
      %v310 = vsel %vm302, %v273, 0
      %v313 = vsel %vm302, %v274, 0
      %vm315 = vcmask 1043456
      %v317 = vsel %vm315, %v297, 0
      %319 = vmatprep.subr.bf16.mxu0 0
      %320 = vmatpush1.bf16.msra.mxu0 %v293
      %321 = vmatprep.subr.bf16.mxu0 0
      %322 = vmatpush1.bf16.msra.mxu0 %v294
      %323 = vmatprep.subr.bf16.mxu0 0
      %324 = vmatpush1.bf16.msra.mxu0 %v295
      %325 = vmatprep.subr.bf16.mxu0 0
      %326 = vmatpush1.bf16.msra.mxu0 %v296
      %327 = vmatprep.subr.bf16.mxu0 0
      %328 = vmatpush1.bf16.msra.mxu0 %v317
      %329 = vmatprep.subr.bf16.mxu0 0
      %330 = vmatpush1.bf16.msra.mxu0 0
      %331 = vmatprep.subr.bf16.mxu0 0
      %332 = vmatpush1.bf16.msra.mxu0 0
      %333 = vmatprep.subr.bf16.mxu0 0
      %334 = vmatpush1.bf16.msra.mxu0 0
      %335 = vmatprep.subr.bf16.mxu0 0
      %336 = vmatpush1.bf16.msra.mxu0 0
      %337 = vmatprep.subr.bf16.mxu0 0
      %338 = vmatpush1.bf16.msra.mxu0 0
      %339 = vmatprep.subr.bf16.mxu0 0
      %340 = vmatpush1.bf16.msra.mxu0 0
      %341 = vmatprep.subr.bf16.mxu0 0
      %342 = vmatpush1.bf16.msra.mxu0 0
      %343 = vmatprep.subr.bf16.mxu0 0
      %344 = vmatpush1.bf16.msra.mxu0 0
      %345 = vmatprep.subr.bf16.mxu0 0
      %346 = vmatpush1.bf16.msra.mxu0 0
      %347 = vmatprep.subr.bf16.mxu0 0
      %348 = vmatpush1.bf16.msra.mxu0 0
      %349 = vmatprep.subr.bf16.mxu0 0
      %350 = vmatpush1.bf16.msra.mxu0 0
      %351 = vmatprep.mubr.bf16.mxu0 0
      %352 = vmatmul.mubr.bf16.gmra.mrb[0].mxu0 %v304
      %v353 = vpop.f32.mrb[0].mxu0
      %v354 = vadd.f32 0.0, %v353
      %v355 = vpop.f32.mrb[0].mxu0
      %v356 = vpop.f32.mrb[0].mxu0
      %v357 = vadd.f32 0.0, %v356
      %v358 = vpop.f32.mrb[0].mxu0
      %359 = vmatprep.mubr.bf16.mxu0 0
      %360 = vmatmul.mubr.bf16.gmra.mrb[0].mxu0 %v307
      %v361 = vpop.f32.mrb[0].mxu0
      %v362 = vadd.f32 0.0, %v361
      %v363 = vpop.f32.mrb[0].mxu0
      %v364 = vpop.f32.mrb[0].mxu0
      %v365 = vadd.f32 0.0, %v364
      %v366 = vpop.f32.mrb[0].mxu0
      %367 = vmatprep.mubr.bf16.mxu0 0
      %368 = vmatmul.mubr.bf16.gmra.mrb[0].mxu0 %v310
      %v369 = vpop.f32.mrb[0].mxu0
      %v370 = vadd.f32 0.0, %v369
      %v371 = vpop.f32.mrb[0].mxu0
      %v372 = vpop.f32.mrb[0].mxu0
      %v373 = vadd.f32 0.0, %v372
      %v374 = vpop.f32.mrb[0].mxu0
      %375 = vmatprep.mubr.bf16.mxu0 0
      %376 = vmatmul.mubr.bf16.gmra.mrb[0].mxu0 %v313
      %v377 = vpop.f32.mrb[0].mxu0
      %v378 = vadd.f32 0.0, %v377
      %v379 = vpop.f32.mrb[0].mxu0
      %v380 = vpop.f32.mrb[0].mxu0
      %v381 = vadd.f32 0.0, %v380
      %v382 = vpop.f32.mrb[0].mxu0
      %383 = vdwg.mxu0
      %v384 = vld [vmem:[%s2] sm:$0x1]
      %v386 = vlaneseq
      %v387 = vshrl.u32 %v386, 7
      %v388 = vsub.s32 0, %v387
      %v389 = vrot.slane %v384, %v388
      %v391 = vmul.f32 %v354, %v389
      %v392 = vmul.f32 %v357, %v389
      %v393 = vmul.f32 %v362, %v389
      %v394 = vmul.f32 %v365, %v389
      %v395 = vmul.f32 %v370, %v389
      %v396 = vmul.f32 %v373, %v389
      %v397 = vmul.f32 %v378, %v389
      %v398 = vmul.f32 %v381, %v389
      %v399 = vld [vmem:[%s3] sm:$0x1]
      %v401 = vlaneseq
      %v402 = vshrl.u32 %v401, 7
      %v403 = vsub.s32 0, %v402
      %v404 = vrot.slane %v399, %v403
      %v406 = vadd.f32 %v391, %v404
      %v407 = vadd.f32 %v392, %v404
      %v408 = vadd.f32 %v393, %v404
      %v409 = vadd.f32 %v394, %v404
      %v410 = vadd.f32 %v395, %v404
      %v411 = vadd.f32 %v396, %v404
      %v412 = vadd.f32 %v397, %v404
      %v413 = vadd.f32 %v398, %v404
      %v414 = vmax.f32 %v406, 0.0
      %v415 = vmax.f32 %v407, 0.0
      %v416 = vmax.f32 %v408, 0.0
      %v417 = vmax.f32 %v409, 0.0
      %v418 = vmax.f32 %v410, 0.0
      %v419 = vmax.f32 %v411, 0.0
      %v420 = vmax.f32 %v412, 0.0
      %v421 = vmax.f32 %v413, 0.0
      %vm422 = vcmask 130048
      %423 = vst.msk [vmem:[%s235] sm:$0xff] %vm422, %v414
      %424 = vst.msk [vmem:[%s235 + $0x8] sm:$0xff] %vm422, %v415
      %425 = vst.msk [vmem:[%s235 + $0x10] sm:$0xff] %vm422, %v416
      %426 = vst.msk [vmem:[%s235 + $0x18] sm:$0xff] %vm422, %v417
      %427 = vst.msk [vmem:[%s235 + $0x20] sm:$0xff] %vm422, %v418
      %428 = vst.msk [vmem:[%s235 + $0x28] sm:$0xff] %vm422, %v419
      %429 = vst.msk [vmem:[%s235 + $0x30] sm:$0xff] %vm422, %v420
      %430 = vst.msk [vmem:[%s235 + $0x38] sm:$0xff] %vm422, %v421
      %s431 = smul.u32 8, %s20
      %p432 = scmp.lt.s32.totalorder %s19, 1
      %s433 = scalar_select %p432, %s19, 1
      %p434 = scmp.lt.s32.totalorder %s431, 7
      %s435 = scalar_select %p434, %s431, 7
      %s436 = smul.addr %s433, 8
      %s437 = sadd.s32 %s435, %s436
      %s438 = smul.addr %s437, 8
      %s439 = scalar_lea.vmem %s4, %s438
      // Predicated region
      $region37: #{dual_stream_unet.48} parent=35 // pred_check
        %p440 = pneg %p138
      $region38: #{dual_stream_unet.48} parent=35 // pred_check_branch
        %442 = sbr.rel (%p440) target = $region40
      $region39: #{dual_stream_unet.48} parent=35 // pred_region
        %s443 = smul.u32 8, %s20
      $region40: #{dual_stream_unet.48} parent=35 // pred_fallthru
        _
    $region36: #{dual_stream_unet.48} parent=5 // pred_fallthru
      _
    %p444 = scmp.le.s32.totalorder 2, %s10
    // Predicated region
    $region41: #{dual_stream_unet.48} parent=5 // pred_check
      %p445 = pneg %p444
    $region42: #{dual_stream_unet.48} parent=5 // pred_check_branch
      %447 = sbr.rel (%p445) target = $region44
    $region43: #{dual_stream_unet.48} parent=5 // pred_region
      %s448 = ssub.s32 %s10, 2
      // Predicated region
      $region45: #{dual_stream_unet.48} parent=43 // pred_check
        %p449 = pneg %p144
      $region46: #{dual_stream_unet.48} parent=43 // pred_check_branch
        %451 = sbr.rel (%p449) target = $region48
      $region47: #{dual_stream_unet.48} parent=43 // pred_region
        %s452 = smul.u32 8, %s22
        %p453 = scmp.lt.s32.totalorder %s21, 1
        %s454 = scalar_select %p453, %s21, 1
        %p455 = scmp.lt.s32.totalorder %s452, 7
        %s456 = scalar_select %p455, %s452, 7
        %s457 = smul.addr %s454, 8
        %s458 = sadd.s32 %s456, %s457
        %s459 = smul.addr %s458, 8
        %s460 = scalar_lea.vmem %s4, %s459
      $region48: #{dual_stream_unet.48} parent=43 // pred_fallthru
        _
    $region44: #{dual_stream_unet.48} parent=5 // pred_fallthru
      _
  $region6: #{dual_stream_unet.48} parent=0 // loop_footer
    %s14 = sadd.s32 1, %s10
  $region7: #{dual_stream_unet.48} parent=0 // loop_footer_branch
    %9 = sbr.rel target = $region3
  $region8: #{dual_stream_unet.48} parent=0 // loop_exit
    _

// kernel: dual_stream_unet.49
$region0: #{dual_stream_unet.49}
  #allocation0 [shape = 'u32[]', space=smem, size = 0x4, offset = 0x4, fixed_abs, tag = 'smem constant byte address 0x4 - core index']
  #allocation1 [shape = 'u32[144,128]{1,0:T(1,128)}', space=vmem, size = 0x12000, scoped, tag = 'internal scratch']
  %s0 = inlined_call_operand.vmem [shape: bf16[2,64,144], index: 0, kind: input, shape index: {}]
  %s1 = inlined_call_operand.vmem [shape: bf16[144,16], index: 1, kind: input, shape index: {}]
  %s2 = inlined_call_operand.vmem [shape: f32[1,16], index: 2, kind: input, shape index: {}]
  %s3 = inlined_call_operand.vmem [shape: f32[1,16], index: 3, kind: input, shape index: {}]
  %s4 = inlined_call_operand.vmem [shape: f32[2,64,16], index: 4, kind: output, shape index: {}]
  %s5 = sld [smem:[#allocation0]]
  $region49: #{dual_stream_unet.49} parent=0
    _
  %s7 = ssub.s32 1, %s5
  %s8 = scalar_select 0, %s7, %s5
  loop: start=0, step=1, limit=4
  $region2: #{dual_stream_unet.49} parent=0 // loop_pre_header
    _
  $region3: #{dual_stream_unet.49} parent=0 // loop_header
    %s10 = sphi 0, %s14
    %p11 = scmp.ge.s32.totalorder %s10, 4
    %s17 = sphi 0, %s29
    %s18 = sphi 0, %s25
    %s19 = sphi 0, %s17
    %s20 = sphi 0, %s18
    %s21 = sphi 0, %s19
    %s22 = sphi 0, %s20
    %s34 = sphi 0, %s36
    %s37 = sphi 0, %s34
    %s38 = sphi 0, %s37
    %s54 = sphi 0, %s38
    %s58 = sphi 0, %s58
    %s60 = sphi 0, %s58
    %s61 = sphi 0, %s60
    %s75 = sphi 0, %s61
    %s79 = sphi 0, %s79
    %s81 = sphi 0, %s79
    %s82 = sphi 0, %s81
    %s96 = sphi 0, %s82
    %s100 = sphi 0, %s100
    %s102 = sphi 0, %s100
    %s103 = sphi 0, %s102
    %s117 = sphi 0, %s103
    %s125 = sphi 0, %s127
    %s128 = sphi 0, %s125
    %s129 = sphi 0, %s128
    %s145 = sphi 0, %s129
  $region4: #{dual_stream_unet.49} parent=0 // loop_header_branch
    %13 = sbr.rel (%p11) target = $region8
  $region5: #{dual_stream_unet.49} parent=0 // loop_body
    %s15 = ssub.s32 %s10, 1
    %s16 = ssub.s32 %s10, 2
    %s23 = sadd.s32 1, %s18
    %p24 = scmp.ge.s32.totalorder %s23, 1
    %s25 = scalar_select %p24, 0, %s23
    %s26 = sadd.s32 1, %s17
    %s27 = scalar_select %p24, %s26, %s17
    %p28 = scmp.ge.s32.totalorder %s27, 2
    %s29 = scalar_select %p28, 0, %s27
    %s30 = ssub.s32 %s17, %s29
    %s31 = ssub.s32 %s18, %s25
    %s32 = sor.u32 %s30, %s31
    %p33 = scmp.eq.s32.totalorder %s32, 0
    %s35 = sadd.s32 %s34, 1
    %s36 = scalar_select %p33, %s34, %s35
    %p39 = pneg %p33
    %p40 = scmp.eq.s32.totalorder %s10, 1
    %p41 = por %p39, %p40
    %p42 = scmp.ne.s32.totalorder %s34, %s37
    %p43 = scmp.eq.s32.totalorder %s10, 0
    %p44 = por %p42, %p43
    %p45 = scmp.ne.s32.totalorder %s34, %s37
    %p46 = scmp.eq.s32.totalorder %s15, 1
    %p47 = por %p45, %p46
    %p48 = scmp.ne.s32.totalorder %s37, %s38
    %p49 = scmp.eq.s32.totalorder %s15, 0
    %p50 = por %p48, %p49
    %p51 = scmp.ne.s32.totalorder %s37, %s38
    %p52 = scmp.eq.s32.totalorder %s16, 1
    %p53 = por %p51, %p52
    %p55 = scmp.ne.s32.totalorder %s38, %s54
    %p56 = scmp.eq.s32.totalorder %s16, 0
    %p57 = por %p55, %p56
    %s59 = sadd.s32 %s58, 1
    %p62 = scmp.eq.s32.totalorder %s10, 1
    %p63 = scmp.ne.s32.totalorder %s58, %s60
    %p64 = scmp.eq.s32.totalorder %s10, 0
    %p65 = por %p63, %p64
    %p66 = scmp.ne.s32.totalorder %s58, %s60
    %p67 = scmp.eq.s32.totalorder %s15, 1
    %p68 = por %p66, %p67
    %p69 = scmp.ne.s32.totalorder %s60, %s61
    %p70 = scmp.eq.s32.totalorder %s15, 0
    %p71 = por %p69, %p70
    %p72 = scmp.ne.s32.totalorder %s60, %s61
    %p73 = scmp.eq.s32.totalorder %s16, 1
    %p74 = por %p72, %p73
    %p76 = scmp.ne.s32.totalorder %s61, %s75
    %p77 = scmp.eq.s32.totalorder %s16, 0
    %p78 = por %p76, %p77
    %s80 = sadd.s32 %s79, 1
    %p83 = scmp.eq.s32.totalorder %s10, 1
    %p84 = scmp.ne.s32.totalorder %s79, %s81
    %p85 = scmp.eq.s32.totalorder %s10, 0
    %p86 = por %p84, %p85
    %p87 = scmp.ne.s32.totalorder %s79, %s81
    %p88 = scmp.eq.s32.totalorder %s15, 1
    %p89 = por %p87, %p88
    %p90 = scmp.ne.s32.totalorder %s81, %s82
    %p91 = scmp.eq.s32.totalorder %s15, 0
    %p92 = por %p90, %p91
    %p93 = scmp.ne.s32.totalorder %s81, %s82
    %p94 = scmp.eq.s32.totalorder %s16, 1
    %p95 = por %p93, %p94
    %p97 = scmp.ne.s32.totalorder %s82, %s96
    %p98 = scmp.eq.s32.totalorder %s16, 0
    %p99 = por %p97, %p98
    %s101 = sadd.s32 %s100, 1
    %p104 = scmp.eq.s32.totalorder %s10, 1
    %p105 = scmp.ne.s32.totalorder %s100, %s102
    %p106 = scmp.eq.s32.totalorder %s10, 0
    %p107 = por %p105, %p106
    %p108 = scmp.ne.s32.totalorder %s100, %s102
    %p109 = scmp.eq.s32.totalorder %s15, 1
    %p110 = por %p108, %p109
    %p111 = scmp.ne.s32.totalorder %s102, %s103
    %p112 = scmp.eq.s32.totalorder %s15, 0
    %p113 = por %p111, %p112
    %p114 = scmp.ne.s32.totalorder %s102, %s103
    %p115 = scmp.eq.s32.totalorder %s16, 1
    %p116 = por %p114, %p115
    %p118 = scmp.ne.s32.totalorder %s103, %s117
    %p119 = scmp.eq.s32.totalorder %s16, 0
    %p120 = por %p118, %p119
    %s121 = ssub.s32 %s17, %s29
    %s122 = ssub.s32 %s18, %s25
    %s123 = sor.u32 %s121, %s122
    %p124 = scmp.eq.s32.totalorder %s123, 0
    %s126 = sadd.s32 %s125, 1
    %s127 = scalar_select %p124, %s125, %s126
    %p130 = pneg %p124
    %p131 = scmp.eq.s32.totalorder %s10, 1
    %p132 = por %p130, %p131
    %p133 = scmp.ne.s32.totalorder %s125, %s128
    %p134 = scmp.eq.s32.totalorder %s10, 0
    %p135 = por %p133, %p134
    %p136 = scmp.ne.s32.totalorder %s125, %s128
    %p137 = scmp.eq.s32.totalorder %s15, 1
    %p138 = por %p136, %p137
    %p139 = scmp.ne.s32.totalorder %s128, %s129
    %p140 = scmp.eq.s32.totalorder %s15, 0
    %p141 = por %p139, %p140
    %p142 = scmp.ne.s32.totalorder %s128, %s129
    %p143 = scmp.eq.s32.totalorder %s16, 1
    %p144 = por %p142, %p143
    %p146 = scmp.ne.s32.totalorder %s129, %s145
    %p147 = scmp.eq.s32.totalorder %s16, 0
    %p148 = por %p146, %p147
    %p149 = scmp.le.s32.totalorder 1, %s10
    %p150 = scmp.lt.s32.totalorder %s10, 3
    %p151 = pnand %p149, %p150
    %p152 = pneg %p151
    // Predicated region
    $region9: #{dual_stream_unet.49} parent=5 // pred_check
      _
    $region10: #{dual_stream_unet.49} parent=5 // pred_check_branch
      %154 = sbr.rel (%p151) target = $region12
    $region11: #{dual_stream_unet.49} parent=5 // pred_region
      %s155 = ssub.s32 %s10, 1
      // Predicated region
      $region13: #{dual_stream_unet.49} parent=11 // pred_check
        %p156 = pneg %p71
      $region14: #{dual_stream_unet.49} parent=11 // pred_check_branch
        %158 = sbr.rel (%p156) target = $region16
      $region15: #{dual_stream_unet.49} parent=11 // pred_region
        _
      $region16: #{dual_stream_unet.49} parent=11 // pred_fallthru
        _
      // Predicated region
      $region17: #{dual_stream_unet.49} parent=11 // pred_check
        %p159 = pneg %p92
      $region18: #{dual_stream_unet.49} parent=11 // pred_check_branch
        %161 = sbr.rel (%p159) target = $region20
      $region19: #{dual_stream_unet.49} parent=11 // pred_region
        _
      $region20: #{dual_stream_unet.49} parent=11 // pred_fallthru
        _
      // Predicated region
      $region21: #{dual_stream_unet.49} parent=11 // pred_check
        %p162 = pneg %p113
      $region22: #{dual_stream_unet.49} parent=11 // pred_check_branch
        %164 = sbr.rel (%p162) target = $region24
      $region23: #{dual_stream_unet.49} parent=11 // pred_region
        _
      $region24: #{dual_stream_unet.49} parent=11 // pred_fallthru
        _
    $region12: #{dual_stream_unet.49} parent=5 // pred_fallthru
      _
    %p165 = scmp.lt.s32.totalorder %s10, 2
    // Predicated region
    $region25: #{dual_stream_unet.49} parent=5 // pred_check
      %p166 = pneg %p165
    $region26: #{dual_stream_unet.49} parent=5 // pred_check_branch
      %168 = sbr.rel (%p166) target = $region28
    $region27: #{dual_stream_unet.49} parent=5 // pred_region
      // Predicated region
      $region29: #{dual_stream_unet.49} parent=27 // pred_check
        %p169 = pneg %p44
      $region30: #{dual_stream_unet.49} parent=27 // pred_check_branch
        %171 = sbr.rel (%p169) target = $region32
      $region31: #{dual_stream_unet.49} parent=27 // pred_region
        %s172 = smul.u32 8, %s18
        %p173 = scmp.lt.s32.totalorder %s17, 1
        %s174 = scalar_select %p173, %s17, 1
        %p175 = scmp.lt.s32.totalorder %s172, 7
        %s176 = scalar_select %p175, %s172, 7
        %s177 = smul.addr %s176, 2
        %s178 = smul.addr %s174, 16
        %s179 = sadd.s32 %s177, %s178
        %s180 = smul.addr %s179, 4
        %s181 = scalar_lea.vmem %s0, %s180
        %s182 = smul.u32 8, %s18
      $region32: #{dual_stream_unet.49} parent=27 // pred_fallthru
        _
    $region28: #{dual_stream_unet.49} parent=5 // pred_fallthru
      _
    %p183 = scmp.le.s32.totalorder 1, %s10
    %p184 = scmp.lt.s32.totalorder %s10, 3
    %p185 = pnand %p183, %p184
    %p186 = pneg %p185
    // Predicated region
    $region33: #{dual_stream_unet.49} parent=5 // pred_check
      _
    $region34: #{dual_stream_unet.49} parent=5 // pred_check_branch
      %188 = sbr.rel (%p185) target = $region36
    $region35: #{dual_stream_unet.49} parent=5 // pred_region
      %s189 = ssub.s32 %s10, 1
      %s190 = smul.u32 8, %s20
      %p191 = scmp.lt.s32.totalorder %s19, 1
      %s192 = scalar_select %p191, %s19, 1
      %p193 = scmp.lt.s32.totalorder %s190, 7
      %s194 = scalar_select %p193, %s190, 7
      %s195 = smul.addr %s194, 2
      %s196 = smul.addr %s192, 16
      %s197 = sadd.s32 %s195, %s196
      %s198 = smul.addr %s197, 4
      %s199 = scalar_lea.vmem %s0, %s198
      %p200 = pneg %p50
      %p201 = pneg %p47
      %p202 = pneg %p71
      %p203 = pneg %p68
      %p204 = pneg %p92
      %p205 = pneg %p89
      %p206 = pneg %p113
      %p207 = pneg %p110
      %p208 = pneg %p141
      %p209 = pneg %p138
      %s210 = smul.u32 8, %s20
      %p211 = scmp.lt.s32.totalorder %s19, 1
      %s212 = scalar_select %p211, %s19, 1
      %p213 = scmp.lt.s32.totalorder %s210, 7
      %s214 = scalar_select %p213, %s210, 7
      %s215 = smul.addr %s212, 8
      %s216 = sadd.s32 %s214, %s215
      %s217 = smul.addr %s216, 8
      %s218 = scalar_lea.vmem %s4, %s217
      %s219 = smul.u32 8, %s20
      %p220 = scmp.lt.s32.totalorder %s19, 1
      %s221 = scalar_select %p220, %s19, 1
      %p222 = scmp.lt.s32.totalorder %s219, 7
      %s223 = scalar_select %p222, %s219, 7
      %s224 = smul.addr %s223, 2
      %s225 = smul.addr %s221, 16
      %s226 = sadd.s32 %s224, %s225
      %s227 = smul.addr %s226, 4
      %s228 = scalar_lea.vmem %s0, %s227
      %s229 = smul.u32 8, %s20
      %s230 = smul.u32 8, %s20
      %p231 = scmp.lt.s32.totalorder %s19, 1
      %s232 = scalar_select %p231, %s19, 1
      %p233 = scmp.lt.s32.totalorder %s230, 7
      %s234 = scalar_select %p233, %s230, 7
      %s235 = smul.addr %s232, 8
      %s236 = sadd.s32 %s234, %s235
      %s237 = smul.addr %s236, 8
      %s238 = scalar_lea.vmem %s4, %s237
      %s239 = smul.u32 8, %s20
      %v241 = vld [vmem:[%s228] sm:$0xff]
      %v242 = vld [vmem:[%s228 + $0x8] sm:$0xff]
      %v243 = vld [vmem:[%s228 + $0x10] sm:$0xff]
      %v244 = vld [vmem:[%s228 + $0x18] sm:$0xff]
      %v245 = vld [vmem:[%s228 + $0x20] sm:$0xff]
      %v246 = vld [vmem:[%s228 + $0x28] sm:$0xff]
      %v247 = vld [vmem:[%s228 + $0x30] sm:$0xff]
      %v248 = vld [vmem:[%s228 + $0x38] sm:$0xff]
      %v249 = vld [vmem:[%s1] sm:$0xf]
      %v250 = vld [vmem:[%s1 + $0x4] sm:$0xf]
      %v251 = vld [vmem:[%s1 + $0x8] sm:$0xf]
      %v252 = vld [vmem:[%s1 + $0xc] sm:$0xf]
      %v253 = vld [vmem:[%s1 + $0x10] sm:$0xf]
      %v254 = vld [vmem:[%s1 + $0x14] sm:$0xf]
      %v255 = vld [vmem:[%s1 + $0x18] sm:$0xf]
      %v256 = vld [vmem:[%s1 + $0x1c] sm:$0xf]
      %v257 = vld [vmem:[%s1 + $0x20] sm:$0xf]
      %v258 = vld [vmem:[%s1 + $0x24] sm:$0xf]
      %v259 = vld [vmem:[%s1 + $0x28] sm:$0xf]
      %v260 = vld [vmem:[%s1 + $0x2c] sm:$0xf]
      %v261 = vld [vmem:[%s1 + $0x30] sm:$0xf]
      %v262 = vld [vmem:[%s1 + $0x34] sm:$0xf]
      %v263 = vld [vmem:[%s1 + $0x38] sm:$0xf]
      %v264 = vld [vmem:[%s1 + $0x3c] sm:$0xf]
      %v265 = vld [vmem:[%s1 + $0x40] sm:$0xf]
      %v266 = vld [vmem:[%s1 + $0x44] sm:$0xf]
      %v275 = vunpack.c.l.b16 %v241
      %v276 = vunpack.c.h.b16 %v241
      %v277 = vunpack.c.l.b16 %v242
      %v278 = vunpack.c.h.b16 %v242
      %v279 = vunpack.c.l.b16 %v243
      %v280 = vunpack.c.h.b16 %v243
      %v281 = vunpack.c.l.b16 %v244
      %v282 = vunpack.c.h.b16 %v244
      %v283 = vunpack.c.l.b16 %v245
      %v284 = vunpack.c.h.b16 %v245
      %v285 = vunpack.c.l.b16 %v246
      %v286 = vunpack.c.h.b16 %v246
      %v287 = vunpack.c.l.b16 %v247
      %v288 = vunpack.c.h.b16 %v247
      %v289 = vunpack.c.l.b16 %v248
      %v290 = vunpack.c.h.b16 %v248
      %v291 = vpack.c.b16 %v277, %v275
      %v292 = vpack.c.b16 %v278, %v276
      %v293 = vpack.c.b16 %v281, %v279
      %v294 = vpack.c.b16 %v282, %v280
      %v295 = vpack.c.b16 %v285, %v283
      %v296 = vpack.c.b16 %v286, %v284
      %v297 = vpack.c.b16 %v289, %v287
      %v298 = vpack.c.b16 %v290, %v288
      %v321 = vunpack.c.l.b16 %v249
      %v322 = vunpack.c.l.b16 %v250
      %v323 = vunpack.c.l.b16 %v251
      %v324 = vunpack.c.l.b16 %v252
      %v325 = vunpack.c.l.b16 %v253
      %v326 = vunpack.c.l.b16 %v254
      %v327 = vunpack.c.l.b16 %v255
      %v328 = vunpack.c.l.b16 %v256
      %v329 = vunpack.c.l.b16 %v257
      %v330 = vunpack.c.l.b16 %v258
      %v331 = vunpack.c.l.b16 %v259
      %v332 = vunpack.c.l.b16 %v260
      %v333 = vunpack.c.l.b16 %v261
      %v334 = vunpack.c.l.b16 %v262
      %v335 = vunpack.c.l.b16 %v263
      %v336 = vunpack.c.l.b16 %v264
      %v337 = vunpack.c.l.b16 %v265
      %v338 = vunpack.c.l.b16 %v266
      %v339 = vpack.c.b16 %v322, %v321
      %v340 = vpack.c.b16 %v324, %v323
      %v341 = vpack.c.b16 %v326, %v325
      %v342 = vpack.c.b16 %v328, %v327
      %v343 = vpack.c.b16 %v330, %v329
      %v344 = vpack.c.b16 %v332, %v331
      %v345 = vpack.c.b16 %v334, %v333
      %v346 = vpack.c.b16 %v336, %v335
      %v347 = vpack.c.b16 %v338, %v337
      %vm357 = vcmask 130048
      %v359 = vsel %vm357, %v292, 0
      %v362 = vsel %vm357, %v294, 0
      %v365 = vsel %vm357, %v296, 0
      %v368 = vsel %vm357, %v298, 0
      %370 = vmatprep.subr.bf16.mxu0 0
      %371 = vmatpush1.bf16.msra.mxu0 %v339
      %372 = vmatprep.subr.bf16.mxu0 0
      %373 = vmatpush1.bf16.msra.mxu0 %v340
      %374 = vmatprep.subr.bf16.mxu0 0
      %375 = vmatpush1.bf16.msra.mxu0 %v341
      %376 = vmatprep.subr.bf16.mxu0 0
      %377 = vmatpush1.bf16.msra.mxu0 %v342
      %378 = vmatprep.subr.bf16.mxu0 0
      %379 = vmatpush1.bf16.msra.mxu0 %v343
      %380 = vmatprep.subr.bf16.mxu0 0
      %381 = vmatpush1.bf16.msra.mxu0 %v344
      %382 = vmatprep.subr.bf16.mxu0 0
      %383 = vmatpush1.bf16.msra.mxu0 %v345
      %384 = vmatprep.subr.bf16.mxu0 0
      %385 = vmatpush1.bf16.msra.mxu0 %v346
      %386 = vmatprep.subr.bf16.mxu0 0
      %387 = vmatpush1.bf16.msra.mxu0 %v347
      %388 = vmatprep.subr.bf16.mxu0 0
      %389 = vmatpush1.bf16.msra.mxu0 0
      %390 = vmatprep.subr.bf16.mxu0 0
      %391 = vmatpush1.bf16.msra.mxu0 0
      %392 = vmatprep.subr.bf16.mxu0 0
      %393 = vmatpush1.bf16.msra.mxu0 0
      %394 = vmatprep.subr.bf16.mxu0 0
      %395 = vmatpush1.bf16.msra.mxu0 0
      %396 = vmatprep.subr.bf16.mxu0 0
      %397 = vmatpush1.bf16.msra.mxu0 0
      %398 = vmatprep.subr.bf16.mxu0 0
      %399 = vmatpush1.bf16.msra.mxu0 0
      %400 = vmatprep.subr.bf16.mxu0 0
      %401 = vmatpush1.bf16.msra.mxu0 0
      %402 = vmatprep.mubr.bf16.mxu0 %v359
      %403 = vmatmul.mubr.bf16.gmra.mrb[0].mxu0 %v291
      %v404 = vpop.f32.mrb[0].mxu0
      %v405 = vadd.f32 0.0, %v404
      %v406 = vpop.f32.mrb[0].mxu0
      %v407 = vpop.f32.mrb[0].mxu0
      %v408 = vadd.f32 0.0, %v407
      %v409 = vpop.f32.mrb[0].mxu0
      %410 = vmatprep.mubr.bf16.mxu0 %v362
      %411 = vmatmul.mubr.bf16.gmra.mrb[0].mxu0 %v293
      %v412 = vpop.f32.mrb[0].mxu0
      %v413 = vadd.f32 0.0, %v412
      %v414 = vpop.f32.mrb[0].mxu0
      %v415 = vpop.f32.mrb[0].mxu0
      %v416 = vadd.f32 0.0, %v415
      %v417 = vpop.f32.mrb[0].mxu0
      %418 = vmatprep.mubr.bf16.mxu0 %v365
      %419 = vmatmul.mubr.bf16.gmra.mrb[0].mxu0 %v295
      %v420 = vpop.f32.mrb[0].mxu0
      %v421 = vadd.f32 0.0, %v420
      %v422 = vpop.f32.mrb[0].mxu0
      %v423 = vpop.f32.mrb[0].mxu0
      %v424 = vadd.f32 0.0, %v423
      %v425 = vpop.f32.mrb[0].mxu0
      %426 = vmatprep.mubr.bf16.mxu0 %v368
      %427 = vmatmul.mubr.bf16.gmra.mrb[0].mxu0 %v297
      %v428 = vpop.f32.mrb[0].mxu0
      %v429 = vadd.f32 0.0, %v428
      %v430 = vpop.f32.mrb[0].mxu0
      %v431 = vpop.f32.mrb[0].mxu0
      %v432 = vadd.f32 0.0, %v431
      %v433 = vpop.f32.mrb[0].mxu0
      %434 = vdwg.mxu0
      %v435 = vld [vmem:[%s2] sm:$0x1]
      %v437 = vlaneseq
      %v438 = vshrl.u32 %v437, 7
      %v439 = vsub.s32 0, %v438
      %v440 = vrot.slane %v435, %v439
      %v442 = vmul.f32 %v405, %v440
      %v443 = vmul.f32 %v408, %v440
      %v444 = vmul.f32 %v413, %v440
      %v445 = vmul.f32 %v416, %v440
      %v446 = vmul.f32 %v421, %v440
      %v447 = vmul.f32 %v424, %v440
      %v448 = vmul.f32 %v429, %v440
      %v449 = vmul.f32 %v432, %v440
      %v450 = vld [vmem:[%s3] sm:$0x1]
      %v452 = vlaneseq
      %v453 = vshrl.u32 %v452, 7
      %v454 = vsub.s32 0, %v453
      %v455 = vrot.slane %v450, %v454
      %v457 = vadd.f32 %v442, %v455
      %v458 = vadd.f32 %v443, %v455
      %v459 = vadd.f32 %v444, %v455
      %v460 = vadd.f32 %v445, %v455
      %v461 = vadd.f32 %v446, %v455
      %v462 = vadd.f32 %v447, %v455
      %v463 = vadd.f32 %v448, %v455
      %v464 = vadd.f32 %v449, %v455
      %v465 = vmax.f32 %v457, 0.0
      %v466 = vmax.f32 %v458, 0.0
      %v467 = vmax.f32 %v459, 0.0
      %v468 = vmax.f32 %v460, 0.0
      %v469 = vmax.f32 %v461, 0.0
      %v470 = vmax.f32 %v462, 0.0
      %v471 = vmax.f32 %v463, 0.0
      %v472 = vmax.f32 %v464, 0.0
      %473 = vst.msk [vmem:[%s238] sm:$0xff] %vm357, %v465
      %474 = vst.msk [vmem:[%s238 + $0x8] sm:$0xff] %vm357, %v466
      %475 = vst.msk [vmem:[%s238 + $0x10] sm:$0xff] %vm357, %v467
      %476 = vst.msk [vmem:[%s238 + $0x18] sm:$0xff] %vm357, %v468
      %477 = vst.msk [vmem:[%s238 + $0x20] sm:$0xff] %vm357, %v469
      %478 = vst.msk [vmem:[%s238 + $0x28] sm:$0xff] %vm357, %v470
      %479 = vst.msk [vmem:[%s238 + $0x30] sm:$0xff] %vm357, %v471
      %480 = vst.msk [vmem:[%s238 + $0x38] sm:$0xff] %vm357, %v472
      %s481 = smul.u32 8, %s20
      %p482 = scmp.lt.s32.totalorder %s19, 1
      %s483 = scalar_select %p482, %s19, 1
      %p484 = scmp.lt.s32.totalorder %s481, 7
      %s485 = scalar_select %p484, %s481, 7
      %s486 = smul.addr %s483, 8
      %s487 = sadd.s32 %s485, %s486
      %s488 = smul.addr %s487, 8
      %s489 = scalar_lea.vmem %s4, %s488
      // Predicated region
      $region37: #{dual_stream_unet.49} parent=35 // pred_check
        %p490 = pneg %p138
      $region38: #{dual_stream_unet.49} parent=35 // pred_check_branch
        %492 = sbr.rel (%p490) target = $region40
      $region39: #{dual_stream_unet.49} parent=35 // pred_region
        %s493 = smul.u32 8, %s20
      $region40: #{dual_stream_unet.49} parent=35 // pred_fallthru
        _
    $region36: #{dual_stream_unet.49} parent=5 // pred_fallthru
      _
    %p494 = scmp.le.s32.totalorder 2, %s10
    // Predicated region
    $region41: #{dual_stream_unet.49} parent=5 // pred_check
      %p495 = pneg %p494
    $region42: #{dual_stream_unet.49} parent=5 // pred_check_branch
      %497 = sbr.rel (%p495) target = $region44
    $region43: #{dual_stream_unet.49} parent=5 // pred_region
      %s498 = ssub.s32 %s10, 2
      // Predicated region
      $region45: #{dual_stream_unet.49} parent=43 // pred_check
        %p499 = pneg %p144
      $region46: #{dual_stream_unet.49} parent=43 // pred_check_branch
        %501 = sbr.rel (%p499) target = $region48
      $region47: #{dual_stream_unet.49} parent=43 // pred_region
        %s502 = smul.u32 8, %s22
        %p503 = scmp.lt.s32.totalorder %s21, 1
        %s504 = scalar_select %p503, %s21, 1
        %p505 = scmp.lt.s32.totalorder %s502, 7
        %s506 = scalar_select %p505, %s502, 7
        %s507 = smul.addr %s504, 8
        %s508 = sadd.s32 %s506, %s507
        %s509 = smul.addr %s508, 8
        %s510 = scalar_lea.vmem %s4, %s509
      $region48: #{dual_stream_unet.49} parent=43 // pred_fallthru
        _
    $region44: #{dual_stream_unet.49} parent=5 // pred_fallthru
      _
  $region6: #{dual_stream_unet.49} parent=0 // loop_footer
    %s14 = sadd.s32 1, %s10
  $region7: #{dual_stream_unet.49} parent=0 // loop_footer_branch
    %9 = sbr.rel target = $region3
  $region8: #{dual_stream_unet.49} parent=0 // loop_exit
    _

// kernel: dual_stream_unet.50
$region0: #{dual_stream_unet.50}
  #allocation0 [shape = 'u32[]', space=smem, size = 0x4, offset = 0x4, fixed_abs, tag = 'smem constant byte address 0x4 - core index']
  #allocation1 [shape = 'u32[144,128]{1,0:T(1,128)}', space=vmem, size = 0x12000, scoped, tag = 'internal scratch']
  %s0 = inlined_call_operand.vmem [shape: f32[2,4,2,4,32], index: 0, kind: input, shape index: {}]
  %s1 = inlined_call_operand.vmem [shape: f32[2,4,4,16], index: 1, kind: output, shape index: {}]
  %s2 = sld [smem:[#allocation0]]
  $region37: #{dual_stream_unet.50} parent=0
    _
  %s4 = ssub.s32 1, %s2
  %s5 = scalar_select 0, %s4, %s2
  loop: start=0, step=1, limit=4
  $region2: #{dual_stream_unet.50} parent=0 // loop_pre_header
    _
  $region3: #{dual_stream_unet.50} parent=0 // loop_header
    %s7 = sphi 0, %s11
    %p8 = scmp.ge.s32.totalorder %s7, 4
    %s17 = sphi 0, %s19
    %s20 = sphi 0, %s17
    %s21 = sphi 0, %s20
    %s37 = sphi 0, %s21
    %s43 = sphi 0, %s45
    %s46 = sphi 0, %s43
    %s47 = sphi 0, %s46
    %s63 = sphi 0, %s47
  $region4: #{dual_stream_unet.50} parent=0 // loop_header_branch
    %10 = sbr.rel (%p8) target = $region8
  $region5: #{dual_stream_unet.50} parent=0 // loop_body
    %s12 = ssub.s32 %s7, 1
    %s13 = ssub.s32 %s7, 2
    %s14 = sadd.s32 %s7, 1
    %s15 = ssub.s32 %s7, %s14
    %p16 = scmp.eq.s32.totalorder %s15, 0
    %s18 = sadd.s32 %s17, 1
    %s19 = scalar_select %p16, %s17, %s18
    %p22 = pneg %p16
    %p23 = scmp.eq.s32.totalorder %s7, 1
    %p24 = por %p22, %p23
    %p25 = scmp.ne.s32.totalorder %s17, %s20
    %p26 = scmp.eq.s32.totalorder %s7, 0
    %p27 = por %p25, %p26
    %p28 = scmp.ne.s32.totalorder %s17, %s20
    %p29 = scmp.eq.s32.totalorder %s12, 1
    %p30 = por %p28, %p29
    %p31 = scmp.ne.s32.totalorder %s20, %s21
    %p32 = scmp.eq.s32.totalorder %s12, 0
    %p33 = por %p31, %p32
    %p34 = scmp.ne.s32.totalorder %s20, %s21
    %p35 = scmp.eq.s32.totalorder %s13, 1
    %p36 = por %p34, %p35
    %p38 = scmp.ne.s32.totalorder %s21, %s37
    %p39 = scmp.eq.s32.totalorder %s13, 0
    %p40 = por %p38, %p39
    %s41 = ssub.s32 %s7, %s14
    %p42 = scmp.eq.s32.totalorder %s41, 0
    %s44 = sadd.s32 %s43, 1
    %s45 = scalar_select %p42, %s43, %s44
    %p48 = pneg %p42
    %p49 = scmp.eq.s32.totalorder %s7, 1
    %p50 = por %p48, %p49
    %p51 = scmp.ne.s32.totalorder %s43, %s46
    %p52 = scmp.eq.s32.totalorder %s7, 0
    %p53 = por %p51, %p52
    %p54 = scmp.ne.s32.totalorder %s43, %s46
    %p55 = scmp.eq.s32.totalorder %s12, 1
    %p56 = por %p54, %p55
    %p57 = scmp.ne.s32.totalorder %s46, %s47
    %p58 = scmp.eq.s32.totalorder %s12, 0
    %p59 = por %p57, %p58
    %p60 = scmp.ne.s32.totalorder %s46, %s47
    %p61 = scmp.eq.s32.totalorder %s13, 1
    %p62 = por %p60, %p61
    %p64 = scmp.ne.s32.totalorder %s47, %s63
    %p65 = scmp.eq.s32.totalorder %s13, 0
    %p66 = por %p64, %p65
    %p67 = scmp.le.s32.totalorder 1, %s7
    %p68 = scmp.lt.s32.totalorder %s7, 3
    %p69 = pnand %p67, %p68
    %p70 = pneg %p69
    // Predicated region
    $region9: #{dual_stream_unet.50} parent=5 // pred_check
      _
    $region10: #{dual_stream_unet.50} parent=5 // pred_check_branch
      %72 = sbr.rel (%p69) target = $region12
    $region11: #{dual_stream_unet.50} parent=5 // pred_region
      %s73 = ssub.s32 %s7, 1
    $region12: #{dual_stream_unet.50} parent=5 // pred_fallthru
      _
    %p74 = scmp.lt.s32.totalorder %s7, 2
    // Predicated region
    $region13: #{dual_stream_unet.50} parent=5 // pred_check
      %p75 = pneg %p74
    $region14: #{dual_stream_unet.50} parent=5 // pred_check_branch
      %77 = sbr.rel (%p75) target = $region16
    $region15: #{dual_stream_unet.50} parent=5 // pred_region
      // Predicated region
      $region17: #{dual_stream_unet.50} parent=15 // pred_check
        %p78 = pneg %p27
      $region18: #{dual_stream_unet.50} parent=15 // pred_check_branch
        %80 = sbr.rel (%p78) target = $region20
      $region19: #{dual_stream_unet.50} parent=15 // pred_region
        %p81 = scmp.lt.s32.totalorder %s7, 1
        %s82 = scalar_select %p81, %s7, 1
        %s83 = smul.addr %s82, 8
        %s84 = smul.addr %s83, 4
        %s85 = scalar_lea.vmem %s0, %s84
      $region20: #{dual_stream_unet.50} parent=15 // pred_fallthru
        _
    $region16: #{dual_stream_unet.50} parent=5 // pred_fallthru
      _
    %p86 = scmp.le.s32.totalorder 1, %s7
    %p87 = scmp.lt.s32.totalorder %s7, 3
    %p88 = pnand %p86, %p87
    %p89 = pneg %p88
    // Predicated region
    $region21: #{dual_stream_unet.50} parent=5 // pred_check
      _
    $region22: #{dual_stream_unet.50} parent=5 // pred_check_branch
      %91 = sbr.rel (%p88) target = $region24
    $region23: #{dual_stream_unet.50} parent=5 // pred_region
      %s92 = ssub.s32 %s7, 1
      %p93 = scmp.lt.s32.totalorder %s12, 1
      %s94 = scalar_select %p93, %s12, 1
      %s95 = smul.addr %s94, 8
      %s96 = smul.addr %s95, 4
      %s97 = scalar_lea.vmem %s0, %s96
      %p98 = pneg %p33
      %p99 = pneg %p30
      %p100 = pneg %p59
      %p101 = pneg %p56
      %p102 = scmp.lt.s32.totalorder %s12, 1
      %s103 = scalar_select %p102, %s12, 1
      %s104 = smul.addr %s103, 4
      %s105 = smul.addr %s104, 4
      %s106 = scalar_lea.vmem %s1, %s105
      %p107 = scmp.lt.s32.totalorder %s12, 1
      %s108 = scalar_select %p107, %s12, 1
      %s109 = smul.addr %s108, 8
      %s110 = smul.addr %s109, 4
      %s111 = scalar_lea.vmem %s0, %s110
      %p112 = scmp.lt.s32.totalorder %s12, 1
      %s113 = scalar_select %p112, %s12, 1
      %s114 = smul.addr %s113, 4
      %s115 = smul.addr %s114, 4
      %s116 = scalar_lea.vmem %s1, %s115
      %v117 = vld [vmem:[%s111] sm:$0xf]
      %v118 = vld [vmem:[%s111 + $0x4] sm:$0xf]
      %v119 = vld [vmem:[%s111 + $0x8] sm:$0xf]
      %v120 = vld [vmem:[%s111 + $0xc] sm:$0xf]
      %v121 = vld [vmem:[%s111 + $0x10] sm:$0xf]
      %v122 = vld [vmem:[%s111 + $0x14] sm:$0xf]
      %v123 = vld [vmem:[%s111 + $0x18] sm:$0xf]
      %v124 = vld [vmem:[%s111 + $0x1c] sm:$0xf]
      %v125 = vmax.f32 %v117, %v118
      %v126 = vmax.f32 %v119, %v120
      %v127 = vmax.f32 %v121, %v122
      %v128 = vmax.f32 %v123, %v124
      %133 = vrot.lane.b32.xlu0 %v125, 112
      %v134 = vpop.permute.xlu0 %133
      %135 = vrot.lane.b32.xlu0 %v126, 112
      %v136 = vpop.permute.xlu0 %135
      %137 = vrot.lane.b32.xlu0 %v127, 112
      %v138 = vpop.permute.xlu0 %137
      %139 = vrot.lane.b32.xlu0 %v128, 112
      %v140 = vpop.permute.xlu0 %139
      %v145 = vmax.f32 %v125, %v134
      %v146 = vmax.f32 %v126, %v136
      %v147 = vmax.f32 %v127, %v138
      %v148 = vmax.f32 %v128, %v140
      %vm149 = vcmask 125952
      %150 = vst.msk [vmem:[%s116] sm:$0xf] %vm149, %v145
      %151 = vst.msk [vmem:[%s116 + $0x4] sm:$0xf] %vm149, %v146
      %152 = vst.msk [vmem:[%s116 + $0x8] sm:$0xf] %vm149, %v147
      %153 = vst.msk [vmem:[%s116 + $0xc] sm:$0xf] %vm149, %v148
      %p154 = scmp.lt.s32.totalorder %s12, 1
      %s155 = scalar_select %p154, %s12, 1
      %s156 = smul.addr %s155, 4
      %s157 = smul.addr %s156, 4
      %s158 = scalar_lea.vmem %s1, %s157
      // Predicated region
      $region25: #{dual_stream_unet.50} parent=23 // pred_check
        %p159 = pneg %p56
      $region26: #{dual_stream_unet.50} parent=23 // pred_check_branch
        %161 = sbr.rel (%p159) target = $region28
      $region27: #{dual_stream_unet.50} parent=23 // pred_region
        _
      $region28: #{dual_stream_unet.50} parent=23 // pred_fallthru
        _
    $region24: #{dual_stream_unet.50} parent=5 // pred_fallthru
      _
    %p162 = scmp.le.s32.totalorder 2, %s7
    // Predicated region
    $region29: #{dual_stream_unet.50} parent=5 // pred_check
      %p163 = pneg %p162
    $region30: #{dual_stream_unet.50} parent=5 // pred_check_branch
      %165 = sbr.rel (%p163) target = $region32
    $region31: #{dual_stream_unet.50} parent=5 // pred_region
      %s166 = ssub.s32 %s7, 2
      // Predicated region
      $region33: #{dual_stream_unet.50} parent=31 // pred_check
        %p167 = pneg %p62
      $region34: #{dual_stream_unet.50} parent=31 // pred_check_branch
        %169 = sbr.rel (%p167) target = $region36
      $region35: #{dual_stream_unet.50} parent=31 // pred_region
        %p170 = scmp.lt.s32.totalorder %s13, 1
        %s171 = scalar_select %p170, %s13, 1
        %s172 = smul.addr %s171, 4
        %s173 = smul.addr %s172, 4
        %s174 = scalar_lea.vmem %s1, %s173
      $region36: #{dual_stream_unet.50} parent=31 // pred_fallthru
        _
    $region32: #{dual_stream_unet.50} parent=5 // pred_fallthru
      _
  $region6: #{dual_stream_unet.50} parent=0 // loop_footer
    %s11 = sadd.s32 1, %s7
  $region7: #{dual_stream_unet.50} parent=0 // loop_footer_branch
    %6 = sbr.rel target = $region3
  $region8: #{dual_stream_unet.50} parent=0 // loop_exit
    _

// kernel: tile.33
$region0: #{tile.33}
  #allocation0 [shape = 's32[1]{0}', space=sflag, size = 0x4, scoped, tag = 'scoped memory for tile.33']
  %s0 = inlined_call_operand.vmem [shape: f32[16], index: 0, kind: input, shape index: {}]
  %s1 = inlined_call_operand.vmem [shape: f32[4,16], index: 1, kind: output, shape index: {}]
  // Predicated region
  $region2: #{tile.33} parent=0 // pred_check
    _
  $region3: #{tile.33} parent=0 // pred_check_branch
    %3 = sbr.rel (0) target = $region5
  $region4: #{tile.33} parent=0 // pred_region
    _
  $region5: #{tile.33} parent=0 // pred_fallthru
    _
  %v4 = vld [vmem:[%s0] ss:$0 sm:$0xff]
  %5 = vst [vmem:[%s1] sm:$0xf] %v4

// kernel: tile.34
$region0: #{tile.34}
  %s0 = inlined_call_operand.vmem [shape: f32[4,16], index: 0, kind: input, shape index: {}]
  %s1 = inlined_call_operand.vmem [shape: f32[1,64], index: 1, kind: output, shape index: {}]
  $region1: #{tile.34} parent=0
    #allocation0 [shape = 'u8[4096]{0}', space=vmem, size = 0x1000, scoped, tag = 'scoped mem for output reshape']
    #allocation1 [shape = 'u8[4096]{0}', space=vmem, size = 0x1000, scoped, tag = 'scoped mem for input reshape']
    %s3 = sshllo.u32 0, 4
    %v4 = vld [vmem:[%s0] sm:%s3]
    %5 = vst [vmem:[#allocation1] sm:%s3] %v4
    %v6 = vld [vmem:[#allocation1] sm:$0x1]
    %vm7 = vcmask 130048
    %8 = vst.msk [vmem:[#allocation0] sm:$0x1] %vm7, %v6
    %s9 = scalar_lea.vmem [#allocation1], 3
    %v10 = vld [vmem:[%s9] sm:$0x1]
    %11 = vrot.lane.b32.xlu0 %v10, 48
    %v12 = vpop.permute.xlu0 %11
    %vm13 = vcmask 523648
    %14 = vst.msk [vmem:[#allocation0] sm:$0x1] %vm13, %v12
    %s15 = scalar_lea.vmem [#allocation1], 2
    %v16 = vld [vmem:[%s15] sm:$0x1]
    %17 = vrot.lane.b32.xlu0 %v16, 32
    %v18 = vpop.permute.xlu0 %17
    %vm19 = vcmask 392448
    %20 = vst.msk [vmem:[#allocation0] sm:$0x1] %vm19, %v18
    %s21 = scalar_lea.vmem [#allocation1], 1
    %v22 = vld [vmem:[%s21] sm:$0x1]
    %23 = vrot.lane.b32.xlu0 %v22, 16
    %v24 = vpop.permute.xlu0 %23
    %vm25 = vcmask 261248
    %26 = vst.msk [vmem:[#allocation0] sm:$0x1] %vm25, %v24
    %s28 = sshllo.u32 0, 1
    %v30 = vld [vmem:[#allocation0] sm:%s28]
    %s31 = sshllo.u32 0, 1
    %32 = vst [vmem:[%s1] sm:%s31] %v30

// kernel: dual_stream_unet.51
$region0: #{dual_stream_unet.51}
  #allocation0 [shape = 'u32[]', space=smem, size = 0x4, offset = 0x4, fixed_abs, tag = 'smem constant byte address 0x4 - core index']
  #allocation1 [shape = 'u32[144,128]{1,0:T(1,128)}', space=vmem, size = 0x12000, scoped, tag = 'internal scratch']
  %s0 = inlined_call_operand.vmem [shape: bf16[2,16,144], index: 0, kind: input, shape index: {}]
  %s1 = inlined_call_operand.vmem [shape: bf16[144,16], index: 1, kind: input, shape index: {}]
  %s2 = inlined_call_operand.vmem [shape: f32[1,16], index: 2, kind: input, shape index: {}]
  %s3 = inlined_call_operand.vmem [shape: f32[1,16], index: 3, kind: input, shape index: {}]
  %s4 = inlined_call_operand.vmem [shape: f32[2,16,16], index: 4, kind: output, shape index: {}]
  %s5 = sld [smem:[#allocation0]]
  $region49: #{dual_stream_unet.51} parent=0
    _
  %s7 = ssub.s32 1, %s5
  %s8 = scalar_select 0, %s7, %s5
  loop: start=0, step=1, limit=4
  $region2: #{dual_stream_unet.51} parent=0 // loop_pre_header
    _
  $region3: #{dual_stream_unet.51} parent=0 // loop_header
    %s10 = sphi 0, %s14
    %p11 = scmp.ge.s32.totalorder %s10, 4
    %s17 = sphi 0, %s29
    %s18 = sphi 0, %s25
    %s19 = sphi 0, %s17
    %s20 = sphi 0, %s18
    %s21 = sphi 0, %s19
    %s22 = sphi 0, %s20
    %s34 = sphi 0, %s36
    %s37 = sphi 0, %s34
    %s38 = sphi 0, %s37
    %s54 = sphi 0, %s38
    %s58 = sphi 0, %s58
    %s60 = sphi 0, %s58
    %s61 = sphi 0, %s60
    %s75 = sphi 0, %s61
    %s79 = sphi 0, %s79
    %s81 = sphi 0, %s79
    %s82 = sphi 0, %s81
    %s96 = sphi 0, %s82
    %s100 = sphi 0, %s100
    %s102 = sphi 0, %s100
    %s103 = sphi 0, %s102
    %s117 = sphi 0, %s103
    %s125 = sphi 0, %s127
    %s128 = sphi 0, %s125
    %s129 = sphi 0, %s128
    %s145 = sphi 0, %s129
  $region4: #{dual_stream_unet.51} parent=0 // loop_header_branch
    %13 = sbr.rel (%p11) target = $region8
  $region5: #{dual_stream_unet.51} parent=0 // loop_body
    %s15 = ssub.s32 %s10, 1
    %s16 = ssub.s32 %s10, 2
    %s23 = sadd.s32 1, %s18
    %p24 = scmp.ge.s32.totalorder %s23, 1
    %s25 = scalar_select %p24, 0, %s23
    %s26 = sadd.s32 1, %s17
    %s27 = scalar_select %p24, %s26, %s17
    %p28 = scmp.ge.s32.totalorder %s27, 2
    %s29 = scalar_select %p28, 0, %s27
    %s30 = ssub.s32 %s17, %s29
    %s31 = ssub.s32 %s18, %s25
    %s32 = sor.u32 %s30, %s31
    %p33 = scmp.eq.s32.totalorder %s32, 0
    %s35 = sadd.s32 %s34, 1
    %s36 = scalar_select %p33, %s34, %s35
    %p39 = pneg %p33
    %p40 = scmp.eq.s32.totalorder %s10, 1
    %p41 = por %p39, %p40
    %p42 = scmp.ne.s32.totalorder %s34, %s37
    %p43 = scmp.eq.s32.totalorder %s10, 0
    %p44 = por %p42, %p43
    %p45 = scmp.ne.s32.totalorder %s34, %s37
    %p46 = scmp.eq.s32.totalorder %s15, 1
    %p47 = por %p45, %p46
    %p48 = scmp.ne.s32.totalorder %s37, %s38
    %p49 = scmp.eq.s32.totalorder %s15, 0
    %p50 = por %p48, %p49
    %p51 = scmp.ne.s32.totalorder %s37, %s38
    %p52 = scmp.eq.s32.totalorder %s16, 1
    %p53 = por %p51, %p52
    %p55 = scmp.ne.s32.totalorder %s38, %s54
    %p56 = scmp.eq.s32.totalorder %s16, 0
    %p57 = por %p55, %p56
    %s59 = sadd.s32 %s58, 1
    %p62 = scmp.eq.s32.totalorder %s10, 1
    %p63 = scmp.ne.s32.totalorder %s58, %s60
    %p64 = scmp.eq.s32.totalorder %s10, 0
    %p65 = por %p63, %p64
    %p66 = scmp.ne.s32.totalorder %s58, %s60
    %p67 = scmp.eq.s32.totalorder %s15, 1
    %p68 = por %p66, %p67
    %p69 = scmp.ne.s32.totalorder %s60, %s61
    %p70 = scmp.eq.s32.totalorder %s15, 0
    %p71 = por %p69, %p70
    %p72 = scmp.ne.s32.totalorder %s60, %s61
    %p73 = scmp.eq.s32.totalorder %s16, 1
    %p74 = por %p72, %p73
    %p76 = scmp.ne.s32.totalorder %s61, %s75
    %p77 = scmp.eq.s32.totalorder %s16, 0
    %p78 = por %p76, %p77
    %s80 = sadd.s32 %s79, 1
    %p83 = scmp.eq.s32.totalorder %s10, 1
    %p84 = scmp.ne.s32.totalorder %s79, %s81
    %p85 = scmp.eq.s32.totalorder %s10, 0
    %p86 = por %p84, %p85
    %p87 = scmp.ne.s32.totalorder %s79, %s81
    %p88 = scmp.eq.s32.totalorder %s15, 1
    %p89 = por %p87, %p88
    %p90 = scmp.ne.s32.totalorder %s81, %s82
    %p91 = scmp.eq.s32.totalorder %s15, 0
    %p92 = por %p90, %p91
    %p93 = scmp.ne.s32.totalorder %s81, %s82
    %p94 = scmp.eq.s32.totalorder %s16, 1
    %p95 = por %p93, %p94
    %p97 = scmp.ne.s32.totalorder %s82, %s96
    %p98 = scmp.eq.s32.totalorder %s16, 0
    %p99 = por %p97, %p98
    %s101 = sadd.s32 %s100, 1
    %p104 = scmp.eq.s32.totalorder %s10, 1
    %p105 = scmp.ne.s32.totalorder %s100, %s102
    %p106 = scmp.eq.s32.totalorder %s10, 0
    %p107 = por %p105, %p106
    %p108 = scmp.ne.s32.totalorder %s100, %s102
    %p109 = scmp.eq.s32.totalorder %s15, 1
    %p110 = por %p108, %p109
    %p111 = scmp.ne.s32.totalorder %s102, %s103
    %p112 = scmp.eq.s32.totalorder %s15, 0
    %p113 = por %p111, %p112
    %p114 = scmp.ne.s32.totalorder %s102, %s103
    %p115 = scmp.eq.s32.totalorder %s16, 1
    %p116 = por %p114, %p115
    %p118 = scmp.ne.s32.totalorder %s103, %s117
    %p119 = scmp.eq.s32.totalorder %s16, 0
    %p120 = por %p118, %p119
    %s121 = ssub.s32 %s17, %s29
    %s122 = ssub.s32 %s18, %s25
    %s123 = sor.u32 %s121, %s122
    %p124 = scmp.eq.s32.totalorder %s123, 0
    %s126 = sadd.s32 %s125, 1
    %s127 = scalar_select %p124, %s125, %s126
    %p130 = pneg %p124
    %p131 = scmp.eq.s32.totalorder %s10, 1
    %p132 = por %p130, %p131
    %p133 = scmp.ne.s32.totalorder %s125, %s128
    %p134 = scmp.eq.s32.totalorder %s10, 0
    %p135 = por %p133, %p134
    %p136 = scmp.ne.s32.totalorder %s125, %s128
    %p137 = scmp.eq.s32.totalorder %s15, 1
    %p138 = por %p136, %p137
    %p139 = scmp.ne.s32.totalorder %s128, %s129
    %p140 = scmp.eq.s32.totalorder %s15, 0
    %p141 = por %p139, %p140
    %p142 = scmp.ne.s32.totalorder %s128, %s129
    %p143 = scmp.eq.s32.totalorder %s16, 1
    %p144 = por %p142, %p143
    %p146 = scmp.ne.s32.totalorder %s129, %s145
    %p147 = scmp.eq.s32.totalorder %s16, 0
    %p148 = por %p146, %p147
    %p149 = scmp.le.s32.totalorder 1, %s10
    %p150 = scmp.lt.s32.totalorder %s10, 3
    %p151 = pnand %p149, %p150
    %p152 = pneg %p151
    // Predicated region
    $region9: #{dual_stream_unet.51} parent=5 // pred_check
      _
    $region10: #{dual_stream_unet.51} parent=5 // pred_check_branch
      %154 = sbr.rel (%p151) target = $region12
    $region11: #{dual_stream_unet.51} parent=5 // pred_region
      %s155 = ssub.s32 %s10, 1
      // Predicated region
      $region13: #{dual_stream_unet.51} parent=11 // pred_check
        %p156 = pneg %p71
      $region14: #{dual_stream_unet.51} parent=11 // pred_check_branch
        %158 = sbr.rel (%p156) target = $region16
      $region15: #{dual_stream_unet.51} parent=11 // pred_region
        _
      $region16: #{dual_stream_unet.51} parent=11 // pred_fallthru
        _
      // Predicated region
      $region17: #{dual_stream_unet.51} parent=11 // pred_check
        %p159 = pneg %p92
      $region18: #{dual_stream_unet.51} parent=11 // pred_check_branch
        %161 = sbr.rel (%p159) target = $region20
      $region19: #{dual_stream_unet.51} parent=11 // pred_region
        _
      $region20: #{dual_stream_unet.51} parent=11 // pred_fallthru
        _
      // Predicated region
      $region21: #{dual_stream_unet.51} parent=11 // pred_check
        %p162 = pneg %p113
      $region22: #{dual_stream_unet.51} parent=11 // pred_check_branch
        %164 = sbr.rel (%p162) target = $region24
      $region23: #{dual_stream_unet.51} parent=11 // pred_region
        _
      $region24: #{dual_stream_unet.51} parent=11 // pred_fallthru
        _
    $region12: #{dual_stream_unet.51} parent=5 // pred_fallthru
      _
    %p165 = scmp.lt.s32.totalorder %s10, 2
    // Predicated region
    $region25: #{dual_stream_unet.51} parent=5 // pred_check
      %p166 = pneg %p165
    $region26: #{dual_stream_unet.51} parent=5 // pred_check_branch
      %168 = sbr.rel (%p166) target = $region28
    $region27: #{dual_stream_unet.51} parent=5 // pred_region
      // Predicated region
      $region29: #{dual_stream_unet.51} parent=27 // pred_check
        %p169 = pneg %p44
      $region30: #{dual_stream_unet.51} parent=27 // pred_check_branch
        %171 = sbr.rel (%p169) target = $region32
      $region31: #{dual_stream_unet.51} parent=27 // pred_region
        %s172 = smul.u32 2, %s18
        %p173 = scmp.lt.s32.totalorder %s17, 1
        %s174 = scalar_select %p173, %s17, 1
        %p175 = scmp.lt.s32.totalorder %s172, 1
        %s176 = scalar_select %p175, %s172, 1
        %s177 = smul.addr %s176, 2
        %s178 = smul.addr %s174, 4
        %s179 = sadd.s32 %s177, %s178
        %s180 = smul.addr %s179, 4
        %s181 = scalar_lea.vmem %s0, %s180
        %s182 = smul.u32 2, %s18
      $region32: #{dual_stream_unet.51} parent=27 // pred_fallthru
        _
    $region28: #{dual_stream_unet.51} parent=5 // pred_fallthru
      _
    %p183 = scmp.le.s32.totalorder 1, %s10
    %p184 = scmp.lt.s32.totalorder %s10, 3
    %p185 = pnand %p183, %p184
    %p186 = pneg %p185
    // Predicated region
    $region33: #{dual_stream_unet.51} parent=5 // pred_check
      _
    $region34: #{dual_stream_unet.51} parent=5 // pred_check_branch
      %188 = sbr.rel (%p185) target = $region36
    $region35: #{dual_stream_unet.51} parent=5 // pred_region
      %s189 = ssub.s32 %s10, 1
      %s190 = smul.u32 2, %s20
      %p191 = scmp.lt.s32.totalorder %s19, 1
      %s192 = scalar_select %p191, %s19, 1
      %p193 = scmp.lt.s32.totalorder %s190, 1
      %s194 = scalar_select %p193, %s190, 1
      %s195 = smul.addr %s194, 2
      %s196 = smul.addr %s192, 4
      %s197 = sadd.s32 %s195, %s196
      %s198 = smul.addr %s197, 4
      %s199 = scalar_lea.vmem %s0, %s198
      %p200 = pneg %p50
      %p201 = pneg %p47
      %p202 = pneg %p71
      %p203 = pneg %p68
      %p204 = pneg %p92
      %p205 = pneg %p89
      %p206 = pneg %p113
      %p207 = pneg %p110
      %p208 = pneg %p141
      %p209 = pneg %p138
      %s210 = smul.u32 2, %s20
      %p211 = scmp.lt.s32.totalorder %s19, 1
      %s212 = scalar_select %p211, %s19, 1
      %p213 = scmp.lt.s32.totalorder %s210, 1
      %s214 = scalar_select %p213, %s210, 1
      %s215 = smul.addr %s212, 2
      %s216 = sadd.s32 %s214, %s215
      %s217 = smul.addr %s216, 8
      %s218 = scalar_lea.vmem %s4, %s217
      %s219 = smul.u32 2, %s20
      %p220 = scmp.lt.s32.totalorder %s19, 1
      %s221 = scalar_select %p220, %s19, 1
      %p222 = scmp.lt.s32.totalorder %s219, 1
      %s223 = scalar_select %p222, %s219, 1
      %s224 = smul.addr %s223, 2
      %s225 = smul.addr %s221, 4
      %s226 = sadd.s32 %s224, %s225
      %s227 = smul.addr %s226, 4
      %s228 = scalar_lea.vmem %s0, %s227
      %s229 = smul.u32 2, %s20
      %s230 = smul.u32 2, %s20
      %p231 = scmp.lt.s32.totalorder %s19, 1
      %s232 = scalar_select %p231, %s19, 1
      %p233 = scmp.lt.s32.totalorder %s230, 1
      %s234 = scalar_select %p233, %s230, 1
      %s235 = smul.addr %s232, 2
      %s236 = sadd.s32 %s234, %s235
      %s237 = smul.addr %s236, 8
      %s238 = scalar_lea.vmem %s4, %s237
      %s239 = smul.u32 2, %s20
      %v241 = vld [vmem:[%s228] sm:$0xff]
      %v242 = vld [vmem:[%s228 + $0x8] sm:$0xff]
      %v243 = vld [vmem:[%s1] sm:$0xf]
      %v244 = vld [vmem:[%s1 + $0x4] sm:$0xf]
      %v245 = vld [vmem:[%s1 + $0x8] sm:$0xf]
      %v246 = vld [vmem:[%s1 + $0xc] sm:$0xf]
      %v247 = vld [vmem:[%s1 + $0x10] sm:$0xf]
      %v248 = vld [vmem:[%s1 + $0x14] sm:$0xf]
      %v249 = vld [vmem:[%s1 + $0x18] sm:$0xf]
      %v250 = vld [vmem:[%s1 + $0x1c] sm:$0xf]
      %v251 = vld [vmem:[%s1 + $0x20] sm:$0xf]
      %v252 = vld [vmem:[%s1 + $0x24] sm:$0xf]
      %v253 = vld [vmem:[%s1 + $0x28] sm:$0xf]
      %v254 = vld [vmem:[%s1 + $0x2c] sm:$0xf]
      %v255 = vld [vmem:[%s1 + $0x30] sm:$0xf]
      %v256 = vld [vmem:[%s1 + $0x34] sm:$0xf]
      %v257 = vld [vmem:[%s1 + $0x38] sm:$0xf]
      %v258 = vld [vmem:[%s1 + $0x3c] sm:$0xf]
      %v259 = vld [vmem:[%s1 + $0x40] sm:$0xf]
      %v260 = vld [vmem:[%s1 + $0x44] sm:$0xf]
      %v263 = vunpack.c.l.b16 %v241
      %v264 = vunpack.c.h.b16 %v241
      %v265 = vunpack.c.l.b16 %v242
      %v266 = vunpack.c.h.b16 %v242
      %v267 = vpack.c.b16 %v265, %v263
      %v268 = vpack.c.b16 %v266, %v264
      %v288 = vunpack.c.l.b16 %v243
      %v289 = vunpack.c.l.b16 %v244
      %v290 = vunpack.c.l.b16 %v245
      %v291 = vunpack.c.l.b16 %v246
      %v292 = vunpack.c.l.b16 %v247
      %v293 = vunpack.c.l.b16 %v248
      %v294 = vunpack.c.l.b16 %v249
      %v295 = vunpack.c.l.b16 %v250
      %v296 = vunpack.c.l.b16 %v251
      %v297 = vunpack.c.l.b16 %v252
      %v298 = vunpack.c.l.b16 %v253
      %v299 = vunpack.c.l.b16 %v254
      %v300 = vunpack.c.l.b16 %v255
      %v301 = vunpack.c.l.b16 %v256
      %v302 = vunpack.c.l.b16 %v257
      %v303 = vunpack.c.l.b16 %v258
      %v304 = vunpack.c.l.b16 %v259
      %v305 = vunpack.c.l.b16 %v260
      %v306 = vpack.c.b16 %v289, %v288
      %v307 = vpack.c.b16 %v291, %v290
      %v308 = vpack.c.b16 %v293, %v292
      %v309 = vpack.c.b16 %v295, %v294
      %v310 = vpack.c.b16 %v297, %v296
      %v311 = vpack.c.b16 %v299, %v298
      %v312 = vpack.c.b16 %v301, %v300
      %v313 = vpack.c.b16 %v303, %v302
      %v314 = vpack.c.b16 %v305, %v304
      %vm324 = vcmask 130048
      %v326 = vsel %vm324, %v268, 0
      %328 = vmatprep.subr.bf16.mxu0 0
      %329 = vmatpush1.bf16.msra.mxu0 %v306
      %330 = vmatprep.subr.bf16.mxu0 0
      %331 = vmatpush1.bf16.msra.mxu0 %v307
      %332 = vmatprep.subr.bf16.mxu0 0
      %333 = vmatpush1.bf16.msra.mxu0 %v308
      %334 = vmatprep.subr.bf16.mxu0 0
      %335 = vmatpush1.bf16.msra.mxu0 %v309
      %336 = vmatprep.subr.bf16.mxu0 0
      %337 = vmatpush1.bf16.msra.mxu0 %v310
      %338 = vmatprep.subr.bf16.mxu0 0
      %339 = vmatpush1.bf16.msra.mxu0 %v311
      %340 = vmatprep.subr.bf16.mxu0 0
      %341 = vmatpush1.bf16.msra.mxu0 %v312
      %342 = vmatprep.subr.bf16.mxu0 0
      %343 = vmatpush1.bf16.msra.mxu0 %v313
      %344 = vmatprep.subr.bf16.mxu0 0
      %345 = vmatpush1.bf16.msra.mxu0 %v314
      %346 = vmatprep.subr.bf16.mxu0 0
      %347 = vmatpush1.bf16.msra.mxu0 0
      %348 = vmatprep.subr.bf16.mxu0 0
      %349 = vmatpush1.bf16.msra.mxu0 0
      %350 = vmatprep.subr.bf16.mxu0 0
      %351 = vmatpush1.bf16.msra.mxu0 0
      %352 = vmatprep.subr.bf16.mxu0 0
      %353 = vmatpush1.bf16.msra.mxu0 0
      %354 = vmatprep.subr.bf16.mxu0 0
      %355 = vmatpush1.bf16.msra.mxu0 0
      %356 = vmatprep.subr.bf16.mxu0 0
      %357 = vmatpush1.bf16.msra.mxu0 0
      %358 = vmatprep.subr.bf16.mxu0 0
      %359 = vmatpush1.bf16.msra.mxu0 0
      %360 = vmatprep.mubr.bf16.mxu0 %v326
      %361 = vmatmul.mubr.bf16.gmra.mrb[0].mxu0 %v267
      %v362 = vpop.f32.mrb[0].mxu0
      %v363 = vadd.f32 0.0, %v362
      %v364 = vpop.f32.mrb[0].mxu0
      %v365 = vpop.f32.mrb[0].mxu0
      %v366 = vadd.f32 0.0, %v365
      %v367 = vpop.f32.mrb[0].mxu0
      %368 = vdwg.mxu0
      %v369 = vld [vmem:[%s2] sm:$0x1]
      %v371 = vlaneseq
      %v372 = vshrl.u32 %v371, 7
      %v373 = vsub.s32 0, %v372
      %v374 = vrot.slane %v369, %v373
      %v376 = vmul.f32 %v363, %v374
      %v377 = vmul.f32 %v366, %v374
      %v378 = vld [vmem:[%s3] sm:$0x1]
      %v380 = vlaneseq
      %v381 = vshrl.u32 %v380, 7
      %v382 = vsub.s32 0, %v381
      %v383 = vrot.slane %v378, %v382
      %v385 = vadd.f32 %v376, %v383
      %v386 = vadd.f32 %v377, %v383
      %v387 = vmax.f32 %v385, 0.0
      %v388 = vmax.f32 %v386, 0.0
      %389 = vst.msk [vmem:[%s238] sm:$0xff] %vm324, %v387
      %390 = vst.msk [vmem:[%s238 + $0x8] sm:$0xff] %vm324, %v388
      %s391 = smul.u32 2, %s20
      %p392 = scmp.lt.s32.totalorder %s19, 1
      %s393 = scalar_select %p392, %s19, 1
      %p394 = scmp.lt.s32.totalorder %s391, 1
      %s395 = scalar_select %p394, %s391, 1
      %s396 = smul.addr %s393, 2
      %s397 = sadd.s32 %s395, %s396
      %s398 = smul.addr %s397, 8
      %s399 = scalar_lea.vmem %s4, %s398
      // Predicated region
      $region37: #{dual_stream_unet.51} parent=35 // pred_check
        %p400 = pneg %p138
      $region38: #{dual_stream_unet.51} parent=35 // pred_check_branch
        %402 = sbr.rel (%p400) target = $region40
      $region39: #{dual_stream_unet.51} parent=35 // pred_region
        %s403 = smul.u32 2, %s20
      $region40: #{dual_stream_unet.51} parent=35 // pred_fallthru
        _
    $region36: #{dual_stream_unet.51} parent=5 // pred_fallthru
      _
    %p404 = scmp.le.s32.totalorder 2, %s10
    // Predicated region
    $region41: #{dual_stream_unet.51} parent=5 // pred_check
      %p405 = pneg %p404
    $region42: #{dual_stream_unet.51} parent=5 // pred_check_branch
      %407 = sbr.rel (%p405) target = $region44
    $region43: #{dual_stream_unet.51} parent=5 // pred_region
      %s408 = ssub.s32 %s10, 2
      // Predicated region
      $region45: #{dual_stream_unet.51} parent=43 // pred_check
        %p409 = pneg %p144
      $region46: #{dual_stream_unet.51} parent=43 // pred_check_branch
        %411 = sbr.rel (%p409) target = $region48
      $region47: #{dual_stream_unet.51} parent=43 // pred_region
        %s412 = smul.u32 2, %s22
        %p413 = scmp.lt.s32.totalorder %s21, 1
        %s414 = scalar_select %p413, %s21, 1
        %p415 = scmp.lt.s32.totalorder %s412, 1
        %s416 = scalar_select %p415, %s412, 1
        %s417 = smul.addr %s414, 2
        %s418 = sadd.s32 %s416, %s417
        %s419 = smul.addr %s418, 8
        %s420 = scalar_lea.vmem %s4, %s419
      $region48: #{dual_stream_unet.51} parent=43 // pred_fallthru
        _
    $region44: #{dual_stream_unet.51} parent=5 // pred_fallthru
      _
  $region6: #{dual_stream_unet.51} parent=0 // loop_footer
    %s14 = sadd.s32 1, %s10
  $region7: #{dual_stream_unet.51} parent=0 // loop_footer_branch
    %9 = sbr.rel target = $region3
  $region8: #{dual_stream_unet.51} parent=0 // loop_exit
    _

// kernel: dual_stream_unet.53
$region0: #{dual_stream_unet.53}
  #allocation0 [shape = 'u32[]', space=smem, size = 0x4, offset = 0x4, fixed_abs, tag = 'smem constant byte address 0x4 - core index']
  #allocation1 [shape = 'u32[144,128]{1,0:T(1,128)}', space=vmem, size = 0x12000, scoped, tag = 'internal scratch']
  %s0 = inlined_call_operand.vmem [shape: bf16[2,16,16], index: 0, kind: input, shape index: {}]
  %s1 = inlined_call_operand.vmem [shape: bf16[16,64], index: 1, kind: input, shape index: {}]
  %s2 = inlined_call_operand.vmem [shape: f32[1,64], index: 2, kind: input, shape index: {}]
  %s3 = inlined_call_operand.vmem [shape: f32[1,64], index: 3, kind: input, shape index: {}]
  %s4 = inlined_call_operand.vmem [shape: f32[2,16,64], index: 4, kind: output, shape index: {}]
  %s5 = sld [smem:[#allocation0]]
  $region49: #{dual_stream_unet.53} parent=0
    _
  %s7 = ssub.s32 1, %s5
  %s8 = scalar_select 0, %s7, %s5
  loop: start=0, step=1, limit=4
  $region2: #{dual_stream_unet.53} parent=0 // loop_pre_header
    _
  $region3: #{dual_stream_unet.53} parent=0 // loop_header
    %s10 = sphi 0, %s14
    %p11 = scmp.ge.s32.totalorder %s10, 4
    %s17 = sphi 0, %s29
    %s18 = sphi 0, %s25
    %s19 = sphi 0, %s17
    %s20 = sphi 0, %s18
    %s21 = sphi 0, %s19
    %s22 = sphi 0, %s20
    %s34 = sphi 0, %s36
    %s37 = sphi 0, %s34
    %s38 = sphi 0, %s37
    %s54 = sphi 0, %s38
    %s58 = sphi 0, %s58
    %s60 = sphi 0, %s58
    %s61 = sphi 0, %s60
    %s75 = sphi 0, %s61
    %s79 = sphi 0, %s79
    %s81 = sphi 0, %s79
    %s82 = sphi 0, %s81
    %s96 = sphi 0, %s82
    %s100 = sphi 0, %s100
    %s102 = sphi 0, %s100
    %s103 = sphi 0, %s102
    %s117 = sphi 0, %s103
    %s125 = sphi 0, %s127
    %s128 = sphi 0, %s125
    %s129 = sphi 0, %s128
    %s145 = sphi 0, %s129
  $region4: #{dual_stream_unet.53} parent=0 // loop_header_branch
    %13 = sbr.rel (%p11) target = $region8
  $region5: #{dual_stream_unet.53} parent=0 // loop_body
    %s15 = ssub.s32 %s10, 1
    %s16 = ssub.s32 %s10, 2
    %s23 = sadd.s32 1, %s18
    %p24 = scmp.ge.s32.totalorder %s23, 1
    %s25 = scalar_select %p24, 0, %s23
    %s26 = sadd.s32 1, %s17
    %s27 = scalar_select %p24, %s26, %s17
    %p28 = scmp.ge.s32.totalorder %s27, 2
    %s29 = scalar_select %p28, 0, %s27
    %s30 = ssub.s32 %s17, %s29
    %s31 = ssub.s32 %s18, %s25
    %s32 = sor.u32 %s30, %s31
    %p33 = scmp.eq.s32.totalorder %s32, 0
    %s35 = sadd.s32 %s34, 1
    %s36 = scalar_select %p33, %s34, %s35
    %p39 = pneg %p33
    %p40 = scmp.eq.s32.totalorder %s10, 1
    %p41 = por %p39, %p40
    %p42 = scmp.ne.s32.totalorder %s34, %s37
    %p43 = scmp.eq.s32.totalorder %s10, 0
    %p44 = por %p42, %p43
    %p45 = scmp.ne.s32.totalorder %s34, %s37
    %p46 = scmp.eq.s32.totalorder %s15, 1
    %p47 = por %p45, %p46
    %p48 = scmp.ne.s32.totalorder %s37, %s38
    %p49 = scmp.eq.s32.totalorder %s15, 0
    %p50 = por %p48, %p49
    %p51 = scmp.ne.s32.totalorder %s37, %s38
    %p52 = scmp.eq.s32.totalorder %s16, 1
    %p53 = por %p51, %p52
    %p55 = scmp.ne.s32.totalorder %s38, %s54
    %p56 = scmp.eq.s32.totalorder %s16, 0
    %p57 = por %p55, %p56
    %s59 = sadd.s32 %s58, 1
    %p62 = scmp.eq.s32.totalorder %s10, 1
    %p63 = scmp.ne.s32.totalorder %s58, %s60
    %p64 = scmp.eq.s32.totalorder %s10, 0
    %p65 = por %p63, %p64
    %p66 = scmp.ne.s32.totalorder %s58, %s60
    %p67 = scmp.eq.s32.totalorder %s15, 1
    %p68 = por %p66, %p67
    %p69 = scmp.ne.s32.totalorder %s60, %s61
    %p70 = scmp.eq.s32.totalorder %s15, 0
    %p71 = por %p69, %p70
    %p72 = scmp.ne.s32.totalorder %s60, %s61
    %p73 = scmp.eq.s32.totalorder %s16, 1
    %p74 = por %p72, %p73
    %p76 = scmp.ne.s32.totalorder %s61, %s75
    %p77 = scmp.eq.s32.totalorder %s16, 0
    %p78 = por %p76, %p77
    %s80 = sadd.s32 %s79, 1
    %p83 = scmp.eq.s32.totalorder %s10, 1
    %p84 = scmp.ne.s32.totalorder %s79, %s81
    %p85 = scmp.eq.s32.totalorder %s10, 0
    %p86 = por %p84, %p85
    %p87 = scmp.ne.s32.totalorder %s79, %s81
    %p88 = scmp.eq.s32.totalorder %s15, 1
    %p89 = por %p87, %p88
    %p90 = scmp.ne.s32.totalorder %s81, %s82
    %p91 = scmp.eq.s32.totalorder %s15, 0
    %p92 = por %p90, %p91
    %p93 = scmp.ne.s32.totalorder %s81, %s82
    %p94 = scmp.eq.s32.totalorder %s16, 1
    %p95 = por %p93, %p94
    %p97 = scmp.ne.s32.totalorder %s82, %s96
    %p98 = scmp.eq.s32.totalorder %s16, 0
    %p99 = por %p97, %p98
    %s101 = sadd.s32 %s100, 1
    %p104 = scmp.eq.s32.totalorder %s10, 1
    %p105 = scmp.ne.s32.totalorder %s100, %s102
    %p106 = scmp.eq.s32.totalorder %s10, 0
    %p107 = por %p105, %p106
    %p108 = scmp.ne.s32.totalorder %s100, %s102
    %p109 = scmp.eq.s32.totalorder %s15, 1
    %p110 = por %p108, %p109
    %p111 = scmp.ne.s32.totalorder %s102, %s103
    %p112 = scmp.eq.s32.totalorder %s15, 0
    %p113 = por %p111, %p112
    %p114 = scmp.ne.s32.totalorder %s102, %s103
    %p115 = scmp.eq.s32.totalorder %s16, 1
    %p116 = por %p114, %p115
    %p118 = scmp.ne.s32.totalorder %s103, %s117
    %p119 = scmp.eq.s32.totalorder %s16, 0
    %p120 = por %p118, %p119
    %s121 = ssub.s32 %s17, %s29
    %s122 = ssub.s32 %s18, %s25
    %s123 = sor.u32 %s121, %s122
    %p124 = scmp.eq.s32.totalorder %s123, 0
    %s126 = sadd.s32 %s125, 1
    %s127 = scalar_select %p124, %s125, %s126
    %p130 = pneg %p124
    %p131 = scmp.eq.s32.totalorder %s10, 1
    %p132 = por %p130, %p131
    %p133 = scmp.ne.s32.totalorder %s125, %s128
    %p134 = scmp.eq.s32.totalorder %s10, 0
    %p135 = por %p133, %p134
    %p136 = scmp.ne.s32.totalorder %s125, %s128
    %p137 = scmp.eq.s32.totalorder %s15, 1
    %p138 = por %p136, %p137
    %p139 = scmp.ne.s32.totalorder %s128, %s129
    %p140 = scmp.eq.s32.totalorder %s15, 0
    %p141 = por %p139, %p140
    %p142 = scmp.ne.s32.totalorder %s128, %s129
    %p143 = scmp.eq.s32.totalorder %s16, 1
    %p144 = por %p142, %p143
    %p146 = scmp.ne.s32.totalorder %s129, %s145
    %p147 = scmp.eq.s32.totalorder %s16, 0
    %p148 = por %p146, %p147
    %p149 = scmp.le.s32.totalorder 1, %s10
    %p150 = scmp.lt.s32.totalorder %s10, 3
    %p151 = pnand %p149, %p150
    %p152 = pneg %p151
    // Predicated region
    $region9: #{dual_stream_unet.53} parent=5 // pred_check
      _
    $region10: #{dual_stream_unet.53} parent=5 // pred_check_branch
      %154 = sbr.rel (%p151) target = $region12
    $region11: #{dual_stream_unet.53} parent=5 // pred_region
      %s155 = ssub.s32 %s10, 1
      // Predicated region
      $region13: #{dual_stream_unet.53} parent=11 // pred_check
        %p156 = pneg %p71
      $region14: #{dual_stream_unet.53} parent=11 // pred_check_branch
        %158 = sbr.rel (%p156) target = $region16
      $region15: #{dual_stream_unet.53} parent=11 // pred_region
        _
      $region16: #{dual_stream_unet.53} parent=11 // pred_fallthru
        _
      // Predicated region
      $region17: #{dual_stream_unet.53} parent=11 // pred_check
        %p159 = pneg %p92
      $region18: #{dual_stream_unet.53} parent=11 // pred_check_branch
        %161 = sbr.rel (%p159) target = $region20
      $region19: #{dual_stream_unet.53} parent=11 // pred_region
        _
      $region20: #{dual_stream_unet.53} parent=11 // pred_fallthru
        _
      // Predicated region
      $region21: #{dual_stream_unet.53} parent=11 // pred_check
        %p162 = pneg %p113
      $region22: #{dual_stream_unet.53} parent=11 // pred_check_branch
        %164 = sbr.rel (%p162) target = $region24
      $region23: #{dual_stream_unet.53} parent=11 // pred_region
        _
      $region24: #{dual_stream_unet.53} parent=11 // pred_fallthru
        _
    $region12: #{dual_stream_unet.53} parent=5 // pred_fallthru
      _
    %p165 = scmp.lt.s32.totalorder %s10, 2
    // Predicated region
    $region25: #{dual_stream_unet.53} parent=5 // pred_check
      %p166 = pneg %p165
    $region26: #{dual_stream_unet.53} parent=5 // pred_check_branch
      %168 = sbr.rel (%p166) target = $region28
    $region27: #{dual_stream_unet.53} parent=5 // pred_region
      // Predicated region
      $region29: #{dual_stream_unet.53} parent=27 // pred_check
        %p169 = pneg %p44
      $region30: #{dual_stream_unet.53} parent=27 // pred_check_branch
        %171 = sbr.rel (%p169) target = $region32
      $region31: #{dual_stream_unet.53} parent=27 // pred_region
        %s172 = smul.u32 2, %s18
        %p173 = scmp.lt.s32.totalorder %s17, 1
        %s174 = scalar_select %p173, %s17, 1
        %p175 = scmp.lt.s32.totalorder %s172, 1
        %s176 = scalar_select %p175, %s172, 1
        %s177 = smul.addr %s174, 2
        %s178 = sadd.s32 %s176, %s177
        %s179 = smul.addr %s178, 4
        %s180 = scalar_lea.vmem %s0, %s179
        %s181 = smul.u32 2, %s18
      $region32: #{dual_stream_unet.53} parent=27 // pred_fallthru
        _
    $region28: #{dual_stream_unet.53} parent=5 // pred_fallthru
      _
    %p182 = scmp.le.s32.totalorder 1, %s10
    %p183 = scmp.lt.s32.totalorder %s10, 3
    %p184 = pnand %p182, %p183
    %p185 = pneg %p184
    // Predicated region
    $region33: #{dual_stream_unet.53} parent=5 // pred_check
      _
    $region34: #{dual_stream_unet.53} parent=5 // pred_check_branch
      %187 = sbr.rel (%p184) target = $region36
    $region35: #{dual_stream_unet.53} parent=5 // pred_region
      %s188 = ssub.s32 %s10, 1
      %s189 = smul.u32 2, %s20
      %p190 = scmp.lt.s32.totalorder %s19, 1
      %s191 = scalar_select %p190, %s19, 1
      %p192 = scmp.lt.s32.totalorder %s189, 1
      %s193 = scalar_select %p192, %s189, 1
      %s194 = smul.addr %s191, 2
      %s195 = sadd.s32 %s193, %s194
      %s196 = smul.addr %s195, 4
      %s197 = scalar_lea.vmem %s0, %s196
      %p198 = pneg %p50
      %p199 = pneg %p47
      %p200 = pneg %p71
      %p201 = pneg %p68
      %p202 = pneg %p92
      %p203 = pneg %p89
      %p204 = pneg %p113
      %p205 = pneg %p110
      %p206 = pneg %p141
      %p207 = pneg %p138
      %s208 = smul.u32 2, %s20
      %p209 = scmp.lt.s32.totalorder %s19, 1
      %s210 = scalar_select %p209, %s19, 1
      %p211 = scmp.lt.s32.totalorder %s208, 1
      %s212 = scalar_select %p211, %s208, 1
      %s213 = smul.addr %s210, 2
      %s214 = sadd.s32 %s212, %s213
      %s215 = smul.addr %s214, 8
      %s216 = scalar_lea.vmem %s4, %s215
      %s217 = smul.u32 2, %s20
      %p218 = scmp.lt.s32.totalorder %s19, 1
      %s219 = scalar_select %p218, %s19, 1
      %p220 = scmp.lt.s32.totalorder %s217, 1
      %s221 = scalar_select %p220, %s217, 1
      %s222 = smul.addr %s219, 2
      %s223 = sadd.s32 %s221, %s222
      %s224 = smul.addr %s223, 4
      %s225 = scalar_lea.vmem %s0, %s224
      %s226 = smul.u32 2, %s20
      %s227 = smul.u32 2, %s20
      %p228 = scmp.lt.s32.totalorder %s19, 1
      %s229 = scalar_select %p228, %s19, 1
      %p230 = scmp.lt.s32.totalorder %s227, 1
      %s231 = scalar_select %p230, %s227, 1
      %s232 = smul.addr %s229, 2
      %s233 = sadd.s32 %s231, %s232
      %s234 = smul.addr %s233, 8
      %s235 = scalar_lea.vmem %s4, %s234
      %s236 = smul.u32 2, %s20
      %v238 = vld [vmem:[%s225] sm:$0xf]
      %v239 = vld [vmem:[%s225 + $0x4] sm:$0xf]
      %v240 = vld [vmem:[%s1] sm:$0xf]
      %v241 = vld [vmem:[%s1 + $0x4] sm:$0xf]
      %v244 = vunpack.c.l.b16 %v238
      %v245 = vunpack.c.l.b16 %v239
      %v246 = vpack.c.b16 %v245, %v244
      %v249 = vunpack.c.l.b16 %v240
      %v250 = vunpack.c.l.b16 %v241
      %v251 = vpack.c.b16 %v250, %v249
      %vm253 = vcmask 130048
      %v255 = vsel %vm253, %v246, 0
      %257 = vmatprep.subr.bf16.mxu0 0
      %258 = vmatpush1.bf16.msra.mxu0 %v251
      %259 = vmatprep.subr.bf16.mxu0 0
      %260 = vmatpush1.bf16.msra.mxu0 0
      %261 = vmatprep.subr.bf16.mxu0 0
      %262 = vmatpush1.bf16.msra.mxu0 0
      %263 = vmatprep.subr.bf16.mxu0 0
      %264 = vmatpush1.bf16.msra.mxu0 0
      %265 = vmatprep.subr.bf16.mxu0 0
      %266 = vmatpush1.bf16.msra.mxu0 0
      %267 = vmatprep.subr.bf16.mxu0 0
      %268 = vmatpush1.bf16.msra.mxu0 0
      %269 = vmatprep.subr.bf16.mxu0 0
      %270 = vmatpush1.bf16.msra.mxu0 0
      %271 = vmatprep.subr.bf16.mxu0 0
      %272 = vmatpush1.bf16.msra.mxu0 0
      %273 = vmatprep.subr.bf16.mxu0 0
      %274 = vmatpush1.bf16.msra.mxu0 0
      %275 = vmatprep.subr.bf16.mxu0 0
      %276 = vmatpush1.bf16.msra.mxu0 0
      %277 = vmatprep.subr.bf16.mxu0 0
      %278 = vmatpush1.bf16.msra.mxu0 0
      %279 = vmatprep.subr.bf16.mxu0 0
      %280 = vmatpush1.bf16.msra.mxu0 0
      %281 = vmatprep.subr.bf16.mxu0 0
      %282 = vmatpush1.bf16.msra.mxu0 0
      %283 = vmatprep.subr.bf16.mxu0 0
      %284 = vmatpush1.bf16.msra.mxu0 0
      %285 = vmatprep.subr.bf16.mxu0 0
      %286 = vmatpush1.bf16.msra.mxu0 0
      %287 = vmatprep.subr.bf16.mxu0 0
      %288 = vmatpush1.bf16.msra.mxu0 0
      %289 = vmatprep.mubr.bf16.mxu0 0
      %290 = vmatmul.mubr.bf16.gmra.mrb[0].mxu0 %v255
      %v291 = vpop.f32.mrb[0].mxu0
      %v292 = vadd.f32 0.0, %v291
      %v293 = vpop.f32.mrb[0].mxu0
      %v294 = vpop.f32.mrb[0].mxu0
      %v295 = vadd.f32 0.0, %v294
      %v296 = vpop.f32.mrb[0].mxu0
      %297 = vdwg.mxu0
      %v298 = vld [vmem:[%s2] sm:$0x1]
      %v300 = vlaneseq
      %v301 = vshrl.u32 %v300, 7
      %v302 = vsub.s32 0, %v301
      %v303 = vrot.slane %v298, %v302
      %v305 = vmul.f32 %v292, %v303
      %v306 = vmul.f32 %v295, %v303
      %v307 = vld [vmem:[%s3] sm:$0x1]
      %v309 = vlaneseq
      %v310 = vshrl.u32 %v309, 7
      %v311 = vsub.s32 0, %v310
      %v312 = vrot.slane %v307, %v311
      %v314 = vadd.f32 %v305, %v312
      %v315 = vadd.f32 %v306, %v312
      %vm316 = vcmask 523264
      %317 = vst.msk [vmem:[%s235] sm:$0xff] %vm316, %v314
      %318 = vst.msk [vmem:[%s235 + $0x8] sm:$0xff] %vm316, %v315
      %s319 = smul.u32 2, %s20
      %p320 = scmp.lt.s32.totalorder %s19, 1
      %s321 = scalar_select %p320, %s19, 1
      %p322 = scmp.lt.s32.totalorder %s319, 1
      %s323 = scalar_select %p322, %s319, 1
      %s324 = smul.addr %s321, 2
      %s325 = sadd.s32 %s323, %s324
      %s326 = smul.addr %s325, 8
      %s327 = scalar_lea.vmem %s4, %s326
      // Predicated region
      $region37: #{dual_stream_unet.53} parent=35 // pred_check
        %p328 = pneg %p138
      $region38: #{dual_stream_unet.53} parent=35 // pred_check_branch
        %330 = sbr.rel (%p328) target = $region40
      $region39: #{dual_stream_unet.53} parent=35 // pred_region
        %s331 = smul.u32 2, %s20
      $region40: #{dual_stream_unet.53} parent=35 // pred_fallthru
        _
    $region36: #{dual_stream_unet.53} parent=5 // pred_fallthru
      _
    %p332 = scmp.le.s32.totalorder 2, %s10
    // Predicated region
    $region41: #{dual_stream_unet.53} parent=5 // pred_check
      %p333 = pneg %p332
    $region42: #{dual_stream_unet.53} parent=5 // pred_check_branch
      %335 = sbr.rel (%p333) target = $region44
    $region43: #{dual_stream_unet.53} parent=5 // pred_region
      %s336 = ssub.s32 %s10, 2
      // Predicated region
      $region45: #{dual_stream_unet.53} parent=43 // pred_check
        %p337 = pneg %p144
      $region46: #{dual_stream_unet.53} parent=43 // pred_check_branch
        %339 = sbr.rel (%p337) target = $region48
      $region47: #{dual_stream_unet.53} parent=43 // pred_region
        %s340 = smul.u32 2, %s22
        %p341 = scmp.lt.s32.totalorder %s21, 1
        %s342 = scalar_select %p341, %s21, 1
        %p343 = scmp.lt.s32.totalorder %s340, 1
        %s344 = scalar_select %p343, %s340, 1
        %s345 = smul.addr %s342, 2
        %s346 = sadd.s32 %s344, %s345
        %s347 = smul.addr %s346, 8
        %s348 = scalar_lea.vmem %s4, %s347
      $region48: #{dual_stream_unet.53} parent=43 // pred_fallthru
        _
    $region44: #{dual_stream_unet.53} parent=5 // pred_fallthru
      _
  $region6: #{dual_stream_unet.53} parent=0 // loop_footer
    %s14 = sadd.s32 1, %s10
  $region7: #{dual_stream_unet.53} parent=0 // loop_footer_branch
    %9 = sbr.rel target = $region3
  $region8: #{dual_stream_unet.53} parent=0 // loop_exit
    _

// kernel: tile.38
$region0: #{tile.38}
  #allocation0 [shape = 's32[1]{0}', space=sflag, size = 0x4, scoped, tag = 'scoped memory for tile.38']
  %s0 = inlined_call_operand.vmem [shape: f32[8], index: 0, kind: input, shape index: {}]
  %s1 = inlined_call_operand.vmem [shape: f32[4,8], index: 1, kind: output, shape index: {}]
  // Predicated region
  $region2: #{tile.38} parent=0 // pred_check
    _
  $region3: #{tile.38} parent=0 // pred_check_branch
    %3 = sbr.rel (0) target = $region5
  $region4: #{tile.38} parent=0 // pred_region
    _
  $region5: #{tile.38} parent=0 // pred_fallthru
    _
  %v4 = vld [vmem:[%s0] ss:$0 sm:$0xff]
  %5 = vst [vmem:[%s1] sm:$0xf] %v4

// kernel: tile.39
$region0: #{tile.39}
  %s0 = inlined_call_operand.vmem [shape: f32[4,8], index: 0, kind: input, shape index: {}]
  %s1 = inlined_call_operand.vmem [shape: f32[1,32], index: 1, kind: output, shape index: {}]
  $region1: #{tile.39} parent=0
    #allocation0 [shape = 'u8[4096]{0}', space=vmem, size = 0x1000, scoped, tag = 'scoped mem for output reshape']
    #allocation1 [shape = 'u8[4096]{0}', space=vmem, size = 0x1000, scoped, tag = 'scoped mem for input reshape']
    %s3 = sshllo.u32 0, 4
    %v4 = vld [vmem:[%s0] sm:%s3]
    %5 = vst [vmem:[#allocation1] sm:%s3] %v4
    %v6 = vld [vmem:[#allocation1] sm:$0x1]
    %vm7 = vcmask 64512
    %8 = vst.msk [vmem:[#allocation0] sm:$0x1] %vm7, %v6
    %s9 = scalar_lea.vmem [#allocation1], 3
    %v10 = vld [vmem:[%s9] sm:$0x1]
    %11 = vrot.lane.b32.xlu0 %v10, 24
    %v12 = vpop.permute.xlu0 %11
    %vm13 = vcmask 261312
    %14 = vst.msk [vmem:[#allocation0] sm:$0x1] %vm13, %v12
    %s15 = scalar_lea.vmem [#allocation1], 2
    %v16 = vld [vmem:[%s15] sm:$0x1]
    %17 = vrot.lane.b32.xlu0 %v16, 16
    %v18 = vpop.permute.xlu0 %17
    %vm19 = vcmask 195712
    %20 = vst.msk [vmem:[#allocation0] sm:$0x1] %vm19, %v18
    %s21 = scalar_lea.vmem [#allocation1], 1
    %v22 = vld [vmem:[%s21] sm:$0x1]
    %23 = vrot.lane.b32.xlu0 %v22, 8
    %v24 = vpop.permute.xlu0 %23
    %vm25 = vcmask 130112
    %26 = vst.msk [vmem:[#allocation0] sm:$0x1] %vm25, %v24
    %s28 = sshllo.u32 0, 1
    %v30 = vld [vmem:[#allocation0] sm:%s28]
    %s31 = sshllo.u32 0, 1
    %32 = vst [vmem:[%s1] sm:%s31] %v30

// kernel: dual_stream_unet.54
$region0: #{dual_stream_unet.54}
  #allocation0 [shape = 'u32[]', space=smem, size = 0x4, offset = 0x4, fixed_abs, tag = 'smem constant byte address 0x4 - core index']
  #allocation1 [shape = 'u32[144,128]{1,0:T(1,128)}', space=vmem, size = 0x12000, scoped, tag = 'internal scratch']
  %s0 = inlined_call_operand.vmem [shape: bf16[2,64,288], index: 0, kind: input, shape index: {}]
  %s1 = inlined_call_operand.vmem [shape: bf16[288,8], index: 1, kind: input, shape index: {}]
  %s2 = inlined_call_operand.vmem [shape: f32[1,8], index: 2, kind: input, shape index: {}]
  %s3 = inlined_call_operand.vmem [shape: f32[1,8], index: 3, kind: input, shape index: {}]
  %s4 = inlined_call_operand.vmem [shape: f32[2,64,8], index: 4, kind: output, shape index: {}]
  %s5 = sld [smem:[#allocation0]]
  $region49: #{dual_stream_unet.54} parent=0
    _
  %s7 = ssub.s32 1, %s5
  %s8 = scalar_select 0, %s7, %s5
  loop: start=0, step=1, limit=4
  $region2: #{dual_stream_unet.54} parent=0 // loop_pre_header
    _
  $region3: #{dual_stream_unet.54} parent=0 // loop_header
    %s10 = sphi 0, %s14
    %p11 = scmp.ge.s32.totalorder %s10, 4
    %s17 = sphi 0, %s29
    %s18 = sphi 0, %s25
    %s19 = sphi 0, %s17
    %s20 = sphi 0, %s18
    %s21 = sphi 0, %s19
    %s22 = sphi 0, %s20
    %s34 = sphi 0, %s36
    %s37 = sphi 0, %s34
    %s38 = sphi 0, %s37
    %s54 = sphi 0, %s38
    %s58 = sphi 0, %s58
    %s60 = sphi 0, %s58
    %s61 = sphi 0, %s60
    %s75 = sphi 0, %s61
    %s79 = sphi 0, %s79
    %s81 = sphi 0, %s79
    %s82 = sphi 0, %s81
    %s96 = sphi 0, %s82
    %s100 = sphi 0, %s100
    %s102 = sphi 0, %s100
    %s103 = sphi 0, %s102
    %s117 = sphi 0, %s103
    %s125 = sphi 0, %s127
    %s128 = sphi 0, %s125
    %s129 = sphi 0, %s128
    %s145 = sphi 0, %s129
  $region4: #{dual_stream_unet.54} parent=0 // loop_header_branch
    %13 = sbr.rel (%p11) target = $region8
  $region5: #{dual_stream_unet.54} parent=0 // loop_body
    %s15 = ssub.s32 %s10, 1
    %s16 = ssub.s32 %s10, 2
    %s23 = sadd.s32 1, %s18
    %p24 = scmp.ge.s32.totalorder %s23, 1
    %s25 = scalar_select %p24, 0, %s23
    %s26 = sadd.s32 1, %s17
    %s27 = scalar_select %p24, %s26, %s17
    %p28 = scmp.ge.s32.totalorder %s27, 2
    %s29 = scalar_select %p28, 0, %s27
    %s30 = ssub.s32 %s17, %s29
    %s31 = ssub.s32 %s18, %s25
    %s32 = sor.u32 %s30, %s31
    %p33 = scmp.eq.s32.totalorder %s32, 0
    %s35 = sadd.s32 %s34, 1
    %s36 = scalar_select %p33, %s34, %s35
    %p39 = pneg %p33
    %p40 = scmp.eq.s32.totalorder %s10, 1
    %p41 = por %p39, %p40
    %p42 = scmp.ne.s32.totalorder %s34, %s37
    %p43 = scmp.eq.s32.totalorder %s10, 0
    %p44 = por %p42, %p43
    %p45 = scmp.ne.s32.totalorder %s34, %s37
    %p46 = scmp.eq.s32.totalorder %s15, 1
    %p47 = por %p45, %p46
    %p48 = scmp.ne.s32.totalorder %s37, %s38
    %p49 = scmp.eq.s32.totalorder %s15, 0
    %p50 = por %p48, %p49
    %p51 = scmp.ne.s32.totalorder %s37, %s38
    %p52 = scmp.eq.s32.totalorder %s16, 1
    %p53 = por %p51, %p52
    %p55 = scmp.ne.s32.totalorder %s38, %s54
    %p56 = scmp.eq.s32.totalorder %s16, 0
    %p57 = por %p55, %p56
    %s59 = sadd.s32 %s58, 1
    %p62 = scmp.eq.s32.totalorder %s10, 1
    %p63 = scmp.ne.s32.totalorder %s58, %s60
    %p64 = scmp.eq.s32.totalorder %s10, 0
    %p65 = por %p63, %p64
    %p66 = scmp.ne.s32.totalorder %s58, %s60
    %p67 = scmp.eq.s32.totalorder %s15, 1
    %p68 = por %p66, %p67
    %p69 = scmp.ne.s32.totalorder %s60, %s61
    %p70 = scmp.eq.s32.totalorder %s15, 0
    %p71 = por %p69, %p70
    %p72 = scmp.ne.s32.totalorder %s60, %s61
    %p73 = scmp.eq.s32.totalorder %s16, 1
    %p74 = por %p72, %p73
    %p76 = scmp.ne.s32.totalorder %s61, %s75
    %p77 = scmp.eq.s32.totalorder %s16, 0
    %p78 = por %p76, %p77
    %s80 = sadd.s32 %s79, 1
    %p83 = scmp.eq.s32.totalorder %s10, 1
    %p84 = scmp.ne.s32.totalorder %s79, %s81
    %p85 = scmp.eq.s32.totalorder %s10, 0
    %p86 = por %p84, %p85
    %p87 = scmp.ne.s32.totalorder %s79, %s81
    %p88 = scmp.eq.s32.totalorder %s15, 1
    %p89 = por %p87, %p88
    %p90 = scmp.ne.s32.totalorder %s81, %s82
    %p91 = scmp.eq.s32.totalorder %s15, 0
    %p92 = por %p90, %p91
    %p93 = scmp.ne.s32.totalorder %s81, %s82
    %p94 = scmp.eq.s32.totalorder %s16, 1
    %p95 = por %p93, %p94
    %p97 = scmp.ne.s32.totalorder %s82, %s96
    %p98 = scmp.eq.s32.totalorder %s16, 0
    %p99 = por %p97, %p98
    %s101 = sadd.s32 %s100, 1
    %p104 = scmp.eq.s32.totalorder %s10, 1
    %p105 = scmp.ne.s32.totalorder %s100, %s102
    %p106 = scmp.eq.s32.totalorder %s10, 0
    %p107 = por %p105, %p106
    %p108 = scmp.ne.s32.totalorder %s100, %s102
    %p109 = scmp.eq.s32.totalorder %s15, 1
    %p110 = por %p108, %p109
    %p111 = scmp.ne.s32.totalorder %s102, %s103
    %p112 = scmp.eq.s32.totalorder %s15, 0
    %p113 = por %p111, %p112
    %p114 = scmp.ne.s32.totalorder %s102, %s103
    %p115 = scmp.eq.s32.totalorder %s16, 1
    %p116 = por %p114, %p115
    %p118 = scmp.ne.s32.totalorder %s103, %s117
    %p119 = scmp.eq.s32.totalorder %s16, 0
    %p120 = por %p118, %p119
    %s121 = ssub.s32 %s17, %s29
    %s122 = ssub.s32 %s18, %s25
    %s123 = sor.u32 %s121, %s122
    %p124 = scmp.eq.s32.totalorder %s123, 0
    %s126 = sadd.s32 %s125, 1
    %s127 = scalar_select %p124, %s125, %s126
    %p130 = pneg %p124
    %p131 = scmp.eq.s32.totalorder %s10, 1
    %p132 = por %p130, %p131
    %p133 = scmp.ne.s32.totalorder %s125, %s128
    %p134 = scmp.eq.s32.totalorder %s10, 0
    %p135 = por %p133, %p134
    %p136 = scmp.ne.s32.totalorder %s125, %s128
    %p137 = scmp.eq.s32.totalorder %s15, 1
    %p138 = por %p136, %p137
    %p139 = scmp.ne.s32.totalorder %s128, %s129
    %p140 = scmp.eq.s32.totalorder %s15, 0
    %p141 = por %p139, %p140
    %p142 = scmp.ne.s32.totalorder %s128, %s129
    %p143 = scmp.eq.s32.totalorder %s16, 1
    %p144 = por %p142, %p143
    %p146 = scmp.ne.s32.totalorder %s129, %s145
    %p147 = scmp.eq.s32.totalorder %s16, 0
    %p148 = por %p146, %p147
    %p149 = scmp.le.s32.totalorder 1, %s10
    %p150 = scmp.lt.s32.totalorder %s10, 3
    %p151 = pnand %p149, %p150
    %p152 = pneg %p151
    // Predicated region
    $region9: #{dual_stream_unet.54} parent=5 // pred_check
      _
    $region10: #{dual_stream_unet.54} parent=5 // pred_check_branch
      %154 = sbr.rel (%p151) target = $region12
    $region11: #{dual_stream_unet.54} parent=5 // pred_region
      %s155 = ssub.s32 %s10, 1
      // Predicated region
      $region13: #{dual_stream_unet.54} parent=11 // pred_check
        %p156 = pneg %p71
      $region14: #{dual_stream_unet.54} parent=11 // pred_check_branch
        %158 = sbr.rel (%p156) target = $region16
      $region15: #{dual_stream_unet.54} parent=11 // pred_region
        _
      $region16: #{dual_stream_unet.54} parent=11 // pred_fallthru
        _
      // Predicated region
      $region17: #{dual_stream_unet.54} parent=11 // pred_check
        %p159 = pneg %p92
      $region18: #{dual_stream_unet.54} parent=11 // pred_check_branch
        %161 = sbr.rel (%p159) target = $region20
      $region19: #{dual_stream_unet.54} parent=11 // pred_region
        _
      $region20: #{dual_stream_unet.54} parent=11 // pred_fallthru
        _
      // Predicated region
      $region21: #{dual_stream_unet.54} parent=11 // pred_check
        %p162 = pneg %p113
      $region22: #{dual_stream_unet.54} parent=11 // pred_check_branch
        %164 = sbr.rel (%p162) target = $region24
      $region23: #{dual_stream_unet.54} parent=11 // pred_region
        _
      $region24: #{dual_stream_unet.54} parent=11 // pred_fallthru
        _
    $region12: #{dual_stream_unet.54} parent=5 // pred_fallthru
      _
    %p165 = scmp.lt.s32.totalorder %s10, 2
    // Predicated region
    $region25: #{dual_stream_unet.54} parent=5 // pred_check
      %p166 = pneg %p165
    $region26: #{dual_stream_unet.54} parent=5 // pred_check_branch
      %168 = sbr.rel (%p166) target = $region28
    $region27: #{dual_stream_unet.54} parent=5 // pred_region
      // Predicated region
      $region29: #{dual_stream_unet.54} parent=27 // pred_check
        %p169 = pneg %p44
      $region30: #{dual_stream_unet.54} parent=27 // pred_check_branch
        %171 = sbr.rel (%p169) target = $region32
      $region31: #{dual_stream_unet.54} parent=27 // pred_region
        %s172 = smul.u32 8, %s18
        %p173 = scmp.lt.s32.totalorder %s17, 1
        %s174 = scalar_select %p173, %s17, 1
        %p175 = scmp.lt.s32.totalorder %s172, 7
        %s176 = scalar_select %p175, %s172, 7
        %s177 = smul.addr %s176, 3
        %s178 = smul.addr %s174, 24
        %s179 = sadd.s32 %s177, %s178
        %s180 = smul.addr %s179, 4
        %s181 = scalar_lea.vmem %s0, %s180
        %s182 = smul.u32 8, %s18
      $region32: #{dual_stream_unet.54} parent=27 // pred_fallthru
        _
    $region28: #{dual_stream_unet.54} parent=5 // pred_fallthru
      _
    %p183 = scmp.le.s32.totalorder 1, %s10
    %p184 = scmp.lt.s32.totalorder %s10, 3
    %p185 = pnand %p183, %p184
    %p186 = pneg %p185
    // Predicated region
    $region33: #{dual_stream_unet.54} parent=5 // pred_check
      _
    $region34: #{dual_stream_unet.54} parent=5 // pred_check_branch
      %188 = sbr.rel (%p185) target = $region36
    $region35: #{dual_stream_unet.54} parent=5 // pred_region
      %s189 = ssub.s32 %s10, 1
      %s190 = smul.u32 8, %s20
      %p191 = scmp.lt.s32.totalorder %s19, 1
      %s192 = scalar_select %p191, %s19, 1
      %p193 = scmp.lt.s32.totalorder %s190, 7
      %s194 = scalar_select %p193, %s190, 7
      %s195 = smul.addr %s194, 3
      %s196 = smul.addr %s192, 24
      %s197 = sadd.s32 %s195, %s196
      %s198 = smul.addr %s197, 4
      %s199 = scalar_lea.vmem %s0, %s198
      %p200 = pneg %p50
      %p201 = pneg %p47
      %p202 = pneg %p71
      %p203 = pneg %p68
      %p204 = pneg %p92
      %p205 = pneg %p89
      %p206 = pneg %p113
      %p207 = pneg %p110
      %p208 = pneg %p141
      %p209 = pneg %p138
      %s210 = smul.u32 8, %s20
      %p211 = scmp.lt.s32.totalorder %s19, 1
      %s212 = scalar_select %p211, %s19, 1
      %p213 = scmp.lt.s32.totalorder %s210, 7
      %s214 = scalar_select %p213, %s210, 7
      %s215 = smul.addr %s212, 8
      %s216 = sadd.s32 %s214, %s215
      %s217 = smul.addr %s216, 8
      %s218 = scalar_lea.vmem %s4, %s217
      %s219 = smul.u32 8, %s20
      %p220 = scmp.lt.s32.totalorder %s19, 1
      %s221 = scalar_select %p220, %s19, 1
      %p222 = scmp.lt.s32.totalorder %s219, 7
      %s223 = scalar_select %p222, %s219, 7
      %s224 = smul.addr %s223, 3
      %s225 = smul.addr %s221, 24
      %s226 = sadd.s32 %s224, %s225
      %s227 = smul.addr %s226, 4
      %s228 = scalar_lea.vmem %s0, %s227
      %s229 = smul.u32 8, %s20
      %s230 = smul.u32 8, %s20
      %p231 = scmp.lt.s32.totalorder %s19, 1
      %s232 = scalar_select %p231, %s19, 1
      %p233 = scmp.lt.s32.totalorder %s230, 7
      %s234 = scalar_select %p233, %s230, 7
      %s235 = smul.addr %s232, 8
      %s236 = sadd.s32 %s234, %s235
      %s237 = smul.addr %s236, 8
      %s238 = scalar_lea.vmem %s4, %s237
      %s239 = smul.u32 8, %s20
      %v241 = vld [vmem:[%s228] sm:$0xff]
      %v242 = vld [vmem:[%s228 + $0x8] sm:$0xf]
      %v243 = vld [vmem:[%s228 + $0xc] sm:$0xff]
      %v244 = vld [vmem:[%s228 + $0x14] sm:$0xf]
      %v245 = vld [vmem:[%s228 + $0x18] sm:$0xff]
      %v246 = vld [vmem:[%s228 + $0x20] sm:$0xf]
      %v247 = vld [vmem:[%s228 + $0x24] sm:$0xff]
      %v248 = vld [vmem:[%s228 + $0x2c] sm:$0xf]
      %v249 = vld [vmem:[%s228 + $0x30] sm:$0xff]
      %v250 = vld [vmem:[%s228 + $0x38] sm:$0xf]
      %v251 = vld [vmem:[%s228 + $0x3c] sm:$0xff]
      %v252 = vld [vmem:[%s228 + $0x44] sm:$0xf]
      %v253 = vld [vmem:[%s228 + $0x48] sm:$0xff]
      %v254 = vld [vmem:[%s228 + $0x50] sm:$0xf]
      %v255 = vld [vmem:[%s228 + $0x54] sm:$0xff]
      %v256 = vld [vmem:[%s228 + $0x5c] sm:$0xf]
      %v257 = vld [vmem:[%s1] sm:$0xf]
      %v258 = vld [vmem:[%s1 + $0x4] sm:$0xf]
      %v259 = vld [vmem:[%s1 + $0x8] sm:$0xf]
      %v260 = vld [vmem:[%s1 + $0xc] sm:$0xf]
      %v261 = vld [vmem:[%s1 + $0x10] sm:$0xf]
      %v262 = vld [vmem:[%s1 + $0x14] sm:$0xf]
      %v263 = vld [vmem:[%s1 + $0x18] sm:$0xf]
      %v264 = vld [vmem:[%s1 + $0x1c] sm:$0xf]
      %v265 = vld [vmem:[%s1 + $0x20] sm:$0xf]
      %v266 = vld [vmem:[%s1 + $0x24] sm:$0xf]
      %v267 = vld [vmem:[%s1 + $0x28] sm:$0xf]
      %v268 = vld [vmem:[%s1 + $0x2c] sm:$0xf]
      %v269 = vld [vmem:[%s1 + $0x30] sm:$0xf]
      %v270 = vld [vmem:[%s1 + $0x34] sm:$0xf]
      %v271 = vld [vmem:[%s1 + $0x38] sm:$0xf]
      %v272 = vld [vmem:[%s1 + $0x3c] sm:$0xf]
      %v273 = vld [vmem:[%s1 + $0x40] sm:$0xf]
      %v274 = vld [vmem:[%s1 + $0x44] sm:$0xf]
      %v275 = vld [vmem:[%s1 + $0x48] sm:$0xf]
      %v276 = vld [vmem:[%s1 + $0x4c] sm:$0xf]
      %v277 = vld [vmem:[%s1 + $0x50] sm:$0xf]
      %v278 = vld [vmem:[%s1 + $0x54] sm:$0xf]
      %v279 = vld [vmem:[%s1 + $0x58] sm:$0xf]
      %v280 = vld [vmem:[%s1 + $0x5c] sm:$0xf]
      %v281 = vld [vmem:[%s1 + $0x60] sm:$0xf]
      %v282 = vld [vmem:[%s1 + $0x64] sm:$0xf]
      %v283 = vld [vmem:[%s1 + $0x68] sm:$0xf]
      %v284 = vld [vmem:[%s1 + $0x6c] sm:$0xf]
      %v285 = vld [vmem:[%s1 + $0x70] sm:$0xf]
      %v286 = vld [vmem:[%s1 + $0x74] sm:$0xf]
      %v287 = vld [vmem:[%s1 + $0x78] sm:$0xf]
      %v288 = vld [vmem:[%s1 + $0x7c] sm:$0xf]
      %v289 = vld [vmem:[%s1 + $0x80] sm:$0xf]
      %v290 = vld [vmem:[%s1 + $0x84] sm:$0xf]
      %v291 = vld [vmem:[%s1 + $0x88] sm:$0xf]
      %v292 = vld [vmem:[%s1 + $0x8c] sm:$0xf]
      %v309 = vunpack.c.l.b16 %v241
      %v310 = vunpack.c.h.b16 %v241
      %v311 = vunpack.c.l.b16 %v242
      %v312 = vunpack.c.l.b16 %v243
      %v313 = vunpack.c.h.b16 %v243
      %v314 = vunpack.c.l.b16 %v244
      %v315 = vunpack.c.l.b16 %v245
      %v316 = vunpack.c.h.b16 %v245
      %v317 = vunpack.c.l.b16 %v246
      %v318 = vunpack.c.l.b16 %v247
      %v319 = vunpack.c.h.b16 %v247
      %v320 = vunpack.c.l.b16 %v248
      %v321 = vunpack.c.l.b16 %v249
      %v322 = vunpack.c.h.b16 %v249
      %v323 = vunpack.c.l.b16 %v250
      %v324 = vunpack.c.l.b16 %v251
      %v325 = vunpack.c.h.b16 %v251
      %v326 = vunpack.c.l.b16 %v252
      %v327 = vunpack.c.l.b16 %v253
      %v328 = vunpack.c.h.b16 %v253
      %v329 = vunpack.c.l.b16 %v254
      %v330 = vunpack.c.l.b16 %v255
      %v331 = vunpack.c.h.b16 %v255
      %v332 = vunpack.c.l.b16 %v256
      %v333 = vpack.c.b16 %v312, %v309
      %v334 = vpack.c.b16 %v313, %v310
      %v335 = vpack.c.b16 %v314, %v311
      %v336 = vpack.c.b16 %v318, %v315
      %v337 = vpack.c.b16 %v319, %v316
      %v338 = vpack.c.b16 %v320, %v317
      %v339 = vpack.c.b16 %v324, %v321
      %v340 = vpack.c.b16 %v325, %v322
      %v341 = vpack.c.b16 %v326, %v323
      %v342 = vpack.c.b16 %v330, %v327
      %v343 = vpack.c.b16 %v331, %v328
      %v344 = vpack.c.b16 %v332, %v329
      %v389 = vunpack.c.l.b16 %v257
      %v390 = vunpack.c.l.b16 %v258
      %v391 = vunpack.c.l.b16 %v259
      %v392 = vunpack.c.l.b16 %v260
      %v393 = vunpack.c.l.b16 %v261
      %v394 = vunpack.c.l.b16 %v262
      %v395 = vunpack.c.l.b16 %v263
      %v396 = vunpack.c.l.b16 %v264
      %v397 = vunpack.c.l.b16 %v265
      %v398 = vunpack.c.l.b16 %v266
      %v399 = vunpack.c.l.b16 %v267
      %v400 = vunpack.c.l.b16 %v268
      %v401 = vunpack.c.l.b16 %v269
      %v402 = vunpack.c.l.b16 %v270
      %v403 = vunpack.c.l.b16 %v271
      %v404 = vunpack.c.l.b16 %v272
      %v405 = vunpack.c.l.b16 %v273
      %v406 = vunpack.c.l.b16 %v274
      %v407 = vunpack.c.l.b16 %v275
      %v408 = vunpack.c.l.b16 %v276
      %v409 = vunpack.c.l.b16 %v277
      %v410 = vunpack.c.l.b16 %v278
      %v411 = vunpack.c.l.b16 %v279
      %v412 = vunpack.c.l.b16 %v280
      %v413 = vunpack.c.l.b16 %v281
      %v414 = vunpack.c.l.b16 %v282
      %v415 = vunpack.c.l.b16 %v283
      %v416 = vunpack.c.l.b16 %v284
      %v417 = vunpack.c.l.b16 %v285
      %v418 = vunpack.c.l.b16 %v286
      %v419 = vunpack.c.l.b16 %v287
      %v420 = vunpack.c.l.b16 %v288
      %v421 = vunpack.c.l.b16 %v289
      %v422 = vunpack.c.l.b16 %v290
      %v423 = vunpack.c.l.b16 %v291
      %v424 = vunpack.c.l.b16 %v292
      %v425 = vpack.c.b16 %v390, %v389
      %v426 = vpack.c.b16 %v392, %v391
      %v427 = vpack.c.b16 %v394, %v393
      %v428 = vpack.c.b16 %v396, %v395
      %v429 = vpack.c.b16 %v398, %v397
      %v430 = vpack.c.b16 %v400, %v399
      %v431 = vpack.c.b16 %v402, %v401
      %v432 = vpack.c.b16 %v404, %v403
      %v433 = vpack.c.b16 %v406, %v405
      %v434 = vpack.c.b16 %v408, %v407
      %v435 = vpack.c.b16 %v410, %v409
      %v436 = vpack.c.b16 %v412, %v411
      %v437 = vpack.c.b16 %v414, %v413
      %v438 = vpack.c.b16 %v416, %v415
      %v439 = vpack.c.b16 %v418, %v417
      %v440 = vpack.c.b16 %v420, %v419
      %v441 = vpack.c.b16 %v422, %v421
      %v442 = vpack.c.b16 %v424, %v423
      %vm461 = vcmask 261120
      %v463 = vsel %vm461, %v335, 0
      %v466 = vsel %vm461, %v338, 0
      %v469 = vsel %vm461, %v341, 0
      %v472 = vsel %vm461, %v344, 0
      %474 = vmatprep.subr.bf16.mxu0 0
      %475 = vmatpush1.bf16.msra.mxu0 %v425
      %476 = vmatprep.subr.bf16.mxu0 0
      %477 = vmatpush1.bf16.msra.mxu0 %v426
      %478 = vmatprep.subr.bf16.mxu0 0
      %479 = vmatpush1.bf16.msra.mxu0 %v427
      %480 = vmatprep.subr.bf16.mxu0 0
      %481 = vmatpush1.bf16.msra.mxu0 %v428
      %482 = vmatprep.subr.bf16.mxu0 0
      %483 = vmatpush1.bf16.msra.mxu0 %v429
      %484 = vmatprep.subr.bf16.mxu0 0
      %485 = vmatpush1.bf16.msra.mxu0 %v430
      %486 = vmatprep.subr.bf16.mxu0 0
      %487 = vmatpush1.bf16.msra.mxu0 %v431
      %488 = vmatprep.subr.bf16.mxu0 0
      %489 = vmatpush1.bf16.msra.mxu0 %v432
      %490 = vmatprep.subr.bf16.mxu0 0
      %491 = vmatpush1.bf16.msra.mxu0 %v433
      %492 = vmatprep.subr.bf16.mxu0 0
      %493 = vmatpush1.bf16.msra.mxu0 %v434
      %494 = vmatprep.subr.bf16.mxu0 0
      %495 = vmatpush1.bf16.msra.mxu0 %v435
      %496 = vmatprep.subr.bf16.mxu0 0
      %497 = vmatpush1.bf16.msra.mxu0 %v436
      %498 = vmatprep.subr.bf16.mxu0 0
      %499 = vmatpush1.bf16.msra.mxu0 %v437
      %500 = vmatprep.subr.bf16.mxu0 0
      %501 = vmatpush1.bf16.msra.mxu0 %v438
      %502 = vmatprep.subr.bf16.mxu0 0
      %503 = vmatpush1.bf16.msra.mxu0 %v439
      %504 = vmatprep.subr.bf16.mxu0 0
      %505 = vmatpush1.bf16.msra.mxu0 %v440
      %506 = vmatprep.mubr.bf16.mxu0 %v334
      %507 = vmatmul.mubr.bf16.gmra.mrb[0].mxu0 %v333
      %v508 = vpop.f32.mrb[0].mxu0
      %v509 = vadd.f32 0.0, %v508
      %v510 = vpop.f32.mrb[0].mxu0
      %v511 = vpop.f32.mrb[0].mxu0
      %v512 = vadd.f32 0.0, %v511
      %v513 = vpop.f32.mrb[0].mxu0
      %514 = vmatprep.mubr.bf16.mxu0 %v337
      %515 = vmatmul.mubr.bf16.gmra.mrb[0].mxu0 %v336
      %v516 = vpop.f32.mrb[0].mxu0
      %v517 = vadd.f32 0.0, %v516
      %v518 = vpop.f32.mrb[0].mxu0
      %v519 = vpop.f32.mrb[0].mxu0
      %v520 = vadd.f32 0.0, %v519
      %v521 = vpop.f32.mrb[0].mxu0
      %522 = vmatprep.mubr.bf16.mxu0 %v340
      %523 = vmatmul.mubr.bf16.gmra.mrb[0].mxu0 %v339
      %v524 = vpop.f32.mrb[0].mxu0
      %v525 = vadd.f32 0.0, %v524
      %v526 = vpop.f32.mrb[0].mxu0
      %v527 = vpop.f32.mrb[0].mxu0
      %v528 = vadd.f32 0.0, %v527
      %v529 = vpop.f32.mrb[0].mxu0
      %530 = vmatprep.mubr.bf16.mxu0 %v343
      %531 = vmatmul.mubr.bf16.gmra.mrb[0].mxu0 %v342
      %v532 = vpop.f32.mrb[0].mxu0
      %v533 = vadd.f32 0.0, %v532
      %v534 = vpop.f32.mrb[0].mxu0
      %v535 = vpop.f32.mrb[0].mxu0
      %v536 = vadd.f32 0.0, %v535
      %v537 = vpop.f32.mrb[0].mxu0
      %538 = vdwg.mxu0
      %539 = vmatprep.subr.bf16.mxu0 0
      %540 = vmatpush1.bf16.msra.mxu0 %v441
      %541 = vmatprep.subr.bf16.mxu0 0
      %542 = vmatpush1.bf16.msra.mxu0 %v442
      %543 = vmatprep.subr.bf16.mxu0 0
      %544 = vmatpush1.bf16.msra.mxu0 0
      %545 = vmatprep.subr.bf16.mxu0 0
      %546 = vmatpush1.bf16.msra.mxu0 0
      %547 = vmatprep.subr.bf16.mxu0 0
      %548 = vmatpush1.bf16.msra.mxu0 0
      %549 = vmatprep.subr.bf16.mxu0 0
      %550 = vmatpush1.bf16.msra.mxu0 0
      %551 = vmatprep.subr.bf16.mxu0 0
      %552 = vmatpush1.bf16.msra.mxu0 0
      %553 = vmatprep.subr.bf16.mxu0 0
      %554 = vmatpush1.bf16.msra.mxu0 0
      %555 = vmatprep.subr.bf16.mxu0 0
      %556 = vmatpush1.bf16.msra.mxu0 0
      %557 = vmatprep.subr.bf16.mxu0 0
      %558 = vmatpush1.bf16.msra.mxu0 0
      %559 = vmatprep.subr.bf16.mxu0 0
      %560 = vmatpush1.bf16.msra.mxu0 0
      %561 = vmatprep.subr.bf16.mxu0 0
      %562 = vmatpush1.bf16.msra.mxu0 0
      %563 = vmatprep.subr.bf16.mxu0 0
      %564 = vmatpush1.bf16.msra.mxu0 0
      %565 = vmatprep.subr.bf16.mxu0 0
      %566 = vmatpush1.bf16.msra.mxu0 0
      %567 = vmatprep.subr.bf16.mxu0 0
      %568 = vmatpush1.bf16.msra.mxu0 0
      %569 = vmatprep.subr.bf16.mxu0 0
      %570 = vmatpush1.bf16.msra.mxu0 0
      %571 = vmatprep.mubr.bf16.mxu0 0
      %572 = vmatmul.mubr.bf16.gmra.mrb[0].mxu0 %v463
      %v573 = vpop.f32.mrb[0].mxu0
      %v574 = vadd.f32 %v509, %v573
      %v575 = vpop.f32.mrb[0].mxu0
      %v576 = vpop.f32.mrb[0].mxu0
      %v577 = vadd.f32 %v512, %v576
      %v578 = vpop.f32.mrb[0].mxu0
      %579 = vmatprep.mubr.bf16.mxu0 0
      %580 = vmatmul.mubr.bf16.gmra.mrb[0].mxu0 %v466
      %v581 = vpop.f32.mrb[0].mxu0
      %v582 = vadd.f32 %v517, %v581
      %v583 = vpop.f32.mrb[0].mxu0
      %v584 = vpop.f32.mrb[0].mxu0
      %v585 = vadd.f32 %v520, %v584
      %v586 = vpop.f32.mrb[0].mxu0
      %587 = vmatprep.mubr.bf16.mxu0 0
      %588 = vmatmul.mubr.bf16.gmra.mrb[0].mxu0 %v469
      %v589 = vpop.f32.mrb[0].mxu0
      %v590 = vadd.f32 %v525, %v589
      %v591 = vpop.f32.mrb[0].mxu0
      %v592 = vpop.f32.mrb[0].mxu0
      %v593 = vadd.f32 %v528, %v592
      %v594 = vpop.f32.mrb[0].mxu0
      %595 = vmatprep.mubr.bf16.mxu0 0
      %596 = vmatmul.mubr.bf16.gmra.mrb[0].mxu0 %v472
      %v597 = vpop.f32.mrb[0].mxu0
      %v598 = vadd.f32 %v533, %v597
      %v599 = vpop.f32.mrb[0].mxu0
      %v600 = vpop.f32.mrb[0].mxu0
      %v601 = vadd.f32 %v536, %v600
      %v602 = vpop.f32.mrb[0].mxu0
      %603 = vdwg.mxu0
      %v604 = vld [vmem:[%s2] sm:$0x1]
      %v606 = vlaneseq
      %v607 = vshrl.u32 %v606, 7
      %v608 = vsub.s32 0, %v607
      %v609 = vrot.slane %v604, %v608
      %v611 = vmul.f32 %v574, %v609
      %v612 = vmul.f32 %v577, %v609
      %v613 = vmul.f32 %v582, %v609
      %v614 = vmul.f32 %v585, %v609
      %v615 = vmul.f32 %v590, %v609
      %v616 = vmul.f32 %v593, %v609
      %v617 = vmul.f32 %v598, %v609
      %v618 = vmul.f32 %v601, %v609
      %v619 = vld [vmem:[%s3] sm:$0x1]
      %v621 = vlaneseq
      %v622 = vshrl.u32 %v621, 7
      %v623 = vsub.s32 0, %v622
      %v624 = vrot.slane %v619, %v623
      %v626 = vadd.f32 %v611, %v624
      %v627 = vadd.f32 %v612, %v624
      %v628 = vadd.f32 %v613, %v624
      %v629 = vadd.f32 %v614, %v624
      %v630 = vadd.f32 %v615, %v624
      %v631 = vadd.f32 %v616, %v624
      %v632 = vadd.f32 %v617, %v624
      %v633 = vadd.f32 %v618, %v624
      %v634 = vmax.f32 %v626, 0.0
      %v635 = vmax.f32 %v627, 0.0
      %v636 = vmax.f32 %v628, 0.0
      %v637 = vmax.f32 %v629, 0.0
      %v638 = vmax.f32 %v630, 0.0
      %v639 = vmax.f32 %v631, 0.0
      %v640 = vmax.f32 %v632, 0.0
      %v641 = vmax.f32 %v633, 0.0
      %vm642 = vcmask 64512
      %643 = vst.msk [vmem:[%s238] sm:$0xff] %vm642, %v634
      %644 = vst.msk [vmem:[%s238 + $0x8] sm:$0xff] %vm642, %v635
      %645 = vst.msk [vmem:[%s238 + $0x10] sm:$0xff] %vm642, %v636
      %646 = vst.msk [vmem:[%s238 + $0x18] sm:$0xff] %vm642, %v637
      %647 = vst.msk [vmem:[%s238 + $0x20] sm:$0xff] %vm642, %v638
      %648 = vst.msk [vmem:[%s238 + $0x28] sm:$0xff] %vm642, %v639
      %649 = vst.msk [vmem:[%s238 + $0x30] sm:$0xff] %vm642, %v640
      %650 = vst.msk [vmem:[%s238 + $0x38] sm:$0xff] %vm642, %v641
      %s651 = smul.u32 8, %s20
      %p652 = scmp.lt.s32.totalorder %s19, 1
      %s653 = scalar_select %p652, %s19, 1
      %p654 = scmp.lt.s32.totalorder %s651, 7
      %s655 = scalar_select %p654, %s651, 7
      %s656 = smul.addr %s653, 8
      %s657 = sadd.s32 %s655, %s656
      %s658 = smul.addr %s657, 8
      %s659 = scalar_lea.vmem %s4, %s658
      // Predicated region
      $region37: #{dual_stream_unet.54} parent=35 // pred_check
        %p660 = pneg %p138
      $region38: #{dual_stream_unet.54} parent=35 // pred_check_branch
        %662 = sbr.rel (%p660) target = $region40
      $region39: #{dual_stream_unet.54} parent=35 // pred_region
        %s663 = smul.u32 8, %s20
      $region40: #{dual_stream_unet.54} parent=35 // pred_fallthru
        _
    $region36: #{dual_stream_unet.54} parent=5 // pred_fallthru
      _
    %p664 = scmp.le.s32.totalorder 2, %s10
    // Predicated region
    $region41: #{dual_stream_unet.54} parent=5 // pred_check
      %p665 = pneg %p664
    $region42: #{dual_stream_unet.54} parent=5 // pred_check_branch
      %667 = sbr.rel (%p665) target = $region44
    $region43: #{dual_stream_unet.54} parent=5 // pred_region
      %s668 = ssub.s32 %s10, 2
      // Predicated region
      $region45: #{dual_stream_unet.54} parent=43 // pred_check
        %p669 = pneg %p144
      $region46: #{dual_stream_unet.54} parent=43 // pred_check_branch
        %671 = sbr.rel (%p669) target = $region48
      $region47: #{dual_stream_unet.54} parent=43 // pred_region
        %s672 = smul.u32 8, %s22
        %p673 = scmp.lt.s32.totalorder %s21, 1
        %s674 = scalar_select %p673, %s21, 1
        %p675 = scmp.lt.s32.totalorder %s672, 7
        %s676 = scalar_select %p675, %s672, 7
        %s677 = smul.addr %s674, 8
        %s678 = sadd.s32 %s676, %s677
        %s679 = smul.addr %s678, 8
        %s680 = scalar_lea.vmem %s4, %s679
      $region48: #{dual_stream_unet.54} parent=43 // pred_fallthru
        _
    $region44: #{dual_stream_unet.54} parent=5 // pred_fallthru
      _
  $region6: #{dual_stream_unet.54} parent=0 // loop_footer
    %s14 = sadd.s32 1, %s10
  $region7: #{dual_stream_unet.54} parent=0 // loop_footer_branch
    %9 = sbr.rel target = $region3
  $region8: #{dual_stream_unet.54} parent=0 // loop_exit
    _

// kernel: dual_stream_unet.55
$region0: #{dual_stream_unet.55}
  #allocation0 [shape = 'u32[]', space=smem, size = 0x4, offset = 0x4, fixed_abs, tag = 'smem constant byte address 0x4 - core index']
  #allocation1 [shape = 'u32[144,128]{1,0:T(1,128)}', space=vmem, size = 0x12000, scoped, tag = 'internal scratch']
  %s0 = inlined_call_operand.vmem [shape: bf16[2,64,72], index: 0, kind: input, shape index: {}]
  %s1 = inlined_call_operand.vmem [shape: bf16[72,8], index: 1, kind: input, shape index: {}]
  %s2 = inlined_call_operand.vmem [shape: f32[1,8], index: 2, kind: input, shape index: {}]
  %s3 = inlined_call_operand.vmem [shape: f32[1,8], index: 3, kind: input, shape index: {}]
  %s4 = inlined_call_operand.vmem [shape: f32[2,64,8], index: 4, kind: output, shape index: {}]
  %s5 = sld [smem:[#allocation0]]
  $region49: #{dual_stream_unet.55} parent=0
    _
  %s7 = ssub.s32 1, %s5
  %s8 = scalar_select 0, %s7, %s5
  loop: start=0, step=1, limit=4
  $region2: #{dual_stream_unet.55} parent=0 // loop_pre_header
    _
  $region3: #{dual_stream_unet.55} parent=0 // loop_header
    %s10 = sphi 0, %s14
    %p11 = scmp.ge.s32.totalorder %s10, 4
    %s17 = sphi 0, %s29
    %s18 = sphi 0, %s25
    %s19 = sphi 0, %s17
    %s20 = sphi 0, %s18
    %s21 = sphi 0, %s19
    %s22 = sphi 0, %s20
    %s34 = sphi 0, %s36
    %s37 = sphi 0, %s34
    %s38 = sphi 0, %s37
    %s54 = sphi 0, %s38
    %s58 = sphi 0, %s58
    %s60 = sphi 0, %s58
    %s61 = sphi 0, %s60
    %s75 = sphi 0, %s61
    %s79 = sphi 0, %s79
    %s81 = sphi 0, %s79
    %s82 = sphi 0, %s81
    %s96 = sphi 0, %s82
    %s100 = sphi 0, %s100
    %s102 = sphi 0, %s100
    %s103 = sphi 0, %s102
    %s117 = sphi 0, %s103
    %s125 = sphi 0, %s127
    %s128 = sphi 0, %s125
    %s129 = sphi 0, %s128
    %s145 = sphi 0, %s129
  $region4: #{dual_stream_unet.55} parent=0 // loop_header_branch
    %13 = sbr.rel (%p11) target = $region8
  $region5: #{dual_stream_unet.55} parent=0 // loop_body
    %s15 = ssub.s32 %s10, 1
    %s16 = ssub.s32 %s10, 2
    %s23 = sadd.s32 1, %s18
    %p24 = scmp.ge.s32.totalorder %s23, 1
    %s25 = scalar_select %p24, 0, %s23
    %s26 = sadd.s32 1, %s17
    %s27 = scalar_select %p24, %s26, %s17
    %p28 = scmp.ge.s32.totalorder %s27, 2
    %s29 = scalar_select %p28, 0, %s27
    %s30 = ssub.s32 %s17, %s29
    %s31 = ssub.s32 %s18, %s25
    %s32 = sor.u32 %s30, %s31
    %p33 = scmp.eq.s32.totalorder %s32, 0
    %s35 = sadd.s32 %s34, 1
    %s36 = scalar_select %p33, %s34, %s35
    %p39 = pneg %p33
    %p40 = scmp.eq.s32.totalorder %s10, 1
    %p41 = por %p39, %p40
    %p42 = scmp.ne.s32.totalorder %s34, %s37
    %p43 = scmp.eq.s32.totalorder %s10, 0
    %p44 = por %p42, %p43
    %p45 = scmp.ne.s32.totalorder %s34, %s37
    %p46 = scmp.eq.s32.totalorder %s15, 1
    %p47 = por %p45, %p46
    %p48 = scmp.ne.s32.totalorder %s37, %s38
    %p49 = scmp.eq.s32.totalorder %s15, 0
    %p50 = por %p48, %p49
    %p51 = scmp.ne.s32.totalorder %s37, %s38
    %p52 = scmp.eq.s32.totalorder %s16, 1
    %p53 = por %p51, %p52
    %p55 = scmp.ne.s32.totalorder %s38, %s54
    %p56 = scmp.eq.s32.totalorder %s16, 0
    %p57 = por %p55, %p56
    %s59 = sadd.s32 %s58, 1
    %p62 = scmp.eq.s32.totalorder %s10, 1
    %p63 = scmp.ne.s32.totalorder %s58, %s60
    %p64 = scmp.eq.s32.totalorder %s10, 0
    %p65 = por %p63, %p64
    %p66 = scmp.ne.s32.totalorder %s58, %s60
    %p67 = scmp.eq.s32.totalorder %s15, 1
    %p68 = por %p66, %p67
    %p69 = scmp.ne.s32.totalorder %s60, %s61
    %p70 = scmp.eq.s32.totalorder %s15, 0
    %p71 = por %p69, %p70
    %p72 = scmp.ne.s32.totalorder %s60, %s61
    %p73 = scmp.eq.s32.totalorder %s16, 1
    %p74 = por %p72, %p73
    %p76 = scmp.ne.s32.totalorder %s61, %s75
    %p77 = scmp.eq.s32.totalorder %s16, 0
    %p78 = por %p76, %p77
    %s80 = sadd.s32 %s79, 1
    %p83 = scmp.eq.s32.totalorder %s10, 1
    %p84 = scmp.ne.s32.totalorder %s79, %s81
    %p85 = scmp.eq.s32.totalorder %s10, 0
    %p86 = por %p84, %p85
    %p87 = scmp.ne.s32.totalorder %s79, %s81
    %p88 = scmp.eq.s32.totalorder %s15, 1
    %p89 = por %p87, %p88
    %p90 = scmp.ne.s32.totalorder %s81, %s82
    %p91 = scmp.eq.s32.totalorder %s15, 0
    %p92 = por %p90, %p91
    %p93 = scmp.ne.s32.totalorder %s81, %s82
    %p94 = scmp.eq.s32.totalorder %s16, 1
    %p95 = por %p93, %p94
    %p97 = scmp.ne.s32.totalorder %s82, %s96
    %p98 = scmp.eq.s32.totalorder %s16, 0
    %p99 = por %p97, %p98
    %s101 = sadd.s32 %s100, 1
    %p104 = scmp.eq.s32.totalorder %s10, 1
    %p105 = scmp.ne.s32.totalorder %s100, %s102
    %p106 = scmp.eq.s32.totalorder %s10, 0
    %p107 = por %p105, %p106
    %p108 = scmp.ne.s32.totalorder %s100, %s102
    %p109 = scmp.eq.s32.totalorder %s15, 1
    %p110 = por %p108, %p109
    %p111 = scmp.ne.s32.totalorder %s102, %s103
    %p112 = scmp.eq.s32.totalorder %s15, 0
    %p113 = por %p111, %p112
    %p114 = scmp.ne.s32.totalorder %s102, %s103
    %p115 = scmp.eq.s32.totalorder %s16, 1
    %p116 = por %p114, %p115
    %p118 = scmp.ne.s32.totalorder %s103, %s117
    %p119 = scmp.eq.s32.totalorder %s16, 0
    %p120 = por %p118, %p119
    %s121 = ssub.s32 %s17, %s29
    %s122 = ssub.s32 %s18, %s25
    %s123 = sor.u32 %s121, %s122
    %p124 = scmp.eq.s32.totalorder %s123, 0
    %s126 = sadd.s32 %s125, 1
    %s127 = scalar_select %p124, %s125, %s126
    %p130 = pneg %p124
    %p131 = scmp.eq.s32.totalorder %s10, 1
    %p132 = por %p130, %p131
    %p133 = scmp.ne.s32.totalorder %s125, %s128
    %p134 = scmp.eq.s32.totalorder %s10, 0
    %p135 = por %p133, %p134
    %p136 = scmp.ne.s32.totalorder %s125, %s128
    %p137 = scmp.eq.s32.totalorder %s15, 1
    %p138 = por %p136, %p137
    %p139 = scmp.ne.s32.totalorder %s128, %s129
    %p140 = scmp.eq.s32.totalorder %s15, 0
    %p141 = por %p139, %p140
    %p142 = scmp.ne.s32.totalorder %s128, %s129
    %p143 = scmp.eq.s32.totalorder %s16, 1
    %p144 = por %p142, %p143
    %p146 = scmp.ne.s32.totalorder %s129, %s145
    %p147 = scmp.eq.s32.totalorder %s16, 0
    %p148 = por %p146, %p147
    %p149 = scmp.le.s32.totalorder 1, %s10
    %p150 = scmp.lt.s32.totalorder %s10, 3
    %p151 = pnand %p149, %p150
    %p152 = pneg %p151
    // Predicated region
    $region9: #{dual_stream_unet.55} parent=5 // pred_check
      _
    $region10: #{dual_stream_unet.55} parent=5 // pred_check_branch
      %154 = sbr.rel (%p151) target = $region12
    $region11: #{dual_stream_unet.55} parent=5 // pred_region
      %s155 = ssub.s32 %s10, 1
      // Predicated region
      $region13: #{dual_stream_unet.55} parent=11 // pred_check
        %p156 = pneg %p71
      $region14: #{dual_stream_unet.55} parent=11 // pred_check_branch
        %158 = sbr.rel (%p156) target = $region16
      $region15: #{dual_stream_unet.55} parent=11 // pred_region
        _
      $region16: #{dual_stream_unet.55} parent=11 // pred_fallthru
        _
      // Predicated region
      $region17: #{dual_stream_unet.55} parent=11 // pred_check
        %p159 = pneg %p92
      $region18: #{dual_stream_unet.55} parent=11 // pred_check_branch
        %161 = sbr.rel (%p159) target = $region20
      $region19: #{dual_stream_unet.55} parent=11 // pred_region
        _
      $region20: #{dual_stream_unet.55} parent=11 // pred_fallthru
        _
      // Predicated region
      $region21: #{dual_stream_unet.55} parent=11 // pred_check
        %p162 = pneg %p113
      $region22: #{dual_stream_unet.55} parent=11 // pred_check_branch
        %164 = sbr.rel (%p162) target = $region24
      $region23: #{dual_stream_unet.55} parent=11 // pred_region
        _
      $region24: #{dual_stream_unet.55} parent=11 // pred_fallthru
        _
    $region12: #{dual_stream_unet.55} parent=5 // pred_fallthru
      _
    %p165 = scmp.lt.s32.totalorder %s10, 2
    // Predicated region
    $region25: #{dual_stream_unet.55} parent=5 // pred_check
      %p166 = pneg %p165
    $region26: #{dual_stream_unet.55} parent=5 // pred_check_branch
      %168 = sbr.rel (%p166) target = $region28
    $region27: #{dual_stream_unet.55} parent=5 // pred_region
      // Predicated region
      $region29: #{dual_stream_unet.55} parent=27 // pred_check
        %p169 = pneg %p44
      $region30: #{dual_stream_unet.55} parent=27 // pred_check_branch
        %171 = sbr.rel (%p169) target = $region32
      $region31: #{dual_stream_unet.55} parent=27 // pred_region
        %s172 = smul.u32 8, %s18
        %p173 = scmp.lt.s32.totalorder %s17, 1
        %s174 = scalar_select %p173, %s17, 1
        %p175 = scmp.lt.s32.totalorder %s172, 7
        %s176 = scalar_select %p175, %s172, 7
        %s177 = smul.addr %s174, 8
        %s178 = sadd.s32 %s176, %s177
        %s179 = smul.addr %s178, 4
        %s180 = scalar_lea.vmem %s0, %s179
        %s181 = smul.u32 8, %s18
      $region32: #{dual_stream_unet.55} parent=27 // pred_fallthru
        _
    $region28: #{dual_stream_unet.55} parent=5 // pred_fallthru
      _
    %p182 = scmp.le.s32.totalorder 1, %s10
    %p183 = scmp.lt.s32.totalorder %s10, 3
    %p184 = pnand %p182, %p183
    %p185 = pneg %p184
    // Predicated region
    $region33: #{dual_stream_unet.55} parent=5 // pred_check
      _
    $region34: #{dual_stream_unet.55} parent=5 // pred_check_branch
      %187 = sbr.rel (%p184) target = $region36
    $region35: #{dual_stream_unet.55} parent=5 // pred_region
      %s188 = ssub.s32 %s10, 1
      %s189 = smul.u32 8, %s20
      %p190 = scmp.lt.s32.totalorder %s19, 1
      %s191 = scalar_select %p190, %s19, 1
      %p192 = scmp.lt.s32.totalorder %s189, 7
      %s193 = scalar_select %p192, %s189, 7
      %s194 = smul.addr %s191, 8
      %s195 = sadd.s32 %s193, %s194
      %s196 = smul.addr %s195, 4
      %s197 = scalar_lea.vmem %s0, %s196
      %p198 = pneg %p50
      %p199 = pneg %p47
      %p200 = pneg %p71
      %p201 = pneg %p68
      %p202 = pneg %p92
      %p203 = pneg %p89
      %p204 = pneg %p113
      %p205 = pneg %p110
      %p206 = pneg %p141
      %p207 = pneg %p138
      %s208 = smul.u32 8, %s20
      %p209 = scmp.lt.s32.totalorder %s19, 1
      %s210 = scalar_select %p209, %s19, 1
      %p211 = scmp.lt.s32.totalorder %s208, 7
      %s212 = scalar_select %p211, %s208, 7
      %s213 = smul.addr %s210, 8
      %s214 = sadd.s32 %s212, %s213
      %s215 = smul.addr %s214, 8
      %s216 = scalar_lea.vmem %s4, %s215
      %s217 = smul.u32 8, %s20
      %p218 = scmp.lt.s32.totalorder %s19, 1
      %s219 = scalar_select %p218, %s19, 1
      %p220 = scmp.lt.s32.totalorder %s217, 7
      %s221 = scalar_select %p220, %s217, 7
      %s222 = smul.addr %s219, 8
      %s223 = sadd.s32 %s221, %s222
      %s224 = smul.addr %s223, 4
      %s225 = scalar_lea.vmem %s0, %s224
      %s226 = smul.u32 8, %s20
      %s227 = smul.u32 8, %s20
      %p228 = scmp.lt.s32.totalorder %s19, 1
      %s229 = scalar_select %p228, %s19, 1
      %p230 = scmp.lt.s32.totalorder %s227, 7
      %s231 = scalar_select %p230, %s227, 7
      %s232 = smul.addr %s229, 8
      %s233 = sadd.s32 %s231, %s232
      %s234 = smul.addr %s233, 8
      %s235 = scalar_lea.vmem %s4, %s234
      %s236 = smul.u32 8, %s20
      %v238 = vld [vmem:[%s225] sm:$0xf]
      %v239 = vld [vmem:[%s225 + $0x4] sm:$0xf]
      %v240 = vld [vmem:[%s225 + $0x8] sm:$0xf]
      %v241 = vld [vmem:[%s225 + $0xc] sm:$0xf]
      %v242 = vld [vmem:[%s225 + $0x10] sm:$0xf]
      %v243 = vld [vmem:[%s225 + $0x14] sm:$0xf]
      %v244 = vld [vmem:[%s225 + $0x18] sm:$0xf]
      %v245 = vld [vmem:[%s225 + $0x1c] sm:$0xf]
      %v246 = vld [vmem:[%s1] sm:$0xf]
      %v247 = vld [vmem:[%s1 + $0x4] sm:$0xf]
      %v248 = vld [vmem:[%s1 + $0x8] sm:$0xf]
      %v249 = vld [vmem:[%s1 + $0xc] sm:$0xf]
      %v250 = vld [vmem:[%s1 + $0x10] sm:$0xf]
      %v251 = vld [vmem:[%s1 + $0x14] sm:$0xf]
      %v252 = vld [vmem:[%s1 + $0x18] sm:$0xf]
      %v253 = vld [vmem:[%s1 + $0x1c] sm:$0xf]
      %v254 = vld [vmem:[%s1 + $0x20] sm:$0xf]
      %v263 = vunpack.c.l.b16 %v238
      %v264 = vunpack.c.l.b16 %v239
      %v265 = vunpack.c.l.b16 %v240
      %v266 = vunpack.c.l.b16 %v241
      %v267 = vunpack.c.l.b16 %v242
      %v268 = vunpack.c.l.b16 %v243
      %v269 = vunpack.c.l.b16 %v244
      %v270 = vunpack.c.l.b16 %v245
      %v271 = vpack.c.b16 %v264, %v263
      %v272 = vpack.c.b16 %v266, %v265
      %v273 = vpack.c.b16 %v268, %v267
      %v274 = vpack.c.b16 %v270, %v269
      %v284 = vunpack.c.l.b16 %v246
      %v285 = vunpack.c.l.b16 %v247
      %v286 = vunpack.c.l.b16 %v248
      %v287 = vunpack.c.l.b16 %v249
      %v288 = vunpack.c.l.b16 %v250
      %v289 = vunpack.c.l.b16 %v251
      %v290 = vunpack.c.l.b16 %v252
      %v291 = vunpack.c.l.b16 %v253
      %v292 = vunpack.c.l.b16 %v254
      %v293 = vpack.c.b16 %v285, %v284
      %v294 = vpack.c.b16 %v287, %v286
      %v295 = vpack.c.b16 %v289, %v288
      %v296 = vpack.c.b16 %v291, %v290
      %v297 = vpack.c.b16 %v292, %v292
      %vm302 = vcmask 588800
      %v304 = vsel %vm302, %v271, 0
      %v307 = vsel %vm302, %v272, 0
      %v310 = vsel %vm302, %v273, 0
      %v313 = vsel %vm302, %v274, 0
      %vm315 = vcmask 1043456
      %v317 = vsel %vm315, %v297, 0
      %319 = vmatprep.subr.bf16.mxu0 0
      %320 = vmatpush1.bf16.msra.mxu0 %v293
      %321 = vmatprep.subr.bf16.mxu0 0
      %322 = vmatpush1.bf16.msra.mxu0 %v294
      %323 = vmatprep.subr.bf16.mxu0 0
      %324 = vmatpush1.bf16.msra.mxu0 %v295
      %325 = vmatprep.subr.bf16.mxu0 0
      %326 = vmatpush1.bf16.msra.mxu0 %v296
      %327 = vmatprep.subr.bf16.mxu0 0
      %328 = vmatpush1.bf16.msra.mxu0 %v317
      %329 = vmatprep.subr.bf16.mxu0 0
      %330 = vmatpush1.bf16.msra.mxu0 0
      %331 = vmatprep.subr.bf16.mxu0 0
      %332 = vmatpush1.bf16.msra.mxu0 0
      %333 = vmatprep.subr.bf16.mxu0 0
      %334 = vmatpush1.bf16.msra.mxu0 0
      %335 = vmatprep.subr.bf16.mxu0 0
      %336 = vmatpush1.bf16.msra.mxu0 0
      %337 = vmatprep.subr.bf16.mxu0 0
      %338 = vmatpush1.bf16.msra.mxu0 0
      %339 = vmatprep.subr.bf16.mxu0 0
      %340 = vmatpush1.bf16.msra.mxu0 0
      %341 = vmatprep.subr.bf16.mxu0 0
      %342 = vmatpush1.bf16.msra.mxu0 0
      %343 = vmatprep.subr.bf16.mxu0 0
      %344 = vmatpush1.bf16.msra.mxu0 0
      %345 = vmatprep.subr.bf16.mxu0 0
      %346 = vmatpush1.bf16.msra.mxu0 0
      %347 = vmatprep.subr.bf16.mxu0 0
      %348 = vmatpush1.bf16.msra.mxu0 0
      %349 = vmatprep.subr.bf16.mxu0 0
      %350 = vmatpush1.bf16.msra.mxu0 0
      %351 = vmatprep.mubr.bf16.mxu0 0
      %352 = vmatmul.mubr.bf16.gmra.mrb[0].mxu0 %v304
      %v353 = vpop.f32.mrb[0].mxu0
      %v354 = vadd.f32 0.0, %v353
      %v355 = vpop.f32.mrb[0].mxu0
      %v356 = vpop.f32.mrb[0].mxu0
      %v357 = vadd.f32 0.0, %v356
      %v358 = vpop.f32.mrb[0].mxu0
      %359 = vmatprep.mubr.bf16.mxu0 0
      %360 = vmatmul.mubr.bf16.gmra.mrb[0].mxu0 %v307
      %v361 = vpop.f32.mrb[0].mxu0
      %v362 = vadd.f32 0.0, %v361
      %v363 = vpop.f32.mrb[0].mxu0
      %v364 = vpop.f32.mrb[0].mxu0
      %v365 = vadd.f32 0.0, %v364
      %v366 = vpop.f32.mrb[0].mxu0
      %367 = vmatprep.mubr.bf16.mxu0 0
      %368 = vmatmul.mubr.bf16.gmra.mrb[0].mxu0 %v310
      %v369 = vpop.f32.mrb[0].mxu0
      %v370 = vadd.f32 0.0, %v369
      %v371 = vpop.f32.mrb[0].mxu0
      %v372 = vpop.f32.mrb[0].mxu0
      %v373 = vadd.f32 0.0, %v372
      %v374 = vpop.f32.mrb[0].mxu0
      %375 = vmatprep.mubr.bf16.mxu0 0
      %376 = vmatmul.mubr.bf16.gmra.mrb[0].mxu0 %v313
      %v377 = vpop.f32.mrb[0].mxu0
      %v378 = vadd.f32 0.0, %v377
      %v379 = vpop.f32.mrb[0].mxu0
      %v380 = vpop.f32.mrb[0].mxu0
      %v381 = vadd.f32 0.0, %v380
      %v382 = vpop.f32.mrb[0].mxu0
      %383 = vdwg.mxu0
      %v384 = vld [vmem:[%s2] sm:$0x1]
      %v386 = vlaneseq
      %v387 = vshrl.u32 %v386, 7
      %v388 = vsub.s32 0, %v387
      %v389 = vrot.slane %v384, %v388
      %v391 = vmul.f32 %v354, %v389
      %v392 = vmul.f32 %v357, %v389
      %v393 = vmul.f32 %v362, %v389
      %v394 = vmul.f32 %v365, %v389
      %v395 = vmul.f32 %v370, %v389
      %v396 = vmul.f32 %v373, %v389
      %v397 = vmul.f32 %v378, %v389
      %v398 = vmul.f32 %v381, %v389
      %v399 = vld [vmem:[%s3] sm:$0x1]
      %v401 = vlaneseq
      %v402 = vshrl.u32 %v401, 7
      %v403 = vsub.s32 0, %v402
      %v404 = vrot.slane %v399, %v403
      %v406 = vadd.f32 %v391, %v404
      %v407 = vadd.f32 %v392, %v404
      %v408 = vadd.f32 %v393, %v404
      %v409 = vadd.f32 %v394, %v404
      %v410 = vadd.f32 %v395, %v404
      %v411 = vadd.f32 %v396, %v404
      %v412 = vadd.f32 %v397, %v404
      %v413 = vadd.f32 %v398, %v404
      %v414 = vmax.f32 %v406, 0.0
      %v415 = vmax.f32 %v407, 0.0
      %v416 = vmax.f32 %v408, 0.0
      %v417 = vmax.f32 %v409, 0.0
      %v418 = vmax.f32 %v410, 0.0
      %v419 = vmax.f32 %v411, 0.0
      %v420 = vmax.f32 %v412, 0.0
      %v421 = vmax.f32 %v413, 0.0
      %vm422 = vcmask 64512
      %423 = vst.msk [vmem:[%s235] sm:$0xff] %vm422, %v414
      %424 = vst.msk [vmem:[%s235 + $0x8] sm:$0xff] %vm422, %v415
      %425 = vst.msk [vmem:[%s235 + $0x10] sm:$0xff] %vm422, %v416
      %426 = vst.msk [vmem:[%s235 + $0x18] sm:$0xff] %vm422, %v417
      %427 = vst.msk [vmem:[%s235 + $0x20] sm:$0xff] %vm422, %v418
      %428 = vst.msk [vmem:[%s235 + $0x28] sm:$0xff] %vm422, %v419
      %429 = vst.msk [vmem:[%s235 + $0x30] sm:$0xff] %vm422, %v420
      %430 = vst.msk [vmem:[%s235 + $0x38] sm:$0xff] %vm422, %v421
      %s431 = smul.u32 8, %s20
      %p432 = scmp.lt.s32.totalorder %s19, 1
      %s433 = scalar_select %p432, %s19, 1
      %p434 = scmp.lt.s32.totalorder %s431, 7
      %s435 = scalar_select %p434, %s431, 7
      %s436 = smul.addr %s433, 8
      %s437 = sadd.s32 %s435, %s436
      %s438 = smul.addr %s437, 8
      %s439 = scalar_lea.vmem %s4, %s438
      // Predicated region
      $region37: #{dual_stream_unet.55} parent=35 // pred_check
        %p440 = pneg %p138
      $region38: #{dual_stream_unet.55} parent=35 // pred_check_branch
        %442 = sbr.rel (%p440) target = $region40
      $region39: #{dual_stream_unet.55} parent=35 // pred_region
        %s443 = smul.u32 8, %s20
      $region40: #{dual_stream_unet.55} parent=35 // pred_fallthru
        _
    $region36: #{dual_stream_unet.55} parent=5 // pred_fallthru
      _
    %p444 = scmp.le.s32.totalorder 2, %s10
    // Predicated region
    $region41: #{dual_stream_unet.55} parent=5 // pred_check
      %p445 = pneg %p444
    $region42: #{dual_stream_unet.55} parent=5 // pred_check_branch
      %447 = sbr.rel (%p445) target = $region44
    $region43: #{dual_stream_unet.55} parent=5 // pred_region
      %s448 = ssub.s32 %s10, 2
      // Predicated region
      $region45: #{dual_stream_unet.55} parent=43 // pred_check
        %p449 = pneg %p144
      $region46: #{dual_stream_unet.55} parent=43 // pred_check_branch
        %451 = sbr.rel (%p449) target = $region48
      $region47: #{dual_stream_unet.55} parent=43 // pred_region
        %s452 = smul.u32 8, %s22
        %p453 = scmp.lt.s32.totalorder %s21, 1
        %s454 = scalar_select %p453, %s21, 1
        %p455 = scmp.lt.s32.totalorder %s452, 7
        %s456 = scalar_select %p455, %s452, 7
        %s457 = smul.addr %s454, 8
        %s458 = sadd.s32 %s456, %s457
        %s459 = smul.addr %s458, 8
        %s460 = scalar_lea.vmem %s4, %s459
      $region48: #{dual_stream_unet.55} parent=43 // pred_fallthru
        _
    $region44: #{dual_stream_unet.55} parent=5 // pred_fallthru
      _
  $region6: #{dual_stream_unet.55} parent=0 // loop_footer
    %s14 = sadd.s32 1, %s10
  $region7: #{dual_stream_unet.55} parent=0 // loop_footer_branch
    %9 = sbr.rel target = $region3
  $region8: #{dual_stream_unet.55} parent=0 // loop_exit
    _

// kernel: dual_stream_unet.56
$region0: #{dual_stream_unet.56}
  #allocation0 [shape = 'u32[]', space=smem, size = 0x4, offset = 0x4, fixed_abs, tag = 'smem constant byte address 0x4 - core index']
  #allocation1 [shape = 'u32[144,128]{1,0:T(1,128)}', space=vmem, size = 0x12000, scoped, tag = 'internal scratch']
  %s0 = inlined_call_operand.vmem [shape: bf16[2,64,8], index: 0, kind: input, shape index: {}]
  %s1 = inlined_call_operand.vmem [shape: bf16[8,32], index: 1, kind: input, shape index: {}]
  %s2 = inlined_call_operand.vmem [shape: f32[1,32], index: 2, kind: input, shape index: {}]
  %s3 = inlined_call_operand.vmem [shape: f32[1,32], index: 3, kind: input, shape index: {}]
  %s4 = inlined_call_operand.vmem [shape: f32[2,64,32], index: 4, kind: output, shape index: {}]
  %s5 = sld [smem:[#allocation0]]
  $region49: #{dual_stream_unet.56} parent=0
    _
  %s7 = ssub.s32 1, %s5
  %s8 = scalar_select 0, %s7, %s5
  loop: start=0, step=1, limit=4
  $region2: #{dual_stream_unet.56} parent=0 // loop_pre_header
    _
  $region3: #{dual_stream_unet.56} parent=0 // loop_header
    %s10 = sphi 0, %s14
    %p11 = scmp.ge.s32.totalorder %s10, 4
    %s17 = sphi 0, %s29
    %s18 = sphi 0, %s25
    %s19 = sphi 0, %s17
    %s20 = sphi 0, %s18
    %s21 = sphi 0, %s19
    %s22 = sphi 0, %s20
    %s34 = sphi 0, %s36
    %s37 = sphi 0, %s34
    %s38 = sphi 0, %s37
    %s54 = sphi 0, %s38
    %s58 = sphi 0, %s58
    %s60 = sphi 0, %s58
    %s61 = sphi 0, %s60
    %s75 = sphi 0, %s61
    %s79 = sphi 0, %s79
    %s81 = sphi 0, %s79
    %s82 = sphi 0, %s81
    %s96 = sphi 0, %s82
    %s100 = sphi 0, %s100
    %s102 = sphi 0, %s100
    %s103 = sphi 0, %s102
    %s117 = sphi 0, %s103
    %s125 = sphi 0, %s127
    %s128 = sphi 0, %s125
    %s129 = sphi 0, %s128
    %s145 = sphi 0, %s129
  $region4: #{dual_stream_unet.56} parent=0 // loop_header_branch
    %13 = sbr.rel (%p11) target = $region8
  $region5: #{dual_stream_unet.56} parent=0 // loop_body
    %s15 = ssub.s32 %s10, 1
    %s16 = ssub.s32 %s10, 2
    %s23 = sadd.s32 1, %s18
    %p24 = scmp.ge.s32.totalorder %s23, 1
    %s25 = scalar_select %p24, 0, %s23
    %s26 = sadd.s32 1, %s17
    %s27 = scalar_select %p24, %s26, %s17
    %p28 = scmp.ge.s32.totalorder %s27, 2
    %s29 = scalar_select %p28, 0, %s27
    %s30 = ssub.s32 %s17, %s29
    %s31 = ssub.s32 %s18, %s25
    %s32 = sor.u32 %s30, %s31
    %p33 = scmp.eq.s32.totalorder %s32, 0
    %s35 = sadd.s32 %s34, 1
    %s36 = scalar_select %p33, %s34, %s35
    %p39 = pneg %p33
    %p40 = scmp.eq.s32.totalorder %s10, 1
    %p41 = por %p39, %p40
    %p42 = scmp.ne.s32.totalorder %s34, %s37
    %p43 = scmp.eq.s32.totalorder %s10, 0
    %p44 = por %p42, %p43
    %p45 = scmp.ne.s32.totalorder %s34, %s37
    %p46 = scmp.eq.s32.totalorder %s15, 1
    %p47 = por %p45, %p46
    %p48 = scmp.ne.s32.totalorder %s37, %s38
    %p49 = scmp.eq.s32.totalorder %s15, 0
    %p50 = por %p48, %p49
    %p51 = scmp.ne.s32.totalorder %s37, %s38
    %p52 = scmp.eq.s32.totalorder %s16, 1
    %p53 = por %p51, %p52
    %p55 = scmp.ne.s32.totalorder %s38, %s54
    %p56 = scmp.eq.s32.totalorder %s16, 0
    %p57 = por %p55, %p56
    %s59 = sadd.s32 %s58, 1
    %p62 = scmp.eq.s32.totalorder %s10, 1
    %p63 = scmp.ne.s32.totalorder %s58, %s60
    %p64 = scmp.eq.s32.totalorder %s10, 0
    %p65 = por %p63, %p64
    %p66 = scmp.ne.s32.totalorder %s58, %s60
    %p67 = scmp.eq.s32.totalorder %s15, 1
    %p68 = por %p66, %p67
    %p69 = scmp.ne.s32.totalorder %s60, %s61
    %p70 = scmp.eq.s32.totalorder %s15, 0
    %p71 = por %p69, %p70
    %p72 = scmp.ne.s32.totalorder %s60, %s61
    %p73 = scmp.eq.s32.totalorder %s16, 1
    %p74 = por %p72, %p73
    %p76 = scmp.ne.s32.totalorder %s61, %s75
    %p77 = scmp.eq.s32.totalorder %s16, 0
    %p78 = por %p76, %p77
    %s80 = sadd.s32 %s79, 1
    %p83 = scmp.eq.s32.totalorder %s10, 1
    %p84 = scmp.ne.s32.totalorder %s79, %s81
    %p85 = scmp.eq.s32.totalorder %s10, 0
    %p86 = por %p84, %p85
    %p87 = scmp.ne.s32.totalorder %s79, %s81
    %p88 = scmp.eq.s32.totalorder %s15, 1
    %p89 = por %p87, %p88
    %p90 = scmp.ne.s32.totalorder %s81, %s82
    %p91 = scmp.eq.s32.totalorder %s15, 0
    %p92 = por %p90, %p91
    %p93 = scmp.ne.s32.totalorder %s81, %s82
    %p94 = scmp.eq.s32.totalorder %s16, 1
    %p95 = por %p93, %p94
    %p97 = scmp.ne.s32.totalorder %s82, %s96
    %p98 = scmp.eq.s32.totalorder %s16, 0
    %p99 = por %p97, %p98
    %s101 = sadd.s32 %s100, 1
    %p104 = scmp.eq.s32.totalorder %s10, 1
    %p105 = scmp.ne.s32.totalorder %s100, %s102
    %p106 = scmp.eq.s32.totalorder %s10, 0
    %p107 = por %p105, %p106
    %p108 = scmp.ne.s32.totalorder %s100, %s102
    %p109 = scmp.eq.s32.totalorder %s15, 1
    %p110 = por %p108, %p109
    %p111 = scmp.ne.s32.totalorder %s102, %s103
    %p112 = scmp.eq.s32.totalorder %s15, 0
    %p113 = por %p111, %p112
    %p114 = scmp.ne.s32.totalorder %s102, %s103
    %p115 = scmp.eq.s32.totalorder %s16, 1
    %p116 = por %p114, %p115
    %p118 = scmp.ne.s32.totalorder %s103, %s117
    %p119 = scmp.eq.s32.totalorder %s16, 0
    %p120 = por %p118, %p119
    %s121 = ssub.s32 %s17, %s29
    %s122 = ssub.s32 %s18, %s25
    %s123 = sor.u32 %s121, %s122
    %p124 = scmp.eq.s32.totalorder %s123, 0
    %s126 = sadd.s32 %s125, 1
    %s127 = scalar_select %p124, %s125, %s126
    %p130 = pneg %p124
    %p131 = scmp.eq.s32.totalorder %s10, 1
    %p132 = por %p130, %p131
    %p133 = scmp.ne.s32.totalorder %s125, %s128
    %p134 = scmp.eq.s32.totalorder %s10, 0
    %p135 = por %p133, %p134
    %p136 = scmp.ne.s32.totalorder %s125, %s128
    %p137 = scmp.eq.s32.totalorder %s15, 1
    %p138 = por %p136, %p137
    %p139 = scmp.ne.s32.totalorder %s128, %s129
    %p140 = scmp.eq.s32.totalorder %s15, 0
    %p141 = por %p139, %p140
    %p142 = scmp.ne.s32.totalorder %s128, %s129
    %p143 = scmp.eq.s32.totalorder %s16, 1
    %p144 = por %p142, %p143
    %p146 = scmp.ne.s32.totalorder %s129, %s145
    %p147 = scmp.eq.s32.totalorder %s16, 0
    %p148 = por %p146, %p147
    %p149 = scmp.le.s32.totalorder 1, %s10
    %p150 = scmp.lt.s32.totalorder %s10, 3
    %p151 = pnand %p149, %p150
    %p152 = pneg %p151
    // Predicated region
    $region9: #{dual_stream_unet.56} parent=5 // pred_check
      _
    $region10: #{dual_stream_unet.56} parent=5 // pred_check_branch
      %154 = sbr.rel (%p151) target = $region12
    $region11: #{dual_stream_unet.56} parent=5 // pred_region
      %s155 = ssub.s32 %s10, 1
      // Predicated region
      $region13: #{dual_stream_unet.56} parent=11 // pred_check
        %p156 = pneg %p71
      $region14: #{dual_stream_unet.56} parent=11 // pred_check_branch
        %158 = sbr.rel (%p156) target = $region16
      $region15: #{dual_stream_unet.56} parent=11 // pred_region
        _
      $region16: #{dual_stream_unet.56} parent=11 // pred_fallthru
        _
      // Predicated region
      $region17: #{dual_stream_unet.56} parent=11 // pred_check
        %p159 = pneg %p92
      $region18: #{dual_stream_unet.56} parent=11 // pred_check_branch
        %161 = sbr.rel (%p159) target = $region20
      $region19: #{dual_stream_unet.56} parent=11 // pred_region
        _
      $region20: #{dual_stream_unet.56} parent=11 // pred_fallthru
        _
      // Predicated region
      $region21: #{dual_stream_unet.56} parent=11 // pred_check
        %p162 = pneg %p113
      $region22: #{dual_stream_unet.56} parent=11 // pred_check_branch
        %164 = sbr.rel (%p162) target = $region24
      $region23: #{dual_stream_unet.56} parent=11 // pred_region
        _
      $region24: #{dual_stream_unet.56} parent=11 // pred_fallthru
        _
    $region12: #{dual_stream_unet.56} parent=5 // pred_fallthru
      _
    %p165 = scmp.lt.s32.totalorder %s10, 2
    // Predicated region
    $region25: #{dual_stream_unet.56} parent=5 // pred_check
      %p166 = pneg %p165
    $region26: #{dual_stream_unet.56} parent=5 // pred_check_branch
      %168 = sbr.rel (%p166) target = $region28
    $region27: #{dual_stream_unet.56} parent=5 // pred_region
      // Predicated region
      $region29: #{dual_stream_unet.56} parent=27 // pred_check
        %p169 = pneg %p44
      $region30: #{dual_stream_unet.56} parent=27 // pred_check_branch
        %171 = sbr.rel (%p169) target = $region32
      $region31: #{dual_stream_unet.56} parent=27 // pred_region
        %s172 = smul.u32 8, %s18
        %p173 = scmp.lt.s32.totalorder %s17, 1
        %s174 = scalar_select %p173, %s17, 1
        %p175 = scmp.lt.s32.totalorder %s172, 7
        %s176 = scalar_select %p175, %s172, 7
        %s177 = smul.addr %s174, 8
        %s178 = sadd.s32 %s176, %s177
        %s179 = smul.addr %s178, 4
        %s180 = scalar_lea.vmem %s0, %s179
        %s181 = smul.u32 8, %s18
      $region32: #{dual_stream_unet.56} parent=27 // pred_fallthru
        _
    $region28: #{dual_stream_unet.56} parent=5 // pred_fallthru
      _
    %p182 = scmp.le.s32.totalorder 1, %s10
    %p183 = scmp.lt.s32.totalorder %s10, 3
    %p184 = pnand %p182, %p183
    %p185 = pneg %p184
    // Predicated region
    $region33: #{dual_stream_unet.56} parent=5 // pred_check
      _
    $region34: #{dual_stream_unet.56} parent=5 // pred_check_branch
      %187 = sbr.rel (%p184) target = $region36
    $region35: #{dual_stream_unet.56} parent=5 // pred_region
      %s188 = ssub.s32 %s10, 1
      %s189 = smul.u32 8, %s20
      %p190 = scmp.lt.s32.totalorder %s19, 1
      %s191 = scalar_select %p190, %s19, 1
      %p192 = scmp.lt.s32.totalorder %s189, 7
      %s193 = scalar_select %p192, %s189, 7
      %s194 = smul.addr %s191, 8
      %s195 = sadd.s32 %s193, %s194
      %s196 = smul.addr %s195, 4
      %s197 = scalar_lea.vmem %s0, %s196
      %p198 = pneg %p50
      %p199 = pneg %p47
      %p200 = pneg %p71
      %p201 = pneg %p68
      %p202 = pneg %p92
      %p203 = pneg %p89
      %p204 = pneg %p113
      %p205 = pneg %p110
      %p206 = pneg %p141
      %p207 = pneg %p138
      %s208 = smul.u32 8, %s20
      %p209 = scmp.lt.s32.totalorder %s19, 1
      %s210 = scalar_select %p209, %s19, 1
      %p211 = scmp.lt.s32.totalorder %s208, 7
      %s212 = scalar_select %p211, %s208, 7
      %s213 = smul.addr %s210, 8
      %s214 = sadd.s32 %s212, %s213
      %s215 = smul.addr %s214, 8
      %s216 = scalar_lea.vmem %s4, %s215
      %s217 = smul.u32 8, %s20
      %p218 = scmp.lt.s32.totalorder %s19, 1
      %s219 = scalar_select %p218, %s19, 1
      %p220 = scmp.lt.s32.totalorder %s217, 7
      %s221 = scalar_select %p220, %s217, 7
      %s222 = smul.addr %s219, 8
      %s223 = sadd.s32 %s221, %s222
      %s224 = smul.addr %s223, 4
      %s225 = scalar_lea.vmem %s0, %s224
      %s226 = smul.u32 8, %s20
      %s227 = smul.u32 8, %s20
      %p228 = scmp.lt.s32.totalorder %s19, 1
      %s229 = scalar_select %p228, %s19, 1
      %p230 = scmp.lt.s32.totalorder %s227, 7
      %s231 = scalar_select %p230, %s227, 7
      %s232 = smul.addr %s229, 8
      %s233 = sadd.s32 %s231, %s232
      %s234 = smul.addr %s233, 8
      %s235 = scalar_lea.vmem %s4, %s234
      %s236 = smul.u32 8, %s20
      %v238 = vld [vmem:[%s225] sm:$0xf]
      %v239 = vld [vmem:[%s225 + $0x4] sm:$0xf]
      %v240 = vld [vmem:[%s225 + $0x8] sm:$0xf]
      %v241 = vld [vmem:[%s225 + $0xc] sm:$0xf]
      %v242 = vld [vmem:[%s225 + $0x10] sm:$0xf]
      %v243 = vld [vmem:[%s225 + $0x14] sm:$0xf]
      %v244 = vld [vmem:[%s225 + $0x18] sm:$0xf]
      %v245 = vld [vmem:[%s225 + $0x1c] sm:$0xf]
      %v246 = vld [vmem:[%s1] sm:$0xf]
      %v255 = vunpack.c.l.b16 %v238
      %v256 = vunpack.c.l.b16 %v239
      %v257 = vunpack.c.l.b16 %v240
      %v258 = vunpack.c.l.b16 %v241
      %v259 = vunpack.c.l.b16 %v242
      %v260 = vunpack.c.l.b16 %v243
      %v261 = vunpack.c.l.b16 %v244
      %v262 = vunpack.c.l.b16 %v245
      %v263 = vpack.c.b16 %v256, %v255
      %v264 = vpack.c.b16 %v258, %v257
      %v265 = vpack.c.b16 %v260, %v259
      %v266 = vpack.c.b16 %v262, %v261
      %vm267 = vcmask 64512
      %v269 = vsel %vm267, %v263, 0
      %v272 = vsel %vm267, %v264, 0
      %v275 = vsel %vm267, %v265, 0
      %v278 = vsel %vm267, %v266, 0
      %vm280 = vcmask 1043456
      %v282 = vsel %vm280, %v246, 0
      %284 = vmatprep.subr.bf16.mxu0 0
      %285 = vmatpush1.bf16.msra.mxu0 %v282
      %286 = vmatprep.subr.bf16.mxu0 0
      %287 = vmatpush1.bf16.msra.mxu0 0
      %288 = vmatprep.subr.bf16.mxu0 0
      %289 = vmatpush1.bf16.msra.mxu0 0
      %290 = vmatprep.subr.bf16.mxu0 0
      %291 = vmatpush1.bf16.msra.mxu0 0
      %292 = vmatprep.subr.bf16.mxu0 0
      %293 = vmatpush1.bf16.msra.mxu0 0
      %294 = vmatprep.subr.bf16.mxu0 0
      %295 = vmatpush1.bf16.msra.mxu0 0
      %296 = vmatprep.subr.bf16.mxu0 0
      %297 = vmatpush1.bf16.msra.mxu0 0
      %298 = vmatprep.subr.bf16.mxu0 0
      %299 = vmatpush1.bf16.msra.mxu0 0
      %300 = vmatprep.subr.bf16.mxu0 0
      %301 = vmatpush1.bf16.msra.mxu0 0
      %302 = vmatprep.subr.bf16.mxu0 0
      %303 = vmatpush1.bf16.msra.mxu0 0
      %304 = vmatprep.subr.bf16.mxu0 0
      %305 = vmatpush1.bf16.msra.mxu0 0
      %306 = vmatprep.subr.bf16.mxu0 0
      %307 = vmatpush1.bf16.msra.mxu0 0
      %308 = vmatprep.subr.bf16.mxu0 0
      %309 = vmatpush1.bf16.msra.mxu0 0
      %310 = vmatprep.subr.bf16.mxu0 0
      %311 = vmatpush1.bf16.msra.mxu0 0
      %312 = vmatprep.subr.bf16.mxu0 0
      %313 = vmatpush1.bf16.msra.mxu0 0
      %314 = vmatprep.subr.bf16.mxu0 0
      %315 = vmatpush1.bf16.msra.mxu0 0
      %316 = vmatprep.mubr.bf16.mxu0 0
      %317 = vmatmul.mubr.bf16.gmra.mrb[0].mxu0 %v269
      %v318 = vpop.f32.mrb[0].mxu0
      %v319 = vadd.f32 0.0, %v318
      %v320 = vpop.f32.mrb[0].mxu0
      %v321 = vpop.f32.mrb[0].mxu0
      %v322 = vadd.f32 0.0, %v321
      %v323 = vpop.f32.mrb[0].mxu0
      %324 = vmatprep.mubr.bf16.mxu0 0
      %325 = vmatmul.mubr.bf16.gmra.mrb[0].mxu0 %v272
      %v326 = vpop.f32.mrb[0].mxu0
      %v327 = vadd.f32 0.0, %v326
      %v328 = vpop.f32.mrb[0].mxu0
      %v329 = vpop.f32.mrb[0].mxu0
      %v330 = vadd.f32 0.0, %v329
      %v331 = vpop.f32.mrb[0].mxu0
      %332 = vmatprep.mubr.bf16.mxu0 0
      %333 = vmatmul.mubr.bf16.gmra.mrb[0].mxu0 %v275
      %v334 = vpop.f32.mrb[0].mxu0
      %v335 = vadd.f32 0.0, %v334
      %v336 = vpop.f32.mrb[0].mxu0
      %v337 = vpop.f32.mrb[0].mxu0
      %v338 = vadd.f32 0.0, %v337
      %v339 = vpop.f32.mrb[0].mxu0
      %340 = vmatprep.mubr.bf16.mxu0 0
      %341 = vmatmul.mubr.bf16.gmra.mrb[0].mxu0 %v278
      %v342 = vpop.f32.mrb[0].mxu0
      %v343 = vadd.f32 0.0, %v342
      %v344 = vpop.f32.mrb[0].mxu0
      %v345 = vpop.f32.mrb[0].mxu0
      %v346 = vadd.f32 0.0, %v345
      %v347 = vpop.f32.mrb[0].mxu0
      %348 = vdwg.mxu0
      %v349 = vld [vmem:[%s2] sm:$0x1]
      %v351 = vlaneseq
      %v352 = vshrl.u32 %v351, 7
      %v353 = vsub.s32 0, %v352
      %v354 = vrot.slane %v349, %v353
      %v356 = vmul.f32 %v319, %v354
      %v357 = vmul.f32 %v322, %v354
      %v358 = vmul.f32 %v327, %v354
      %v359 = vmul.f32 %v330, %v354
      %v360 = vmul.f32 %v335, %v354
      %v361 = vmul.f32 %v338, %v354
      %v362 = vmul.f32 %v343, %v354
      %v363 = vmul.f32 %v346, %v354
      %v364 = vld [vmem:[%s3] sm:$0x1]
      %v366 = vlaneseq
      %v367 = vshrl.u32 %v366, 7
      %v368 = vsub.s32 0, %v367
      %v369 = vrot.slane %v364, %v368
      %v371 = vadd.f32 %v356, %v369
      %v372 = vadd.f32 %v357, %v369
      %v373 = vadd.f32 %v358, %v369
      %v374 = vadd.f32 %v359, %v369
      %v375 = vadd.f32 %v360, %v369
      %v376 = vadd.f32 %v361, %v369
      %v377 = vadd.f32 %v362, %v369
      %v378 = vadd.f32 %v363, %v369
      %vm379 = vcmask 261120
      %380 = vst.msk [vmem:[%s235] sm:$0xff] %vm379, %v371
      %381 = vst.msk [vmem:[%s235 + $0x8] sm:$0xff] %vm379, %v372
      %382 = vst.msk [vmem:[%s235 + $0x10] sm:$0xff] %vm379, %v373
      %383 = vst.msk [vmem:[%s235 + $0x18] sm:$0xff] %vm379, %v374
      %384 = vst.msk [vmem:[%s235 + $0x20] sm:$0xff] %vm379, %v375
      %385 = vst.msk [vmem:[%s235 + $0x28] sm:$0xff] %vm379, %v376
      %386 = vst.msk [vmem:[%s235 + $0x30] sm:$0xff] %vm379, %v377
      %387 = vst.msk [vmem:[%s235 + $0x38] sm:$0xff] %vm379, %v378
      %s388 = smul.u32 8, %s20
      %p389 = scmp.lt.s32.totalorder %s19, 1
      %s390 = scalar_select %p389, %s19, 1
      %p391 = scmp.lt.s32.totalorder %s388, 7
      %s392 = scalar_select %p391, %s388, 7
      %s393 = smul.addr %s390, 8
      %s394 = sadd.s32 %s392, %s393
      %s395 = smul.addr %s394, 8
      %s396 = scalar_lea.vmem %s4, %s395
      // Predicated region
      $region37: #{dual_stream_unet.56} parent=35 // pred_check
        %p397 = pneg %p138
      $region38: #{dual_stream_unet.56} parent=35 // pred_check_branch
        %399 = sbr.rel (%p397) target = $region40
      $region39: #{dual_stream_unet.56} parent=35 // pred_region
        %s400 = smul.u32 8, %s20
      $region40: #{dual_stream_unet.56} parent=35 // pred_fallthru
        _
    $region36: #{dual_stream_unet.56} parent=5 // pred_fallthru
      _
    %p401 = scmp.le.s32.totalorder 2, %s10
    // Predicated region
    $region41: #{dual_stream_unet.56} parent=5 // pred_check
      %p402 = pneg %p401
    $region42: #{dual_stream_unet.56} parent=5 // pred_check_branch
      %404 = sbr.rel (%p402) target = $region44
    $region43: #{dual_stream_unet.56} parent=5 // pred_region
      %s405 = ssub.s32 %s10, 2
      // Predicated region
      $region45: #{dual_stream_unet.56} parent=43 // pred_check
        %p406 = pneg %p144
      $region46: #{dual_stream_unet.56} parent=43 // pred_check_branch
        %408 = sbr.rel (%p406) target = $region48
      $region47: #{dual_stream_unet.56} parent=43 // pred_region
        %s409 = smul.u32 8, %s22
        %p410 = scmp.lt.s32.totalorder %s21, 1
        %s411 = scalar_select %p410, %s21, 1
        %p412 = scmp.lt.s32.totalorder %s409, 7
        %s413 = scalar_select %p412, %s409, 7
        %s414 = smul.addr %s411, 8
        %s415 = sadd.s32 %s413, %s414
        %s416 = smul.addr %s415, 8
        %s417 = scalar_lea.vmem %s4, %s416
      $region48: #{dual_stream_unet.56} parent=43 // pred_fallthru
        _
    $region44: #{dual_stream_unet.56} parent=5 // pred_fallthru
      _
  $region6: #{dual_stream_unet.56} parent=0 // loop_footer
    %s14 = sadd.s32 1, %s10
  $region7: #{dual_stream_unet.56} parent=0 // loop_footer_branch
    %9 = sbr.rel target = $region3
  $region8: #{dual_stream_unet.56} parent=0 // loop_exit
    _

// kernel: dual_stream_unet.57
$region0: #{dual_stream_unet.57}
  #allocation0 [shape = 'u32[]', space=smem, size = 0x4, offset = 0x4, fixed_abs, tag = 'smem constant byte address 0x4 - core index']
  #allocation1 [shape = 'u32[144,128]{1,0:T(1,128)}', space=vmem, size = 0x12000, scoped, tag = 'internal scratch']
  %s0 = inlined_call_operand.vmem [shape: bf16[2,256,144], index: 0, kind: input, shape index: {}]
  %s1 = inlined_call_operand.vmem [shape: bf16[144,8], index: 1, kind: input, shape index: {}]
  %s2 = inlined_call_operand.vmem [shape: f32[1,8], index: 2, kind: input, shape index: {}]
  %s3 = inlined_call_operand.vmem [shape: f32[1,8], index: 3, kind: input, shape index: {}]
  %s4 = inlined_call_operand.vmem [shape: f32[2,256,8], index: 4, kind: output, shape index: {}]
  %s5 = sld [smem:[#allocation0]]
  $region49: #{dual_stream_unet.57} parent=0
    _
  %s7 = ssub.s32 1, %s5
  %s8 = scalar_select 0, %s7, %s5
  loop: start=0, step=1, limit=4
  $region2: #{dual_stream_unet.57} parent=0 // loop_pre_header
    _
  $region3: #{dual_stream_unet.57} parent=0 // loop_header
    %s10 = sphi 0, %s14
    %p11 = scmp.ge.s32.totalorder %s10, 4
    %s17 = sphi 0, %s29
    %s18 = sphi 0, %s25
    %s19 = sphi 0, %s17
    %s20 = sphi 0, %s18
    %s21 = sphi 0, %s19
    %s22 = sphi 0, %s20
    %s34 = sphi 0, %s36
    %s37 = sphi 0, %s34
    %s38 = sphi 0, %s37
    %s54 = sphi 0, %s38
    %s58 = sphi 0, %s58
    %s60 = sphi 0, %s58
    %s61 = sphi 0, %s60
    %s75 = sphi 0, %s61
    %s79 = sphi 0, %s79
    %s81 = sphi 0, %s79
    %s82 = sphi 0, %s81
    %s96 = sphi 0, %s82
    %s100 = sphi 0, %s100
    %s102 = sphi 0, %s100
    %s103 = sphi 0, %s102
    %s117 = sphi 0, %s103
    %s125 = sphi 0, %s127
    %s128 = sphi 0, %s125
    %s129 = sphi 0, %s128
    %s145 = sphi 0, %s129
  $region4: #{dual_stream_unet.57} parent=0 // loop_header_branch
    %13 = sbr.rel (%p11) target = $region8
  $region5: #{dual_stream_unet.57} parent=0 // loop_body
    %s15 = ssub.s32 %s10, 1
    %s16 = ssub.s32 %s10, 2
    %s23 = sadd.s32 1, %s18
    %p24 = scmp.ge.s32.totalorder %s23, 1
    %s25 = scalar_select %p24, 0, %s23
    %s26 = sadd.s32 1, %s17
    %s27 = scalar_select %p24, %s26, %s17
    %p28 = scmp.ge.s32.totalorder %s27, 2
    %s29 = scalar_select %p28, 0, %s27
    %s30 = ssub.s32 %s17, %s29
    %s31 = ssub.s32 %s18, %s25
    %s32 = sor.u32 %s30, %s31
    %p33 = scmp.eq.s32.totalorder %s32, 0
    %s35 = sadd.s32 %s34, 1
    %s36 = scalar_select %p33, %s34, %s35
    %p39 = pneg %p33
    %p40 = scmp.eq.s32.totalorder %s10, 1
    %p41 = por %p39, %p40
    %p42 = scmp.ne.s32.totalorder %s34, %s37
    %p43 = scmp.eq.s32.totalorder %s10, 0
    %p44 = por %p42, %p43
    %p45 = scmp.ne.s32.totalorder %s34, %s37
    %p46 = scmp.eq.s32.totalorder %s15, 1
    %p47 = por %p45, %p46
    %p48 = scmp.ne.s32.totalorder %s37, %s38
    %p49 = scmp.eq.s32.totalorder %s15, 0
    %p50 = por %p48, %p49
    %p51 = scmp.ne.s32.totalorder %s37, %s38
    %p52 = scmp.eq.s32.totalorder %s16, 1
    %p53 = por %p51, %p52
    %p55 = scmp.ne.s32.totalorder %s38, %s54
    %p56 = scmp.eq.s32.totalorder %s16, 0
    %p57 = por %p55, %p56
    %s59 = sadd.s32 %s58, 1
    %p62 = scmp.eq.s32.totalorder %s10, 1
    %p63 = scmp.ne.s32.totalorder %s58, %s60
    %p64 = scmp.eq.s32.totalorder %s10, 0
    %p65 = por %p63, %p64
    %p66 = scmp.ne.s32.totalorder %s58, %s60
    %p67 = scmp.eq.s32.totalorder %s15, 1
    %p68 = por %p66, %p67
    %p69 = scmp.ne.s32.totalorder %s60, %s61
    %p70 = scmp.eq.s32.totalorder %s15, 0
    %p71 = por %p69, %p70
    %p72 = scmp.ne.s32.totalorder %s60, %s61
    %p73 = scmp.eq.s32.totalorder %s16, 1
    %p74 = por %p72, %p73
    %p76 = scmp.ne.s32.totalorder %s61, %s75
    %p77 = scmp.eq.s32.totalorder %s16, 0
    %p78 = por %p76, %p77
    %s80 = sadd.s32 %s79, 1
    %p83 = scmp.eq.s32.totalorder %s10, 1
    %p84 = scmp.ne.s32.totalorder %s79, %s81
    %p85 = scmp.eq.s32.totalorder %s10, 0
    %p86 = por %p84, %p85
    %p87 = scmp.ne.s32.totalorder %s79, %s81
    %p88 = scmp.eq.s32.totalorder %s15, 1
    %p89 = por %p87, %p88
    %p90 = scmp.ne.s32.totalorder %s81, %s82
    %p91 = scmp.eq.s32.totalorder %s15, 0
    %p92 = por %p90, %p91
    %p93 = scmp.ne.s32.totalorder %s81, %s82
    %p94 = scmp.eq.s32.totalorder %s16, 1
    %p95 = por %p93, %p94
    %p97 = scmp.ne.s32.totalorder %s82, %s96
    %p98 = scmp.eq.s32.totalorder %s16, 0
    %p99 = por %p97, %p98
    %s101 = sadd.s32 %s100, 1
    %p104 = scmp.eq.s32.totalorder %s10, 1
    %p105 = scmp.ne.s32.totalorder %s100, %s102
    %p106 = scmp.eq.s32.totalorder %s10, 0
    %p107 = por %p105, %p106
    %p108 = scmp.ne.s32.totalorder %s100, %s102
    %p109 = scmp.eq.s32.totalorder %s15, 1
    %p110 = por %p108, %p109
    %p111 = scmp.ne.s32.totalorder %s102, %s103
    %p112 = scmp.eq.s32.totalorder %s15, 0
    %p113 = por %p111, %p112
    %p114 = scmp.ne.s32.totalorder %s102, %s103
    %p115 = scmp.eq.s32.totalorder %s16, 1
    %p116 = por %p114, %p115
    %p118 = scmp.ne.s32.totalorder %s103, %s117
    %p119 = scmp.eq.s32.totalorder %s16, 0
    %p120 = por %p118, %p119
    %s121 = ssub.s32 %s17, %s29
    %s122 = ssub.s32 %s18, %s25
    %s123 = sor.u32 %s121, %s122
    %p124 = scmp.eq.s32.totalorder %s123, 0
    %s126 = sadd.s32 %s125, 1
    %s127 = scalar_select %p124, %s125, %s126
    %p130 = pneg %p124
    %p131 = scmp.eq.s32.totalorder %s10, 1
    %p132 = por %p130, %p131
    %p133 = scmp.ne.s32.totalorder %s125, %s128
    %p134 = scmp.eq.s32.totalorder %s10, 0
    %p135 = por %p133, %p134
    %p136 = scmp.ne.s32.totalorder %s125, %s128
    %p137 = scmp.eq.s32.totalorder %s15, 1
    %p138 = por %p136, %p137
    %p139 = scmp.ne.s32.totalorder %s128, %s129
    %p140 = scmp.eq.s32.totalorder %s15, 0
    %p141 = por %p139, %p140
    %p142 = scmp.ne.s32.totalorder %s128, %s129
    %p143 = scmp.eq.s32.totalorder %s16, 1
    %p144 = por %p142, %p143
    %p146 = scmp.ne.s32.totalorder %s129, %s145
    %p147 = scmp.eq.s32.totalorder %s16, 0
    %p148 = por %p146, %p147
    %p149 = scmp.le.s32.totalorder 1, %s10
    %p150 = scmp.lt.s32.totalorder %s10, 3
    %p151 = pnand %p149, %p150
    %p152 = pneg %p151
    // Predicated region
    $region9: #{dual_stream_unet.57} parent=5 // pred_check
      _
    $region10: #{dual_stream_unet.57} parent=5 // pred_check_branch
      %154 = sbr.rel (%p151) target = $region12
    $region11: #{dual_stream_unet.57} parent=5 // pred_region
      %s155 = ssub.s32 %s10, 1
      // Predicated region
      $region13: #{dual_stream_unet.57} parent=11 // pred_check
        %p156 = pneg %p71
      $region14: #{dual_stream_unet.57} parent=11 // pred_check_branch
        %158 = sbr.rel (%p156) target = $region16
      $region15: #{dual_stream_unet.57} parent=11 // pred_region
        _
      $region16: #{dual_stream_unet.57} parent=11 // pred_fallthru
        _
      // Predicated region
      $region17: #{dual_stream_unet.57} parent=11 // pred_check
        %p159 = pneg %p92
      $region18: #{dual_stream_unet.57} parent=11 // pred_check_branch
        %161 = sbr.rel (%p159) target = $region20
      $region19: #{dual_stream_unet.57} parent=11 // pred_region
        _
      $region20: #{dual_stream_unet.57} parent=11 // pred_fallthru
        _
      // Predicated region
      $region21: #{dual_stream_unet.57} parent=11 // pred_check
        %p162 = pneg %p113
      $region22: #{dual_stream_unet.57} parent=11 // pred_check_branch
        %164 = sbr.rel (%p162) target = $region24
      $region23: #{dual_stream_unet.57} parent=11 // pred_region
        _
      $region24: #{dual_stream_unet.57} parent=11 // pred_fallthru
        _
    $region12: #{dual_stream_unet.57} parent=5 // pred_fallthru
      _
    %p165 = scmp.lt.s32.totalorder %s10, 2
    // Predicated region
    $region25: #{dual_stream_unet.57} parent=5 // pred_check
      %p166 = pneg %p165
    $region26: #{dual_stream_unet.57} parent=5 // pred_check_branch
      %168 = sbr.rel (%p166) target = $region28
    $region27: #{dual_stream_unet.57} parent=5 // pred_region
      // Predicated region
      $region29: #{dual_stream_unet.57} parent=27 // pred_check
        %p169 = pneg %p44
      $region30: #{dual_stream_unet.57} parent=27 // pred_check_branch
        %171 = sbr.rel (%p169) target = $region32
      $region31: #{dual_stream_unet.57} parent=27 // pred_region
        %s172 = smul.u32 32, %s18
        %p173 = scmp.lt.s32.totalorder %s17, 1
        %s174 = scalar_select %p173, %s17, 1
        %p175 = scmp.lt.s32.totalorder %s172, 31
        %s176 = scalar_select %p175, %s172, 31
        %s177 = smul.addr %s176, 2
        %s178 = smul.addr %s174, 64
        %s179 = sadd.s32 %s177, %s178
        %s180 = smul.addr %s179, 4
        %s181 = scalar_lea.vmem %s0, %s180
        %s182 = smul.u32 32, %s18
      $region32: #{dual_stream_unet.57} parent=27 // pred_fallthru
        _
    $region28: #{dual_stream_unet.57} parent=5 // pred_fallthru
      _
    %p183 = scmp.le.s32.totalorder 1, %s10
    %p184 = scmp.lt.s32.totalorder %s10, 3
    %p185 = pnand %p183, %p184
    %p186 = pneg %p185
    // Predicated region
    $region33: #{dual_stream_unet.57} parent=5 // pred_check
      _
    $region34: #{dual_stream_unet.57} parent=5 // pred_check_branch
      %188 = sbr.rel (%p185) target = $region36
    $region35: #{dual_stream_unet.57} parent=5 // pred_region
      %s189 = ssub.s32 %s10, 1
      %s190 = smul.u32 32, %s20
      %p191 = scmp.lt.s32.totalorder %s19, 1
      %s192 = scalar_select %p191, %s19, 1
      %p193 = scmp.lt.s32.totalorder %s190, 31
      %s194 = scalar_select %p193, %s190, 31
      %s195 = smul.addr %s194, 2
      %s196 = smul.addr %s192, 64
      %s197 = sadd.s32 %s195, %s196
      %s198 = smul.addr %s197, 4
      %s199 = scalar_lea.vmem %s0, %s198
      %p200 = pneg %p50
      %p201 = pneg %p47
      %p202 = pneg %p71
      %p203 = pneg %p68
      %p204 = pneg %p92
      %p205 = pneg %p89
      %p206 = pneg %p113
      %p207 = pneg %p110
      %p208 = pneg %p141
      %p209 = pneg %p138
      %s210 = smul.u32 32, %s20
      %p211 = scmp.lt.s32.totalorder %s19, 1
      %s212 = scalar_select %p211, %s19, 1
      %p213 = scmp.lt.s32.totalorder %s210, 31
      %s214 = scalar_select %p213, %s210, 31
      %s215 = smul.addr %s212, 32
      %s216 = sadd.s32 %s214, %s215
      %s217 = smul.addr %s216, 8
      %s218 = scalar_lea.vmem %s4, %s217
      %s219 = smul.u32 32, %s20
      %p220 = scmp.lt.s32.totalorder %s19, 1
      %s221 = scalar_select %p220, %s19, 1
      %p222 = scmp.lt.s32.totalorder %s219, 31
      %s223 = scalar_select %p222, %s219, 31
      %s224 = smul.addr %s223, 2
      %s225 = smul.addr %s221, 64
      %s226 = sadd.s32 %s224, %s225
      %s227 = smul.addr %s226, 4
      %s228 = scalar_lea.vmem %s0, %s227
      %s229 = smul.u32 32, %s20
      %s230 = smul.u32 32, %s20
      %p231 = scmp.lt.s32.totalorder %s19, 1
      %s232 = scalar_select %p231, %s19, 1
      %p233 = scmp.lt.s32.totalorder %s230, 31
      %s234 = scalar_select %p233, %s230, 31
      %s235 = smul.addr %s232, 32
      %s236 = sadd.s32 %s234, %s235
      %s237 = smul.addr %s236, 8
      %s238 = scalar_lea.vmem %s4, %s237
      %s239 = smul.u32 32, %s20
      %v241 = vld [vmem:[%s228] sm:$0xff]
      %v242 = vld [vmem:[%s228 + $0x8] sm:$0xff]
      %v243 = vld [vmem:[%s228 + $0x10] sm:$0xff]
      %v244 = vld [vmem:[%s228 + $0x18] sm:$0xff]
      %v245 = vld [vmem:[%s228 + $0x20] sm:$0xff]
      %v246 = vld [vmem:[%s228 + $0x28] sm:$0xff]
      %v247 = vld [vmem:[%s228 + $0x30] sm:$0xff]
      %v248 = vld [vmem:[%s228 + $0x38] sm:$0xff]
      %v249 = vld [vmem:[%s228 + $0x40] sm:$0xff]
      %v250 = vld [vmem:[%s228 + $0x48] sm:$0xff]
      %v251 = vld [vmem:[%s228 + $0x50] sm:$0xff]
      %v252 = vld [vmem:[%s228 + $0x58] sm:$0xff]
      %v253 = vld [vmem:[%s228 + $0x60] sm:$0xff]
      %v254 = vld [vmem:[%s228 + $0x68] sm:$0xff]
      %v255 = vld [vmem:[%s228 + $0x70] sm:$0xff]
      %v256 = vld [vmem:[%s228 + $0x78] sm:$0xff]
      %v257 = vld [vmem:[%s228 + $0x80] sm:$0xff]
      %v258 = vld [vmem:[%s228 + $0x88] sm:$0xff]
      %v259 = vld [vmem:[%s228 + $0x90] sm:$0xff]
      %v260 = vld [vmem:[%s228 + $0x98] sm:$0xff]
      %v261 = vld [vmem:[%s228 + $0xa0] sm:$0xff]
      %v262 = vld [vmem:[%s228 + $0xa8] sm:$0xff]
      %v263 = vld [vmem:[%s228 + $0xb0] sm:$0xff]
      %v264 = vld [vmem:[%s228 + $0xb8] sm:$0xff]
      %v265 = vld [vmem:[%s228 + $0xc0] sm:$0xff]
      %v266 = vld [vmem:[%s228 + $0xc8] sm:$0xff]
      %v267 = vld [vmem:[%s228 + $0xd0] sm:$0xff]
      %v268 = vld [vmem:[%s228 + $0xd8] sm:$0xff]
      %v269 = vld [vmem:[%s228 + $0xe0] sm:$0xff]
      %v270 = vld [vmem:[%s228 + $0xe8] sm:$0xff]
      %v271 = vld [vmem:[%s228 + $0xf0] sm:$0xff]
      %v272 = vld [vmem:[%s228 + $0xf8] sm:$0xff]
      %v273 = vld [vmem:[%s1] sm:$0xf]
      %v274 = vld [vmem:[%s1 + $0x4] sm:$0xf]
      %v275 = vld [vmem:[%s1 + $0x8] sm:$0xf]
      %v276 = vld [vmem:[%s1 + $0xc] sm:$0xf]
      %v277 = vld [vmem:[%s1 + $0x10] sm:$0xf]
      %v278 = vld [vmem:[%s1 + $0x14] sm:$0xf]
      %v279 = vld [vmem:[%s1 + $0x18] sm:$0xf]
      %v280 = vld [vmem:[%s1 + $0x1c] sm:$0xf]
      %v281 = vld [vmem:[%s1 + $0x20] sm:$0xf]
      %v282 = vld [vmem:[%s1 + $0x24] sm:$0xf]
      %v283 = vld [vmem:[%s1 + $0x28] sm:$0xf]
      %v284 = vld [vmem:[%s1 + $0x2c] sm:$0xf]
      %v285 = vld [vmem:[%s1 + $0x30] sm:$0xf]
      %v286 = vld [vmem:[%s1 + $0x34] sm:$0xf]
      %v287 = vld [vmem:[%s1 + $0x38] sm:$0xf]
      %v288 = vld [vmem:[%s1 + $0x3c] sm:$0xf]
      %v289 = vld [vmem:[%s1 + $0x40] sm:$0xf]
      %v290 = vld [vmem:[%s1 + $0x44] sm:$0xf]
      %v323 = vunpack.c.l.b16 %v241
      %v324 = vunpack.c.h.b16 %v241
      %v325 = vunpack.c.l.b16 %v242
      %v326 = vunpack.c.h.b16 %v242
      %v327 = vunpack.c.l.b16 %v243
      %v328 = vunpack.c.h.b16 %v243
      %v329 = vunpack.c.l.b16 %v244
      %v330 = vunpack.c.h.b16 %v244
      %v331 = vunpack.c.l.b16 %v245
      %v332 = vunpack.c.h.b16 %v245
      %v333 = vunpack.c.l.b16 %v246
      %v334 = vunpack.c.h.b16 %v246
      %v335 = vunpack.c.l.b16 %v247
      %v336 = vunpack.c.h.b16 %v247
      %v337 = vunpack.c.l.b16 %v248
      %v338 = vunpack.c.h.b16 %v248
      %v339 = vunpack.c.l.b16 %v249
      %v340 = vunpack.c.h.b16 %v249
      %v341 = vunpack.c.l.b16 %v250
      %v342 = vunpack.c.h.b16 %v250
      %v343 = vunpack.c.l.b16 %v251
      %v344 = vunpack.c.h.b16 %v251
      %v345 = vunpack.c.l.b16 %v252
      %v346 = vunpack.c.h.b16 %v252
      %v347 = vunpack.c.l.b16 %v253
      %v348 = vunpack.c.h.b16 %v253
      %v349 = vunpack.c.l.b16 %v254
      %v350 = vunpack.c.h.b16 %v254
      %v351 = vunpack.c.l.b16 %v255
      %v352 = vunpack.c.h.b16 %v255
      %v353 = vunpack.c.l.b16 %v256
      %v354 = vunpack.c.h.b16 %v256
      %v355 = vunpack.c.l.b16 %v257
      %v356 = vunpack.c.h.b16 %v257
      %v357 = vunpack.c.l.b16 %v258
      %v358 = vunpack.c.h.b16 %v258
      %v359 = vunpack.c.l.b16 %v259
      %v360 = vunpack.c.h.b16 %v259
      %v361 = vunpack.c.l.b16 %v260
      %v362 = vunpack.c.h.b16 %v260
      %v363 = vunpack.c.l.b16 %v261
      %v364 = vunpack.c.h.b16 %v261
      %v365 = vunpack.c.l.b16 %v262
      %v366 = vunpack.c.h.b16 %v262
      %v367 = vunpack.c.l.b16 %v263
      %v368 = vunpack.c.h.b16 %v263
      %v369 = vunpack.c.l.b16 %v264
      %v370 = vunpack.c.h.b16 %v264
      %v371 = vunpack.c.l.b16 %v265
      %v372 = vunpack.c.h.b16 %v265
      %v373 = vunpack.c.l.b16 %v266
      %v374 = vunpack.c.h.b16 %v266
      %v375 = vunpack.c.l.b16 %v267
      %v376 = vunpack.c.h.b16 %v267
      %v377 = vunpack.c.l.b16 %v268
      %v378 = vunpack.c.h.b16 %v268
      %v379 = vunpack.c.l.b16 %v269
      %v380 = vunpack.c.h.b16 %v269
      %v381 = vunpack.c.l.b16 %v270
      %v382 = vunpack.c.h.b16 %v270
      %v383 = vunpack.c.l.b16 %v271
      %v384 = vunpack.c.h.b16 %v271
      %v385 = vunpack.c.l.b16 %v272
      %v386 = vunpack.c.h.b16 %v272
      %v387 = vpack.c.b16 %v325, %v323
      %v388 = vpack.c.b16 %v326, %v324
      %v389 = vpack.c.b16 %v329, %v327
      %v390 = vpack.c.b16 %v330, %v328
      %v391 = vpack.c.b16 %v333, %v331
      %v392 = vpack.c.b16 %v334, %v332
      %v393 = vpack.c.b16 %v337, %v335
      %v394 = vpack.c.b16 %v338, %v336
      %v395 = vpack.c.b16 %v341, %v339
      %v396 = vpack.c.b16 %v342, %v340
      %v397 = vpack.c.b16 %v345, %v343
      %v398 = vpack.c.b16 %v346, %v344
      %v399 = vpack.c.b16 %v349, %v347
      %v400 = vpack.c.b16 %v350, %v348
      %v401 = vpack.c.b16 %v353, %v351
      %v402 = vpack.c.b16 %v354, %v352
      %v403 = vpack.c.b16 %v357, %v355
      %v404 = vpack.c.b16 %v358, %v356
      %v405 = vpack.c.b16 %v361, %v359
      %v406 = vpack.c.b16 %v362, %v360
      %v407 = vpack.c.b16 %v365, %v363
      %v408 = vpack.c.b16 %v366, %v364
      %v409 = vpack.c.b16 %v369, %v367
      %v410 = vpack.c.b16 %v370, %v368
      %v411 = vpack.c.b16 %v373, %v371
      %v412 = vpack.c.b16 %v374, %v372
      %v413 = vpack.c.b16 %v377, %v375
      %v414 = vpack.c.b16 %v378, %v376
      %v415 = vpack.c.b16 %v381, %v379
      %v416 = vpack.c.b16 %v382, %v380
      %v417 = vpack.c.b16 %v385, %v383
      %v418 = vpack.c.b16 %v386, %v384
      %v453 = vunpack.c.l.b16 %v273
      %v454 = vunpack.c.l.b16 %v274
      %v455 = vunpack.c.l.b16 %v275
      %v456 = vunpack.c.l.b16 %v276
      %v457 = vunpack.c.l.b16 %v277
      %v458 = vunpack.c.l.b16 %v278
      %v459 = vunpack.c.l.b16 %v279
      %v460 = vunpack.c.l.b16 %v280
      %v461 = vunpack.c.l.b16 %v281
      %v462 = vunpack.c.l.b16 %v282
      %v463 = vunpack.c.l.b16 %v283
      %v464 = vunpack.c.l.b16 %v284
      %v465 = vunpack.c.l.b16 %v285
      %v466 = vunpack.c.l.b16 %v286
      %v467 = vunpack.c.l.b16 %v287
      %v468 = vunpack.c.l.b16 %v288
      %v469 = vunpack.c.l.b16 %v289
      %v470 = vunpack.c.l.b16 %v290
      %v471 = vpack.c.b16 %v454, %v453
      %v472 = vpack.c.b16 %v456, %v455
      %v473 = vpack.c.b16 %v458, %v457
      %v474 = vpack.c.b16 %v460, %v459
      %v475 = vpack.c.b16 %v462, %v461
      %v476 = vpack.c.b16 %v464, %v463
      %v477 = vpack.c.b16 %v466, %v465
      %v478 = vpack.c.b16 %v468, %v467
      %v479 = vpack.c.b16 %v470, %v469
      %vm489 = vcmask 130048
      %v491 = vsel %vm489, %v388, 0
      %v494 = vsel %vm489, %v390, 0
      %v497 = vsel %vm489, %v392, 0
      %v500 = vsel %vm489, %v394, 0
      %v503 = vsel %vm489, %v396, 0
      %v506 = vsel %vm489, %v398, 0
      %v509 = vsel %vm489, %v400, 0
      %v512 = vsel %vm489, %v402, 0
      %v515 = vsel %vm489, %v404, 0
      %v518 = vsel %vm489, %v406, 0
      %v521 = vsel %vm489, %v408, 0
      %v524 = vsel %vm489, %v410, 0
      %v527 = vsel %vm489, %v412, 0
      %v530 = vsel %vm489, %v414, 0
      %v533 = vsel %vm489, %v416, 0
      %v536 = vsel %vm489, %v418, 0
      %538 = vmatprep.subr.bf16.mxu0 0
      %539 = vmatpush1.bf16.msra.mxu0 %v471
      %540 = vmatprep.subr.bf16.mxu0 0
      %541 = vmatpush1.bf16.msra.mxu0 %v472
      %542 = vmatprep.subr.bf16.mxu0 0
      %543 = vmatpush1.bf16.msra.mxu0 %v473
      %544 = vmatprep.subr.bf16.mxu0 0
      %545 = vmatpush1.bf16.msra.mxu0 %v474
      %546 = vmatprep.subr.bf16.mxu0 0
      %547 = vmatpush1.bf16.msra.mxu0 %v475
      %548 = vmatprep.subr.bf16.mxu0 0
      %549 = vmatpush1.bf16.msra.mxu0 %v476
      %550 = vmatprep.subr.bf16.mxu0 0
      %551 = vmatpush1.bf16.msra.mxu0 %v477
      %552 = vmatprep.subr.bf16.mxu0 0
      %553 = vmatpush1.bf16.msra.mxu0 %v478
      %554 = vmatprep.subr.bf16.mxu0 0
      %555 = vmatpush1.bf16.msra.mxu0 %v479
      %556 = vmatprep.subr.bf16.mxu0 0
      %557 = vmatpush1.bf16.msra.mxu0 0
      %558 = vmatprep.subr.bf16.mxu0 0
      %559 = vmatpush1.bf16.msra.mxu0 0
      %560 = vmatprep.subr.bf16.mxu0 0
      %561 = vmatpush1.bf16.msra.mxu0 0
      %562 = vmatprep.subr.bf16.mxu0 0
      %563 = vmatpush1.bf16.msra.mxu0 0
      %564 = vmatprep.subr.bf16.mxu0 0
      %565 = vmatpush1.bf16.msra.mxu0 0
      %566 = vmatprep.subr.bf16.mxu0 0
      %567 = vmatpush1.bf16.msra.mxu0 0
      %568 = vmatprep.subr.bf16.mxu0 0
      %569 = vmatpush1.bf16.msra.mxu0 0
      %570 = vmatprep.mubr.bf16.mxu0 %v491
      %571 = vmatmul.mubr.bf16.gmra.mrb[0].mxu0 %v387
      %v572 = vpop.f32.mrb[0].mxu0
      %v573 = vadd.f32 0.0, %v572
      %v574 = vpop.f32.mrb[0].mxu0
      %v575 = vpop.f32.mrb[0].mxu0
      %v576 = vadd.f32 0.0, %v575
      %v577 = vpop.f32.mrb[0].mxu0
      %578 = vmatprep.mubr.bf16.mxu0 %v494
      %579 = vmatmul.mubr.bf16.gmra.mrb[0].mxu0 %v389
      %v580 = vpop.f32.mrb[0].mxu0
      %v581 = vadd.f32 0.0, %v580
      %v582 = vpop.f32.mrb[0].mxu0
      %v583 = vpop.f32.mrb[0].mxu0
      %v584 = vadd.f32 0.0, %v583
      %v585 = vpop.f32.mrb[0].mxu0
      %586 = vmatprep.mubr.bf16.mxu0 %v497
      %587 = vmatmul.mubr.bf16.gmra.mrb[0].mxu0 %v391
      %v588 = vpop.f32.mrb[0].mxu0
      %v589 = vadd.f32 0.0, %v588
      %v590 = vpop.f32.mrb[0].mxu0
      %v591 = vpop.f32.mrb[0].mxu0
      %v592 = vadd.f32 0.0, %v591
      %v593 = vpop.f32.mrb[0].mxu0
      %594 = vmatprep.mubr.bf16.mxu0 %v500
      %595 = vmatmul.mubr.bf16.gmra.mrb[0].mxu0 %v393
      %v596 = vpop.f32.mrb[0].mxu0
      %v597 = vadd.f32 0.0, %v596
      %v598 = vpop.f32.mrb[0].mxu0
      %v599 = vpop.f32.mrb[0].mxu0
      %v600 = vadd.f32 0.0, %v599
      %v601 = vpop.f32.mrb[0].mxu0
      %602 = vmatprep.mubr.bf16.mxu0 %v503
      %603 = vmatmul.mubr.bf16.gmra.mrb[0].mxu0 %v395
      %v604 = vpop.f32.mrb[0].mxu0
      %v605 = vadd.f32 0.0, %v604
      %v606 = vpop.f32.mrb[0].mxu0
      %v607 = vpop.f32.mrb[0].mxu0
      %v608 = vadd.f32 0.0, %v607
      %v609 = vpop.f32.mrb[0].mxu0
      %610 = vmatprep.mubr.bf16.mxu0 %v506
      %611 = vmatmul.mubr.bf16.gmra.mrb[0].mxu0 %v397
      %v612 = vpop.f32.mrb[0].mxu0
      %v613 = vadd.f32 0.0, %v612
      %v614 = vpop.f32.mrb[0].mxu0
      %v615 = vpop.f32.mrb[0].mxu0
      %v616 = vadd.f32 0.0, %v615
      %v617 = vpop.f32.mrb[0].mxu0
      %618 = vmatprep.mubr.bf16.mxu0 %v509
      %619 = vmatmul.mubr.bf16.gmra.mrb[0].mxu0 %v399
      %v620 = vpop.f32.mrb[0].mxu0
      %v621 = vadd.f32 0.0, %v620
      %v622 = vpop.f32.mrb[0].mxu0
      %v623 = vpop.f32.mrb[0].mxu0
      %v624 = vadd.f32 0.0, %v623
      %v625 = vpop.f32.mrb[0].mxu0
      %626 = vmatprep.mubr.bf16.mxu0 %v512
      %627 = vmatmul.mubr.bf16.gmra.mrb[0].mxu0 %v401
      %v628 = vpop.f32.mrb[0].mxu0
      %v629 = vadd.f32 0.0, %v628
      %v630 = vpop.f32.mrb[0].mxu0
      %v631 = vpop.f32.mrb[0].mxu0
      %v632 = vadd.f32 0.0, %v631
      %v633 = vpop.f32.mrb[0].mxu0
      %634 = vmatprep.mubr.bf16.mxu0 %v515
      %635 = vmatmul.mubr.bf16.gmra.mrb[0].mxu0 %v403
      %v636 = vpop.f32.mrb[0].mxu0
      %v637 = vadd.f32 0.0, %v636
      %v638 = vpop.f32.mrb[0].mxu0
      %v639 = vpop.f32.mrb[0].mxu0
      %v640 = vadd.f32 0.0, %v639
      %v641 = vpop.f32.mrb[0].mxu0
      %642 = vmatprep.mubr.bf16.mxu0 %v518
      %643 = vmatmul.mubr.bf16.gmra.mrb[0].mxu0 %v405
      %v644 = vpop.f32.mrb[0].mxu0
      %v645 = vadd.f32 0.0, %v644
      %v646 = vpop.f32.mrb[0].mxu0
      %v647 = vpop.f32.mrb[0].mxu0
      %v648 = vadd.f32 0.0, %v647
      %v649 = vpop.f32.mrb[0].mxu0
      %650 = vmatprep.mubr.bf16.mxu0 %v521
      %651 = vmatmul.mubr.bf16.gmra.mrb[0].mxu0 %v407
      %v652 = vpop.f32.mrb[0].mxu0
      %v653 = vadd.f32 0.0, %v652
      %v654 = vpop.f32.mrb[0].mxu0
      %v655 = vpop.f32.mrb[0].mxu0
      %v656 = vadd.f32 0.0, %v655
      %v657 = vpop.f32.mrb[0].mxu0
      %658 = vmatprep.mubr.bf16.mxu0 %v524
      %659 = vmatmul.mubr.bf16.gmra.mrb[0].mxu0 %v409
      %v660 = vpop.f32.mrb[0].mxu0
      %v661 = vadd.f32 0.0, %v660
      %v662 = vpop.f32.mrb[0].mxu0
      %v663 = vpop.f32.mrb[0].mxu0
      %v664 = vadd.f32 0.0, %v663
      %v665 = vpop.f32.mrb[0].mxu0
      %666 = vmatprep.mubr.bf16.mxu0 %v527
      %667 = vmatmul.mubr.bf16.gmra.mrb[0].mxu0 %v411
      %v668 = vpop.f32.mrb[0].mxu0
      %v669 = vadd.f32 0.0, %v668
      %v670 = vpop.f32.mrb[0].mxu0
      %v671 = vpop.f32.mrb[0].mxu0
      %v672 = vadd.f32 0.0, %v671
      %v673 = vpop.f32.mrb[0].mxu0
      %674 = vmatprep.mubr.bf16.mxu0 %v530
      %675 = vmatmul.mubr.bf16.gmra.mrb[0].mxu0 %v413
      %v676 = vpop.f32.mrb[0].mxu0
      %v677 = vadd.f32 0.0, %v676
      %v678 = vpop.f32.mrb[0].mxu0
      %v679 = vpop.f32.mrb[0].mxu0
      %v680 = vadd.f32 0.0, %v679
      %v681 = vpop.f32.mrb[0].mxu0
      %682 = vmatprep.mubr.bf16.mxu0 %v533
      %683 = vmatmul.mubr.bf16.gmra.mrb[0].mxu0 %v415
      %v684 = vpop.f32.mrb[0].mxu0
      %v685 = vadd.f32 0.0, %v684
      %v686 = vpop.f32.mrb[0].mxu0
      %v687 = vpop.f32.mrb[0].mxu0
      %v688 = vadd.f32 0.0, %v687
      %v689 = vpop.f32.mrb[0].mxu0
      %690 = vmatprep.mubr.bf16.mxu0 %v536
      %691 = vmatmul.mubr.bf16.gmra.mrb[0].mxu0 %v417
      %v692 = vpop.f32.mrb[0].mxu0
      %v693 = vadd.f32 0.0, %v692
      %v694 = vpop.f32.mrb[0].mxu0
      %v695 = vpop.f32.mrb[0].mxu0
      %v696 = vadd.f32 0.0, %v695
      %v697 = vpop.f32.mrb[0].mxu0
      %698 = vdwg.mxu0
      %v699 = vld [vmem:[%s2] sm:$0x1]
      %v701 = vlaneseq
      %v702 = vshrl.u32 %v701, 7
      %v703 = vsub.s32 0, %v702
      %v704 = vrot.slane %v699, %v703
      %v706 = vmul.f32 %v573, %v704
      %v707 = vmul.f32 %v576, %v704
      %v708 = vmul.f32 %v581, %v704
      %v709 = vmul.f32 %v584, %v704
      %v710 = vmul.f32 %v589, %v704
      %v711 = vmul.f32 %v592, %v704
      %v712 = vmul.f32 %v597, %v704
      %v713 = vmul.f32 %v600, %v704
      %v714 = vmul.f32 %v605, %v704
      %v715 = vmul.f32 %v608, %v704
      %v716 = vmul.f32 %v613, %v704
      %v717 = vmul.f32 %v616, %v704
      %v718 = vmul.f32 %v621, %v704
      %v719 = vmul.f32 %v624, %v704
      %v720 = vmul.f32 %v629, %v704
      %v721 = vmul.f32 %v632, %v704
      %v722 = vmul.f32 %v637, %v704
      %v723 = vmul.f32 %v640, %v704
      %v724 = vmul.f32 %v645, %v704
      %v725 = vmul.f32 %v648, %v704
      %v726 = vmul.f32 %v653, %v704
      %v727 = vmul.f32 %v656, %v704
      %v728 = vmul.f32 %v661, %v704
      %v729 = vmul.f32 %v664, %v704
      %v730 = vmul.f32 %v669, %v704
      %v731 = vmul.f32 %v672, %v704
      %v732 = vmul.f32 %v677, %v704
      %v733 = vmul.f32 %v680, %v704
      %v734 = vmul.f32 %v685, %v704
      %v735 = vmul.f32 %v688, %v704
      %v736 = vmul.f32 %v693, %v704
      %v737 = vmul.f32 %v696, %v704
      %v738 = vld [vmem:[%s3] sm:$0x1]
      %v740 = vlaneseq
      %v741 = vshrl.u32 %v740, 7
      %v742 = vsub.s32 0, %v741
      %v743 = vrot.slane %v738, %v742
      %v745 = vadd.f32 %v706, %v743
      %v746 = vadd.f32 %v707, %v743
      %v747 = vadd.f32 %v708, %v743
      %v748 = vadd.f32 %v709, %v743
      %v749 = vadd.f32 %v710, %v743
      %v750 = vadd.f32 %v711, %v743
      %v751 = vadd.f32 %v712, %v743
      %v752 = vadd.f32 %v713, %v743
      %v753 = vadd.f32 %v714, %v743
      %v754 = vadd.f32 %v715, %v743
      %v755 = vadd.f32 %v716, %v743
      %v756 = vadd.f32 %v717, %v743
      %v757 = vadd.f32 %v718, %v743
      %v758 = vadd.f32 %v719, %v743
      %v759 = vadd.f32 %v720, %v743
      %v760 = vadd.f32 %v721, %v743
      %v761 = vadd.f32 %v722, %v743
      %v762 = vadd.f32 %v723, %v743
      %v763 = vadd.f32 %v724, %v743
      %v764 = vadd.f32 %v725, %v743
      %v765 = vadd.f32 %v726, %v743
      %v766 = vadd.f32 %v727, %v743
      %v767 = vadd.f32 %v728, %v743
      %v768 = vadd.f32 %v729, %v743
      %v769 = vadd.f32 %v730, %v743
      %v770 = vadd.f32 %v731, %v743
      %v771 = vadd.f32 %v732, %v743
      %v772 = vadd.f32 %v733, %v743
      %v773 = vadd.f32 %v734, %v743
      %v774 = vadd.f32 %v735, %v743
      %v775 = vadd.f32 %v736, %v743
      %v776 = vadd.f32 %v737, %v743
      %v777 = vmax.f32 %v745, 0.0
      %v778 = vmax.f32 %v746, 0.0
      %v779 = vmax.f32 %v747, 0.0
      %v780 = vmax.f32 %v748, 0.0
      %v781 = vmax.f32 %v749, 0.0
      %v782 = vmax.f32 %v750, 0.0
      %v783 = vmax.f32 %v751, 0.0
      %v784 = vmax.f32 %v752, 0.0
      %v785 = vmax.f32 %v753, 0.0
      %v786 = vmax.f32 %v754, 0.0
      %v787 = vmax.f32 %v755, 0.0
      %v788 = vmax.f32 %v756, 0.0
      %v789 = vmax.f32 %v757, 0.0
      %v790 = vmax.f32 %v758, 0.0
      %v791 = vmax.f32 %v759, 0.0
      %v792 = vmax.f32 %v760, 0.0
      %v793 = vmax.f32 %v761, 0.0
      %v794 = vmax.f32 %v762, 0.0
      %v795 = vmax.f32 %v763, 0.0
      %v796 = vmax.f32 %v764, 0.0
      %v797 = vmax.f32 %v765, 0.0
      %v798 = vmax.f32 %v766, 0.0
      %v799 = vmax.f32 %v767, 0.0
      %v800 = vmax.f32 %v768, 0.0
      %v801 = vmax.f32 %v769, 0.0
      %v802 = vmax.f32 %v770, 0.0
      %v803 = vmax.f32 %v771, 0.0
      %v804 = vmax.f32 %v772, 0.0
      %v805 = vmax.f32 %v773, 0.0
      %v806 = vmax.f32 %v774, 0.0
      %v807 = vmax.f32 %v775, 0.0
      %v808 = vmax.f32 %v776, 0.0
      %vm809 = vcmask 64512
      %810 = vst.msk [vmem:[%s238] sm:$0xff] %vm809, %v777
      %811 = vst.msk [vmem:[%s238 + $0x8] sm:$0xff] %vm809, %v778
      %812 = vst.msk [vmem:[%s238 + $0x10] sm:$0xff] %vm809, %v779
      %813 = vst.msk [vmem:[%s238 + $0x18] sm:$0xff] %vm809, %v780
      %814 = vst.msk [vmem:[%s238 + $0x20] sm:$0xff] %vm809, %v781
      %815 = vst.msk [vmem:[%s238 + $0x28] sm:$0xff] %vm809, %v782
      %816 = vst.msk [vmem:[%s238 + $0x30] sm:$0xff] %vm809, %v783
      %817 = vst.msk [vmem:[%s238 + $0x38] sm:$0xff] %vm809, %v784
      %818 = vst.msk [vmem:[%s238 + $0x40] sm:$0xff] %vm809, %v785
      %819 = vst.msk [vmem:[%s238 + $0x48] sm:$0xff] %vm809, %v786
      %820 = vst.msk [vmem:[%s238 + $0x50] sm:$0xff] %vm809, %v787
      %821 = vst.msk [vmem:[%s238 + $0x58] sm:$0xff] %vm809, %v788
      %822 = vst.msk [vmem:[%s238 + $0x60] sm:$0xff] %vm809, %v789
      %823 = vst.msk [vmem:[%s238 + $0x68] sm:$0xff] %vm809, %v790
      %824 = vst.msk [vmem:[%s238 + $0x70] sm:$0xff] %vm809, %v791
      %825 = vst.msk [vmem:[%s238 + $0x78] sm:$0xff] %vm809, %v792
      %826 = vst.msk [vmem:[%s238 + $0x80] sm:$0xff] %vm809, %v793
      %827 = vst.msk [vmem:[%s238 + $0x88] sm:$0xff] %vm809, %v794
      %828 = vst.msk [vmem:[%s238 + $0x90] sm:$0xff] %vm809, %v795
      %829 = vst.msk [vmem:[%s238 + $0x98] sm:$0xff] %vm809, %v796
      %830 = vst.msk [vmem:[%s238 + $0xa0] sm:$0xff] %vm809, %v797
      %831 = vst.msk [vmem:[%s238 + $0xa8] sm:$0xff] %vm809, %v798
      %832 = vst.msk [vmem:[%s238 + $0xb0] sm:$0xff] %vm809, %v799
      %833 = vst.msk [vmem:[%s238 + $0xb8] sm:$0xff] %vm809, %v800
      %834 = vst.msk [vmem:[%s238 + $0xc0] sm:$0xff] %vm809, %v801
      %835 = vst.msk [vmem:[%s238 + $0xc8] sm:$0xff] %vm809, %v802
      %836 = vst.msk [vmem:[%s238 + $0xd0] sm:$0xff] %vm809, %v803
      %837 = vst.msk [vmem:[%s238 + $0xd8] sm:$0xff] %vm809, %v804
      %838 = vst.msk [vmem:[%s238 + $0xe0] sm:$0xff] %vm809, %v805
      %839 = vst.msk [vmem:[%s238 + $0xe8] sm:$0xff] %vm809, %v806
      %840 = vst.msk [vmem:[%s238 + $0xf0] sm:$0xff] %vm809, %v807
      %841 = vst.msk [vmem:[%s238 + $0xf8] sm:$0xff] %vm809, %v808
      %s842 = smul.u32 32, %s20
      %p843 = scmp.lt.s32.totalorder %s19, 1
      %s844 = scalar_select %p843, %s19, 1
      %p845 = scmp.lt.s32.totalorder %s842, 31
      %s846 = scalar_select %p845, %s842, 31
      %s847 = smul.addr %s844, 32
      %s848 = sadd.s32 %s846, %s847
      %s849 = smul.addr %s848, 8
      %s850 = scalar_lea.vmem %s4, %s849
      // Predicated region
      $region37: #{dual_stream_unet.57} parent=35 // pred_check
        %p851 = pneg %p138
      $region38: #{dual_stream_unet.57} parent=35 // pred_check_branch
        %853 = sbr.rel (%p851) target = $region40
      $region39: #{dual_stream_unet.57} parent=35 // pred_region
        %s854 = smul.u32 32, %s20
      $region40: #{dual_stream_unet.57} parent=35 // pred_fallthru
        _
    $region36: #{dual_stream_unet.57} parent=5 // pred_fallthru
      _
    %p855 = scmp.le.s32.totalorder 2, %s10
    // Predicated region
    $region41: #{dual_stream_unet.57} parent=5 // pred_check
      %p856 = pneg %p855
    $region42: #{dual_stream_unet.57} parent=5 // pred_check_branch
      %858 = sbr.rel (%p856) target = $region44
    $region43: #{dual_stream_unet.57} parent=5 // pred_region
      %s859 = ssub.s32 %s10, 2
      // Predicated region
      $region45: #{dual_stream_unet.57} parent=43 // pred_check
        %p860 = pneg %p144
      $region46: #{dual_stream_unet.57} parent=43 // pred_check_branch
        %862 = sbr.rel (%p860) target = $region48
      $region47: #{dual_stream_unet.57} parent=43 // pred_region
        %s863 = smul.u32 32, %s22
        %p864 = scmp.lt.s32.totalorder %s21, 1
        %s865 = scalar_select %p864, %s21, 1
        %p866 = scmp.lt.s32.totalorder %s863, 31
        %s867 = scalar_select %p866, %s863, 31
        %s868 = smul.addr %s865, 32
        %s869 = sadd.s32 %s867, %s868
        %s870 = smul.addr %s869, 8
        %s871 = scalar_lea.vmem %s4, %s870
      $region48: #{dual_stream_unet.57} parent=43 // pred_fallthru
        _
    $region44: #{dual_stream_unet.57} parent=5 // pred_fallthru
      _
  $region6: #{dual_stream_unet.57} parent=0 // loop_footer
    %s14 = sadd.s32 1, %s10
  $region7: #{dual_stream_unet.57} parent=0 // loop_footer_branch
    %9 = sbr.rel target = $region3
  $region8: #{dual_stream_unet.57} parent=0 // loop_exit
    _

// kernel: dual_stream_unet.59
$region0: #{dual_stream_unet.59}
  #allocation0 [shape = 'u32[]', space=smem, size = 0x4, offset = 0x4, fixed_abs, tag = 'smem constant byte address 0x4 - core index']
  #allocation1 [shape = 'u32[144,128]{1,0:T(1,128)}', space=vmem, size = 0x12000, scoped, tag = 'internal scratch']
  #allocation2 [shape = 'f32[1,1]{1,0:T(1,128)S(1)}', space=vmem, size = 0x200, scoped, tag = 'scoped memory for dual_stream_unet.59']
  #allocation3 [shape = 'f32[1,1]{1,0:T(1,128)S(1)}', space=vmem, size = 0x200, scoped, tag = 'scoped memory for dual_stream_unet.59']
  %s0 = inlined_call_operand.vmem [shape: bf16[2,256,8], index: 0, kind: input, shape index: {}]
  %s1 = inlined_call_operand.vmem [shape: bf16[8,1], index: 1, kind: input, shape index: {}]
  %s2 = inlined_call_operand.<no memory space> [shape: f32[1,1], index: 2, kind: input, shape index: {}]
  %s3 = inlined_call_operand.<no memory space> [shape: f32[1,1], index: 3, kind: input, shape index: {}]
  %s4 = inlined_call_operand.vmem [shape: f32[2,256,1], index: 4, kind: output, shape index: {}]
  %s5 = sld [smem:[#allocation0]]
  $region49: #{dual_stream_unet.59} parent=0
    _
  %s7 = ssub.s32 1, %s5
  %s8 = scalar_select 0, %s7, %s5
  %v9 = vstv %s2
  %10 = vst [vmem:[#allocation2] sm:$0x1] %v9
  %v11 = vstv %s3
  %12 = vst [vmem:[#allocation3] sm:$0x1] %v11
  loop: start=0, step=1, limit=4
  $region2: #{dual_stream_unet.59} parent=0 // loop_pre_header
    _
  $region3: #{dual_stream_unet.59} parent=0 // loop_header
    %s14 = sphi 0, %s18
    %p15 = scmp.ge.s32.totalorder %s14, 4
    %s21 = sphi 0, %s33
    %s22 = sphi 0, %s29
    %s23 = sphi 0, %s21
    %s24 = sphi 0, %s22
    %s25 = sphi 0, %s23
    %s26 = sphi 0, %s24
    %s38 = sphi 0, %s40
    %s41 = sphi 0, %s38
    %s42 = sphi 0, %s41
    %s58 = sphi 0, %s42
    %s62 = sphi 0, %s62
    %s64 = sphi 0, %s62
    %s65 = sphi 0, %s64
    %s79 = sphi 0, %s65
    %s83 = sphi 0, %s83
    %s85 = sphi 0, %s83
    %s86 = sphi 0, %s85
    %s100 = sphi 0, %s86
    %s104 = sphi 0, %s104
    %s106 = sphi 0, %s104
    %s107 = sphi 0, %s106
    %s121 = sphi 0, %s107
    %s129 = sphi 0, %s131
    %s132 = sphi 0, %s129
    %s133 = sphi 0, %s132
    %s149 = sphi 0, %s133
  $region4: #{dual_stream_unet.59} parent=0 // loop_header_branch
    %17 = sbr.rel (%p15) target = $region8
  $region5: #{dual_stream_unet.59} parent=0 // loop_body
    %s19 = ssub.s32 %s14, 1
    %s20 = ssub.s32 %s14, 2
    %s27 = sadd.s32 1, %s22
    %p28 = scmp.ge.s32.totalorder %s27, 1
    %s29 = scalar_select %p28, 0, %s27
    %s30 = sadd.s32 1, %s21
    %s31 = scalar_select %p28, %s30, %s21
    %p32 = scmp.ge.s32.totalorder %s31, 2
    %s33 = scalar_select %p32, 0, %s31
    %s34 = ssub.s32 %s21, %s33
    %s35 = ssub.s32 %s22, %s29
    %s36 = sor.u32 %s34, %s35
    %p37 = scmp.eq.s32.totalorder %s36, 0
    %s39 = sadd.s32 %s38, 1
    %s40 = scalar_select %p37, %s38, %s39
    %p43 = pneg %p37
    %p44 = scmp.eq.s32.totalorder %s14, 1
    %p45 = por %p43, %p44
    %p46 = scmp.ne.s32.totalorder %s38, %s41
    %p47 = scmp.eq.s32.totalorder %s14, 0
    %p48 = por %p46, %p47
    %p49 = scmp.ne.s32.totalorder %s38, %s41
    %p50 = scmp.eq.s32.totalorder %s19, 1
    %p51 = por %p49, %p50
    %p52 = scmp.ne.s32.totalorder %s41, %s42
    %p53 = scmp.eq.s32.totalorder %s19, 0
    %p54 = por %p52, %p53
    %p55 = scmp.ne.s32.totalorder %s41, %s42
    %p56 = scmp.eq.s32.totalorder %s20, 1
    %p57 = por %p55, %p56
    %p59 = scmp.ne.s32.totalorder %s42, %s58
    %p60 = scmp.eq.s32.totalorder %s20, 0
    %p61 = por %p59, %p60
    %s63 = sadd.s32 %s62, 1
    %p66 = scmp.eq.s32.totalorder %s14, 1
    %p67 = scmp.ne.s32.totalorder %s62, %s64
    %p68 = scmp.eq.s32.totalorder %s14, 0
    %p69 = por %p67, %p68
    %p70 = scmp.ne.s32.totalorder %s62, %s64
    %p71 = scmp.eq.s32.totalorder %s19, 1
    %p72 = por %p70, %p71
    %p73 = scmp.ne.s32.totalorder %s64, %s65
    %p74 = scmp.eq.s32.totalorder %s19, 0
    %p75 = por %p73, %p74
    %p76 = scmp.ne.s32.totalorder %s64, %s65
    %p77 = scmp.eq.s32.totalorder %s20, 1
    %p78 = por %p76, %p77
    %p80 = scmp.ne.s32.totalorder %s65, %s79
    %p81 = scmp.eq.s32.totalorder %s20, 0
    %p82 = por %p80, %p81
    %s84 = sadd.s32 %s83, 1
    %p87 = scmp.eq.s32.totalorder %s14, 1
    %p88 = scmp.ne.s32.totalorder %s83, %s85
    %p89 = scmp.eq.s32.totalorder %s14, 0
    %p90 = por %p88, %p89
    %p91 = scmp.ne.s32.totalorder %s83, %s85
    %p92 = scmp.eq.s32.totalorder %s19, 1
    %p93 = por %p91, %p92
    %p94 = scmp.ne.s32.totalorder %s85, %s86
    %p95 = scmp.eq.s32.totalorder %s19, 0
    %p96 = por %p94, %p95
    %p97 = scmp.ne.s32.totalorder %s85, %s86
    %p98 = scmp.eq.s32.totalorder %s20, 1
    %p99 = por %p97, %p98
    %p101 = scmp.ne.s32.totalorder %s86, %s100
    %p102 = scmp.eq.s32.totalorder %s20, 0
    %p103 = por %p101, %p102
    %s105 = sadd.s32 %s104, 1
    %p108 = scmp.eq.s32.totalorder %s14, 1
    %p109 = scmp.ne.s32.totalorder %s104, %s106
    %p110 = scmp.eq.s32.totalorder %s14, 0
    %p111 = por %p109, %p110
    %p112 = scmp.ne.s32.totalorder %s104, %s106
    %p113 = scmp.eq.s32.totalorder %s19, 1
    %p114 = por %p112, %p113
    %p115 = scmp.ne.s32.totalorder %s106, %s107
    %p116 = scmp.eq.s32.totalorder %s19, 0
    %p117 = por %p115, %p116
    %p118 = scmp.ne.s32.totalorder %s106, %s107
    %p119 = scmp.eq.s32.totalorder %s20, 1
    %p120 = por %p118, %p119
    %p122 = scmp.ne.s32.totalorder %s107, %s121
    %p123 = scmp.eq.s32.totalorder %s20, 0
    %p124 = por %p122, %p123
    %s125 = ssub.s32 %s21, %s33
    %s126 = ssub.s32 %s22, %s29
    %s127 = sor.u32 %s125, %s126
    %p128 = scmp.eq.s32.totalorder %s127, 0
    %s130 = sadd.s32 %s129, 1
    %s131 = scalar_select %p128, %s129, %s130
    %p134 = pneg %p128
    %p135 = scmp.eq.s32.totalorder %s14, 1
    %p136 = por %p134, %p135
    %p137 = scmp.ne.s32.totalorder %s129, %s132
    %p138 = scmp.eq.s32.totalorder %s14, 0
    %p139 = por %p137, %p138
    %p140 = scmp.ne.s32.totalorder %s129, %s132
    %p141 = scmp.eq.s32.totalorder %s19, 1
    %p142 = por %p140, %p141
    %p143 = scmp.ne.s32.totalorder %s132, %s133
    %p144 = scmp.eq.s32.totalorder %s19, 0
    %p145 = por %p143, %p144
    %p146 = scmp.ne.s32.totalorder %s132, %s133
    %p147 = scmp.eq.s32.totalorder %s20, 1
    %p148 = por %p146, %p147
    %p150 = scmp.ne.s32.totalorder %s133, %s149
    %p151 = scmp.eq.s32.totalorder %s20, 0
    %p152 = por %p150, %p151
    %p153 = scmp.le.s32.totalorder 1, %s14
    %p154 = scmp.lt.s32.totalorder %s14, 3
    %p155 = pnand %p153, %p154
    %p156 = pneg %p155
    // Predicated region
    $region9: #{dual_stream_unet.59} parent=5 // pred_check
      _
    $region10: #{dual_stream_unet.59} parent=5 // pred_check_branch
      %158 = sbr.rel (%p155) target = $region12
    $region11: #{dual_stream_unet.59} parent=5 // pred_region
      %s159 = ssub.s32 %s14, 1
      // Predicated region
      $region13: #{dual_stream_unet.59} parent=11 // pred_check
        %p160 = pneg %p75
      $region14: #{dual_stream_unet.59} parent=11 // pred_check_branch
        %162 = sbr.rel (%p160) target = $region16
      $region15: #{dual_stream_unet.59} parent=11 // pred_region
        _
      $region16: #{dual_stream_unet.59} parent=11 // pred_fallthru
        _
      // Predicated region
      $region17: #{dual_stream_unet.59} parent=11 // pred_check
        %p163 = pneg %p96
      $region18: #{dual_stream_unet.59} parent=11 // pred_check_branch
        %165 = sbr.rel (%p163) target = $region20
      $region19: #{dual_stream_unet.59} parent=11 // pred_region
        _
      $region20: #{dual_stream_unet.59} parent=11 // pred_fallthru
        _
      // Predicated region
      $region21: #{dual_stream_unet.59} parent=11 // pred_check
        %p166 = pneg %p117
      $region22: #{dual_stream_unet.59} parent=11 // pred_check_branch
        %168 = sbr.rel (%p166) target = $region24
      $region23: #{dual_stream_unet.59} parent=11 // pred_region
        _
      $region24: #{dual_stream_unet.59} parent=11 // pred_fallthru
        _
    $region12: #{dual_stream_unet.59} parent=5 // pred_fallthru
      _
    %p169 = scmp.lt.s32.totalorder %s14, 2
    // Predicated region
    $region25: #{dual_stream_unet.59} parent=5 // pred_check
      %p170 = pneg %p169
    $region26: #{dual_stream_unet.59} parent=5 // pred_check_branch
      %172 = sbr.rel (%p170) target = $region28
    $region27: #{dual_stream_unet.59} parent=5 // pred_region
      // Predicated region
      $region29: #{dual_stream_unet.59} parent=27 // pred_check
        %p173 = pneg %p48
      $region30: #{dual_stream_unet.59} parent=27 // pred_check_branch
        %175 = sbr.rel (%p173) target = $region32
      $region31: #{dual_stream_unet.59} parent=27 // pred_region
        %s176 = smul.u32 32, %s22
        %p177 = scmp.lt.s32.totalorder %s21, 1
        %s178 = scalar_select %p177, %s21, 1
        %p179 = scmp.lt.s32.totalorder %s176, 31
        %s180 = scalar_select %p179, %s176, 31
        %s181 = smul.addr %s178, 32
        %s182 = sadd.s32 %s180, %s181
        %s183 = smul.addr %s182, 4
        %s184 = scalar_lea.vmem %s0, %s183
        %s185 = smul.u32 32, %s22
      $region32: #{dual_stream_unet.59} parent=27 // pred_fallthru
        _
    $region28: #{dual_stream_unet.59} parent=5 // pred_fallthru
      _
    %p186 = scmp.le.s32.totalorder 1, %s14
    %p187 = scmp.lt.s32.totalorder %s14, 3
    %p188 = pnand %p186, %p187
    %p189 = pneg %p188
    // Predicated region
    $region33: #{dual_stream_unet.59} parent=5 // pred_check
      _
    $region34: #{dual_stream_unet.59} parent=5 // pred_check_branch
      %191 = sbr.rel (%p188) target = $region36
    $region35: #{dual_stream_unet.59} parent=5 // pred_region
      %s192 = ssub.s32 %s14, 1
      %s193 = smul.u32 32, %s24
      %p194 = scmp.lt.s32.totalorder %s23, 1
      %s195 = scalar_select %p194, %s23, 1
      %p196 = scmp.lt.s32.totalorder %s193, 31
      %s197 = scalar_select %p196, %s193, 31
      %s198 = smul.addr %s195, 32
      %s199 = sadd.s32 %s197, %s198
      %s200 = smul.addr %s199, 4
      %s201 = scalar_lea.vmem %s0, %s200
      %p202 = pneg %p54
      %p203 = pneg %p51
      %p204 = pneg %p75
      %p205 = pneg %p72
      %p206 = pneg %p96
      %p207 = pneg %p93
      %p208 = pneg %p117
      %p209 = pneg %p114
      %p210 = pneg %p145
      %p211 = pneg %p142
      %s212 = smul.u32 32, %s24
      %p213 = scmp.lt.s32.totalorder %s23, 1
      %s214 = scalar_select %p213, %s23, 1
      %p215 = scmp.lt.s32.totalorder %s212, 31
      %s216 = scalar_select %p215, %s212, 31
      %s217 = smul.addr %s214, 32
      %s218 = sadd.s32 %s216, %s217
      %s219 = smul.addr %s218, 8
      %s220 = scalar_lea.vmem %s4, %s219
      %s221 = smul.u32 32, %s24
      %p222 = scmp.lt.s32.totalorder %s23, 1
      %s223 = scalar_select %p222, %s23, 1
      %p224 = scmp.lt.s32.totalorder %s221, 31
      %s225 = scalar_select %p224, %s221, 31
      %s226 = smul.addr %s223, 32
      %s227 = sadd.s32 %s225, %s226
      %s228 = smul.addr %s227, 4
      %s229 = scalar_lea.vmem %s0, %s228
      %s230 = smul.u32 32, %s24
      %s231 = smul.u32 32, %s24
      %p232 = scmp.lt.s32.totalorder %s23, 1
      %s233 = scalar_select %p232, %s23, 1
      %p234 = scmp.lt.s32.totalorder %s231, 31
      %s235 = scalar_select %p234, %s231, 31
      %s236 = smul.addr %s233, 32
      %s237 = sadd.s32 %s235, %s236
      %s238 = smul.addr %s237, 8
      %s239 = scalar_lea.vmem %s4, %s238
      %s240 = smul.u32 32, %s24
      %v242 = vld [vmem:[%s229] sm:$0xf]
      %v243 = vld [vmem:[%s229 + $0x4] sm:$0xf]
      %v244 = vld [vmem:[%s229 + $0x8] sm:$0xf]
      %v245 = vld [vmem:[%s229 + $0xc] sm:$0xf]
      %v246 = vld [vmem:[%s229 + $0x10] sm:$0xf]
      %v247 = vld [vmem:[%s229 + $0x14] sm:$0xf]
      %v248 = vld [vmem:[%s229 + $0x18] sm:$0xf]
      %v249 = vld [vmem:[%s229 + $0x1c] sm:$0xf]
      %v250 = vld [vmem:[%s229 + $0x20] sm:$0xf]
      %v251 = vld [vmem:[%s229 + $0x24] sm:$0xf]
      %v252 = vld [vmem:[%s229 + $0x28] sm:$0xf]
      %v253 = vld [vmem:[%s229 + $0x2c] sm:$0xf]
      %v254 = vld [vmem:[%s229 + $0x30] sm:$0xf]
      %v255 = vld [vmem:[%s229 + $0x34] sm:$0xf]
      %v256 = vld [vmem:[%s229 + $0x38] sm:$0xf]
      %v257 = vld [vmem:[%s229 + $0x3c] sm:$0xf]
      %v258 = vld [vmem:[%s229 + $0x40] sm:$0xf]
      %v259 = vld [vmem:[%s229 + $0x44] sm:$0xf]
      %v260 = vld [vmem:[%s229 + $0x48] sm:$0xf]
      %v261 = vld [vmem:[%s229 + $0x4c] sm:$0xf]
      %v262 = vld [vmem:[%s229 + $0x50] sm:$0xf]
      %v263 = vld [vmem:[%s229 + $0x54] sm:$0xf]
      %v264 = vld [vmem:[%s229 + $0x58] sm:$0xf]
      %v265 = vld [vmem:[%s229 + $0x5c] sm:$0xf]
      %v266 = vld [vmem:[%s229 + $0x60] sm:$0xf]
      %v267 = vld [vmem:[%s229 + $0x64] sm:$0xf]
      %v268 = vld [vmem:[%s229 + $0x68] sm:$0xf]
      %v269 = vld [vmem:[%s229 + $0x6c] sm:$0xf]
      %v270 = vld [vmem:[%s229 + $0x70] sm:$0xf]
      %v271 = vld [vmem:[%s229 + $0x74] sm:$0xf]
      %v272 = vld [vmem:[%s229 + $0x78] sm:$0xf]
      %v273 = vld [vmem:[%s229 + $0x7c] sm:$0xf]
      %v274 = vld [vmem:[%s1] sm:$0xf]
      %v307 = vunpack.c.l.b16 %v242
      %v308 = vunpack.c.l.b16 %v243
      %v309 = vunpack.c.l.b16 %v244
      %v310 = vunpack.c.l.b16 %v245
      %v311 = vunpack.c.l.b16 %v246
      %v312 = vunpack.c.l.b16 %v247
      %v313 = vunpack.c.l.b16 %v248
      %v314 = vunpack.c.l.b16 %v249
      %v315 = vunpack.c.l.b16 %v250
      %v316 = vunpack.c.l.b16 %v251
      %v317 = vunpack.c.l.b16 %v252
      %v318 = vunpack.c.l.b16 %v253
      %v319 = vunpack.c.l.b16 %v254
      %v320 = vunpack.c.l.b16 %v255
      %v321 = vunpack.c.l.b16 %v256
      %v322 = vunpack.c.l.b16 %v257
      %v323 = vunpack.c.l.b16 %v258
      %v324 = vunpack.c.l.b16 %v259
      %v325 = vunpack.c.l.b16 %v260
      %v326 = vunpack.c.l.b16 %v261
      %v327 = vunpack.c.l.b16 %v262
      %v328 = vunpack.c.l.b16 %v263
      %v329 = vunpack.c.l.b16 %v264
      %v330 = vunpack.c.l.b16 %v265
      %v331 = vunpack.c.l.b16 %v266
      %v332 = vunpack.c.l.b16 %v267
      %v333 = vunpack.c.l.b16 %v268
      %v334 = vunpack.c.l.b16 %v269
      %v335 = vunpack.c.l.b16 %v270
      %v336 = vunpack.c.l.b16 %v271
      %v337 = vunpack.c.l.b16 %v272
      %v338 = vunpack.c.l.b16 %v273
      %v339 = vpack.c.b16 %v308, %v307
      %v340 = vpack.c.b16 %v310, %v309
      %v341 = vpack.c.b16 %v312, %v311
      %v342 = vpack.c.b16 %v314, %v313
      %v343 = vpack.c.b16 %v316, %v315
      %v344 = vpack.c.b16 %v318, %v317
      %v345 = vpack.c.b16 %v320, %v319
      %v346 = vpack.c.b16 %v322, %v321
      %v347 = vpack.c.b16 %v324, %v323
      %v348 = vpack.c.b16 %v326, %v325
      %v349 = vpack.c.b16 %v328, %v327
      %v350 = vpack.c.b16 %v330, %v329
      %v351 = vpack.c.b16 %v332, %v331
      %v352 = vpack.c.b16 %v334, %v333
      %v353 = vpack.c.b16 %v336, %v335
      %v354 = vpack.c.b16 %v338, %v337
      %vm355 = vcmask 64512
      %v357 = vsel %vm355, %v339, 0
      %v360 = vsel %vm355, %v340, 0
      %v363 = vsel %vm355, %v341, 0
      %v366 = vsel %vm355, %v342, 0
      %v369 = vsel %vm355, %v343, 0
      %v372 = vsel %vm355, %v344, 0
      %v375 = vsel %vm355, %v345, 0
      %v378 = vsel %vm355, %v346, 0
      %v381 = vsel %vm355, %v347, 0
      %v384 = vsel %vm355, %v348, 0
      %v387 = vsel %vm355, %v349, 0
      %v390 = vsel %vm355, %v350, 0
      %v393 = vsel %vm355, %v351, 0
      %v396 = vsel %vm355, %v352, 0
      %v399 = vsel %vm355, %v353, 0
      %v402 = vsel %vm355, %v354, 0
      %vm404 = vcmask 1043456
      %v406 = vsel %vm404, %v274, 0
      %408 = vmatprep.subr.bf16.mxu0 0
      %409 = vmatpush1.bf16.msra.mxu0 %v406
      %410 = vmatprep.subr.bf16.mxu0 0
      %411 = vmatpush1.bf16.msra.mxu0 0
      %412 = vmatprep.subr.bf16.mxu0 0
      %413 = vmatpush1.bf16.msra.mxu0 0
      %414 = vmatprep.subr.bf16.mxu0 0
      %415 = vmatpush1.bf16.msra.mxu0 0
      %416 = vmatprep.subr.bf16.mxu0 0
      %417 = vmatpush1.bf16.msra.mxu0 0
      %418 = vmatprep.subr.bf16.mxu0 0
      %419 = vmatpush1.bf16.msra.mxu0 0
      %420 = vmatprep.subr.bf16.mxu0 0
      %421 = vmatpush1.bf16.msra.mxu0 0
      %422 = vmatprep.subr.bf16.mxu0 0
      %423 = vmatpush1.bf16.msra.mxu0 0
      %424 = vmatprep.subr.bf16.mxu0 0
      %425 = vmatpush1.bf16.msra.mxu0 0
      %426 = vmatprep.subr.bf16.mxu0 0
      %427 = vmatpush1.bf16.msra.mxu0 0
      %428 = vmatprep.subr.bf16.mxu0 0
      %429 = vmatpush1.bf16.msra.mxu0 0
      %430 = vmatprep.subr.bf16.mxu0 0
      %431 = vmatpush1.bf16.msra.mxu0 0
      %432 = vmatprep.subr.bf16.mxu0 0
      %433 = vmatpush1.bf16.msra.mxu0 0
      %434 = vmatprep.subr.bf16.mxu0 0
      %435 = vmatpush1.bf16.msra.mxu0 0
      %436 = vmatprep.subr.bf16.mxu0 0
      %437 = vmatpush1.bf16.msra.mxu0 0
      %438 = vmatprep.subr.bf16.mxu0 0
      %439 = vmatpush1.bf16.msra.mxu0 0
      %440 = vmatprep.mubr.bf16.mxu0 0
      %441 = vmatmul.mubr.bf16.gmra.mrb[0].mxu0 %v357
      %v442 = vpop.f32.mrb[0].mxu0
      %v443 = vadd.f32 0.0, %v442
      %v444 = vpop.f32.mrb[0].mxu0
      %v445 = vpop.f32.mrb[0].mxu0
      %v446 = vadd.f32 0.0, %v445
      %v447 = vpop.f32.mrb[0].mxu0
      %448 = vmatprep.mubr.bf16.mxu0 0
      %449 = vmatmul.mubr.bf16.gmra.mrb[0].mxu0 %v360
      %v450 = vpop.f32.mrb[0].mxu0
      %v451 = vadd.f32 0.0, %v450
      %v452 = vpop.f32.mrb[0].mxu0
      %v453 = vpop.f32.mrb[0].mxu0
      %v454 = vadd.f32 0.0, %v453
      %v455 = vpop.f32.mrb[0].mxu0
      %456 = vmatprep.mubr.bf16.mxu0 0
      %457 = vmatmul.mubr.bf16.gmra.mrb[0].mxu0 %v363
      %v458 = vpop.f32.mrb[0].mxu0
      %v459 = vadd.f32 0.0, %v458
      %v460 = vpop.f32.mrb[0].mxu0
      %v461 = vpop.f32.mrb[0].mxu0
      %v462 = vadd.f32 0.0, %v461
      %v463 = vpop.f32.mrb[0].mxu0
      %464 = vmatprep.mubr.bf16.mxu0 0
      %465 = vmatmul.mubr.bf16.gmra.mrb[0].mxu0 %v366
      %v466 = vpop.f32.mrb[0].mxu0
      %v467 = vadd.f32 0.0, %v466
      %v468 = vpop.f32.mrb[0].mxu0
      %v469 = vpop.f32.mrb[0].mxu0
      %v470 = vadd.f32 0.0, %v469
      %v471 = vpop.f32.mrb[0].mxu0
      %472 = vmatprep.mubr.bf16.mxu0 0
      %473 = vmatmul.mubr.bf16.gmra.mrb[0].mxu0 %v369
      %v474 = vpop.f32.mrb[0].mxu0
      %v475 = vadd.f32 0.0, %v474
      %v476 = vpop.f32.mrb[0].mxu0
      %v477 = vpop.f32.mrb[0].mxu0
      %v478 = vadd.f32 0.0, %v477
      %v479 = vpop.f32.mrb[0].mxu0
      %480 = vmatprep.mubr.bf16.mxu0 0
      %481 = vmatmul.mubr.bf16.gmra.mrb[0].mxu0 %v372
      %v482 = vpop.f32.mrb[0].mxu0
      %v483 = vadd.f32 0.0, %v482
      %v484 = vpop.f32.mrb[0].mxu0
      %v485 = vpop.f32.mrb[0].mxu0
      %v486 = vadd.f32 0.0, %v485
      %v487 = vpop.f32.mrb[0].mxu0
      %488 = vmatprep.mubr.bf16.mxu0 0
      %489 = vmatmul.mubr.bf16.gmra.mrb[0].mxu0 %v375
      %v490 = vpop.f32.mrb[0].mxu0
      %v491 = vadd.f32 0.0, %v490
      %v492 = vpop.f32.mrb[0].mxu0
      %v493 = vpop.f32.mrb[0].mxu0
      %v494 = vadd.f32 0.0, %v493
      %v495 = vpop.f32.mrb[0].mxu0
      %496 = vmatprep.mubr.bf16.mxu0 0
      %497 = vmatmul.mubr.bf16.gmra.mrb[0].mxu0 %v378
      %v498 = vpop.f32.mrb[0].mxu0
      %v499 = vadd.f32 0.0, %v498
      %v500 = vpop.f32.mrb[0].mxu0
      %v501 = vpop.f32.mrb[0].mxu0
      %v502 = vadd.f32 0.0, %v501
      %v503 = vpop.f32.mrb[0].mxu0
      %504 = vmatprep.mubr.bf16.mxu0 0
      %505 = vmatmul.mubr.bf16.gmra.mrb[0].mxu0 %v381
      %v506 = vpop.f32.mrb[0].mxu0
      %v507 = vadd.f32 0.0, %v506
      %v508 = vpop.f32.mrb[0].mxu0
      %v509 = vpop.f32.mrb[0].mxu0
      %v510 = vadd.f32 0.0, %v509
      %v511 = vpop.f32.mrb[0].mxu0
      %512 = vmatprep.mubr.bf16.mxu0 0
      %513 = vmatmul.mubr.bf16.gmra.mrb[0].mxu0 %v384
      %v514 = vpop.f32.mrb[0].mxu0
      %v515 = vadd.f32 0.0, %v514
      %v516 = vpop.f32.mrb[0].mxu0
      %v517 = vpop.f32.mrb[0].mxu0
      %v518 = vadd.f32 0.0, %v517
      %v519 = vpop.f32.mrb[0].mxu0
      %520 = vmatprep.mubr.bf16.mxu0 0
      %521 = vmatmul.mubr.bf16.gmra.mrb[0].mxu0 %v387
      %v522 = vpop.f32.mrb[0].mxu0
      %v523 = vadd.f32 0.0, %v522
      %v524 = vpop.f32.mrb[0].mxu0
      %v525 = vpop.f32.mrb[0].mxu0
      %v526 = vadd.f32 0.0, %v525
      %v527 = vpop.f32.mrb[0].mxu0
      %528 = vmatprep.mubr.bf16.mxu0 0
      %529 = vmatmul.mubr.bf16.gmra.mrb[0].mxu0 %v390
      %v530 = vpop.f32.mrb[0].mxu0
      %v531 = vadd.f32 0.0, %v530
      %v532 = vpop.f32.mrb[0].mxu0
      %v533 = vpop.f32.mrb[0].mxu0
      %v534 = vadd.f32 0.0, %v533
      %v535 = vpop.f32.mrb[0].mxu0
      %536 = vmatprep.mubr.bf16.mxu0 0
      %537 = vmatmul.mubr.bf16.gmra.mrb[0].mxu0 %v393
      %v538 = vpop.f32.mrb[0].mxu0
      %v539 = vadd.f32 0.0, %v538
      %v540 = vpop.f32.mrb[0].mxu0
      %v541 = vpop.f32.mrb[0].mxu0
      %v542 = vadd.f32 0.0, %v541
      %v543 = vpop.f32.mrb[0].mxu0
      %544 = vmatprep.mubr.bf16.mxu0 0
      %545 = vmatmul.mubr.bf16.gmra.mrb[0].mxu0 %v396
      %v546 = vpop.f32.mrb[0].mxu0
      %v547 = vadd.f32 0.0, %v546
      %v548 = vpop.f32.mrb[0].mxu0
      %v549 = vpop.f32.mrb[0].mxu0
      %v550 = vadd.f32 0.0, %v549
      %v551 = vpop.f32.mrb[0].mxu0
      %552 = vmatprep.mubr.bf16.mxu0 0
      %553 = vmatmul.mubr.bf16.gmra.mrb[0].mxu0 %v399
      %v554 = vpop.f32.mrb[0].mxu0
      %v555 = vadd.f32 0.0, %v554
      %v556 = vpop.f32.mrb[0].mxu0
      %v557 = vpop.f32.mrb[0].mxu0
      %v558 = vadd.f32 0.0, %v557
      %v559 = vpop.f32.mrb[0].mxu0
      %560 = vmatprep.mubr.bf16.mxu0 0
      %561 = vmatmul.mubr.bf16.gmra.mrb[0].mxu0 %v402
      %v562 = vpop.f32.mrb[0].mxu0
      %v563 = vadd.f32 0.0, %v562
      %v564 = vpop.f32.mrb[0].mxu0
      %v565 = vpop.f32.mrb[0].mxu0
      %v566 = vadd.f32 0.0, %v565
      %v567 = vpop.f32.mrb[0].mxu0
      %568 = vdwg.mxu0
      %v569 = vld [vmem:[#allocation2] sm:$0x1]
      %v571 = vlaneseq
      %v572 = vshrl.u32 %v571, 7
      %v573 = vsub.s32 0, %v572
      %v574 = vrot.slane %v569, %v573
      %v576 = vmul.f32 %v443, %v574
      %v577 = vmul.f32 %v446, %v574
      %v578 = vmul.f32 %v451, %v574
      %v579 = vmul.f32 %v454, %v574
      %v580 = vmul.f32 %v459, %v574
      %v581 = vmul.f32 %v462, %v574
      %v582 = vmul.f32 %v467, %v574
      %v583 = vmul.f32 %v470, %v574
      %v584 = vmul.f32 %v475, %v574
      %v585 = vmul.f32 %v478, %v574
      %v586 = vmul.f32 %v483, %v574
      %v587 = vmul.f32 %v486, %v574
      %v588 = vmul.f32 %v491, %v574
      %v589 = vmul.f32 %v494, %v574
      %v590 = vmul.f32 %v499, %v574
      %v591 = vmul.f32 %v502, %v574
      %v592 = vmul.f32 %v507, %v574
      %v593 = vmul.f32 %v510, %v574
      %v594 = vmul.f32 %v515, %v574
      %v595 = vmul.f32 %v518, %v574
      %v596 = vmul.f32 %v523, %v574
      %v597 = vmul.f32 %v526, %v574
      %v598 = vmul.f32 %v531, %v574
      %v599 = vmul.f32 %v534, %v574
      %v600 = vmul.f32 %v539, %v574
      %v601 = vmul.f32 %v542, %v574
      %v602 = vmul.f32 %v547, %v574
      %v603 = vmul.f32 %v550, %v574
      %v604 = vmul.f32 %v555, %v574
      %v605 = vmul.f32 %v558, %v574
      %v606 = vmul.f32 %v563, %v574
      %v607 = vmul.f32 %v566, %v574
      %v608 = vld [vmem:[#allocation3] sm:$0x1]
      %v610 = vlaneseq
      %v611 = vshrl.u32 %v610, 7
      %v612 = vsub.s32 0, %v611
      %v613 = vrot.slane %v608, %v612
      %v615 = vadd.f32 %v576, %v613
      %v616 = vadd.f32 %v577, %v613
      %v617 = vadd.f32 %v578, %v613
      %v618 = vadd.f32 %v579, %v613
      %v619 = vadd.f32 %v580, %v613
      %v620 = vadd.f32 %v581, %v613
      %v621 = vadd.f32 %v582, %v613
      %v622 = vadd.f32 %v583, %v613
      %v623 = vadd.f32 %v584, %v613
      %v624 = vadd.f32 %v585, %v613
      %v625 = vadd.f32 %v586, %v613
      %v626 = vadd.f32 %v587, %v613
      %v627 = vadd.f32 %v588, %v613
      %v628 = vadd.f32 %v589, %v613
      %v629 = vadd.f32 %v590, %v613
      %v630 = vadd.f32 %v591, %v613
      %v631 = vadd.f32 %v592, %v613
      %v632 = vadd.f32 %v593, %v613
      %v633 = vadd.f32 %v594, %v613
      %v634 = vadd.f32 %v595, %v613
      %v635 = vadd.f32 %v596, %v613
      %v636 = vadd.f32 %v597, %v613
      %v637 = vadd.f32 %v598, %v613
      %v638 = vadd.f32 %v599, %v613
      %v639 = vadd.f32 %v600, %v613
      %v640 = vadd.f32 %v601, %v613
      %v641 = vadd.f32 %v602, %v613
      %v642 = vadd.f32 %v603, %v613
      %v643 = vadd.f32 %v604, %v613
      %v644 = vadd.f32 %v605, %v613
      %v645 = vadd.f32 %v606, %v613
      %v646 = vadd.f32 %v607, %v613
      %vm647 = vcmask 7168
      %648 = vst.msk [vmem:[%s239] sm:$0xff] %vm647, %v615
      %649 = vst.msk [vmem:[%s239 + $0x8] sm:$0xff] %vm647, %v616
      %650 = vst.msk [vmem:[%s239 + $0x10] sm:$0xff] %vm647, %v617
      %651 = vst.msk [vmem:[%s239 + $0x18] sm:$0xff] %vm647, %v618
      %652 = vst.msk [vmem:[%s239 + $0x20] sm:$0xff] %vm647, %v619
      %653 = vst.msk [vmem:[%s239 + $0x28] sm:$0xff] %vm647, %v620
      %654 = vst.msk [vmem:[%s239 + $0x30] sm:$0xff] %vm647, %v621
      %655 = vst.msk [vmem:[%s239 + $0x38] sm:$0xff] %vm647, %v622
      %656 = vst.msk [vmem:[%s239 + $0x40] sm:$0xff] %vm647, %v623
      %657 = vst.msk [vmem:[%s239 + $0x48] sm:$0xff] %vm647, %v624
      %658 = vst.msk [vmem:[%s239 + $0x50] sm:$0xff] %vm647, %v625
      %659 = vst.msk [vmem:[%s239 + $0x58] sm:$0xff] %vm647, %v626
      %660 = vst.msk [vmem:[%s239 + $0x60] sm:$0xff] %vm647, %v627
      %661 = vst.msk [vmem:[%s239 + $0x68] sm:$0xff] %vm647, %v628
      %662 = vst.msk [vmem:[%s239 + $0x70] sm:$0xff] %vm647, %v629
      %663 = vst.msk [vmem:[%s239 + $0x78] sm:$0xff] %vm647, %v630
      %664 = vst.msk [vmem:[%s239 + $0x80] sm:$0xff] %vm647, %v631
      %665 = vst.msk [vmem:[%s239 + $0x88] sm:$0xff] %vm647, %v632
      %666 = vst.msk [vmem:[%s239 + $0x90] sm:$0xff] %vm647, %v633
      %667 = vst.msk [vmem:[%s239 + $0x98] sm:$0xff] %vm647, %v634
      %668 = vst.msk [vmem:[%s239 + $0xa0] sm:$0xff] %vm647, %v635
      %669 = vst.msk [vmem:[%s239 + $0xa8] sm:$0xff] %vm647, %v636
      %670 = vst.msk [vmem:[%s239 + $0xb0] sm:$0xff] %vm647, %v637
      %671 = vst.msk [vmem:[%s239 + $0xb8] sm:$0xff] %vm647, %v638
      %672 = vst.msk [vmem:[%s239 + $0xc0] sm:$0xff] %vm647, %v639
      %673 = vst.msk [vmem:[%s239 + $0xc8] sm:$0xff] %vm647, %v640
      %674 = vst.msk [vmem:[%s239 + $0xd0] sm:$0xff] %vm647, %v641
      %675 = vst.msk [vmem:[%s239 + $0xd8] sm:$0xff] %vm647, %v642
      %676 = vst.msk [vmem:[%s239 + $0xe0] sm:$0xff] %vm647, %v643
      %677 = vst.msk [vmem:[%s239 + $0xe8] sm:$0xff] %vm647, %v644
      %678 = vst.msk [vmem:[%s239 + $0xf0] sm:$0xff] %vm647, %v645
      %679 = vst.msk [vmem:[%s239 + $0xf8] sm:$0xff] %vm647, %v646
      %s680 = smul.u32 32, %s24
      %p681 = scmp.lt.s32.totalorder %s23, 1
      %s682 = scalar_select %p681, %s23, 1
      %p683 = scmp.lt.s32.totalorder %s680, 31
      %s684 = scalar_select %p683, %s680, 31
      %s685 = smul.addr %s682, 32
      %s686 = sadd.s32 %s684, %s685
      %s687 = smul.addr %s686, 8
      %s688 = scalar_lea.vmem %s4, %s687
      // Predicated region
      $region37: #{dual_stream_unet.59} parent=35 // pred_check
        %p689 = pneg %p142
      $region38: #{dual_stream_unet.59} parent=35 // pred_check_branch
        %691 = sbr.rel (%p689) target = $region40
      $region39: #{dual_stream_unet.59} parent=35 // pred_region
        %s692 = smul.u32 32, %s24
      $region40: #{dual_stream_unet.59} parent=35 // pred_fallthru
        _
    $region36: #{dual_stream_unet.59} parent=5 // pred_fallthru
      _
    %p693 = scmp.le.s32.totalorder 2, %s14
    // Predicated region
    $region41: #{dual_stream_unet.59} parent=5 // pred_check
      %p694 = pneg %p693
    $region42: #{dual_stream_unet.59} parent=5 // pred_check_branch
      %696 = sbr.rel (%p694) target = $region44
    $region43: #{dual_stream_unet.59} parent=5 // pred_region
      %s697 = ssub.s32 %s14, 2
      // Predicated region
      $region45: #{dual_stream_unet.59} parent=43 // pred_check
        %p698 = pneg %p148
      $region46: #{dual_stream_unet.59} parent=43 // pred_check_branch
        %700 = sbr.rel (%p698) target = $region48
      $region47: #{dual_stream_unet.59} parent=43 // pred_region
        %s701 = smul.u32 32, %s26
        %p702 = scmp.lt.s32.totalorder %s25, 1
        %s703 = scalar_select %p702, %s25, 1
        %p704 = scmp.lt.s32.totalorder %s701, 31
        %s705 = scalar_select %p704, %s701, 31
        %s706 = smul.addr %s703, 32
        %s707 = sadd.s32 %s705, %s706
        %s708 = smul.addr %s707, 8
        %s709 = scalar_lea.vmem %s4, %s708
      $region48: #{dual_stream_unet.59} parent=43 // pred_fallthru
        _
    $region44: #{dual_stream_unet.59} parent=5 // pred_fallthru
      _
  $region6: #{dual_stream_unet.59} parent=0 // loop_footer
    %s18 = sadd.s32 1, %s14
  $region7: #{dual_stream_unet.59} parent=0 // loop_footer_branch
    %13 = sbr.rel target = $region3
  $region8: #{dual_stream_unet.59} parent=0 // loop_exit
    _

// kernel: dual_stream_unet.30
$region0: #{dual_stream_unet.30}
  #allocation0 [shape = 'u32[]', space=smem, size = 0x4, offset = 0x4, fixed_abs, tag = 'smem constant byte address 0x4 - core index']
  #allocation1 [shape = 'u32[144,128]{1,0:T(1,128)}', space=vmem, size = 0x12000, scoped, tag = 'internal scratch']
  %s0 = inlined_call_operand.vmem [shape: bf16[2,256,18], index: 0, kind: input, shape index: {}]
  %s1 = inlined_call_operand.vmem [shape: bf16[18,8], index: 1, kind: input, shape index: {}]
  %s2 = inlined_call_operand.vmem [shape: f32[1,8], index: 2, kind: input, shape index: {}]
  %s3 = inlined_call_operand.vmem [shape: f32[1,8], index: 3, kind: input, shape index: {}]
  %s4 = inlined_call_operand.vmem [shape: f32[2,256,8], index: 4, kind: output, shape index: {}]
  %s5 = sld [smem:[#allocation0]]
  $region49: #{dual_stream_unet.30} parent=0
    _
  %s7 = ssub.s32 1, %s5
  %s8 = scalar_select 0, %s7, %s5
  loop: start=0, step=1, limit=4
  $region2: #{dual_stream_unet.30} parent=0 // loop_pre_header
    _
  $region3: #{dual_stream_unet.30} parent=0 // loop_header
    %s10 = sphi 0, %s14
    %p11 = scmp.ge.s32.totalorder %s10, 4
    %s17 = sphi 0, %s29
    %s18 = sphi 0, %s25
    %s19 = sphi 0, %s17
    %s20 = sphi 0, %s18
    %s21 = sphi 0, %s19
    %s22 = sphi 0, %s20
    %s34 = sphi 0, %s36
    %s37 = sphi 0, %s34
    %s38 = sphi 0, %s37
    %s54 = sphi 0, %s38
    %s58 = sphi 0, %s58
    %s60 = sphi 0, %s58
    %s61 = sphi 0, %s60
    %s75 = sphi 0, %s61
    %s79 = sphi 0, %s79
    %s81 = sphi 0, %s79
    %s82 = sphi 0, %s81
    %s96 = sphi 0, %s82
    %s100 = sphi 0, %s100
    %s102 = sphi 0, %s100
    %s103 = sphi 0, %s102
    %s117 = sphi 0, %s103
    %s125 = sphi 0, %s127
    %s128 = sphi 0, %s125
    %s129 = sphi 0, %s128
    %s145 = sphi 0, %s129
  $region4: #{dual_stream_unet.30} parent=0 // loop_header_branch
    %13 = sbr.rel (%p11) target = $region8
  $region5: #{dual_stream_unet.30} parent=0 // loop_body
    %s15 = ssub.s32 %s10, 1
    %s16 = ssub.s32 %s10, 2
    %s23 = sadd.s32 1, %s18
    %p24 = scmp.ge.s32.totalorder %s23, 1
    %s25 = scalar_select %p24, 0, %s23
    %s26 = sadd.s32 1, %s17
    %s27 = scalar_select %p24, %s26, %s17
    %p28 = scmp.ge.s32.totalorder %s27, 2
    %s29 = scalar_select %p28, 0, %s27
    %s30 = ssub.s32 %s17, %s29
    %s31 = ssub.s32 %s18, %s25
    %s32 = sor.u32 %s30, %s31
    %p33 = scmp.eq.s32.totalorder %s32, 0
    %s35 = sadd.s32 %s34, 1
    %s36 = scalar_select %p33, %s34, %s35
    %p39 = pneg %p33
    %p40 = scmp.eq.s32.totalorder %s10, 1
    %p41 = por %p39, %p40
    %p42 = scmp.ne.s32.totalorder %s34, %s37
    %p43 = scmp.eq.s32.totalorder %s10, 0
    %p44 = por %p42, %p43
    %p45 = scmp.ne.s32.totalorder %s34, %s37
    %p46 = scmp.eq.s32.totalorder %s15, 1
    %p47 = por %p45, %p46
    %p48 = scmp.ne.s32.totalorder %s37, %s38
    %p49 = scmp.eq.s32.totalorder %s15, 0
    %p50 = por %p48, %p49
    %p51 = scmp.ne.s32.totalorder %s37, %s38
    %p52 = scmp.eq.s32.totalorder %s16, 1
    %p53 = por %p51, %p52
    %p55 = scmp.ne.s32.totalorder %s38, %s54
    %p56 = scmp.eq.s32.totalorder %s16, 0
    %p57 = por %p55, %p56
    %s59 = sadd.s32 %s58, 1
    %p62 = scmp.eq.s32.totalorder %s10, 1
    %p63 = scmp.ne.s32.totalorder %s58, %s60
    %p64 = scmp.eq.s32.totalorder %s10, 0
    %p65 = por %p63, %p64
    %p66 = scmp.ne.s32.totalorder %s58, %s60
    %p67 = scmp.eq.s32.totalorder %s15, 1
    %p68 = por %p66, %p67
    %p69 = scmp.ne.s32.totalorder %s60, %s61
    %p70 = scmp.eq.s32.totalorder %s15, 0
    %p71 = por %p69, %p70
    %p72 = scmp.ne.s32.totalorder %s60, %s61
    %p73 = scmp.eq.s32.totalorder %s16, 1
    %p74 = por %p72, %p73
    %p76 = scmp.ne.s32.totalorder %s61, %s75
    %p77 = scmp.eq.s32.totalorder %s16, 0
    %p78 = por %p76, %p77
    %s80 = sadd.s32 %s79, 1
    %p83 = scmp.eq.s32.totalorder %s10, 1
    %p84 = scmp.ne.s32.totalorder %s79, %s81
    %p85 = scmp.eq.s32.totalorder %s10, 0
    %p86 = por %p84, %p85
    %p87 = scmp.ne.s32.totalorder %s79, %s81
    %p88 = scmp.eq.s32.totalorder %s15, 1
    %p89 = por %p87, %p88
    %p90 = scmp.ne.s32.totalorder %s81, %s82
    %p91 = scmp.eq.s32.totalorder %s15, 0
    %p92 = por %p90, %p91
    %p93 = scmp.ne.s32.totalorder %s81, %s82
    %p94 = scmp.eq.s32.totalorder %s16, 1
    %p95 = por %p93, %p94
    %p97 = scmp.ne.s32.totalorder %s82, %s96
    %p98 = scmp.eq.s32.totalorder %s16, 0
    %p99 = por %p97, %p98
    %s101 = sadd.s32 %s100, 1
    %p104 = scmp.eq.s32.totalorder %s10, 1
    %p105 = scmp.ne.s32.totalorder %s100, %s102
    %p106 = scmp.eq.s32.totalorder %s10, 0
    %p107 = por %p105, %p106
    %p108 = scmp.ne.s32.totalorder %s100, %s102
    %p109 = scmp.eq.s32.totalorder %s15, 1
    %p110 = por %p108, %p109
    %p111 = scmp.ne.s32.totalorder %s102, %s103
    %p112 = scmp.eq.s32.totalorder %s15, 0
    %p113 = por %p111, %p112
    %p114 = scmp.ne.s32.totalorder %s102, %s103
    %p115 = scmp.eq.s32.totalorder %s16, 1
    %p116 = por %p114, %p115
    %p118 = scmp.ne.s32.totalorder %s103, %s117
    %p119 = scmp.eq.s32.totalorder %s16, 0
    %p120 = por %p118, %p119
    %s121 = ssub.s32 %s17, %s29
    %s122 = ssub.s32 %s18, %s25
    %s123 = sor.u32 %s121, %s122
    %p124 = scmp.eq.s32.totalorder %s123, 0
    %s126 = sadd.s32 %s125, 1
    %s127 = scalar_select %p124, %s125, %s126
    %p130 = pneg %p124
    %p131 = scmp.eq.s32.totalorder %s10, 1
    %p132 = por %p130, %p131
    %p133 = scmp.ne.s32.totalorder %s125, %s128
    %p134 = scmp.eq.s32.totalorder %s10, 0
    %p135 = por %p133, %p134
    %p136 = scmp.ne.s32.totalorder %s125, %s128
    %p137 = scmp.eq.s32.totalorder %s15, 1
    %p138 = por %p136, %p137
    %p139 = scmp.ne.s32.totalorder %s128, %s129
    %p140 = scmp.eq.s32.totalorder %s15, 0
    %p141 = por %p139, %p140
    %p142 = scmp.ne.s32.totalorder %s128, %s129
    %p143 = scmp.eq.s32.totalorder %s16, 1
    %p144 = por %p142, %p143
    %p146 = scmp.ne.s32.totalorder %s129, %s145
    %p147 = scmp.eq.s32.totalorder %s16, 0
    %p148 = por %p146, %p147
    %p149 = scmp.le.s32.totalorder 1, %s10
    %p150 = scmp.lt.s32.totalorder %s10, 3
    %p151 = pnand %p149, %p150
    %p152 = pneg %p151
    // Predicated region
    $region9: #{dual_stream_unet.30} parent=5 // pred_check
      _
    $region10: #{dual_stream_unet.30} parent=5 // pred_check_branch
      %154 = sbr.rel (%p151) target = $region12
    $region11: #{dual_stream_unet.30} parent=5 // pred_region
      %s155 = ssub.s32 %s10, 1
      // Predicated region
      $region13: #{dual_stream_unet.30} parent=11 // pred_check
        %p156 = pneg %p71
      $region14: #{dual_stream_unet.30} parent=11 // pred_check_branch
        %158 = sbr.rel (%p156) target = $region16
      $region15: #{dual_stream_unet.30} parent=11 // pred_region
        _
      $region16: #{dual_stream_unet.30} parent=11 // pred_fallthru
        _
      // Predicated region
      $region17: #{dual_stream_unet.30} parent=11 // pred_check
        %p159 = pneg %p92
      $region18: #{dual_stream_unet.30} parent=11 // pred_check_branch
        %161 = sbr.rel (%p159) target = $region20
      $region19: #{dual_stream_unet.30} parent=11 // pred_region
        _
      $region20: #{dual_stream_unet.30} parent=11 // pred_fallthru
        _
      // Predicated region
      $region21: #{dual_stream_unet.30} parent=11 // pred_check
        %p162 = pneg %p113
      $region22: #{dual_stream_unet.30} parent=11 // pred_check_branch
        %164 = sbr.rel (%p162) target = $region24
      $region23: #{dual_stream_unet.30} parent=11 // pred_region
        _
      $region24: #{dual_stream_unet.30} parent=11 // pred_fallthru
        _
    $region12: #{dual_stream_unet.30} parent=5 // pred_fallthru
      _
    %p165 = scmp.lt.s32.totalorder %s10, 2
    // Predicated region
    $region25: #{dual_stream_unet.30} parent=5 // pred_check
      %p166 = pneg %p165
    $region26: #{dual_stream_unet.30} parent=5 // pred_check_branch
      %168 = sbr.rel (%p166) target = $region28
    $region27: #{dual_stream_unet.30} parent=5 // pred_region
      // Predicated region
      $region29: #{dual_stream_unet.30} parent=27 // pred_check
        %p169 = pneg %p44
      $region30: #{dual_stream_unet.30} parent=27 // pred_check_branch
        %171 = sbr.rel (%p169) target = $region32
      $region31: #{dual_stream_unet.30} parent=27 // pred_region
        %s172 = smul.u32 32, %s18
        %p173 = scmp.lt.s32.totalorder %s17, 1
        %s174 = scalar_select %p173, %s17, 1
        %p175 = scmp.lt.s32.totalorder %s172, 31
        %s176 = scalar_select %p175, %s172, 31
        %s177 = smul.addr %s174, 32
        %s178 = sadd.s32 %s176, %s177
        %s179 = smul.addr %s178, 4
        %s180 = scalar_lea.vmem %s0, %s179
        %s181 = smul.u32 32, %s18
      $region32: #{dual_stream_unet.30} parent=27 // pred_fallthru
        _
    $region28: #{dual_stream_unet.30} parent=5 // pred_fallthru
      _
    %p182 = scmp.le.s32.totalorder 1, %s10
    %p183 = scmp.lt.s32.totalorder %s10, 3
    %p184 = pnand %p182, %p183
    %p185 = pneg %p184
    // Predicated region
    $region33: #{dual_stream_unet.30} parent=5 // pred_check
      _
    $region34: #{dual_stream_unet.30} parent=5 // pred_check_branch
      %187 = sbr.rel (%p184) target = $region36
    $region35: #{dual_stream_unet.30} parent=5 // pred_region
      %s188 = ssub.s32 %s10, 1
      %s189 = smul.u32 32, %s20
      %p190 = scmp.lt.s32.totalorder %s19, 1
      %s191 = scalar_select %p190, %s19, 1
      %p192 = scmp.lt.s32.totalorder %s189, 31
      %s193 = scalar_select %p192, %s189, 31
      %s194 = smul.addr %s191, 32
      %s195 = sadd.s32 %s193, %s194
      %s196 = smul.addr %s195, 4
      %s197 = scalar_lea.vmem %s0, %s196
      %p198 = pneg %p50
      %p199 = pneg %p47
      %p200 = pneg %p71
      %p201 = pneg %p68
      %p202 = pneg %p92
      %p203 = pneg %p89
      %p204 = pneg %p113
      %p205 = pneg %p110
      %p206 = pneg %p141
      %p207 = pneg %p138
      %s208 = smul.u32 32, %s20
      %p209 = scmp.lt.s32.totalorder %s19, 1
      %s210 = scalar_select %p209, %s19, 1
      %p211 = scmp.lt.s32.totalorder %s208, 31
      %s212 = scalar_select %p211, %s208, 31
      %s213 = smul.addr %s210, 32
      %s214 = sadd.s32 %s212, %s213
      %s215 = smul.addr %s214, 8
      %s216 = scalar_lea.vmem %s4, %s215
      %s217 = smul.u32 32, %s20
      %p218 = scmp.lt.s32.totalorder %s19, 1
      %s219 = scalar_select %p218, %s19, 1
      %p220 = scmp.lt.s32.totalorder %s217, 31
      %s221 = scalar_select %p220, %s217, 31
      %s222 = smul.addr %s219, 32
      %s223 = sadd.s32 %s221, %s222
      %s224 = smul.addr %s223, 4
      %s225 = scalar_lea.vmem %s0, %s224
      %s226 = smul.u32 32, %s20
      %s227 = smul.u32 32, %s20
      %p228 = scmp.lt.s32.totalorder %s19, 1
      %s229 = scalar_select %p228, %s19, 1
      %p230 = scmp.lt.s32.totalorder %s227, 31
      %s231 = scalar_select %p230, %s227, 31
      %s232 = smul.addr %s229, 32
      %s233 = sadd.s32 %s231, %s232
      %s234 = smul.addr %s233, 8
      %s235 = scalar_lea.vmem %s4, %s234
      %s236 = smul.u32 32, %s20
      %v238 = vld [vmem:[%s225] sm:$0xf]
      %v239 = vld [vmem:[%s225 + $0x4] sm:$0xf]
      %v240 = vld [vmem:[%s225 + $0x8] sm:$0xf]
      %v241 = vld [vmem:[%s225 + $0xc] sm:$0xf]
      %v242 = vld [vmem:[%s225 + $0x10] sm:$0xf]
      %v243 = vld [vmem:[%s225 + $0x14] sm:$0xf]
      %v244 = vld [vmem:[%s225 + $0x18] sm:$0xf]
      %v245 = vld [vmem:[%s225 + $0x1c] sm:$0xf]
      %v246 = vld [vmem:[%s225 + $0x20] sm:$0xf]
      %v247 = vld [vmem:[%s225 + $0x24] sm:$0xf]
      %v248 = vld [vmem:[%s225 + $0x28] sm:$0xf]
      %v249 = vld [vmem:[%s225 + $0x2c] sm:$0xf]
      %v250 = vld [vmem:[%s225 + $0x30] sm:$0xf]
      %v251 = vld [vmem:[%s225 + $0x34] sm:$0xf]
      %v252 = vld [vmem:[%s225 + $0x38] sm:$0xf]
      %v253 = vld [vmem:[%s225 + $0x3c] sm:$0xf]
      %v254 = vld [vmem:[%s225 + $0x40] sm:$0xf]
      %v255 = vld [vmem:[%s225 + $0x44] sm:$0xf]
      %v256 = vld [vmem:[%s225 + $0x48] sm:$0xf]
      %v257 = vld [vmem:[%s225 + $0x4c] sm:$0xf]
      %v258 = vld [vmem:[%s225 + $0x50] sm:$0xf]
      %v259 = vld [vmem:[%s225 + $0x54] sm:$0xf]
      %v260 = vld [vmem:[%s225 + $0x58] sm:$0xf]
      %v261 = vld [vmem:[%s225 + $0x5c] sm:$0xf]
      %v262 = vld [vmem:[%s225 + $0x60] sm:$0xf]
      %v263 = vld [vmem:[%s225 + $0x64] sm:$0xf]
      %v264 = vld [vmem:[%s225 + $0x68] sm:$0xf]
      %v265 = vld [vmem:[%s225 + $0x6c] sm:$0xf]
      %v266 = vld [vmem:[%s225 + $0x70] sm:$0xf]
      %v267 = vld [vmem:[%s225 + $0x74] sm:$0xf]
      %v268 = vld [vmem:[%s225 + $0x78] sm:$0xf]
      %v269 = vld [vmem:[%s225 + $0x7c] sm:$0xf]
      %v270 = vld [vmem:[%s1] sm:$0xf]
      %v271 = vld [vmem:[%s1 + $0x4] sm:$0xf]
      %v272 = vld [vmem:[%s1 + $0x8] sm:$0x1]
      %v305 = vunpack.c.l.b16 %v238
      %v306 = vunpack.c.l.b16 %v239
      %v307 = vunpack.c.l.b16 %v240
      %v308 = vunpack.c.l.b16 %v241
      %v309 = vunpack.c.l.b16 %v242
      %v310 = vunpack.c.l.b16 %v243
      %v311 = vunpack.c.l.b16 %v244
      %v312 = vunpack.c.l.b16 %v245
      %v313 = vunpack.c.l.b16 %v246
      %v314 = vunpack.c.l.b16 %v247
      %v315 = vunpack.c.l.b16 %v248
      %v316 = vunpack.c.l.b16 %v249
      %v317 = vunpack.c.l.b16 %v250
      %v318 = vunpack.c.l.b16 %v251
      %v319 = vunpack.c.l.b16 %v252
      %v320 = vunpack.c.l.b16 %v253
      %v321 = vunpack.c.l.b16 %v254
      %v322 = vunpack.c.l.b16 %v255
      %v323 = vunpack.c.l.b16 %v256
      %v324 = vunpack.c.l.b16 %v257
      %v325 = vunpack.c.l.b16 %v258
      %v326 = vunpack.c.l.b16 %v259
      %v327 = vunpack.c.l.b16 %v260
      %v328 = vunpack.c.l.b16 %v261
      %v329 = vunpack.c.l.b16 %v262
      %v330 = vunpack.c.l.b16 %v263
      %v331 = vunpack.c.l.b16 %v264
      %v332 = vunpack.c.l.b16 %v265
      %v333 = vunpack.c.l.b16 %v266
      %v334 = vunpack.c.l.b16 %v267
      %v335 = vunpack.c.l.b16 %v268
      %v336 = vunpack.c.l.b16 %v269
      %v337 = vpack.c.b16 %v306, %v305
      %v338 = vpack.c.b16 %v308, %v307
      %v339 = vpack.c.b16 %v310, %v309
      %v340 = vpack.c.b16 %v312, %v311
      %v341 = vpack.c.b16 %v314, %v313
      %v342 = vpack.c.b16 %v316, %v315
      %v343 = vpack.c.b16 %v318, %v317
      %v344 = vpack.c.b16 %v320, %v319
      %v345 = vpack.c.b16 %v322, %v321
      %v346 = vpack.c.b16 %v324, %v323
      %v347 = vpack.c.b16 %v326, %v325
      %v348 = vpack.c.b16 %v328, %v327
      %v349 = vpack.c.b16 %v330, %v329
      %v350 = vpack.c.b16 %v332, %v331
      %v351 = vpack.c.b16 %v334, %v333
      %v352 = vpack.c.b16 %v336, %v335
      %v356 = vunpack.c.l.b16 %v270
      %v357 = vunpack.c.l.b16 %v271
      %v358 = vunpack.c.l.b16 %v272
      %v359 = vpack.c.b16 %v357, %v356
      %v360 = vpack.c.b16 %v358, %v358
      %vm362 = vcmask 146432
      %v364 = vsel %vm362, %v337, 0
      %v367 = vsel %vm362, %v338, 0
      %v370 = vsel %vm362, %v339, 0
      %v373 = vsel %vm362, %v340, 0
      %v376 = vsel %vm362, %v341, 0
      %v379 = vsel %vm362, %v342, 0
      %v382 = vsel %vm362, %v343, 0
      %v385 = vsel %vm362, %v344, 0
      %v388 = vsel %vm362, %v345, 0
      %v391 = vsel %vm362, %v346, 0
      %v394 = vsel %vm362, %v347, 0
      %v397 = vsel %vm362, %v348, 0
      %v400 = vsel %vm362, %v349, 0
      %v403 = vsel %vm362, %v350, 0
      %v406 = vsel %vm362, %v351, 0
      %v409 = vsel %vm362, %v352, 0
      %vm411 = vcmask 1040384
      %v413 = vsel %vm411, %v360, 0
      %415 = vmatprep.subr.bf16.mxu0 0
      %416 = vmatpush1.bf16.msra.mxu0 %v359
      %417 = vmatprep.subr.bf16.mxu0 0
      %418 = vmatpush1.bf16.msra.mxu0 %v413
      %419 = vmatprep.subr.bf16.mxu0 0
      %420 = vmatpush1.bf16.msra.mxu0 0
      %421 = vmatprep.subr.bf16.mxu0 0
      %422 = vmatpush1.bf16.msra.mxu0 0
      %423 = vmatprep.subr.bf16.mxu0 0
      %424 = vmatpush1.bf16.msra.mxu0 0
      %425 = vmatprep.subr.bf16.mxu0 0
      %426 = vmatpush1.bf16.msra.mxu0 0
      %427 = vmatprep.subr.bf16.mxu0 0
      %428 = vmatpush1.bf16.msra.mxu0 0
      %429 = vmatprep.subr.bf16.mxu0 0
      %430 = vmatpush1.bf16.msra.mxu0 0
      %431 = vmatprep.subr.bf16.mxu0 0
      %432 = vmatpush1.bf16.msra.mxu0 0
      %433 = vmatprep.subr.bf16.mxu0 0
      %434 = vmatpush1.bf16.msra.mxu0 0
      %435 = vmatprep.subr.bf16.mxu0 0
      %436 = vmatpush1.bf16.msra.mxu0 0
      %437 = vmatprep.subr.bf16.mxu0 0
      %438 = vmatpush1.bf16.msra.mxu0 0
      %439 = vmatprep.subr.bf16.mxu0 0
      %440 = vmatpush1.bf16.msra.mxu0 0
      %441 = vmatprep.subr.bf16.mxu0 0
      %442 = vmatpush1.bf16.msra.mxu0 0
      %443 = vmatprep.subr.bf16.mxu0 0
      %444 = vmatpush1.bf16.msra.mxu0 0
      %445 = vmatprep.subr.bf16.mxu0 0
      %446 = vmatpush1.bf16.msra.mxu0 0
      %447 = vmatprep.mubr.bf16.mxu0 0
      %448 = vmatmul.mubr.bf16.gmra.mrb[0].mxu0 %v364
      %v449 = vpop.f32.mrb[0].mxu0
      %v450 = vadd.f32 0.0, %v449
      %v451 = vpop.f32.mrb[0].mxu0
      %v452 = vpop.f32.mrb[0].mxu0
      %v453 = vadd.f32 0.0, %v452
      %v454 = vpop.f32.mrb[0].mxu0
      %455 = vmatprep.mubr.bf16.mxu0 0
      %456 = vmatmul.mubr.bf16.gmra.mrb[0].mxu0 %v367
      %v457 = vpop.f32.mrb[0].mxu0
      %v458 = vadd.f32 0.0, %v457
      %v459 = vpop.f32.mrb[0].mxu0
      %v460 = vpop.f32.mrb[0].mxu0
      %v461 = vadd.f32 0.0, %v460
      %v462 = vpop.f32.mrb[0].mxu0
      %463 = vmatprep.mubr.bf16.mxu0 0
      %464 = vmatmul.mubr.bf16.gmra.mrb[0].mxu0 %v370
      %v465 = vpop.f32.mrb[0].mxu0
      %v466 = vadd.f32 0.0, %v465
      %v467 = vpop.f32.mrb[0].mxu0
      %v468 = vpop.f32.mrb[0].mxu0
      %v469 = vadd.f32 0.0, %v468
      %v470 = vpop.f32.mrb[0].mxu0
      %471 = vmatprep.mubr.bf16.mxu0 0
      %472 = vmatmul.mubr.bf16.gmra.mrb[0].mxu0 %v373
      %v473 = vpop.f32.mrb[0].mxu0
      %v474 = vadd.f32 0.0, %v473
      %v475 = vpop.f32.mrb[0].mxu0
      %v476 = vpop.f32.mrb[0].mxu0
      %v477 = vadd.f32 0.0, %v476
      %v478 = vpop.f32.mrb[0].mxu0
      %479 = vmatprep.mubr.bf16.mxu0 0
      %480 = vmatmul.mubr.bf16.gmra.mrb[0].mxu0 %v376
      %v481 = vpop.f32.mrb[0].mxu0
      %v482 = vadd.f32 0.0, %v481
      %v483 = vpop.f32.mrb[0].mxu0
      %v484 = vpop.f32.mrb[0].mxu0
      %v485 = vadd.f32 0.0, %v484
      %v486 = vpop.f32.mrb[0].mxu0
      %487 = vmatprep.mubr.bf16.mxu0 0
      %488 = vmatmul.mubr.bf16.gmra.mrb[0].mxu0 %v379
      %v489 = vpop.f32.mrb[0].mxu0
      %v490 = vadd.f32 0.0, %v489
      %v491 = vpop.f32.mrb[0].mxu0
      %v492 = vpop.f32.mrb[0].mxu0
      %v493 = vadd.f32 0.0, %v492
      %v494 = vpop.f32.mrb[0].mxu0
      %495 = vmatprep.mubr.bf16.mxu0 0
      %496 = vmatmul.mubr.bf16.gmra.mrb[0].mxu0 %v382
      %v497 = vpop.f32.mrb[0].mxu0
      %v498 = vadd.f32 0.0, %v497
      %v499 = vpop.f32.mrb[0].mxu0
      %v500 = vpop.f32.mrb[0].mxu0
      %v501 = vadd.f32 0.0, %v500
      %v502 = vpop.f32.mrb[0].mxu0
      %503 = vmatprep.mubr.bf16.mxu0 0
      %504 = vmatmul.mubr.bf16.gmra.mrb[0].mxu0 %v385
      %v505 = vpop.f32.mrb[0].mxu0
      %v506 = vadd.f32 0.0, %v505
      %v507 = vpop.f32.mrb[0].mxu0
      %v508 = vpop.f32.mrb[0].mxu0
      %v509 = vadd.f32 0.0, %v508
      %v510 = vpop.f32.mrb[0].mxu0
      %511 = vmatprep.mubr.bf16.mxu0 0
      %512 = vmatmul.mubr.bf16.gmra.mrb[0].mxu0 %v388
      %v513 = vpop.f32.mrb[0].mxu0
      %v514 = vadd.f32 0.0, %v513
      %v515 = vpop.f32.mrb[0].mxu0
      %v516 = vpop.f32.mrb[0].mxu0
      %v517 = vadd.f32 0.0, %v516
      %v518 = vpop.f32.mrb[0].mxu0
      %519 = vmatprep.mubr.bf16.mxu0 0
      %520 = vmatmul.mubr.bf16.gmra.mrb[0].mxu0 %v391
      %v521 = vpop.f32.mrb[0].mxu0
      %v522 = vadd.f32 0.0, %v521
      %v523 = vpop.f32.mrb[0].mxu0
      %v524 = vpop.f32.mrb[0].mxu0
      %v525 = vadd.f32 0.0, %v524
      %v526 = vpop.f32.mrb[0].mxu0
      %527 = vmatprep.mubr.bf16.mxu0 0
      %528 = vmatmul.mubr.bf16.gmra.mrb[0].mxu0 %v394
      %v529 = vpop.f32.mrb[0].mxu0
      %v530 = vadd.f32 0.0, %v529
      %v531 = vpop.f32.mrb[0].mxu0
      %v532 = vpop.f32.mrb[0].mxu0
      %v533 = vadd.f32 0.0, %v532
      %v534 = vpop.f32.mrb[0].mxu0
      %535 = vmatprep.mubr.bf16.mxu0 0
      %536 = vmatmul.mubr.bf16.gmra.mrb[0].mxu0 %v397
      %v537 = vpop.f32.mrb[0].mxu0
      %v538 = vadd.f32 0.0, %v537
      %v539 = vpop.f32.mrb[0].mxu0
      %v540 = vpop.f32.mrb[0].mxu0
      %v541 = vadd.f32 0.0, %v540
      %v542 = vpop.f32.mrb[0].mxu0
      %543 = vmatprep.mubr.bf16.mxu0 0
      %544 = vmatmul.mubr.bf16.gmra.mrb[0].mxu0 %v400
      %v545 = vpop.f32.mrb[0].mxu0
      %v546 = vadd.f32 0.0, %v545
      %v547 = vpop.f32.mrb[0].mxu0
      %v548 = vpop.f32.mrb[0].mxu0
      %v549 = vadd.f32 0.0, %v548
      %v550 = vpop.f32.mrb[0].mxu0
      %551 = vmatprep.mubr.bf16.mxu0 0
      %552 = vmatmul.mubr.bf16.gmra.mrb[0].mxu0 %v403
      %v553 = vpop.f32.mrb[0].mxu0
      %v554 = vadd.f32 0.0, %v553
      %v555 = vpop.f32.mrb[0].mxu0
      %v556 = vpop.f32.mrb[0].mxu0
      %v557 = vadd.f32 0.0, %v556
      %v558 = vpop.f32.mrb[0].mxu0
      %559 = vmatprep.mubr.bf16.mxu0 0
      %560 = vmatmul.mubr.bf16.gmra.mrb[0].mxu0 %v406
      %v561 = vpop.f32.mrb[0].mxu0
      %v562 = vadd.f32 0.0, %v561
      %v563 = vpop.f32.mrb[0].mxu0
      %v564 = vpop.f32.mrb[0].mxu0
      %v565 = vadd.f32 0.0, %v564
      %v566 = vpop.f32.mrb[0].mxu0
      %567 = vmatprep.mubr.bf16.mxu0 0
      %568 = vmatmul.mubr.bf16.gmra.mrb[0].mxu0 %v409
      %v569 = vpop.f32.mrb[0].mxu0
      %v570 = vadd.f32 0.0, %v569
      %v571 = vpop.f32.mrb[0].mxu0
      %v572 = vpop.f32.mrb[0].mxu0
      %v573 = vadd.f32 0.0, %v572
      %v574 = vpop.f32.mrb[0].mxu0
      %575 = vdwg.mxu0
      %v576 = vld [vmem:[%s2] sm:$0x1]
      %v578 = vlaneseq
      %v579 = vshrl.u32 %v578, 7
      %v580 = vsub.s32 0, %v579
      %v581 = vrot.slane %v576, %v580
      %v583 = vmul.f32 %v450, %v581
      %v584 = vmul.f32 %v453, %v581
      %v585 = vmul.f32 %v458, %v581
      %v586 = vmul.f32 %v461, %v581
      %v587 = vmul.f32 %v466, %v581
      %v588 = vmul.f32 %v469, %v581
      %v589 = vmul.f32 %v474, %v581
      %v590 = vmul.f32 %v477, %v581
      %v591 = vmul.f32 %v482, %v581
      %v592 = vmul.f32 %v485, %v581
      %v593 = vmul.f32 %v490, %v581
      %v594 = vmul.f32 %v493, %v581
      %v595 = vmul.f32 %v498, %v581
      %v596 = vmul.f32 %v501, %v581
      %v597 = vmul.f32 %v506, %v581
      %v598 = vmul.f32 %v509, %v581
      %v599 = vmul.f32 %v514, %v581
      %v600 = vmul.f32 %v517, %v581
      %v601 = vmul.f32 %v522, %v581
      %v602 = vmul.f32 %v525, %v581
      %v603 = vmul.f32 %v530, %v581
      %v604 = vmul.f32 %v533, %v581
      %v605 = vmul.f32 %v538, %v581
      %v606 = vmul.f32 %v541, %v581
      %v607 = vmul.f32 %v546, %v581
      %v608 = vmul.f32 %v549, %v581
      %v609 = vmul.f32 %v554, %v581
      %v610 = vmul.f32 %v557, %v581
      %v611 = vmul.f32 %v562, %v581
      %v612 = vmul.f32 %v565, %v581
      %v613 = vmul.f32 %v570, %v581
      %v614 = vmul.f32 %v573, %v581
      %v615 = vld [vmem:[%s3] sm:$0x1]
      %v617 = vlaneseq
      %v618 = vshrl.u32 %v617, 7
      %v619 = vsub.s32 0, %v618
      %v620 = vrot.slane %v615, %v619
      %v622 = vadd.f32 %v583, %v620
      %v623 = vadd.f32 %v584, %v620
      %v624 = vadd.f32 %v585, %v620
      %v625 = vadd.f32 %v586, %v620
      %v626 = vadd.f32 %v587, %v620
      %v627 = vadd.f32 %v588, %v620
      %v628 = vadd.f32 %v589, %v620
      %v629 = vadd.f32 %v590, %v620
      %v630 = vadd.f32 %v591, %v620
      %v631 = vadd.f32 %v592, %v620
      %v632 = vadd.f32 %v593, %v620
      %v633 = vadd.f32 %v594, %v620
      %v634 = vadd.f32 %v595, %v620
      %v635 = vadd.f32 %v596, %v620
      %v636 = vadd.f32 %v597, %v620
      %v637 = vadd.f32 %v598, %v620
      %v638 = vadd.f32 %v599, %v620
      %v639 = vadd.f32 %v600, %v620
      %v640 = vadd.f32 %v601, %v620
      %v641 = vadd.f32 %v602, %v620
      %v642 = vadd.f32 %v603, %v620
      %v643 = vadd.f32 %v604, %v620
      %v644 = vadd.f32 %v605, %v620
      %v645 = vadd.f32 %v606, %v620
      %v646 = vadd.f32 %v607, %v620
      %v647 = vadd.f32 %v608, %v620
      %v648 = vadd.f32 %v609, %v620
      %v649 = vadd.f32 %v610, %v620
      %v650 = vadd.f32 %v611, %v620
      %v651 = vadd.f32 %v612, %v620
      %v652 = vadd.f32 %v613, %v620
      %v653 = vadd.f32 %v614, %v620
      %v654 = vmax.f32 %v622, 0.0
      %v655 = vmax.f32 %v623, 0.0
      %v656 = vmax.f32 %v624, 0.0
      %v657 = vmax.f32 %v625, 0.0
      %v658 = vmax.f32 %v626, 0.0
      %v659 = vmax.f32 %v627, 0.0
      %v660 = vmax.f32 %v628, 0.0
      %v661 = vmax.f32 %v629, 0.0
      %v662 = vmax.f32 %v630, 0.0
      %v663 = vmax.f32 %v631, 0.0
      %v664 = vmax.f32 %v632, 0.0
      %v665 = vmax.f32 %v633, 0.0
      %v666 = vmax.f32 %v634, 0.0
      %v667 = vmax.f32 %v635, 0.0
      %v668 = vmax.f32 %v636, 0.0
      %v669 = vmax.f32 %v637, 0.0
      %v670 = vmax.f32 %v638, 0.0
      %v671 = vmax.f32 %v639, 0.0
      %v672 = vmax.f32 %v640, 0.0
      %v673 = vmax.f32 %v641, 0.0
      %v674 = vmax.f32 %v642, 0.0
      %v675 = vmax.f32 %v643, 0.0
      %v676 = vmax.f32 %v644, 0.0
      %v677 = vmax.f32 %v645, 0.0
      %v678 = vmax.f32 %v646, 0.0
      %v679 = vmax.f32 %v647, 0.0
      %v680 = vmax.f32 %v648, 0.0
      %v681 = vmax.f32 %v649, 0.0
      %v682 = vmax.f32 %v650, 0.0
      %v683 = vmax.f32 %v651, 0.0
      %v684 = vmax.f32 %v652, 0.0
      %v685 = vmax.f32 %v653, 0.0
      %vm686 = vcmask 64512
      %687 = vst.msk [vmem:[%s235] sm:$0xff] %vm686, %v654
      %688 = vst.msk [vmem:[%s235 + $0x8] sm:$0xff] %vm686, %v655
      %689 = vst.msk [vmem:[%s235 + $0x10] sm:$0xff] %vm686, %v656
      %690 = vst.msk [vmem:[%s235 + $0x18] sm:$0xff] %vm686, %v657
      %691 = vst.msk [vmem:[%s235 + $0x20] sm:$0xff] %vm686, %v658
      %692 = vst.msk [vmem:[%s235 + $0x28] sm:$0xff] %vm686, %v659
      %693 = vst.msk [vmem:[%s235 + $0x30] sm:$0xff] %vm686, %v660
      %694 = vst.msk [vmem:[%s235 + $0x38] sm:$0xff] %vm686, %v661
      %695 = vst.msk [vmem:[%s235 + $0x40] sm:$0xff] %vm686, %v662
      %696 = vst.msk [vmem:[%s235 + $0x48] sm:$0xff] %vm686, %v663
      %697 = vst.msk [vmem:[%s235 + $0x50] sm:$0xff] %vm686, %v664
      %698 = vst.msk [vmem:[%s235 + $0x58] sm:$0xff] %vm686, %v665
      %699 = vst.msk [vmem:[%s235 + $0x60] sm:$0xff] %vm686, %v666
      %700 = vst.msk [vmem:[%s235 + $0x68] sm:$0xff] %vm686, %v667
      %701 = vst.msk [vmem:[%s235 + $0x70] sm:$0xff] %vm686, %v668
      %702 = vst.msk [vmem:[%s235 + $0x78] sm:$0xff] %vm686, %v669
      %703 = vst.msk [vmem:[%s235 + $0x80] sm:$0xff] %vm686, %v670
      %704 = vst.msk [vmem:[%s235 + $0x88] sm:$0xff] %vm686, %v671
      %705 = vst.msk [vmem:[%s235 + $0x90] sm:$0xff] %vm686, %v672
      %706 = vst.msk [vmem:[%s235 + $0x98] sm:$0xff] %vm686, %v673
      %707 = vst.msk [vmem:[%s235 + $0xa0] sm:$0xff] %vm686, %v674
      %708 = vst.msk [vmem:[%s235 + $0xa8] sm:$0xff] %vm686, %v675
      %709 = vst.msk [vmem:[%s235 + $0xb0] sm:$0xff] %vm686, %v676
      %710 = vst.msk [vmem:[%s235 + $0xb8] sm:$0xff] %vm686, %v677
      %711 = vst.msk [vmem:[%s235 + $0xc0] sm:$0xff] %vm686, %v678
      %712 = vst.msk [vmem:[%s235 + $0xc8] sm:$0xff] %vm686, %v679
      %713 = vst.msk [vmem:[%s235 + $0xd0] sm:$0xff] %vm686, %v680
      %714 = vst.msk [vmem:[%s235 + $0xd8] sm:$0xff] %vm686, %v681
      %715 = vst.msk [vmem:[%s235 + $0xe0] sm:$0xff] %vm686, %v682
      %716 = vst.msk [vmem:[%s235 + $0xe8] sm:$0xff] %vm686, %v683
      %717 = vst.msk [vmem:[%s235 + $0xf0] sm:$0xff] %vm686, %v684
      %718 = vst.msk [vmem:[%s235 + $0xf8] sm:$0xff] %vm686, %v685
      %s719 = smul.u32 32, %s20
      %p720 = scmp.lt.s32.totalorder %s19, 1
      %s721 = scalar_select %p720, %s19, 1
      %p722 = scmp.lt.s32.totalorder %s719, 31
      %s723 = scalar_select %p722, %s719, 31
      %s724 = smul.addr %s721, 32
      %s725 = sadd.s32 %s723, %s724
      %s726 = smul.addr %s725, 8
      %s727 = scalar_lea.vmem %s4, %s726
      // Predicated region
      $region37: #{dual_stream_unet.30} parent=35 // pred_check
        %p728 = pneg %p138
      $region38: #{dual_stream_unet.30} parent=35 // pred_check_branch
        %730 = sbr.rel (%p728) target = $region40
      $region39: #{dual_stream_unet.30} parent=35 // pred_region
        %s731 = smul.u32 32, %s20
      $region40: #{dual_stream_unet.30} parent=35 // pred_fallthru
        _
    $region36: #{dual_stream_unet.30} parent=5 // pred_fallthru
      _
    %p732 = scmp.le.s32.totalorder 2, %s10
    // Predicated region
    $region41: #{dual_stream_unet.30} parent=5 // pred_check
      %p733 = pneg %p732
    $region42: #{dual_stream_unet.30} parent=5 // pred_check_branch
      %735 = sbr.rel (%p733) target = $region44
    $region43: #{dual_stream_unet.30} parent=5 // pred_region
      %s736 = ssub.s32 %s10, 2
      // Predicated region
      $region45: #{dual_stream_unet.30} parent=43 // pred_check
        %p737 = pneg %p144
      $region46: #{dual_stream_unet.30} parent=43 // pred_check_branch
        %739 = sbr.rel (%p737) target = $region48
      $region47: #{dual_stream_unet.30} parent=43 // pred_region
        %s740 = smul.u32 32, %s22
        %p741 = scmp.lt.s32.totalorder %s21, 1
        %s742 = scalar_select %p741, %s21, 1
        %p743 = scmp.lt.s32.totalorder %s740, 31
        %s744 = scalar_select %p743, %s740, 31
        %s745 = smul.addr %s742, 32
        %s746 = sadd.s32 %s744, %s745
        %s747 = smul.addr %s746, 8
        %s748 = scalar_lea.vmem %s4, %s747
      $region48: #{dual_stream_unet.30} parent=43 // pred_fallthru
        _
    $region44: #{dual_stream_unet.30} parent=5 // pred_fallthru
      _
  $region6: #{dual_stream_unet.30} parent=0 // loop_footer
    %s14 = sadd.s32 1, %s10
  $region7: #{dual_stream_unet.30} parent=0 // loop_footer_branch
    %9 = sbr.rel target = $region3
  $region8: #{dual_stream_unet.30} parent=0 // loop_exit
    _

</llo_original>
